<compile_context>
chip_gen: v6e
topology: v6e:2x2x1
jax: 0.10.0
libtpu: 0.0.40
codegen_flags: <defaults>
</compile_context>

<pallas_src>
import functools
import math

import numpy as np
import jax
import jax.numpy as jnp
from jax.experimental import pallas as pl
from jax.experimental.pallas import tpu as pltpu


# ---------------------------------------------------------------------------
# Kernel
# ---------------------------------------------------------------------------
def _mha_kernel(*refs, heads, fuse_add):
    """Fused multi-head self-attention over a block of independent sequences.

    refs (fuse_add=False): x, wqkv, bqkv, wo, bo, out
    refs (fuse_add=True) : x, wqkv, bqkv, wo, bo, add, out

    x    : (Bb, S, C)        bf16 block of sequences, channels last (lane dim)
    wqkv : (3, heads, C, hd) bf16 per-head q/k/v projection slabs (x @ W layout)
    bqkv : (3, heads, 1, hd) f32
    wo   : (heads, hd, C)    bf16 per-head output-projection slabs
    bo   : (1, C)            f32
    add  : (Bb, S, C)        f32 summed into the output (fused v_ctx + h_ctx)
    out  : (Bb, S, C)        f32
    """
    if fuse_add:
        x_ref, wqkv_ref, bqkv_ref, wo_ref, bo_ref, add_ref, o_ref = refs
    else:
        x_ref, wqkv_ref, bqkv_ref, wo_ref, bo_ref, o_ref = refs
        add_ref = None

    Bb, S, C = x_ref.shape
    hd = C // heads
    scale = 1.0 / math.sqrt(hd)

    # One big (Bb*S, C) activation matrix; bf16 operands for the MXU.
    x2 = x_ref[...].reshape(Bb * S, C).astype(jnp.bfloat16)

    acc = jnp.zeros((Bb * S, C), jnp.float32)
    for h in range(heads):                      # static unroll; heads is small
        # Per-head projections: K = C (full contraction); each head's output
        # lands at lane offset 0 -> no per-head lane slicing anywhere.
        q = jnp.dot(x2, wqkv_ref[0, h], preferred_element_type=jnp.float32)
        k = jnp.dot(x2, wqkv_ref[1, h], preferred_element_type=jnp.float32)
        v = jnp.dot(x2, wqkv_ref[2, h], preferred_element_type=jnp.float32)
        q = (q + bqkv_ref[0, h]) * scale
        k = k + bqkv_ref[1, h]
        v = v + bqkv_ref[2, h]
        q3 = q.reshape(Bb, S, hd).astype(jnp.bfloat16)
        k3 = k.reshape(Bb, S, hd).astype(jnp.bfloat16)
        v3 = v.reshape(Bb, S, hd).astype(jnp.bfloat16)

        # Scores + softmax kept in f32 (bf16 only on MXU operands).
        s = jnp.einsum('bqd,bkd->bqk', q3, k3, preferred_element_type=jnp.float32)
        s = s - jnp.max(s, axis=-1, keepdims=True)
        p = jnp.exp(s)
        p = p * pl.reciprocal(jnp.sum(p, axis=-1, keepdims=True), approx=True)

        ctx = jnp.einsum('bqk,bkd->bqd', p.astype(jnp.bfloat16), v3,
                         preferred_element_type=jnp.float32)
        # Head merge == accumulated per-head output projection (no concat).
        acc = acc + jnp.dot(ctx.reshape(Bb * S, hd).astype(jnp.bfloat16),
                            wo_ref[h], preferred_element_type=jnp.float32)

    y = acc + bo_ref[...]
    if fuse_add:
        y = y + add_ref[...].reshape(Bb * S, C).astype(jnp.float32)
    o_ref[...] = y.reshape(Bb, S, C).astype(o_ref.dtype)


# ---------------------------------------------------------------------------
# Block sizing / VMEM budgeting
# ---------------------------------------------------------------------------
def _vmem_capacity_bytes():
    """Physical VMEM per core; conservative 64 MiB (v7x) fallback."""
    try:
        info = pltpu.get_tpu_info()
        cap = int(getattr(info, "vmem_capacity_bytes", 0) or 0)
        if cap > 0:
            return cap
    except Exception:
        pass
    return 64 * 1024 * 1024


def _pick_block_rows(B, S, C, heads, fuse_add, budget_bytes):
    """Largest divisor of B whose VMEM estimate fits the budget, keeping >= 4
    grid steps (>= 2 pipelined iterations per TensorCore on v7x megacore)."""
    hd = C // heads

    def est(bb):
        rows = bb * S
        b = rows * C * 2 * 2                      # x block (bf16), double-buffered
        b += rows * C * 4 * 2                     # out block (f32), double-buffered
        if fuse_add:
            b += rows * C * 4 * 2                 # fused-add block (f32)
        b += rows * C * 2                         # x2 bf16 copy
        b += rows * hd * (4 + 2) * 3              # q/k/v of the live head (f32+bf16)
        b += bb * S * S * 4 * 3                   # scores/exp/probs of the live head
        b += rows * C * 4                         # output-projection accumulator
        return b

    min_steps = min(B, 4)
    best = 1
    for d in range(1, B + 1):
        if B % d or (B // d) < min_steps:
            continue
        if est(d) <= budget_bytes:
            best = max(best, d)
    return best


# ---------------------------------------------------------------------------
# pallas_call wrapper
# ---------------------------------------------------------------------------
def mha_pallas(x, wqkv, bqkv, wo, bo, *, heads, add_to=None):
    """Batched multi-head self-attention. x: (B, S, C) -> (B, S, C) f32.

    If `add_to` is given (same shape as the output) it is summed into the
    result inside the kernel (fuses FactorAttention's v_ctx + h_ctx add).
    """
    B, S, C = x.shape
    assert C % heads == 0
    fuse_add = add_to is not None

    cap = _vmem_capacity_bytes()
    vmem_limit = min(int(cap * 0.75), 100 * 1024 * 1024)
    weight_bytes = 2 * (wqkv.size * wqkv.dtype.itemsize
                        + bqkv.size * bqkv.dtype.itemsize
                        + wo.size * wo.dtype.itemsize
                        + bo.size * bo.dtype.itemsize)
    budget = max(vmem_limit // 2 - weight_bytes, 1 << 20)
    Bb = _pick_block_rows(B, S, C, heads, fuse_add, budget)

    seq_spec = pl.BlockSpec((Bb, S, C), lambda i: (i, 0, 0))

    def const_spec(shape):
        return pl.BlockSpec(shape, lambda i: (0,) * len(shape))

    in_specs = [seq_spec, const_spec(wqkv.shape), const_spec(bqkv.shape),
                const_spec(wo.shape), const_spec(bo.shape)]
    args = [x, wqkv, bqkv, wo, bo]
    if fuse_add:
        in_specs.append(seq_spec)
        args.append(add_to)

    kernel = functools.partial(_mha_kernel, heads=heads, fuse_add=fuse_add)
    return pl.pallas_call(
        kernel,
        out_shape=jax.ShapeDtypeStruct((B, S, C), jnp.float32),
        grid=(B // Bb,),
        in_specs=in_specs,
        out_specs=seq_spec,
        compiler_params=pltpu.CompilerParams(
            dimension_semantics=("parallel",),
            vmem_limit_bytes=vmem_limit),
    )(*args)


def factor_attention(images, v_params, h_params, *, heads):
    """Pallas forward. images: (N, C, H, W) f32 -> (N, C, H, W) f32."""
    N, C, H, W = images.shape
    x = jnp.transpose(images, (0, 2, 3, 1)).astype(jnp.bfloat16)   # (N, H, W, C)

    # v_attention: vmapped over H, attends along W for each (n, h).
    v_ctx = mha_pallas(x.reshape(N * H, W, C), *v_params, heads=heads)
    v_ctx = v_ctx.reshape(N, H, W, C)                               # f32

    # h_attention: vmapped over W, attends along H for each (n, w).
    # The v_ctx + h_ctx sum is fused into this kernel (one less HBM pass).
    xh = jnp.transpose(x, (0, 2, 1, 3)).reshape(N * W, H, C)
    vh = jnp.transpose(v_ctx, (0, 2, 1, 3)).reshape(N * W, H, C)
    ctx = mha_pallas(xh, *h_params, heads=heads, add_to=vh)         # (N*W, H, C)

    return jnp.transpose(ctx.reshape(N, W, H, C), (0, 3, 2, 1))     # back to NCHW


# ---------------------------------------------------------------------------
# Pure-JAX reference matching PyTorch nn.MultiheadAttention semantics.
# ---------------------------------------------------------------------------
def mha_ref(x, wqkv, bqkv, wout, bout, heads):
    B, S, C = x.shape
    hd = C // heads
    qkv = x @ wqkv + bqkv                                           # (B, S, 3C)
    q, k, v = qkv[..., :C], qkv[..., C:2 * C], qkv[..., 2 * C:]
    q = q.reshape(B, S, heads, hd).transpose(0, 2, 1, 3)
    k = k.reshape(B, S, heads, hd).transpose(0, 2, 1, 3)
    v = v.reshape(B, S, heads, hd).transpose(0, 2, 1, 3)
    s = jnp.einsum('bhqd,bhkd->bhqk', q, k) / math.sqrt(hd)
    p = jax.nn.softmax(s, axis=-1)
    ctx = jnp.einsum('bhqk,bhkd->bhqd', p, v)
    ctx = ctx.transpose(0, 2, 1, 3).reshape(B, S, C)
    return ctx @ wout + bout


def factor_attention_ref(images, v_params, h_params, *, heads):
    N, C, H, W = images.shape
    x = jnp.transpose(images, (0, 2, 3, 1))
    xv = x.reshape(N * H, W, C)
    v_ctx = mha_ref(xv, *v_params, heads).reshape(N, H, W, C)
    xh = jnp.transpose(x, (0, 2, 1, 3)).reshape(N * W, H, C)
    h_ctx = mha_ref(xh, *h_params, heads).reshape(N, W, H, C).transpose(0, 2, 1, 3)
    return jnp.transpose(v_ctx + h_ctx, (0, 3, 1, 2))


if __name__ == "__main__":
    batch = 2
    hidden_size = 32
    heads = 4
    H = W = 16

    key = jax.random.PRNGKey(0)
    ks = jax.random.split(key, 9)

    def make_mha_params(k1, k2, k3, k4, C, heads):
        # PyTorch-convention nn.MultiheadAttention parameters ...
        in_proj_weight = 0.1 * jax.random.normal(k1, (3 * C, C), jnp.float32)
        in_proj_bias = 0.1 * jax.random.normal(k2, (3 * C,), jnp.float32)
        out_proj_weight = 0.1 * jax.random.normal(k3, (C, C), jnp.float32)
        out_proj_bias = 0.1 * jax.random.normal(k4, (C,), jnp.float32)

        # ... x @ W layout for the pure-JAX reference ...
        ref_params = (in_proj_weight.T, in_proj_bias[None, :],
                      out_proj_weight.T, out_proj_bias[None, :])

        # ... per-head weight slabs (bf16) for the Pallas kernel.
        hd = C // heads
        wqkv = (in_proj_weight.reshape(3, C, C)       # (3, C_out, C_in)
                .transpose(0, 2, 1)                   # (3, C_in, C_out)
                .reshape(3, C, heads, hd)
                .transpose(0, 2, 1, 3))               # (3, heads, C_in, hd)
        bqkv = in_proj_bias.reshape(3, heads, 1, hd)
        wo = out_proj_weight.T.reshape(heads, hd, C)  # rows = ctx channel h*hd+d
        bo = out_proj_bias[None, :]
        kern_params = (wqkv.astype(jnp.bfloat16), bqkv,
                       wo.astype(jnp.bfloat16), bo)
        return ref_params, kern_params

    v_ref_p, v_kern_p = make_mha_params(ks[0], ks[1], ks[2], ks[3], hidden_size, heads)
    h_ref_p, h_kern_p = make_mha_params(ks[4], ks[5], ks[6], ks[7], hidden_size, heads)
    x = jax.random.normal(ks[8], (batch, hidden_size, H, W), jnp.float32)

    out = jax.block_until_ready(factor_attention(x, v_kern_p, h_kern_p, heads=heads))
    ref = jax.block_until_ready(factor_attention_ref(x, v_ref_p, h_ref_p, heads=heads))

    assert out.shape == (batch, hidden_size, H, W), out.shape
    # bf16 MXU operands + approx-reciprocal softmax => slightly looser tolerance.
    np.testing.assert_allclose(np.asarray(out), np.asarray(ref), rtol=2e-2, atol=2e-2)

    print("KERNEL_OK")
</pallas_src>

<mosaic_0001>
module attributes {stable_mosaic.version = 11 : i64} {
  func.func @_mha_kernel(%arg0: i32, %arg1: memref<8x16x32xbf16, #tpu.memory_space<vmem>>, %arg2: memref<3x4x32x8xbf16, #tpu.memory_space<vmem>>, %arg3: memref<3x4x1x8xf32, #tpu.memory_space<vmem>>, %arg4: memref<4x8x32xbf16, #tpu.memory_space<vmem>>, %arg5: memref<1x32xf32, #tpu.memory_space<vmem>>, %arg6: memref<8x16x32xf32, #tpu.memory_space<vmem>>) attributes {dimension_semantics = [#tpu.dimension_semantics<parallel>], iteration_bounds = array<i64: 4>, scalar_prefetch = 0 : i64, scratch_operands = 0 : i64, tpu.core_type = #tpu.core_type<tc>, window_params = [{transform_indices = @transform_0, window_bounds = array<i64: 8, 16, 32>}, {pipeline_mode = #tpu.pipeline_mode<synchronous>, transform_indices = @transform_1, window_bounds = array<i64: 3, 4, 32, 8>}, {pipeline_mode = #tpu.pipeline_mode<synchronous>, transform_indices = @transform_2, window_bounds = array<i64: 3, 4, 1, 8>}, {pipeline_mode = #tpu.pipeline_mode<synchronous>, transform_indices = @transform_3, window_bounds = array<i64: 4, 8, 32>}, {pipeline_mode = #tpu.pipeline_mode<synchronous>, transform_indices = @transform_4, window_bounds = array<i64: 1, 32>}, {transform_indices = @transform_5, window_bounds = array<i64: 8, 16, 32>}]} {
    %c0 = arith.constant 0 : index
    %c0_0 = arith.constant 0 : index
    %c0_1 = arith.constant 0 : index
    %0 = vector.load %arg1[%c0, %c0_0, %c0_1] : memref<8x16x32xbf16, #tpu.memory_space<vmem>>, vector<8x16x32xbf16>
    %1 = vector.shape_cast %0 : vector<8x16x32xbf16> to vector<128x32xbf16>
    %cst = arith.constant 0.000000e+00 : f32
    %2 = vector.broadcast %cst : f32 to vector<128x32xf32>
    %c0_2 = arith.constant 0 : index
    %c0_3 = arith.constant 0 : index
    %c0_4 = arith.constant 0 : index
    %c0_5 = arith.constant 0 : index
    %3 = vector.load %arg2[%c0_2, %c0_3, %c0_4, %c0_5] : memref<3x4x32x8xbf16, #tpu.memory_space<vmem>>, vector<1x1x32x8xbf16>
    %4 = vector.shape_cast %3 : vector<1x1x32x8xbf16> to vector<32x8xbf16>
    %cst_6 = arith.constant dense<0.000000e+00> : vector<128x8xf32>
    %5 = tpu.matmul %1, %4, %cst_6 {dimension_numbers = #tpu.dot_dimension_numbers<[1], [0], [0], [1], [0, 0, 1, 1], [], []>} : vector<128x32xbf16>, vector<32x8xbf16>, vector<128x8xf32> -> vector<128x8xf32>
    %c1 = arith.constant 1 : index
    %c0_7 = arith.constant 0 : index
    %c0_8 = arith.constant 0 : index
    %c0_9 = arith.constant 0 : index
    %6 = vector.load %arg2[%c1, %c0_7, %c0_8, %c0_9] : memref<3x4x32x8xbf16, #tpu.memory_space<vmem>>, vector<1x1x32x8xbf16>
    %7 = vector.shape_cast %6 : vector<1x1x32x8xbf16> to vector<32x8xbf16>
    %cst_10 = arith.constant dense<0.000000e+00> : vector<128x8xf32>
    %8 = tpu.matmul %1, %7, %cst_10 {dimension_numbers = #tpu.dot_dimension_numbers<[1], [0], [0], [1], [0, 0, 1, 1], [], []>} : vector<128x32xbf16>, vector<32x8xbf16>, vector<128x8xf32> -> vector<128x8xf32>
    %c2 = arith.constant 2 : index
    %c0_11 = arith.constant 0 : index
    %c0_12 = arith.constant 0 : index
    %c0_13 = arith.constant 0 : index
    %9 = vector.load %arg2[%c2, %c0_11, %c0_12, %c0_13] : memref<3x4x32x8xbf16, #tpu.memory_space<vmem>>, vector<1x1x32x8xbf16>
    %10 = vector.shape_cast %9 : vector<1x1x32x8xbf16> to vector<32x8xbf16>
    %cst_14 = arith.constant dense<0.000000e+00> : vector<128x8xf32>
    %11 = tpu.matmul %1, %10, %cst_14 {dimension_numbers = #tpu.dot_dimension_numbers<[1], [0], [0], [1], [0, 0, 1, 1], [], []>} : vector<128x32xbf16>, vector<32x8xbf16>, vector<128x8xf32> -> vector<128x8xf32>
    %c0_15 = arith.constant 0 : index
    %c0_16 = arith.constant 0 : index
    %c0_17 = arith.constant 0 : index
    %c0_18 = arith.constant 0 : index
    %12 = vector.load %arg3[%c0_15, %c0_16, %c0_17, %c0_18] : memref<3x4x1x8xf32, #tpu.memory_space<vmem>>, vector<1x1x1x8xf32>
    %13 = vector.shape_cast %12 : vector<1x1x1x8xf32> to vector<1x8xf32>
    %14 = vector.broadcast %13 : vector<1x8xf32> to vector<128x8xf32>
    %15 = arith.addf %5, %14 : vector<128x8xf32>
    %cst_19 = arith.constant 0.353553385 : f32
    %16 = vector.broadcast %cst_19 : f32 to vector<128x8xf32>
    %17 = arith.mulf %15, %16 : vector<128x8xf32>
    %c1_20 = arith.constant 1 : index
    %c0_21 = arith.constant 0 : index
    %c0_22 = arith.constant 0 : index
    %c0_23 = arith.constant 0 : index
    %18 = vector.load %arg3[%c1_20, %c0_21, %c0_22, %c0_23] : memref<3x4x1x8xf32, #tpu.memory_space<vmem>>, vector<1x1x1x8xf32>
    %19 = vector.shape_cast %18 : vector<1x1x1x8xf32> to vector<1x8xf32>
    %20 = vector.broadcast %19 : vector<1x8xf32> to vector<128x8xf32>
    %21 = arith.addf %8, %20 : vector<128x8xf32>
    %c2_24 = arith.constant 2 : index
    %c0_25 = arith.constant 0 : index
    %c0_26 = arith.constant 0 : index
    %c0_27 = arith.constant 0 : index
    %22 = vector.load %arg3[%c2_24, %c0_25, %c0_26, %c0_27] : memref<3x4x1x8xf32, #tpu.memory_space<vmem>>, vector<1x1x1x8xf32>
    %23 = vector.shape_cast %22 : vector<1x1x1x8xf32> to vector<1x8xf32>
    %24 = vector.broadcast %23 : vector<1x8xf32> to vector<128x8xf32>
    %25 = arith.addf %11, %24 : vector<128x8xf32>
    %26 = vector.shape_cast %17 : vector<128x8xf32> to vector<8x16x8xf32>
    %27 = arith.truncf %26 : vector<8x16x8xf32> to vector<8x16x8xbf16>
    %28 = vector.shape_cast %21 : vector<128x8xf32> to vector<8x16x8xf32>
    %29 = arith.truncf %28 : vector<8x16x8xf32> to vector<8x16x8xbf16>
    %30 = vector.shape_cast %25 : vector<128x8xf32> to vector<8x16x8xf32>
    %31 = arith.truncf %30 : vector<8x16x8xf32> to vector<8x16x8xbf16>
    "tpu.trace_start"() <{level = 10 : i32, message = "bqd,bkd->bqk"}> : () -> ()
    %cst_28 = arith.constant dense<0.000000e+00> : vector<8x16x16xf32>
    %32 = tpu.matmul %27, %29, %cst_28 {dimension_numbers = #tpu.dot_dimension_numbers<[2], [2], [1], [1], [0, 0, 0, 1, 1, 1], [0], [0]>} : vector<8x16x8xbf16>, vector<8x16x8xbf16>, vector<8x16x16xf32> -> vector<8x16x16xf32>
    "tpu.trace_stop"() : () -> ()
    %cst_29 = arith.constant dense<0xFF800000> : vector<8x16xf32>
    %33 = vector.multi_reduction <maximumf>, %32, %cst_29 [2] : vector<8x16x16xf32> to vector<8x16xf32>
    %34 = vector.shape_cast %33 : vector<8x16xf32> to vector<8x16x1xf32>
    %35 = vector.broadcast %34 : vector<8x16x1xf32> to vector<8x16x16xf32>
    %36 = arith.subf %32, %35 : vector<8x16x16xf32>
    %37 = math.exp %36 : vector<8x16x16xf32>
    %cst_30 = arith.constant dense<0.000000e+00> : vector<8x16xf32>
    %38 = vector.multi_reduction <add>, %37, %cst_30 [2] : vector<8x16x16xf32> to vector<8x16xf32>
    %39 = vector.shape_cast %38 : vector<8x16xf32> to vector<8x16x1xf32>
    %40 = tpu.reciprocal %39 {approx = true} : vector<8x16x1xf32> -> vector<8x16x1xf32>
    %41 = vector.broadcast %40 : vector<8x16x1xf32> to vector<8x16x16xf32>
    %42 = arith.mulf %37, %41 : vector<8x16x16xf32>
    %43 = arith.truncf %42 : vector<8x16x16xf32> to vector<8x16x16xbf16>
    "tpu.trace_start"() <{level = 10 : i32, message = "bqk,bkd->bqd"}> : () -> ()
    %cst_31 = arith.constant dense<0.000000e+00> : vector<8x16x8xf32>
    %44 = tpu.matmul %43, %31, %cst_31 {dimension_numbers = #tpu.dot_dimension_numbers<[2], [1], [1], [2], [0, 0, 0, 1, 1, 2], [0], [0]>} : vector<8x16x16xbf16>, vector<8x16x8xbf16>, vector<8x16x8xf32> -> vector<8x16x8xf32>
    "tpu.trace_stop"() : () -> ()
    %45 = vector.shape_cast %44 : vector<8x16x8xf32> to vector<128x8xf32>
    %46 = arith.truncf %45 : vector<128x8xf32> to vector<128x8xbf16>
    %c0_32 = arith.constant 0 : index
    %c0_33 = arith.constant 0 : index
    %c0_34 = arith.constant 0 : index
    %47 = vector.load %arg4[%c0_32, %c0_33, %c0_34] : memref<4x8x32xbf16, #tpu.memory_space<vmem>>, vector<1x8x32xbf16>
    %48 = vector.shape_cast %47 : vector<1x8x32xbf16> to vector<8x32xbf16>
    %cst_35 = arith.constant dense<0.000000e+00> : vector<128x32xf32>
    %49 = tpu.matmul %46, %48, %cst_35 {dimension_numbers = #tpu.dot_dimension_numbers<[1], [0], [0], [1], [0, 0, 1, 1], [], []>} : vector<128x8xbf16>, vector<8x32xbf16>, vector<128x32xf32> -> vector<128x32xf32>
    %50 = arith.addf %2, %49 : vector<128x32xf32>
    %c0_36 = arith.constant 0 : index
    %c1_37 = arith.constant 1 : index
    %c0_38 = arith.constant 0 : index
    %c0_39 = arith.constant 0 : index
    %51 = vector.load %arg2[%c0_36, %c1_37, %c0_38, %c0_39] : memref<3x4x32x8xbf16, #tpu.memory_space<vmem>>, vector<1x1x32x8xbf16>
    %52 = vector.shape_cast %51 : vector<1x1x32x8xbf16> to vector<32x8xbf16>
    %cst_40 = arith.constant dense<0.000000e+00> : vector<128x8xf32>
    %53 = tpu.matmul %1, %52, %cst_40 {dimension_numbers = #tpu.dot_dimension_numbers<[1], [0], [0], [1], [0, 0, 1, 1], [], []>} : vector<128x32xbf16>, vector<32x8xbf16>, vector<128x8xf32> -> vector<128x8xf32>
    %c1_41 = arith.constant 1 : index
    %c1_42 = arith.constant 1 : index
    %c0_43 = arith.constant 0 : index
    %c0_44 = arith.constant 0 : index
    %54 = vector.load %arg2[%c1_41, %c1_42, %c0_43, %c0_44] : memref<3x4x32x8xbf16, #tpu.memory_space<vmem>>, vector<1x1x32x8xbf16>
    %55 = vector.shape_cast %54 : vector<1x1x32x8xbf16> to vector<32x8xbf16>
    %cst_45 = arith.constant dense<0.000000e+00> : vector<128x8xf32>
    %56 = tpu.matmul %1, %55, %cst_45 {dimension_numbers = #tpu.dot_dimension_numbers<[1], [0], [0], [1], [0, 0, 1, 1], [], []>} : vector<128x32xbf16>, vector<32x8xbf16>, vector<128x8xf32> -> vector<128x8xf32>
    %c2_46 = arith.constant 2 : index
    %c1_47 = arith.constant 1 : index
    %c0_48 = arith.constant 0 : index
    %c0_49 = arith.constant 0 : index
    %57 = vector.load %arg2[%c2_46, %c1_47, %c0_48, %c0_49] : memref<3x4x32x8xbf16, #tpu.memory_space<vmem>>, vector<1x1x32x8xbf16>
    %58 = vector.shape_cast %57 : vector<1x1x32x8xbf16> to vector<32x8xbf16>
    %cst_50 = arith.constant dense<0.000000e+00> : vector<128x8xf32>
    %59 = tpu.matmul %1, %58, %cst_50 {dimension_numbers = #tpu.dot_dimension_numbers<[1], [0], [0], [1], [0, 0, 1, 1], [], []>} : vector<128x32xbf16>, vector<32x8xbf16>, vector<128x8xf32> -> vector<128x8xf32>
    %c0_51 = arith.constant 0 : index
    %c1_52 = arith.constant 1 : index
    %c0_53 = arith.constant 0 : index
    %c0_54 = arith.constant 0 : index
    %60 = vector.load %arg3[%c0_51, %c1_52, %c0_53, %c0_54] : memref<3x4x1x8xf32, #tpu.memory_space<vmem>>, vector<1x1x1x8xf32>
    %61 = vector.shape_cast %60 : vector<1x1x1x8xf32> to vector<1x8xf32>
    %62 = vector.broadcast %61 : vector<1x8xf32> to vector<128x8xf32>
    %63 = arith.addf %53, %62 : vector<128x8xf32>
    %cst_55 = arith.constant 0.353553385 : f32
    %64 = vector.broadcast %cst_55 : f32 to vector<128x8xf32>
    %65 = arith.mulf %63, %64 : vector<128x8xf32>
    %c1_56 = arith.constant 1 : index
    %c1_57 = arith.constant 1 : index
    %c0_58 = arith.constant 0 : index
    %c0_59 = arith.constant 0 : index
    %66 = vector.load %arg3[%c1_56, %c1_57, %c0_58, %c0_59] : memref<3x4x1x8xf32, #tpu.memory_space<vmem>>, vector<1x1x1x8xf32>
    %67 = vector.shape_cast %66 : vector<1x1x1x8xf32> to vector<1x8xf32>
    %68 = vector.broadcast %67 : vector<1x8xf32> to vector<128x8xf32>
    %69 = arith.addf %56, %68 : vector<128x8xf32>
    %c2_60 = arith.constant 2 : index
    %c1_61 = arith.constant 1 : index
    %c0_62 = arith.constant 0 : index
    %c0_63 = arith.constant 0 : index
    %70 = vector.load %arg3[%c2_60, %c1_61, %c0_62, %c0_63] : memref<3x4x1x8xf32, #tpu.memory_space<vmem>>, vector<1x1x1x8xf32>
    %71 = vector.shape_cast %70 : vector<1x1x1x8xf32> to vector<1x8xf32>
    %72 = vector.broadcast %71 : vector<1x8xf32> to vector<128x8xf32>
    %73 = arith.addf %59, %72 : vector<128x8xf32>
    %74 = vector.shape_cast %65 : vector<128x8xf32> to vector<8x16x8xf32>
    %75 = arith.truncf %74 : vector<8x16x8xf32> to vector<8x16x8xbf16>
    %76 = vector.shape_cast %69 : vector<128x8xf32> to vector<8x16x8xf32>
    %77 = arith.truncf %76 : vector<8x16x8xf32> to vector<8x16x8xbf16>
    %78 = vector.shape_cast %73 : vector<128x8xf32> to vector<8x16x8xf32>
    %79 = arith.truncf %78 : vector<8x16x8xf32> to vector<8x16x8xbf16>
    "tpu.trace_start"() <{level = 10 : i32, message = "bqd,bkd->bqk"}> : () -> ()
    %cst_64 = arith.constant dense<0.000000e+00> : vector<8x16x16xf32>
    %80 = tpu.matmul %75, %77, %cst_64 {dimension_numbers = #tpu.dot_dimension_numbers<[2], [2], [1], [1], [0, 0, 0, 1, 1, 1], [0], [0]>} : vector<8x16x8xbf16>, vector<8x16x8xbf16>, vector<8x16x16xf32> -> vector<8x16x16xf32>
    "tpu.trace_stop"() : () -> ()
    %cst_65 = arith.constant dense<0xFF800000> : vector<8x16xf32>
    %81 = vector.multi_reduction <maximumf>, %80, %cst_65 [2] : vector<8x16x16xf32> to vector<8x16xf32>
    %82 = vector.shape_cast %81 : vector<8x16xf32> to vector<8x16x1xf32>
    %83 = vector.broadcast %82 : vector<8x16x1xf32> to vector<8x16x16xf32>
    %84 = arith.subf %80, %83 : vector<8x16x16xf32>
    %85 = math.exp %84 : vector<8x16x16xf32>
    %cst_66 = arith.constant dense<0.000000e+00> : vector<8x16xf32>
    %86 = vector.multi_reduction <add>, %85, %cst_66 [2] : vector<8x16x16xf32> to vector<8x16xf32>
    %87 = vector.shape_cast %86 : vector<8x16xf32> to vector<8x16x1xf32>
    %88 = tpu.reciprocal %87 {approx = true} : vector<8x16x1xf32> -> vector<8x16x1xf32>
    %89 = vector.broadcast %88 : vector<8x16x1xf32> to vector<8x16x16xf32>
    %90 = arith.mulf %85, %89 : vector<8x16x16xf32>
    %91 = arith.truncf %90 : vector<8x16x16xf32> to vector<8x16x16xbf16>
    "tpu.trace_start"() <{level = 10 : i32, message = "bqk,bkd->bqd"}> : () -> ()
    %cst_67 = arith.constant dense<0.000000e+00> : vector<8x16x8xf32>
    %92 = tpu.matmul %91, %79, %cst_67 {dimension_numbers = #tpu.dot_dimension_numbers<[2], [1], [1], [2], [0, 0, 0, 1, 1, 2], [0], [0]>} : vector<8x16x16xbf16>, vector<8x16x8xbf16>, vector<8x16x8xf32> -> vector<8x16x8xf32>
    "tpu.trace_stop"() : () -> ()
    %93 = vector.shape_cast %92 : vector<8x16x8xf32> to vector<128x8xf32>
    %94 = arith.truncf %93 : vector<128x8xf32> to vector<128x8xbf16>
    %c1_68 = arith.constant 1 : index
    %c0_69 = arith.constant 0 : index
    %c0_70 = arith.constant 0 : index
    %95 = vector.load %arg4[%c1_68, %c0_69, %c0_70] : memref<4x8x32xbf16, #tpu.memory_space<vmem>>, vector<1x8x32xbf16>
    %96 = vector.shape_cast %95 : vector<1x8x32xbf16> to vector<8x32xbf16>
    %cst_71 = arith.constant dense<0.000000e+00> : vector<128x32xf32>
    %97 = tpu.matmul %94, %96, %cst_71 {dimension_numbers = #tpu.dot_dimension_numbers<[1], [0], [0], [1], [0, 0, 1, 1], [], []>} : vector<128x8xbf16>, vector<8x32xbf16>, vector<128x32xf32> -> vector<128x32xf32>
    %98 = arith.addf %50, %97 : vector<128x32xf32>
    %c0_72 = arith.constant 0 : index
    %c2_73 = arith.constant 2 : index
    %c0_74 = arith.constant 0 : index
    %c0_75 = arith.constant 0 : index
    %99 = vector.load %arg2[%c0_72, %c2_73, %c0_74, %c0_75] : memref<3x4x32x8xbf16, #tpu.memory_space<vmem>>, vector<1x1x32x8xbf16>
    %100 = vector.shape_cast %99 : vector<1x1x32x8xbf16> to vector<32x8xbf16>
    %cst_76 = arith.constant dense<0.000000e+00> : vector<128x8xf32>
    %101 = tpu.matmul %1, %100, %cst_76 {dimension_numbers = #tpu.dot_dimension_numbers<[1], [0], [0], [1], [0, 0, 1, 1], [], []>} : vector<128x32xbf16>, vector<32x8xbf16>, vector<128x8xf32> -> vector<128x8xf32>
    %c1_77 = arith.constant 1 : index
    %c2_78 = arith.constant 2 : index
    %c0_79 = arith.constant 0 : index
    %c0_80 = arith.constant 0 : index
    %102 = vector.load %arg2[%c1_77, %c2_78, %c0_79, %c0_80] : memref<3x4x32x8xbf16, #tpu.memory_space<vmem>>, vector<1x1x32x8xbf16>
    %103 = vector.shape_cast %102 : vector<1x1x32x8xbf16> to vector<32x8xbf16>
    %cst_81 = arith.constant dense<0.000000e+00> : vector<128x8xf32>
    %104 = tpu.matmul %1, %103, %cst_81 {dimension_numbers = #tpu.dot_dimension_numbers<[1], [0], [0], [1], [0, 0, 1, 1], [], []>} : vector<128x32xbf16>, vector<32x8xbf16>, vector<128x8xf32> -> vector<128x8xf32>
    %c2_82 = arith.constant 2 : index
    %c2_83 = arith.constant 2 : index
    %c0_84 = arith.constant 0 : index
    %c0_85 = arith.constant 0 : index
    %105 = vector.load %arg2[%c2_82, %c2_83, %c0_84, %c0_85] : memref<3x4x32x8xbf16, #tpu.memory_space<vmem>>, vector<1x1x32x8xbf16>
    %106 = vector.shape_cast %105 : vector<1x1x32x8xbf16> to vector<32x8xbf16>
    %cst_86 = arith.constant dense<0.000000e+00> : vector<128x8xf32>
    %107 = tpu.matmul %1, %106, %cst_86 {dimension_numbers = #tpu.dot_dimension_numbers<[1], [0], [0], [1], [0, 0, 1, 1], [], []>} : vector<128x32xbf16>, vector<32x8xbf16>, vector<128x8xf32> -> vector<128x8xf32>
    %c0_87 = arith.constant 0 : index
    %c2_88 = arith.constant 2 : index
    %c0_89 = arith.constant 0 : index
    %c0_90 = arith.constant 0 : index
    %108 = vector.load %arg3[%c0_87, %c2_88, %c0_89, %c0_90] : memref<3x4x1x8xf32, #tpu.memory_space<vmem>>, vector<1x1x1x8xf32>
    %109 = vector.shape_cast %108 : vector<1x1x1x8xf32> to vector<1x8xf32>
    %110 = vector.broadcast %109 : vector<1x8xf32> to vector<128x8xf32>
    %111 = arith.addf %101, %110 : vector<128x8xf32>
    %cst_91 = arith.constant 0.353553385 : f32
    %112 = vector.broadcast %cst_91 : f32 to vector<128x8xf32>
    %113 = arith.mulf %111, %112 : vector<128x8xf32>
    %c1_92 = arith.constant 1 : index
    %c2_93 = arith.constant 2 : index
    %c0_94 = arith.constant 0 : index
    %c0_95 = arith.constant 0 : index
    %114 = vector.load %arg3[%c1_92, %c2_93, %c0_94, %c0_95] : memref<3x4x1x8xf32, #tpu.memory_space<vmem>>, vector<1x1x1x8xf32>
    %115 = vector.shape_cast %114 : vector<1x1x1x8xf32> to vector<1x8xf32>
    %116 = vector.broadcast %115 : vector<1x8xf32> to vector<128x8xf32>
    %117 = arith.addf %104, %116 : vector<128x8xf32>
    %c2_96 = arith.constant 2 : index
    %c2_97 = arith.constant 2 : index
    %c0_98 = arith.constant 0 : index
    %c0_99 = arith.constant 0 : index
    %118 = vector.load %arg3[%c2_96, %c2_97, %c0_98, %c0_99] : memref<3x4x1x8xf32, #tpu.memory_space<vmem>>, vector<1x1x1x8xf32>
    %119 = vector.shape_cast %118 : vector<1x1x1x8xf32> to vector<1x8xf32>
    %120 = vector.broadcast %119 : vector<1x8xf32> to vector<128x8xf32>
    %121 = arith.addf %107, %120 : vector<128x8xf32>
    %122 = vector.shape_cast %113 : vector<128x8xf32> to vector<8x16x8xf32>
    %123 = arith.truncf %122 : vector<8x16x8xf32> to vector<8x16x8xbf16>
    %124 = vector.shape_cast %117 : vector<128x8xf32> to vector<8x16x8xf32>
    %125 = arith.truncf %124 : vector<8x16x8xf32> to vector<8x16x8xbf16>
    %126 = vector.shape_cast %121 : vector<128x8xf32> to vector<8x16x8xf32>
    %127 = arith.truncf %126 : vector<8x16x8xf32> to vector<8x16x8xbf16>
    "tpu.trace_start"() <{level = 10 : i32, message = "bqd,bkd->bqk"}> : () -> ()
    %cst_100 = arith.constant dense<0.000000e+00> : vector<8x16x16xf32>
    %128 = tpu.matmul %123, %125, %cst_100 {dimension_numbers = #tpu.dot_dimension_numbers<[2], [2], [1], [1], [0, 0, 0, 1, 1, 1], [0], [0]>} : vector<8x16x8xbf16>, vector<8x16x8xbf16>, vector<8x16x16xf32> -> vector<8x16x16xf32>
    "tpu.trace_stop"() : () -> ()
    %cst_101 = arith.constant dense<0xFF800000> : vector<8x16xf32>
    %129 = vector.multi_reduction <maximumf>, %128, %cst_101 [2] : vector<8x16x16xf32> to vector<8x16xf32>
    %130 = vector.shape_cast %129 : vector<8x16xf32> to vector<8x16x1xf32>
    %131 = vector.broadcast %130 : vector<8x16x1xf32> to vector<8x16x16xf32>
    %132 = arith.subf %128, %131 : vector<8x16x16xf32>
    %133 = math.exp %132 : vector<8x16x16xf32>
    %cst_102 = arith.constant dense<0.000000e+00> : vector<8x16xf32>
    %134 = vector.multi_reduction <add>, %133, %cst_102 [2] : vector<8x16x16xf32> to vector<8x16xf32>
    %135 = vector.shape_cast %134 : vector<8x16xf32> to vector<8x16x1xf32>
    %136 = tpu.reciprocal %135 {approx = true} : vector<8x16x1xf32> -> vector<8x16x1xf32>
    %137 = vector.broadcast %136 : vector<8x16x1xf32> to vector<8x16x16xf32>
    %138 = arith.mulf %133, %137 : vector<8x16x16xf32>
    %139 = arith.truncf %138 : vector<8x16x16xf32> to vector<8x16x16xbf16>
    "tpu.trace_start"() <{level = 10 : i32, message = "bqk,bkd->bqd"}> : () -> ()
    %cst_103 = arith.constant dense<0.000000e+00> : vector<8x16x8xf32>
    %140 = tpu.matmul %139, %127, %cst_103 {dimension_numbers = #tpu.dot_dimension_numbers<[2], [1], [1], [2], [0, 0, 0, 1, 1, 2], [0], [0]>} : vector<8x16x16xbf16>, vector<8x16x8xbf16>, vector<8x16x8xf32> -> vector<8x16x8xf32>
    "tpu.trace_stop"() : () -> ()
    %141 = vector.shape_cast %140 : vector<8x16x8xf32> to vector<128x8xf32>
    %142 = arith.truncf %141 : vector<128x8xf32> to vector<128x8xbf16>
    %c2_104 = arith.constant 2 : index
    %c0_105 = arith.constant 0 : index
    %c0_106 = arith.constant 0 : index
    %143 = vector.load %arg4[%c2_104, %c0_105, %c0_106] : memref<4x8x32xbf16, #tpu.memory_space<vmem>>, vector<1x8x32xbf16>
    %144 = vector.shape_cast %143 : vector<1x8x32xbf16> to vector<8x32xbf16>
    %cst_107 = arith.constant dense<0.000000e+00> : vector<128x32xf32>
    %145 = tpu.matmul %142, %144, %cst_107 {dimension_numbers = #tpu.dot_dimension_numbers<[1], [0], [0], [1], [0, 0, 1, 1], [], []>} : vector<128x8xbf16>, vector<8x32xbf16>, vector<128x32xf32> -> vector<128x32xf32>
    %146 = arith.addf %98, %145 : vector<128x32xf32>
    %c0_108 = arith.constant 0 : index
    %c3 = arith.constant 3 : index
    %c0_109 = arith.constant 0 : index
    %c0_110 = arith.constant 0 : index
    %147 = vector.load %arg2[%c0_108, %c3, %c0_109, %c0_110] : memref<3x4x32x8xbf16, #tpu.memory_space<vmem>>, vector<1x1x32x8xbf16>
    %148 = vector.shape_cast %147 : vector<1x1x32x8xbf16> to vector<32x8xbf16>
    %cst_111 = arith.constant dense<0.000000e+00> : vector<128x8xf32>
    %149 = tpu.matmul %1, %148, %cst_111 {dimension_numbers = #tpu.dot_dimension_numbers<[1], [0], [0], [1], [0, 0, 1, 1], [], []>} : vector<128x32xbf16>, vector<32x8xbf16>, vector<128x8xf32> -> vector<128x8xf32>
    %c1_112 = arith.constant 1 : index
    %c3_113 = arith.constant 3 : index
    %c0_114 = arith.constant 0 : index
    %c0_115 = arith.constant 0 : index
    %150 = vector.load %arg2[%c1_112, %c3_113, %c0_114, %c0_115] : memref<3x4x32x8xbf16, #tpu.memory_space<vmem>>, vector<1x1x32x8xbf16>
    %151 = vector.shape_cast %150 : vector<1x1x32x8xbf16> to vector<32x8xbf16>
    %cst_116 = arith.constant dense<0.000000e+00> : vector<128x8xf32>
    %152 = tpu.matmul %1, %151, %cst_116 {dimension_numbers = #tpu.dot_dimension_numbers<[1], [0], [0], [1], [0, 0, 1, 1], [], []>} : vector<128x32xbf16>, vector<32x8xbf16>, vector<128x8xf32> -> vector<128x8xf32>
    %c2_117 = arith.constant 2 : index
    %c3_118 = arith.constant 3 : index
    %c0_119 = arith.constant 0 : index
    %c0_120 = arith.constant 0 : index
    %153 = vector.load %arg2[%c2_117, %c3_118, %c0_119, %c0_120] : memref<3x4x32x8xbf16, #tpu.memory_space<vmem>>, vector<1x1x32x8xbf16>
    %154 = vector.shape_cast %153 : vector<1x1x32x8xbf16> to vector<32x8xbf16>
    %cst_121 = arith.constant dense<0.000000e+00> : vector<128x8xf32>
    %155 = tpu.matmul %1, %154, %cst_121 {dimension_numbers = #tpu.dot_dimension_numbers<[1], [0], [0], [1], [0, 0, 1, 1], [], []>} : vector<128x32xbf16>, vector<32x8xbf16>, vector<128x8xf32> -> vector<128x8xf32>
    %c0_122 = arith.constant 0 : index
    %c3_123 = arith.constant 3 : index
    %c0_124 = arith.constant 0 : index
    %c0_125 = arith.constant 0 : index
    %156 = vector.load %arg3[%c0_122, %c3_123, %c0_124, %c0_125] : memref<3x4x1x8xf32, #tpu.memory_space<vmem>>, vector<1x1x1x8xf32>
    %157 = vector.shape_cast %156 : vector<1x1x1x8xf32> to vector<1x8xf32>
    %158 = vector.broadcast %157 : vector<1x8xf32> to vector<128x8xf32>
    %159 = arith.addf %149, %158 : vector<128x8xf32>
    %cst_126 = arith.constant 0.353553385 : f32
    %160 = vector.broadcast %cst_126 : f32 to vector<128x8xf32>
    %161 = arith.mulf %159, %160 : vector<128x8xf32>
    %c1_127 = arith.constant 1 : index
    %c3_128 = arith.constant 3 : index
    %c0_129 = arith.constant 0 : index
    %c0_130 = arith.constant 0 : index
    %162 = vector.load %arg3[%c1_127, %c3_128, %c0_129, %c0_130] : memref<3x4x1x8xf32, #tpu.memory_space<vmem>>, vector<1x1x1x8xf32>
    %163 = vector.shape_cast %162 : vector<1x1x1x8xf32> to vector<1x8xf32>
    %164 = vector.broadcast %163 : vector<1x8xf32> to vector<128x8xf32>
    %165 = arith.addf %152, %164 : vector<128x8xf32>
    %c2_131 = arith.constant 2 : index
    %c3_132 = arith.constant 3 : index
    %c0_133 = arith.constant 0 : index
    %c0_134 = arith.constant 0 : index
    %166 = vector.load %arg3[%c2_131, %c3_132, %c0_133, %c0_134] : memref<3x4x1x8xf32, #tpu.memory_space<vmem>>, vector<1x1x1x8xf32>
    %167 = vector.shape_cast %166 : vector<1x1x1x8xf32> to vector<1x8xf32>
    %168 = vector.broadcast %167 : vector<1x8xf32> to vector<128x8xf32>
    %169 = arith.addf %155, %168 : vector<128x8xf32>
    %170 = vector.shape_cast %161 : vector<128x8xf32> to vector<8x16x8xf32>
    %171 = arith.truncf %170 : vector<8x16x8xf32> to vector<8x16x8xbf16>
    %172 = vector.shape_cast %165 : vector<128x8xf32> to vector<8x16x8xf32>
    %173 = arith.truncf %172 : vector<8x16x8xf32> to vector<8x16x8xbf16>
    %174 = vector.shape_cast %169 : vector<128x8xf32> to vector<8x16x8xf32>
    %175 = arith.truncf %174 : vector<8x16x8xf32> to vector<8x16x8xbf16>
    "tpu.trace_start"() <{level = 10 : i32, message = "bqd,bkd->bqk"}> : () -> ()
    %cst_135 = arith.constant dense<0.000000e+00> : vector<8x16x16xf32>
    %176 = tpu.matmul %171, %173, %cst_135 {dimension_numbers = #tpu.dot_dimension_numbers<[2], [2], [1], [1], [0, 0, 0, 1, 1, 1], [0], [0]>} : vector<8x16x8xbf16>, vector<8x16x8xbf16>, vector<8x16x16xf32> -> vector<8x16x16xf32>
    "tpu.trace_stop"() : () -> ()
    %cst_136 = arith.constant dense<0xFF800000> : vector<8x16xf32>
    %177 = vector.multi_reduction <maximumf>, %176, %cst_136 [2] : vector<8x16x16xf32> to vector<8x16xf32>
    %178 = vector.shape_cast %177 : vector<8x16xf32> to vector<8x16x1xf32>
    %179 = vector.broadcast %178 : vector<8x16x1xf32> to vector<8x16x16xf32>
    %180 = arith.subf %176, %179 : vector<8x16x16xf32>
    %181 = math.exp %180 : vector<8x16x16xf32>
    %cst_137 = arith.constant dense<0.000000e+00> : vector<8x16xf32>
    %182 = vector.multi_reduction <add>, %181, %cst_137 [2] : vector<8x16x16xf32> to vector<8x16xf32>
    %183 = vector.shape_cast %182 : vector<8x16xf32> to vector<8x16x1xf32>
    %184 = tpu.reciprocal %183 {approx = true} : vector<8x16x1xf32> -> vector<8x16x1xf32>
    %185 = vector.broadcast %184 : vector<8x16x1xf32> to vector<8x16x16xf32>
    %186 = arith.mulf %181, %185 : vector<8x16x16xf32>
    %187 = arith.truncf %186 : vector<8x16x16xf32> to vector<8x16x16xbf16>
    "tpu.trace_start"() <{level = 10 : i32, message = "bqk,bkd->bqd"}> : () -> ()
    %cst_138 = arith.constant dense<0.000000e+00> : vector<8x16x8xf32>
    %188 = tpu.matmul %187, %175, %cst_138 {dimension_numbers = #tpu.dot_dimension_numbers<[2], [1], [1], [2], [0, 0, 0, 1, 1, 2], [0], [0]>} : vector<8x16x16xbf16>, vector<8x16x8xbf16>, vector<8x16x8xf32> -> vector<8x16x8xf32>
    "tpu.trace_stop"() : () -> ()
    %189 = vector.shape_cast %188 : vector<8x16x8xf32> to vector<128x8xf32>
    %190 = arith.truncf %189 : vector<128x8xf32> to vector<128x8xbf16>
    %c3_139 = arith.constant 3 : index
    %c0_140 = arith.constant 0 : index
    %c0_141 = arith.constant 0 : index
    %191 = vector.load %arg4[%c3_139, %c0_140, %c0_141] : memref<4x8x32xbf16, #tpu.memory_space<vmem>>, vector<1x8x32xbf16>
    %192 = vector.shape_cast %191 : vector<1x8x32xbf16> to vector<8x32xbf16>
    %cst_142 = arith.constant dense<0.000000e+00> : vector<128x32xf32>
    %193 = tpu.matmul %190, %192, %cst_142 {dimension_numbers = #tpu.dot_dimension_numbers<[1], [0], [0], [1], [0, 0, 1, 1], [], []>} : vector<128x8xbf16>, vector<8x32xbf16>, vector<128x32xf32> -> vector<128x32xf32>
    %194 = arith.addf %146, %193 : vector<128x32xf32>
    %c0_143 = arith.constant 0 : index
    %c0_144 = arith.constant 0 : index
    %195 = vector.load %arg5[%c0_143, %c0_144] : memref<1x32xf32, #tpu.memory_space<vmem>>, vector<1x32xf32>
    %196 = vector.broadcast %195 : vector<1x32xf32> to vector<128x32xf32>
    %197 = arith.addf %194, %196 : vector<128x32xf32>
    %198 = vector.shape_cast %197 : vector<128x32xf32> to vector<8x16x32xf32>
    %c0_145 = arith.constant 0 : index
    %c0_146 = arith.constant 0 : index
    %c0_147 = arith.constant 0 : index
    %199 = vector.load %arg6[%c0_145, %c0_146, %c0_147] : memref<8x16x32xf32, #tpu.memory_space<vmem>>, vector<8x16x32xf32>
    tpu.vector_store %arg6[%c0_145, %c0_146, %c0_147], %198 {strides = array<i32>} : memref<8x16x32xf32, #tpu.memory_space<vmem>>, vector<8x16x32xf32>,
    return
  }
  func.func @transform_0(%arg0: i32) -> (i32, i32, i32) {
    %c0_i32 = arith.constant 0 : i32
    %c0_i32_0 = arith.constant 0 : i32
    %c0_i32_1 = arith.constant 0 : i32
    return %arg0, %c0_i32, %c0_i32_0 : i32, i32, i32
  }
  func.func @transform_1(%arg0: i32) -> (i32, i32, i32, i32) {
    %c0_i32 = arith.constant 0 : i32
    %c0_i32_0 = arith.constant 0 : i32
    %c0_i32_1 = arith.constant 0 : i32
    %c0_i32_2 = arith.constant 0 : i32
    %c0_i32_3 = arith.constant 0 : i32
    return %c0_i32, %c0_i32_0, %c0_i32_1, %c0_i32_2 : i32, i32, i32, i32
  }
  func.func @transform_2(%arg0: i32) -> (i32, i32, i32, i32) {
    %c0_i32 = arith.constant 0 : i32
    %c0_i32_0 = arith.constant 0 : i32
    %c0_i32_1 = arith.constant 0 : i32
    %c0_i32_2 = arith.constant 0 : i32
    %c0_i32_3 = arith.constant 0 : i32
    return %c0_i32, %c0_i32_0, %c0_i32_1, %c0_i32_2 : i32, i32, i32, i32
  }
  func.func @transform_3(%arg0: i32) -> (i32, i32, i32) {
    %c0_i32 = arith.constant 0 : i32
    %c0_i32_0 = arith.constant 0 : i32
    %c0_i32_1 = arith.constant 0 : i32
    %c0_i32_2 = arith.constant 0 : i32
    return %c0_i32, %c0_i32_0, %c0_i32_1 : i32, i32, i32
  }
  func.func @transform_4(%arg0: i32) -> (i32, i32) {
    %c0_i32 = arith.constant 0 : i32
    %c0_i32_0 = arith.constant 0 : i32
    %c0_i32_1 = arith.constant 0 : i32
    return %c0_i32, %c0_i32_0 : i32, i32
  }
  func.func @transform_5(%arg0: i32) -> (i32, i32, i32) {
    %c0_i32 = arith.constant 0 : i32
    %c0_i32_0 = arith.constant 0 : i32
    %c0_i32_1 = arith.constant 0 : i32
    return %arg0, %c0_i32, %c0_i32_0 : i32, i32, i32
  }
}

</mosaic_0001>

<llo_original>
// kernel: tpu_custom_call.1
$region0: #{tpu_custom_call.1}
  #allocation0 [shape = 'u32[]', space=smem, size = 0x4, offset = 0x4, fixed_abs, tag = 'smem constant byte address 0x4 - core index']
  #allocation1 [shape = 'u32[144,128]{1,0:T(1,128)}', space=vmem, size = 0x12000, scoped, tag = 'internal scratch']
  %s0 = inlined_call_operand.hbm [shape: bf16[32,16,32], index: 0, kind: input, shape index: {}]
  %s1 = inlined_call_operand.vmem [shape: bf16[3,4,32,8], index: 1, kind: input, shape index: {}]
  %s2 = inlined_call_operand.vmem [shape: f32[3,4,1,8], index: 2, kind: input, shape index: {}]
  %s3 = inlined_call_operand.vmem [shape: bf16[4,8,32], index: 3, kind: input, shape index: {}]
  %s4 = inlined_call_operand.vmem [shape: f32[1,32], index: 4, kind: input, shape index: {}]
  %s5 = inlined_call_operand.hbm [shape: f32[32,16,32], index: 5, kind: output, shape index: {}]
  %s6 = sld [smem:[#allocation0]]
  $region57: #{tpu_custom_call.1} parent=0
    _
  %s8 = ssub.s32 1, %s6
  %s9 = scalar_select 0, %s8, %s6
  $region1: #{tpu_custom_call.1} parent=0
    #allocation2 [shape = 'u8[65536]{0}', space=vmem, size = 0x10000, scoped, tag = 'input window, operand 0']
    #allocation3 [shape = 's32[2]{0}', space=sflag, size = 0x8, scoped, tag = 'scoped memory for tpu_custom_call.1']
    #allocation4 [shape = 's32[2]{0}', space=sflag, size = 0x8, scoped, tag = 'scoped memory for tpu_custom_call.1']
    #allocation5 [shape = 'u8[131072]{0}', space=vmem, size = 0x20000, scoped, tag = 'output window, operand 0']
    %10 = vsyncpa [#allocation3], 0
    %s11 = scalar_lea.sflag [#allocation3], 1
    %12 = vsyncpa %s11, 0
    %13 = vsyncpa [#allocation4], 0
    %s14 = scalar_lea.sflag [#allocation4], 1
    %15 = vsyncpa %s14, 0
    loop: start=0, step=1, limit=6
    $region2: #{tpu_custom_call.1} parent=1 // loop_pre_header
      _
    $region3: #{tpu_custom_call.1} parent=1 // loop_header
      %s17 = sphi 0, %s21
      %p18 = scmp.ge.s32.totalorder %s17, 6
      %s27 = sphi 0, %s29
      %s30 = sphi 0, %s27
      %s31 = sphi 0, %s30
      %s47 = sphi 0, %s31
      %s51 = sphi 0, %s51
      %s53 = sphi 0, %s51
      %s54 = sphi 0, %s53
      %s68 = sphi 0, %s54
      %s72 = sphi 0, %s72
      %s74 = sphi 0, %s72
      %s75 = sphi 0, %s74
      %s89 = sphi 0, %s75
      %s93 = sphi 0, %s93
      %s95 = sphi 0, %s93
      %s96 = sphi 0, %s95
      %s110 = sphi 0, %s96
      %s114 = sphi 0, %s114
      %s116 = sphi 0, %s114
      %s117 = sphi 0, %s116
      %s131 = sphi 0, %s117
      %s137 = sphi 0, %s139
      %s140 = sphi 0, %s137
      %s141 = sphi 0, %s140
      %s157 = sphi 0, %s141
    $region4: #{tpu_custom_call.1} parent=1 // loop_header_branch
      %20 = sbr.rel (%p18) target = $region8
    $region5: #{tpu_custom_call.1} parent=1 // loop_body
      %s22 = ssub.s32 %s17, 1
      %s23 = ssub.s32 %s17, 2
      %s24 = sadd.s32 %s17, 1
      %s25 = ssub.s32 %s17, %s24
      %p26 = scmp.eq.s32.totalorder %s25, 0
      %s28 = sadd.s32 %s27, 1
      %s29 = scalar_select %p26, %s27, %s28
      %p32 = pneg %p26
      %p33 = scmp.eq.s32.totalorder %s17, 3
      %p34 = por %p32, %p33
      %p35 = scmp.ne.s32.totalorder %s27, %s30
      %p36 = scmp.eq.s32.totalorder %s17, 0
      %p37 = por %p35, %p36
      %p38 = scmp.ne.s32.totalorder %s27, %s30
      %p39 = scmp.eq.s32.totalorder %s22, 3
      %p40 = por %p38, %p39
      %p41 = scmp.ne.s32.totalorder %s30, %s31
      %p42 = scmp.eq.s32.totalorder %s22, 0
      %p43 = por %p41, %p42
      %p44 = scmp.ne.s32.totalorder %s30, %s31
      %p45 = scmp.eq.s32.totalorder %s23, 3
      %p46 = por %p44, %p45
      %p48 = scmp.ne.s32.totalorder %s31, %s47
      %p49 = scmp.eq.s32.totalorder %s23, 0
      %p50 = por %p48, %p49
      %s52 = sadd.s32 %s51, 1
      %p55 = scmp.eq.s32.totalorder %s17, 3
      %p56 = scmp.ne.s32.totalorder %s51, %s53
      %p57 = scmp.eq.s32.totalorder %s17, 0
      %p58 = por %p56, %p57
      %p59 = scmp.ne.s32.totalorder %s51, %s53
      %p60 = scmp.eq.s32.totalorder %s22, 3
      %p61 = por %p59, %p60
      %p62 = scmp.ne.s32.totalorder %s53, %s54
      %p63 = scmp.eq.s32.totalorder %s22, 0
      %p64 = por %p62, %p63
      %p65 = scmp.ne.s32.totalorder %s53, %s54
      %p66 = scmp.eq.s32.totalorder %s23, 3
      %p67 = por %p65, %p66
      %p69 = scmp.ne.s32.totalorder %s54, %s68
      %p70 = scmp.eq.s32.totalorder %s23, 0
      %p71 = por %p69, %p70
      %s73 = sadd.s32 %s72, 1
      %p76 = scmp.eq.s32.totalorder %s17, 3
      %p77 = scmp.ne.s32.totalorder %s72, %s74
      %p78 = scmp.eq.s32.totalorder %s17, 0
      %p79 = por %p77, %p78
      %p80 = scmp.ne.s32.totalorder %s72, %s74
      %p81 = scmp.eq.s32.totalorder %s22, 3
      %p82 = por %p80, %p81
      %p83 = scmp.ne.s32.totalorder %s74, %s75
      %p84 = scmp.eq.s32.totalorder %s22, 0
      %p85 = por %p83, %p84
      %p86 = scmp.ne.s32.totalorder %s74, %s75
      %p87 = scmp.eq.s32.totalorder %s23, 3
      %p88 = por %p86, %p87
      %p90 = scmp.ne.s32.totalorder %s75, %s89
      %p91 = scmp.eq.s32.totalorder %s23, 0
      %p92 = por %p90, %p91
      %s94 = sadd.s32 %s93, 1
      %p97 = scmp.eq.s32.totalorder %s17, 3
      %p98 = scmp.ne.s32.totalorder %s93, %s95
      %p99 = scmp.eq.s32.totalorder %s17, 0
      %p100 = por %p98, %p99
      %p101 = scmp.ne.s32.totalorder %s93, %s95
      %p102 = scmp.eq.s32.totalorder %s22, 3
      %p103 = por %p101, %p102
      %p104 = scmp.ne.s32.totalorder %s95, %s96
      %p105 = scmp.eq.s32.totalorder %s22, 0
      %p106 = por %p104, %p105
      %p107 = scmp.ne.s32.totalorder %s95, %s96
      %p108 = scmp.eq.s32.totalorder %s23, 3
      %p109 = por %p107, %p108
      %p111 = scmp.ne.s32.totalorder %s96, %s110
      %p112 = scmp.eq.s32.totalorder %s23, 0
      %p113 = por %p111, %p112
      %s115 = sadd.s32 %s114, 1
      %p118 = scmp.eq.s32.totalorder %s17, 3
      %p119 = scmp.ne.s32.totalorder %s114, %s116
      %p120 = scmp.eq.s32.totalorder %s17, 0
      %p121 = por %p119, %p120
      %p122 = scmp.ne.s32.totalorder %s114, %s116
      %p123 = scmp.eq.s32.totalorder %s22, 3
      %p124 = por %p122, %p123
      %p125 = scmp.ne.s32.totalorder %s116, %s117
      %p126 = scmp.eq.s32.totalorder %s22, 0
      %p127 = por %p125, %p126
      %p128 = scmp.ne.s32.totalorder %s116, %s117
      %p129 = scmp.eq.s32.totalorder %s23, 3
      %p130 = por %p128, %p129
      %p132 = scmp.ne.s32.totalorder %s117, %s131
      %p133 = scmp.eq.s32.totalorder %s23, 0
      %p134 = por %p132, %p133
      %s135 = ssub.s32 %s17, %s24
      %p136 = scmp.eq.s32.totalorder %s135, 0
      %s138 = sadd.s32 %s137, 1
      %s139 = scalar_select %p136, %s137, %s138
      %p142 = pneg %p136
      %p143 = scmp.eq.s32.totalorder %s17, 3
      %p144 = por %p142, %p143
      %p145 = scmp.ne.s32.totalorder %s137, %s140
      %p146 = scmp.eq.s32.totalorder %s17, 0
      %p147 = por %p145, %p146
      %p148 = scmp.ne.s32.totalorder %s137, %s140
      %p149 = scmp.eq.s32.totalorder %s22, 3
      %p150 = por %p148, %p149
      %p151 = scmp.ne.s32.totalorder %s140, %s141
      %p152 = scmp.eq.s32.totalorder %s22, 0
      %p153 = por %p151, %p152
      %p154 = scmp.ne.s32.totalorder %s140, %s141
      %p155 = scmp.eq.s32.totalorder %s23, 3
      %p156 = por %p154, %p155
      %p158 = scmp.ne.s32.totalorder %s141, %s157
      %p159 = scmp.eq.s32.totalorder %s23, 0
      %p160 = por %p158, %p159
      %p161 = scmp.le.s32.totalorder 1, %s17
      %p162 = scmp.lt.s32.totalorder %s17, 5
      %p163 = pnand %p161, %p162
      %p164 = pneg %p163
      // Predicated region
      $region9: #{tpu_custom_call.1} parent=5 // pred_check
        _
      $region10: #{tpu_custom_call.1} parent=5 // pred_check_branch
        %166 = sbr.rel (%p163) target = $region12
      $region11: #{tpu_custom_call.1} parent=5 // pred_region
        %s167 = ssub.s32 %s17, 1
        // Predicated region
        $region13: #{tpu_custom_call.1} parent=11 // pred_check
          %p168 = pneg %p64
        $region14: #{tpu_custom_call.1} parent=11 // pred_check_branch
          %170 = sbr.rel (%p168) target = $region16
        $region15: #{tpu_custom_call.1} parent=11 // pred_region
          _
        $region16: #{tpu_custom_call.1} parent=11 // pred_fallthru
          _
        // Predicated region
        $region17: #{tpu_custom_call.1} parent=11 // pred_check
          %p171 = pneg %p85
        $region18: #{tpu_custom_call.1} parent=11 // pred_check_branch
          %173 = sbr.rel (%p171) target = $region20
        $region19: #{tpu_custom_call.1} parent=11 // pred_region
          _
        $region20: #{tpu_custom_call.1} parent=11 // pred_fallthru
          _
        // Predicated region
        $region21: #{tpu_custom_call.1} parent=11 // pred_check
          %p174 = pneg %p106
        $region22: #{tpu_custom_call.1} parent=11 // pred_check_branch
          %176 = sbr.rel (%p174) target = $region24
        $region23: #{tpu_custom_call.1} parent=11 // pred_region
          _
        $region24: #{tpu_custom_call.1} parent=11 // pred_fallthru
          _
        // Predicated region
        $region25: #{tpu_custom_call.1} parent=11 // pred_check
          %p177 = pneg %p127
        $region26: #{tpu_custom_call.1} parent=11 // pred_check_branch
          %179 = sbr.rel (%p177) target = $region28
        $region27: #{tpu_custom_call.1} parent=11 // pred_region
          _
        $region28: #{tpu_custom_call.1} parent=11 // pred_fallthru
          _
      $region12: #{tpu_custom_call.1} parent=5 // pred_fallthru
        _
      %p180 = scmp.lt.s32.totalorder %s17, 4
      // Predicated region
      $region29: #{tpu_custom_call.1} parent=5 // pred_check
        %p181 = pneg %p180
      $region30: #{tpu_custom_call.1} parent=5 // pred_check_branch
        %183 = sbr.rel (%p181) target = $region32
      $region31: #{tpu_custom_call.1} parent=5 // pred_region
        // Predicated region
        $region33: #{tpu_custom_call.1} parent=31 // pred_check
          %p184 = pneg %p37
        $region34: #{tpu_custom_call.1} parent=31 // pred_check_branch
          %186 = sbr.rel (%p184) target = $region36
        $region35: #{tpu_custom_call.1} parent=31 // pred_region
          %s187 = sand.u32 %s27, 1
          %s188 = scalar_lea.sflag [#allocation3], %s187
          %s189 = sand.u32 %s27, 1
          %s190 = smul.addr %s189, 64
          %s191 = scalar_lea.vmem [#allocation2], %s190
          %s192 = smul.u32 8, %s17
          %s194 = ssub.s32 1024, 1024
          %195 = vsyncadd %s188, %s194
          %s196 = smul.addr %s192, 2
          %s197 = smul.addr %s196, 64
          %s198 = scalar_lea.hbm %s0, %s197
          %s199 = sshll.u32 %s191, 4
          %s200 = int_to_ptr.vmem [resolvable:$true] %s199
          %205 = dma.hbm_to_vmem [thread:$0]  %s198, 1024, %s200, %s188, 64, 64, 4
        $region36: #{tpu_custom_call.1} parent=31 // pred_fallthru
          _
      $region32: #{tpu_custom_call.1} parent=5 // pred_fallthru
        _
      %p206 = scmp.le.s32.totalorder 1, %s17
      %p207 = scmp.lt.s32.totalorder %s17, 5
      %p208 = pnand %p206, %p207
      %p209 = pneg %p208
      // Predicated region
      $region37: #{tpu_custom_call.1} parent=5 // pred_check
        _
      $region38: #{tpu_custom_call.1} parent=5 // pred_check_branch
        %211 = sbr.rel (%p208) target = $region40
      $region39: #{tpu_custom_call.1} parent=5 // pred_region
        %s212 = ssub.s32 %s17, 1
        %s213 = sand.u32 %s30, 1
        %s214 = scalar_lea.sflag [#allocation3], %s213
        %s215 = sand.u32 %s30, 1
        %s216 = smul.addr %s215, 64
        %s217 = scalar_lea.vmem [#allocation2], %s216
        // Predicated region
        $region41: #{tpu_custom_call.1} parent=39 // pred_check
          %p218 = pneg %p43
        $region42: #{tpu_custom_call.1} parent=39 // pred_check_branch
          %220 = sbr.rel (%p218) target = $region44
        $region43: #{tpu_custom_call.1} parent=39 // pred_region
          %221 = dma.done %s214, 1024
        $region44: #{tpu_custom_call.1} parent=39 // pred_fallthru
          _
        %s222 = sand.u32 %s30, 1
        %s223 = scalar_lea.sflag [#allocation3], %s222
        %s224 = sand.u32 %s30, 1
        %s225 = smul.addr %s224, 64
        %s226 = scalar_lea.vmem [#allocation2], %s225
        %p227 = pneg %p43
        %p228 = pneg %p40
        %p229 = pneg %p64
        %p230 = pneg %p61
        %p231 = pneg %p85
        %p232 = pneg %p82
        %p233 = pneg %p106
        %p234 = pneg %p103
        %p235 = pneg %p127
        %p236 = pneg %p124
        %p237 = pneg %p153
        %p238 = pneg %p150
        %s239 = sand.u32 %s140, 1
        %s240 = scalar_lea.sflag [#allocation4], %s239
        %s241 = sand.u32 %s140, 1
        %s242 = smul.addr %s241, 128
        %s243 = scalar_lea.vmem [#allocation5], %s242
        %s244 = smul.u32 8, %s22
        %s245 = smul.u32 8, %s22
        %v247 = vld [vmem:[%s217] sm:$0xf]
        %v248 = vld [vmem:[%s217 + $0x4] sm:$0xf]
        %v249 = vld [vmem:[%s217 + $0x8] sm:$0xf]
        %v250 = vld [vmem:[%s217 + $0xc] sm:$0xf]
        %v251 = vld [vmem:[%s217 + $0x10] sm:$0xf]
        %v252 = vld [vmem:[%s217 + $0x14] sm:$0xf]
        %v253 = vld [vmem:[%s217 + $0x18] sm:$0xf]
        %v254 = vld [vmem:[%s217 + $0x1c] sm:$0xf]
        %v255 = vld [vmem:[%s217 + $0x20] sm:$0xf]
        %v256 = vld [vmem:[%s217 + $0x24] sm:$0xf]
        %v257 = vld [vmem:[%s217 + $0x28] sm:$0xf]
        %v258 = vld [vmem:[%s217 + $0x2c] sm:$0xf]
        %v259 = vld [vmem:[%s217 + $0x30] sm:$0xf]
        %v260 = vld [vmem:[%s217 + $0x34] sm:$0xf]
        %v261 = vld [vmem:[%s217 + $0x38] sm:$0xf]
        %v262 = vld [vmem:[%s217 + $0x3c] sm:$0xf]
        %v263 = vld [vmem:[%s1] sm:$0xf]
        %v264 = vld [vmem:[%s1 + $0x4] sm:$0xf]
        %v265 = vld [vmem:[%s1 + $0x8] sm:$0xf]
        %v266 = vld [vmem:[%s1 + $0xc] sm:$0xf]
        %s267 = scalar_lea.vmem %s1, 64
        %v268 = vld [vmem:[%s267] sm:$0xf]
        %v269 = vld [vmem:[%s267 + $0x4] sm:$0xf]
        %v270 = vld [vmem:[%s267 + $0x8] sm:$0xf]
        %v271 = vld [vmem:[%s267 + $0xc] sm:$0xf]
        %s272 = scalar_lea.vmem %s1, 128
        %v273 = vld [vmem:[%s272] sm:$0xf]
        %v274 = vld [vmem:[%s272 + $0x4] sm:$0xf]
        %v275 = vld [vmem:[%s272 + $0x8] sm:$0xf]
        %v276 = vld [vmem:[%s272 + $0xc] sm:$0xf]
        %v277 = vld [vmem:[%s2] sm:$0x1]
        %v279 = vlaneseq
        %v280 = vshrl.u32 %v279, 7
        %v281 = vsub.s32 0, %v280
        %v282 = vrot.slane %v277, %v281
        %v300 = vunpack.c.l.b16 %v247
        %v301 = vunpack.c.l.b16 %v248
        %v302 = vunpack.c.l.b16 %v249
        %v303 = vunpack.c.l.b16 %v250
        %v304 = vunpack.c.l.b16 %v251
        %v305 = vunpack.c.l.b16 %v252
        %v306 = vunpack.c.l.b16 %v253
        %v307 = vunpack.c.l.b16 %v254
        %v308 = vunpack.c.l.b16 %v255
        %v309 = vunpack.c.l.b16 %v256
        %v310 = vunpack.c.l.b16 %v257
        %v311 = vunpack.c.l.b16 %v258
        %v312 = vunpack.c.l.b16 %v259
        %v313 = vunpack.c.l.b16 %v260
        %v314 = vunpack.c.l.b16 %v261
        %v315 = vunpack.c.l.b16 %v262
        %v316 = vpack.c.b16 %v301, %v300
        %v317 = vpack.c.b16 %v303, %v302
        %v318 = vpack.c.b16 %v305, %v304
        %v319 = vpack.c.b16 %v307, %v306
        %v320 = vpack.c.b16 %v309, %v308
        %v321 = vpack.c.b16 %v311, %v310
        %v322 = vpack.c.b16 %v313, %v312
        %v323 = vpack.c.b16 %v315, %v314
        %v328 = vunpack.c.l.b16 %v263
        %v329 = vunpack.c.l.b16 %v264
        %v330 = vunpack.c.l.b16 %v265
        %v331 = vunpack.c.l.b16 %v266
        %v332 = vpack.c.b16 %v329, %v328
        %v333 = vpack.c.b16 %v331, %v330
        %vm336 = vcmask 261120
        %v338 = vsel %vm336, %v316, 0
        %v341 = vsel %vm336, %v317, 0
        %v344 = vsel %vm336, %v318, 0
        %v347 = vsel %vm336, %v319, 0
        %v350 = vsel %vm336, %v320, 0
        %v353 = vsel %vm336, %v321, 0
        %v356 = vsel %vm336, %v322, 0
        %v359 = vsel %vm336, %v323, 0
        %361 = vmatprep.subr.bf16.mxu0 0
        %362 = vmatpush1.bf16.msra.mxu0 0
        %363 = vmatprep.subr.bf16.mxu0 0
        %364 = vmatpush1.bf16.msra.mxu0 0
        %365 = vmatprep.subr.bf16.mxu0 0
        %366 = vmatpush1.bf16.msra.mxu0 0
        %367 = vmatprep.subr.bf16.mxu0 0
        %368 = vmatpush1.bf16.msra.mxu0 0
        %369 = vmatprep.subr.bf16.mxu0 0
        %370 = vmatpush1.bf16.msra.mxu0 0
        %371 = vmatprep.subr.bf16.mxu0 0
        %372 = vmatpush1.bf16.msra.mxu0 0
        %373 = vmatprep.subr.bf16.mxu0 0
        %374 = vmatpush1.bf16.msra.mxu0 %v333
        %375 = vmatprep.subr.bf16.mxu0 0
        %376 = vmatpush1.bf16.msra.mxu0 %v332
        %377 = vmatprep.subr.bf16.mxu0 0
        %378 = vmatpush2.bf16.msra.mxu0 0
        %379 = vmatprep.subr.bf16.mxu0 0
        %380 = vmatpush2.bf16.msra.mxu0 0
        %381 = vmatprep.subr.bf16.mxu0 0
        %382 = vmatpush2.bf16.msra.mxu0 0
        %383 = vmatprep.subr.bf16.mxu0 0
        %384 = vmatpush2.bf16.msra.mxu0 0
        %385 = vmatprep.subr.bf16.mxu0 0
        %386 = vmatpush2.bf16.msra.mxu0 0
        %387 = vmatprep.subr.bf16.mxu0 0
        %388 = vmatpush2.bf16.msra.mxu0 0
        %389 = vmatprep.subr.bf16.mxu0 0
        %390 = vmatpush2.bf16.msra.mxu0 0
        %391 = vmatprep.subr.bf16.mxu0 0
        %392 = vmatpush2.bf16.msra.mxu0 0
        %393 = vmatprep.mubr.bf16.mxu0 0
        %394 = vmatmul.mubr.bf16.gmra.mxu0 %v338
        %v395 = vpop.f32.mrf.mxu0
        %v396 = vadd.f32 %v282, %v395
        %v397 = vpop.f32.mrf.mxu0
        %v398 = vpop.f32.mrf.mxu0
        %v399 = vadd.f32 %v282, %v398
        %v400 = vpop.f32.mrf.mxu0
        %401 = vmatprep.mubr.bf16.mxu0 0
        %402 = vmatmul.mubr.bf16.gmra.mxu0 %v341
        %v403 = vpop.f32.mrf.mxu0
        %v404 = vadd.f32 %v282, %v403
        %v405 = vpop.f32.mrf.mxu0
        %v406 = vpop.f32.mrf.mxu0
        %v407 = vadd.f32 %v282, %v406
        %v408 = vpop.f32.mrf.mxu0
        %409 = vmatprep.mubr.bf16.mxu0 0
        %410 = vmatmul.mubr.bf16.gmra.mxu0 %v344
        %v411 = vpop.f32.mrf.mxu0
        %v412 = vadd.f32 %v282, %v411
        %v413 = vpop.f32.mrf.mxu0
        %v414 = vpop.f32.mrf.mxu0
        %v415 = vadd.f32 %v282, %v414
        %v416 = vpop.f32.mrf.mxu0
        %417 = vmatprep.mubr.bf16.mxu0 0
        %418 = vmatmul.mubr.bf16.gmra.mxu0 %v347
        %v419 = vpop.f32.mrf.mxu0
        %v420 = vadd.f32 %v282, %v419
        %v421 = vpop.f32.mrf.mxu0
        %v422 = vpop.f32.mrf.mxu0
        %v423 = vadd.f32 %v282, %v422
        %v424 = vpop.f32.mrf.mxu0
        %425 = vmatprep.mubr.bf16.mxu0 0
        %426 = vmatmul.mubr.bf16.gmra.mxu0 %v350
        %v427 = vpop.f32.mrf.mxu0
        %v428 = vadd.f32 %v282, %v427
        %v429 = vpop.f32.mrf.mxu0
        %v430 = vpop.f32.mrf.mxu0
        %v431 = vadd.f32 %v282, %v430
        %v432 = vpop.f32.mrf.mxu0
        %433 = vmatprep.mubr.bf16.mxu0 0
        %434 = vmatmul.mubr.bf16.gmra.mxu0 %v353
        %v435 = vpop.f32.mrf.mxu0
        %v436 = vadd.f32 %v282, %v435
        %v437 = vpop.f32.mrf.mxu0
        %v438 = vpop.f32.mrf.mxu0
        %v439 = vadd.f32 %v282, %v438
        %v440 = vpop.f32.mrf.mxu0
        %441 = vmatprep.mubr.bf16.mxu0 0
        %442 = vmatmul.mubr.bf16.gmra.mxu0 %v356
        %v443 = vpop.f32.mrf.mxu0
        %v444 = vadd.f32 %v282, %v443
        %v445 = vpop.f32.mrf.mxu0
        %v446 = vpop.f32.mrf.mxu0
        %v447 = vadd.f32 %v282, %v446
        %v448 = vpop.f32.mrf.mxu0
        %449 = vmatprep.mubr.bf16.mxu0 0
        %450 = vmatmul.mubr.bf16.gmra.mxu0 %v359
        %v451 = vpop.f32.mrf.mxu0
        %v452 = vadd.f32 %v282, %v451
        %v453 = vpop.f32.mrf.mxu0
        %v454 = vpop.f32.mrf.mxu0
        %v455 = vadd.f32 %v282, %v454
        %v456 = vpop.f32.mrf.mxu0
        %457 = vdwg.mxu0
        %v458 = vmul.f32 %v396, 0.35355338
        %v459 = vmul.f32 %v399, 0.35355338
        %v460 = vmul.f32 %v404, 0.35355338
        %v461 = vmul.f32 %v407, 0.35355338
        %v462 = vmul.f32 %v412, 0.35355338
        %v463 = vmul.f32 %v415, 0.35355338
        %v464 = vmul.f32 %v420, 0.35355338
        %v465 = vmul.f32 %v423, 0.35355338
        %v466 = vmul.f32 %v428, 0.35355338
        %v467 = vmul.f32 %v431, 0.35355338
        %v468 = vmul.f32 %v436, 0.35355338
        %v469 = vmul.f32 %v439, 0.35355338
        %v470 = vmul.f32 %v444, 0.35355338
        %v471 = vmul.f32 %v447, 0.35355338
        %v472 = vmul.f32 %v452, 0.35355338
        %v473 = vmul.f32 %v455, 0.35355338
        %s474 = scalar_lea.vmem %s2, 4
        %v475 = vld [vmem:[%s474] sm:$0x1]
        %v477 = vlaneseq
        %v478 = vshrl.u32 %v477, 7
        %v479 = vsub.s32 0, %v478
        %v480 = vrot.slane %v475, %v479
        %v486 = vunpack.c.l.b16 %v268
        %v487 = vunpack.c.l.b16 %v269
        %v488 = vunpack.c.l.b16 %v270
        %v489 = vunpack.c.l.b16 %v271
        %v490 = vpack.c.b16 %v487, %v486
        %v491 = vpack.c.b16 %v489, %v488
        %494 = vmatprep.subr.bf16.mxu0 0
        %495 = vmatpush1.bf16.msra.mxu0 0
        %496 = vmatprep.subr.bf16.mxu0 0
        %497 = vmatpush1.bf16.msra.mxu0 0
        %498 = vmatprep.subr.bf16.mxu0 0
        %499 = vmatpush1.bf16.msra.mxu0 0
        %500 = vmatprep.subr.bf16.mxu0 0
        %501 = vmatpush1.bf16.msra.mxu0 0
        %502 = vmatprep.subr.bf16.mxu0 0
        %503 = vmatpush1.bf16.msra.mxu0 0
        %504 = vmatprep.subr.bf16.mxu0 0
        %505 = vmatpush1.bf16.msra.mxu0 0
        %506 = vmatprep.subr.bf16.mxu0 0
        %507 = vmatpush1.bf16.msra.mxu0 %v491
        %508 = vmatprep.subr.bf16.mxu0 0
        %509 = vmatpush1.bf16.msra.mxu0 %v490
        %510 = vmatprep.subr.bf16.mxu0 0
        %511 = vmatpush2.bf16.msra.mxu0 0
        %512 = vmatprep.subr.bf16.mxu0 0
        %513 = vmatpush2.bf16.msra.mxu0 0
        %514 = vmatprep.subr.bf16.mxu0 0
        %515 = vmatpush2.bf16.msra.mxu0 0
        %516 = vmatprep.subr.bf16.mxu0 0
        %517 = vmatpush2.bf16.msra.mxu0 0
        %518 = vmatprep.subr.bf16.mxu0 0
        %519 = vmatpush2.bf16.msra.mxu0 0
        %520 = vmatprep.subr.bf16.mxu0 0
        %521 = vmatpush2.bf16.msra.mxu0 0
        %522 = vmatprep.subr.bf16.mxu0 0
        %523 = vmatpush2.bf16.msra.mxu0 0
        %524 = vmatprep.subr.bf16.mxu0 0
        %525 = vmatpush2.bf16.msra.mxu0 0
        %526 = vmatprep.mubr.bf16.mxu0 0
        %527 = vmatmul.mubr.bf16.gmra.mxu0 %v338
        %v528 = vpop.f32.mrf.mxu0
        %v529 = vadd.f32 %v480, %v528
        %v530 = vpop.f32.mrf.mxu0
        %v531 = vpop.f32.mrf.mxu0
        %v532 = vadd.f32 %v480, %v531
        %v533 = vpop.f32.mrf.mxu0
        %534 = vmatprep.mubr.bf16.mxu0 0
        %535 = vmatmul.mubr.bf16.gmra.mxu0 %v341
        %v536 = vpop.f32.mrf.mxu0
        %v537 = vadd.f32 %v480, %v536
        %v538 = vpop.f32.mrf.mxu0
        %v539 = vpop.f32.mrf.mxu0
        %v540 = vadd.f32 %v480, %v539
        %v541 = vpop.f32.mrf.mxu0
        %542 = vmatprep.mubr.bf16.mxu0 0
        %543 = vmatmul.mubr.bf16.gmra.mxu0 %v344
        %v544 = vpop.f32.mrf.mxu0
        %v545 = vadd.f32 %v480, %v544
        %v546 = vpop.f32.mrf.mxu0
        %v547 = vpop.f32.mrf.mxu0
        %v548 = vadd.f32 %v480, %v547
        %v549 = vpop.f32.mrf.mxu0
        %550 = vmatprep.mubr.bf16.mxu0 0
        %551 = vmatmul.mubr.bf16.gmra.mxu0 %v347
        %v552 = vpop.f32.mrf.mxu0
        %v553 = vadd.f32 %v480, %v552
        %v554 = vpop.f32.mrf.mxu0
        %v555 = vpop.f32.mrf.mxu0
        %v556 = vadd.f32 %v480, %v555
        %v557 = vpop.f32.mrf.mxu0
        %558 = vmatprep.mubr.bf16.mxu0 0
        %559 = vmatmul.mubr.bf16.gmra.mxu0 %v350
        %v560 = vpop.f32.mrf.mxu0
        %v561 = vadd.f32 %v480, %v560
        %v562 = vpop.f32.mrf.mxu0
        %v563 = vpop.f32.mrf.mxu0
        %v564 = vadd.f32 %v480, %v563
        %v565 = vpop.f32.mrf.mxu0
        %566 = vmatprep.mubr.bf16.mxu0 0
        %567 = vmatmul.mubr.bf16.gmra.mxu0 %v353
        %v568 = vpop.f32.mrf.mxu0
        %v569 = vadd.f32 %v480, %v568
        %v570 = vpop.f32.mrf.mxu0
        %v571 = vpop.f32.mrf.mxu0
        %v572 = vadd.f32 %v480, %v571
        %v573 = vpop.f32.mrf.mxu0
        %574 = vmatprep.mubr.bf16.mxu0 0
        %575 = vmatmul.mubr.bf16.gmra.mxu0 %v356
        %v576 = vpop.f32.mrf.mxu0
        %v577 = vadd.f32 %v480, %v576
        %v578 = vpop.f32.mrf.mxu0
        %v579 = vpop.f32.mrf.mxu0
        %v580 = vadd.f32 %v480, %v579
        %v581 = vpop.f32.mrf.mxu0
        %582 = vmatprep.mubr.bf16.mxu0 0
        %583 = vmatmul.mubr.bf16.gmra.mxu0 %v359
        %v584 = vpop.f32.mrf.mxu0
        %v585 = vadd.f32 %v480, %v584
        %v586 = vpop.f32.mrf.mxu0
        %v587 = vpop.f32.mrf.mxu0
        %v588 = vadd.f32 %v480, %v587
        %v589 = vpop.f32.mrf.mxu0
        %590 = vdwg.mxu0
        %s591 = scalar_lea.vmem %s2, 8
        %v592 = vld [vmem:[%s591] sm:$0x1]
        %v594 = vlaneseq
        %v595 = vshrl.u32 %v594, 7
        %v596 = vsub.s32 0, %v595
        %v597 = vrot.slane %v592, %v596
        %v603 = vunpack.c.l.b16 %v273
        %v604 = vunpack.c.l.b16 %v274
        %v605 = vunpack.c.l.b16 %v275
        %v606 = vunpack.c.l.b16 %v276
        %v607 = vpack.c.b16 %v604, %v603
        %v608 = vpack.c.b16 %v606, %v605
        %611 = vmatprep.subr.bf16.mxu0 0
        %612 = vmatpush1.bf16.msra.mxu0 0
        %613 = vmatprep.subr.bf16.mxu0 0
        %614 = vmatpush1.bf16.msra.mxu0 0
        %615 = vmatprep.subr.bf16.mxu0 0
        %616 = vmatpush1.bf16.msra.mxu0 0
        %617 = vmatprep.subr.bf16.mxu0 0
        %618 = vmatpush1.bf16.msra.mxu0 0
        %619 = vmatprep.subr.bf16.mxu0 0
        %620 = vmatpush1.bf16.msra.mxu0 0
        %621 = vmatprep.subr.bf16.mxu0 0
        %622 = vmatpush1.bf16.msra.mxu0 0
        %623 = vmatprep.subr.bf16.mxu0 0
        %624 = vmatpush1.bf16.msra.mxu0 %v608
        %625 = vmatprep.subr.bf16.mxu0 0
        %626 = vmatpush1.bf16.msra.mxu0 %v607
        %627 = vmatprep.subr.bf16.mxu0 0
        %628 = vmatpush2.bf16.msra.mxu0 0
        %629 = vmatprep.subr.bf16.mxu0 0
        %630 = vmatpush2.bf16.msra.mxu0 0
        %631 = vmatprep.subr.bf16.mxu0 0
        %632 = vmatpush2.bf16.msra.mxu0 0
        %633 = vmatprep.subr.bf16.mxu0 0
        %634 = vmatpush2.bf16.msra.mxu0 0
        %635 = vmatprep.subr.bf16.mxu0 0
        %636 = vmatpush2.bf16.msra.mxu0 0
        %637 = vmatprep.subr.bf16.mxu0 0
        %638 = vmatpush2.bf16.msra.mxu0 0
        %639 = vmatprep.subr.bf16.mxu0 0
        %640 = vmatpush2.bf16.msra.mxu0 0
        %641 = vmatprep.subr.bf16.mxu0 0
        %642 = vmatpush2.bf16.msra.mxu0 0
        %643 = vmatprep.mubr.bf16.mxu0 0
        %644 = vmatmul.mubr.bf16.gmra.mxu0 %v338
        %v645 = vpop.f32.mrf.mxu0
        %v646 = vadd.f32 %v597, %v645
        %v647 = vpop.f32.mrf.mxu0
        %v648 = vpop.f32.mrf.mxu0
        %v649 = vadd.f32 %v597, %v648
        %v650 = vpop.f32.mrf.mxu0
        %651 = vmatprep.mubr.bf16.mxu0 0
        %652 = vmatmul.mubr.bf16.gmra.mxu0 %v341
        %v653 = vpop.f32.mrf.mxu0
        %v654 = vadd.f32 %v597, %v653
        %v655 = vpop.f32.mrf.mxu0
        %v656 = vpop.f32.mrf.mxu0
        %v657 = vadd.f32 %v597, %v656
        %v658 = vpop.f32.mrf.mxu0
        %659 = vmatprep.mubr.bf16.mxu0 0
        %660 = vmatmul.mubr.bf16.gmra.mxu0 %v344
        %v661 = vpop.f32.mrf.mxu0
        %v662 = vadd.f32 %v597, %v661
        %v663 = vpop.f32.mrf.mxu0
        %v664 = vpop.f32.mrf.mxu0
        %v665 = vadd.f32 %v597, %v664
        %v666 = vpop.f32.mrf.mxu0
        %667 = vmatprep.mubr.bf16.mxu0 0
        %668 = vmatmul.mubr.bf16.gmra.mxu0 %v347
        %v669 = vpop.f32.mrf.mxu0
        %v670 = vadd.f32 %v597, %v669
        %v671 = vpop.f32.mrf.mxu0
        %v672 = vpop.f32.mrf.mxu0
        %v673 = vadd.f32 %v597, %v672
        %v674 = vpop.f32.mrf.mxu0
        %675 = vmatprep.mubr.bf16.mxu0 0
        %676 = vmatmul.mubr.bf16.gmra.mxu0 %v350
        %v677 = vpop.f32.mrf.mxu0
        %v678 = vadd.f32 %v597, %v677
        %v679 = vpop.f32.mrf.mxu0
        %v680 = vpop.f32.mrf.mxu0
        %v681 = vadd.f32 %v597, %v680
        %v682 = vpop.f32.mrf.mxu0
        %683 = vmatprep.mubr.bf16.mxu0 0
        %684 = vmatmul.mubr.bf16.gmra.mxu0 %v353
        %v685 = vpop.f32.mrf.mxu0
        %v686 = vadd.f32 %v597, %v685
        %v687 = vpop.f32.mrf.mxu0
        %v688 = vpop.f32.mrf.mxu0
        %v689 = vadd.f32 %v597, %v688
        %v690 = vpop.f32.mrf.mxu0
        %691 = vmatprep.mubr.bf16.mxu0 0
        %692 = vmatmul.mubr.bf16.gmra.mxu0 %v356
        %v693 = vpop.f32.mrf.mxu0
        %v694 = vadd.f32 %v597, %v693
        %v695 = vpop.f32.mrf.mxu0
        %v696 = vpop.f32.mrf.mxu0
        %v697 = vadd.f32 %v597, %v696
        %v698 = vpop.f32.mrf.mxu0
        %699 = vmatprep.mubr.bf16.mxu0 0
        %700 = vmatmul.mubr.bf16.gmra.mxu0 %v359
        %v701 = vpop.f32.mrf.mxu0
        %v702 = vadd.f32 %v597, %v701
        %v703 = vpop.f32.mrf.mxu0
        %v704 = vpop.f32.mrf.mxu0
        %v705 = vadd.f32 %v597, %v704
        %v706 = vpop.f32.mrf.mxu0
        %707 = vdwg.mxu0
        %v708 = vpack.c.bf16 %v459, %v458
        %v709 = vpack.c.bf16 %v461, %v460
        %v710 = vpack.c.bf16 %v463, %v462
        %v711 = vpack.c.bf16 %v465, %v464
        %v712 = vpack.c.bf16 %v467, %v466
        %v713 = vpack.c.bf16 %v469, %v468
        %v714 = vpack.c.bf16 %v471, %v470
        %v715 = vpack.c.bf16 %v473, %v472
        %v716 = vpack.c.bf16 %v532, %v529
        %v717 = vpack.c.bf16 %v540, %v537
        %v718 = vpack.c.bf16 %v548, %v545
        %v719 = vpack.c.bf16 %v556, %v553
        %v720 = vpack.c.bf16 %v564, %v561
        %v721 = vpack.c.bf16 %v572, %v569
        %v722 = vpack.c.bf16 %v580, %v577
        %v723 = vpack.c.bf16 %v588, %v585
        %v724 = vpack.c.bf16 %v649, %v646
        %v725 = vpack.c.bf16 %v657, %v654
        %v726 = vpack.c.bf16 %v665, %v662
        %v727 = vpack.c.bf16 %v673, %v670
        %v728 = vpack.c.bf16 %v681, %v678
        %v729 = vpack.c.bf16 %v689, %v686
        %v730 = vpack.c.bf16 %v697, %v694
        %v731 = vpack.c.bf16 %v705, %v702
        %vm732 = vcmask 64512
        %v734 = vsel %vm732, %v708, 0
        %v737 = vsel %vm732, %v716, 0
        %739 = vmatprep.subr.bf16.mxu0 0
        %740 = vmatpush1.bf16.xpose.msra.mxu0 0
        %741 = vmatprep.subr.bf16.mxu0 0
        %742 = vmatpush1.bf16.xpose.msra.mxu0 0
        %743 = vmatprep.subr.bf16.mxu0 0
        %744 = vmatpush1.bf16.xpose.msra.mxu0 0
        %745 = vmatprep.subr.bf16.mxu0 0
        %746 = vmatpush1.bf16.xpose.msra.mxu0 0
        %747 = vmatprep.subr.bf16.mxu0 0
        %748 = vmatpush1.bf16.xpose.msra.mxu0 0
        %749 = vmatprep.subr.bf16.mxu0 0
        %750 = vmatpush1.bf16.xpose.msra.mxu0 0
        %751 = vmatprep.subr.bf16.mxu0 0
        %752 = vmatpush1.bf16.xpose.msra.mxu0 0
        %753 = vmatprep.subr.bf16.mxu0 0
        %754 = vmatpush1.bf16.xpose.msra.mxu0 %v737
        %755 = vmatprep.subr.bf16.mxu0 0
        %756 = vmatpush2.bf16.xpose.msra.mxu0 0
        %757 = vmatprep.subr.bf16.mxu0 0
        %758 = vmatpush2.bf16.xpose.msra.mxu0 0
        %759 = vmatprep.subr.bf16.mxu0 0
        %760 = vmatpush2.bf16.xpose.msra.mxu0 0
        %761 = vmatprep.subr.bf16.mxu0 0
        %762 = vmatpush2.bf16.xpose.msra.mxu0 0
        %763 = vmatprep.subr.bf16.mxu0 0
        %764 = vmatpush2.bf16.xpose.msra.mxu0 0
        %765 = vmatprep.subr.bf16.mxu0 0
        %766 = vmatpush2.bf16.xpose.msra.mxu0 0
        %767 = vmatprep.subr.bf16.mxu0 0
        %768 = vmatpush2.bf16.xpose.msra.mxu0 0
        %769 = vmatprep.subr.bf16.mxu0 0
        %770 = vmatpush2.bf16.xpose.msra.mxu0 0
        %771 = vmatprep.mubr.bf16.mxu0 0
        %772 = vmatmul.mubr.bf16.gmra.mxu0 %v734
        %v773 = vpop.f32.mrf.mxu0
        %v774 = vadd.f32 0.0, %v773
        %v775 = vpop.f32.mrf.mxu0
        %v776 = vpop.f32.mrf.mxu0
        %v777 = vadd.f32 0.0, %v776
        %v778 = vpop.f32.mrf.mxu0
        %779 = vdwg.mxu0
        %v781 = vsel %vm732, %v709, 0
        %v784 = vsel %vm732, %v717, 0
        %786 = vmatprep.subr.bf16.mxu0 0
        %787 = vmatpush1.bf16.xpose.msra.mxu0 0
        %788 = vmatprep.subr.bf16.mxu0 0
        %789 = vmatpush1.bf16.xpose.msra.mxu0 0
        %790 = vmatprep.subr.bf16.mxu0 0
        %791 = vmatpush1.bf16.xpose.msra.mxu0 0
        %792 = vmatprep.subr.bf16.mxu0 0
        %793 = vmatpush1.bf16.xpose.msra.mxu0 0
        %794 = vmatprep.subr.bf16.mxu0 0
        %795 = vmatpush1.bf16.xpose.msra.mxu0 0
        %796 = vmatprep.subr.bf16.mxu0 0
        %797 = vmatpush1.bf16.xpose.msra.mxu0 0
        %798 = vmatprep.subr.bf16.mxu0 0
        %799 = vmatpush1.bf16.xpose.msra.mxu0 0
        %800 = vmatprep.subr.bf16.mxu0 0
        %801 = vmatpush1.bf16.xpose.msra.mxu0 %v784
        %802 = vmatprep.subr.bf16.mxu0 0
        %803 = vmatpush2.bf16.xpose.msra.mxu0 0
        %804 = vmatprep.subr.bf16.mxu0 0
        %805 = vmatpush2.bf16.xpose.msra.mxu0 0
        %806 = vmatprep.subr.bf16.mxu0 0
        %807 = vmatpush2.bf16.xpose.msra.mxu0 0
        %808 = vmatprep.subr.bf16.mxu0 0
        %809 = vmatpush2.bf16.xpose.msra.mxu0 0
        %810 = vmatprep.subr.bf16.mxu0 0
        %811 = vmatpush2.bf16.xpose.msra.mxu0 0
        %812 = vmatprep.subr.bf16.mxu0 0
        %813 = vmatpush2.bf16.xpose.msra.mxu0 0
        %814 = vmatprep.subr.bf16.mxu0 0
        %815 = vmatpush2.bf16.xpose.msra.mxu0 0
        %816 = vmatprep.subr.bf16.mxu0 0
        %817 = vmatpush2.bf16.xpose.msra.mxu0 0
        %818 = vmatprep.mubr.bf16.mxu0 0
        %819 = vmatmul.mubr.bf16.gmra.mxu0 %v781
        %v820 = vpop.f32.mrf.mxu0
        %v821 = vadd.f32 0.0, %v820
        %v822 = vpop.f32.mrf.mxu0
        %v823 = vpop.f32.mrf.mxu0
        %v824 = vadd.f32 0.0, %v823
        %v825 = vpop.f32.mrf.mxu0
        %826 = vdwg.mxu0
        %v828 = vsel %vm732, %v710, 0
        %v831 = vsel %vm732, %v718, 0
        %833 = vmatprep.subr.bf16.mxu0 0
        %834 = vmatpush1.bf16.xpose.msra.mxu0 0
        %835 = vmatprep.subr.bf16.mxu0 0
        %836 = vmatpush1.bf16.xpose.msra.mxu0 0
        %837 = vmatprep.subr.bf16.mxu0 0
        %838 = vmatpush1.bf16.xpose.msra.mxu0 0
        %839 = vmatprep.subr.bf16.mxu0 0
        %840 = vmatpush1.bf16.xpose.msra.mxu0 0
        %841 = vmatprep.subr.bf16.mxu0 0
        %842 = vmatpush1.bf16.xpose.msra.mxu0 0
        %843 = vmatprep.subr.bf16.mxu0 0
        %844 = vmatpush1.bf16.xpose.msra.mxu0 0
        %845 = vmatprep.subr.bf16.mxu0 0
        %846 = vmatpush1.bf16.xpose.msra.mxu0 0
        %847 = vmatprep.subr.bf16.mxu0 0
        %848 = vmatpush1.bf16.xpose.msra.mxu0 %v831
        %849 = vmatprep.subr.bf16.mxu0 0
        %850 = vmatpush2.bf16.xpose.msra.mxu0 0
        %851 = vmatprep.subr.bf16.mxu0 0
        %852 = vmatpush2.bf16.xpose.msra.mxu0 0
        %853 = vmatprep.subr.bf16.mxu0 0
        %854 = vmatpush2.bf16.xpose.msra.mxu0 0
        %855 = vmatprep.subr.bf16.mxu0 0
        %856 = vmatpush2.bf16.xpose.msra.mxu0 0
        %857 = vmatprep.subr.bf16.mxu0 0
        %858 = vmatpush2.bf16.xpose.msra.mxu0 0
        %859 = vmatprep.subr.bf16.mxu0 0
        %860 = vmatpush2.bf16.xpose.msra.mxu0 0
        %861 = vmatprep.subr.bf16.mxu0 0
        %862 = vmatpush2.bf16.xpose.msra.mxu0 0
        %863 = vmatprep.subr.bf16.mxu0 0
        %864 = vmatpush2.bf16.xpose.msra.mxu0 0
        %865 = vmatprep.mubr.bf16.mxu0 0
        %866 = vmatmul.mubr.bf16.gmra.mxu0 %v828
        %v867 = vpop.f32.mrf.mxu0
        %v868 = vadd.f32 0.0, %v867
        %v869 = vpop.f32.mrf.mxu0
        %v870 = vpop.f32.mrf.mxu0
        %v871 = vadd.f32 0.0, %v870
        %v872 = vpop.f32.mrf.mxu0
        %873 = vdwg.mxu0
        %v875 = vsel %vm732, %v711, 0
        %v878 = vsel %vm732, %v719, 0
        %880 = vmatprep.subr.bf16.mxu0 0
        %881 = vmatpush1.bf16.xpose.msra.mxu0 0
        %882 = vmatprep.subr.bf16.mxu0 0
        %883 = vmatpush1.bf16.xpose.msra.mxu0 0
        %884 = vmatprep.subr.bf16.mxu0 0
        %885 = vmatpush1.bf16.xpose.msra.mxu0 0
        %886 = vmatprep.subr.bf16.mxu0 0
        %887 = vmatpush1.bf16.xpose.msra.mxu0 0
        %888 = vmatprep.subr.bf16.mxu0 0
        %889 = vmatpush1.bf16.xpose.msra.mxu0 0
        %890 = vmatprep.subr.bf16.mxu0 0
        %891 = vmatpush1.bf16.xpose.msra.mxu0 0
        %892 = vmatprep.subr.bf16.mxu0 0
        %893 = vmatpush1.bf16.xpose.msra.mxu0 0
        %894 = vmatprep.subr.bf16.mxu0 0
        %895 = vmatpush1.bf16.xpose.msra.mxu0 %v878
        %896 = vmatprep.subr.bf16.mxu0 0
        %897 = vmatpush2.bf16.xpose.msra.mxu0 0
        %898 = vmatprep.subr.bf16.mxu0 0
        %899 = vmatpush2.bf16.xpose.msra.mxu0 0
        %900 = vmatprep.subr.bf16.mxu0 0
        %901 = vmatpush2.bf16.xpose.msra.mxu0 0
        %902 = vmatprep.subr.bf16.mxu0 0
        %903 = vmatpush2.bf16.xpose.msra.mxu0 0
        %904 = vmatprep.subr.bf16.mxu0 0
        %905 = vmatpush2.bf16.xpose.msra.mxu0 0
        %906 = vmatprep.subr.bf16.mxu0 0
        %907 = vmatpush2.bf16.xpose.msra.mxu0 0
        %908 = vmatprep.subr.bf16.mxu0 0
        %909 = vmatpush2.bf16.xpose.msra.mxu0 0
        %910 = vmatprep.subr.bf16.mxu0 0
        %911 = vmatpush2.bf16.xpose.msra.mxu0 0
        %912 = vmatprep.mubr.bf16.mxu0 0
        %913 = vmatmul.mubr.bf16.gmra.mxu0 %v875
        %v914 = vpop.f32.mrf.mxu0
        %v915 = vadd.f32 0.0, %v914
        %v916 = vpop.f32.mrf.mxu0
        %v917 = vpop.f32.mrf.mxu0
        %v918 = vadd.f32 0.0, %v917
        %v919 = vpop.f32.mrf.mxu0
        %920 = vdwg.mxu0
        %v922 = vsel %vm732, %v712, 0
        %v925 = vsel %vm732, %v720, 0
        %927 = vmatprep.subr.bf16.mxu0 0
        %928 = vmatpush1.bf16.xpose.msra.mxu0 0
        %929 = vmatprep.subr.bf16.mxu0 0
        %930 = vmatpush1.bf16.xpose.msra.mxu0 0
        %931 = vmatprep.subr.bf16.mxu0 0
        %932 = vmatpush1.bf16.xpose.msra.mxu0 0
        %933 = vmatprep.subr.bf16.mxu0 0
        %934 = vmatpush1.bf16.xpose.msra.mxu0 0
        %935 = vmatprep.subr.bf16.mxu0 0
        %936 = vmatpush1.bf16.xpose.msra.mxu0 0
        %937 = vmatprep.subr.bf16.mxu0 0
        %938 = vmatpush1.bf16.xpose.msra.mxu0 0
        %939 = vmatprep.subr.bf16.mxu0 0
        %940 = vmatpush1.bf16.xpose.msra.mxu0 0
        %941 = vmatprep.subr.bf16.mxu0 0
        %942 = vmatpush1.bf16.xpose.msra.mxu0 %v925
        %943 = vmatprep.subr.bf16.mxu0 0
        %944 = vmatpush2.bf16.xpose.msra.mxu0 0
        %945 = vmatprep.subr.bf16.mxu0 0
        %946 = vmatpush2.bf16.xpose.msra.mxu0 0
        %947 = vmatprep.subr.bf16.mxu0 0
        %948 = vmatpush2.bf16.xpose.msra.mxu0 0
        %949 = vmatprep.subr.bf16.mxu0 0
        %950 = vmatpush2.bf16.xpose.msra.mxu0 0
        %951 = vmatprep.subr.bf16.mxu0 0
        %952 = vmatpush2.bf16.xpose.msra.mxu0 0
        %953 = vmatprep.subr.bf16.mxu0 0
        %954 = vmatpush2.bf16.xpose.msra.mxu0 0
        %955 = vmatprep.subr.bf16.mxu0 0
        %956 = vmatpush2.bf16.xpose.msra.mxu0 0
        %957 = vmatprep.subr.bf16.mxu0 0
        %958 = vmatpush2.bf16.xpose.msra.mxu0 0
        %959 = vmatprep.mubr.bf16.mxu0 0
        %960 = vmatmul.mubr.bf16.gmra.mxu0 %v922
        %v961 = vpop.f32.mrf.mxu0
        %v962 = vadd.f32 0.0, %v961
        %v963 = vpop.f32.mrf.mxu0
        %v964 = vpop.f32.mrf.mxu0
        %v965 = vadd.f32 0.0, %v964
        %v966 = vpop.f32.mrf.mxu0
        %967 = vdwg.mxu0
        %v969 = vsel %vm732, %v713, 0
        %v972 = vsel %vm732, %v721, 0
        %974 = vmatprep.subr.bf16.mxu0 0
        %975 = vmatpush1.bf16.xpose.msra.mxu0 0
        %976 = vmatprep.subr.bf16.mxu0 0
        %977 = vmatpush1.bf16.xpose.msra.mxu0 0
        %978 = vmatprep.subr.bf16.mxu0 0
        %979 = vmatpush1.bf16.xpose.msra.mxu0 0
        %980 = vmatprep.subr.bf16.mxu0 0
        %981 = vmatpush1.bf16.xpose.msra.mxu0 0
        %982 = vmatprep.subr.bf16.mxu0 0
        %983 = vmatpush1.bf16.xpose.msra.mxu0 0
        %984 = vmatprep.subr.bf16.mxu0 0
        %985 = vmatpush1.bf16.xpose.msra.mxu0 0
        %986 = vmatprep.subr.bf16.mxu0 0
        %987 = vmatpush1.bf16.xpose.msra.mxu0 0
        %988 = vmatprep.subr.bf16.mxu0 0
        %989 = vmatpush1.bf16.xpose.msra.mxu0 %v972
        %990 = vmatprep.subr.bf16.mxu0 0
        %991 = vmatpush2.bf16.xpose.msra.mxu0 0
        %992 = vmatprep.subr.bf16.mxu0 0
        %993 = vmatpush2.bf16.xpose.msra.mxu0 0
        %994 = vmatprep.subr.bf16.mxu0 0
        %995 = vmatpush2.bf16.xpose.msra.mxu0 0
        %996 = vmatprep.subr.bf16.mxu0 0
        %997 = vmatpush2.bf16.xpose.msra.mxu0 0
        %998 = vmatprep.subr.bf16.mxu0 0
        %999 = vmatpush2.bf16.xpose.msra.mxu0 0
        %1000 = vmatprep.subr.bf16.mxu0 0
        %1001 = vmatpush2.bf16.xpose.msra.mxu0 0
        %1002 = vmatprep.subr.bf16.mxu0 0
        %1003 = vmatpush2.bf16.xpose.msra.mxu0 0
        %1004 = vmatprep.subr.bf16.mxu0 0
        %1005 = vmatpush2.bf16.xpose.msra.mxu0 0
        %1006 = vmatprep.mubr.bf16.mxu0 0
        %1007 = vmatmul.mubr.bf16.gmra.mxu0 %v969
        %v1008 = vpop.f32.mrf.mxu0
        %v1009 = vadd.f32 0.0, %v1008
        %v1010 = vpop.f32.mrf.mxu0
        %v1011 = vpop.f32.mrf.mxu0
        %v1012 = vadd.f32 0.0, %v1011
        %v1013 = vpop.f32.mrf.mxu0
        %1014 = vdwg.mxu0
        %v1016 = vsel %vm732, %v714, 0
        %v1019 = vsel %vm732, %v722, 0
        %1021 = vmatprep.subr.bf16.mxu0 0
        %1022 = vmatpush1.bf16.xpose.msra.mxu0 0
        %1023 = vmatprep.subr.bf16.mxu0 0
        %1024 = vmatpush1.bf16.xpose.msra.mxu0 0
        %1025 = vmatprep.subr.bf16.mxu0 0
        %1026 = vmatpush1.bf16.xpose.msra.mxu0 0
        %1027 = vmatprep.subr.bf16.mxu0 0
        %1028 = vmatpush1.bf16.xpose.msra.mxu0 0
        %1029 = vmatprep.subr.bf16.mxu0 0
        %1030 = vmatpush1.bf16.xpose.msra.mxu0 0
        %1031 = vmatprep.subr.bf16.mxu0 0
        %1032 = vmatpush1.bf16.xpose.msra.mxu0 0
        %1033 = vmatprep.subr.bf16.mxu0 0
        %1034 = vmatpush1.bf16.xpose.msra.mxu0 0
        %1035 = vmatprep.subr.bf16.mxu0 0
        %1036 = vmatpush1.bf16.xpose.msra.mxu0 %v1019
        %1037 = vmatprep.subr.bf16.mxu0 0
        %1038 = vmatpush2.bf16.xpose.msra.mxu0 0
        %1039 = vmatprep.subr.bf16.mxu0 0
        %1040 = vmatpush2.bf16.xpose.msra.mxu0 0
        %1041 = vmatprep.subr.bf16.mxu0 0
        %1042 = vmatpush2.bf16.xpose.msra.mxu0 0
        %1043 = vmatprep.subr.bf16.mxu0 0
        %1044 = vmatpush2.bf16.xpose.msra.mxu0 0
        %1045 = vmatprep.subr.bf16.mxu0 0
        %1046 = vmatpush2.bf16.xpose.msra.mxu0 0
        %1047 = vmatprep.subr.bf16.mxu0 0
        %1048 = vmatpush2.bf16.xpose.msra.mxu0 0
        %1049 = vmatprep.subr.bf16.mxu0 0
        %1050 = vmatpush2.bf16.xpose.msra.mxu0 0
        %1051 = vmatprep.subr.bf16.mxu0 0
        %1052 = vmatpush2.bf16.xpose.msra.mxu0 0
        %1053 = vmatprep.mubr.bf16.mxu0 0
        %1054 = vmatmul.mubr.bf16.gmra.mxu0 %v1016
        %v1055 = vpop.f32.mrf.mxu0
        %v1056 = vadd.f32 0.0, %v1055
        %v1057 = vpop.f32.mrf.mxu0
        %v1058 = vpop.f32.mrf.mxu0
        %v1059 = vadd.f32 0.0, %v1058
        %v1060 = vpop.f32.mrf.mxu0
        %1061 = vdwg.mxu0
        %v1063 = vsel %vm732, %v715, 0
        %v1066 = vsel %vm732, %v723, 0
        %1068 = vmatprep.subr.bf16.mxu0 0
        %1069 = vmatpush1.bf16.xpose.msra.mxu0 0
        %1070 = vmatprep.subr.bf16.mxu0 0
        %1071 = vmatpush1.bf16.xpose.msra.mxu0 0
        %1072 = vmatprep.subr.bf16.mxu0 0
        %1073 = vmatpush1.bf16.xpose.msra.mxu0 0
        %1074 = vmatprep.subr.bf16.mxu0 0
        %1075 = vmatpush1.bf16.xpose.msra.mxu0 0
        %1076 = vmatprep.subr.bf16.mxu0 0
        %1077 = vmatpush1.bf16.xpose.msra.mxu0 0
        %1078 = vmatprep.subr.bf16.mxu0 0
        %1079 = vmatpush1.bf16.xpose.msra.mxu0 0
        %1080 = vmatprep.subr.bf16.mxu0 0
        %1081 = vmatpush1.bf16.xpose.msra.mxu0 0
        %1082 = vmatprep.subr.bf16.mxu0 0
        %1083 = vmatpush1.bf16.xpose.msra.mxu0 %v1066
        %1084 = vmatprep.subr.bf16.mxu0 0
        %1085 = vmatpush2.bf16.xpose.msra.mxu0 0
        %1086 = vmatprep.subr.bf16.mxu0 0
        %1087 = vmatpush2.bf16.xpose.msra.mxu0 0
        %1088 = vmatprep.subr.bf16.mxu0 0
        %1089 = vmatpush2.bf16.xpose.msra.mxu0 0
        %1090 = vmatprep.subr.bf16.mxu0 0
        %1091 = vmatpush2.bf16.xpose.msra.mxu0 0
        %1092 = vmatprep.subr.bf16.mxu0 0
        %1093 = vmatpush2.bf16.xpose.msra.mxu0 0
        %1094 = vmatprep.subr.bf16.mxu0 0
        %1095 = vmatpush2.bf16.xpose.msra.mxu0 0
        %1096 = vmatprep.subr.bf16.mxu0 0
        %1097 = vmatpush2.bf16.xpose.msra.mxu0 0
        %1098 = vmatprep.subr.bf16.mxu0 0
        %1099 = vmatpush2.bf16.xpose.msra.mxu0 0
        %1100 = vmatprep.mubr.bf16.mxu0 0
        %1101 = vmatmul.mubr.bf16.gmra.mxu0 %v1063
        %v1102 = vpop.f32.mrf.mxu0
        %v1103 = vadd.f32 0.0, %v1102
        %v1104 = vpop.f32.mrf.mxu0
        %v1105 = vpop.f32.mrf.mxu0
        %v1106 = vadd.f32 0.0, %v1105
        %v1107 = vpop.f32.mrf.mxu0
        %1108 = vdwg.mxu0
        %vm1109 = vcmask 130048
        %v1110 = vsel %vm1109, %v774, -inf
        %1111 = vmax.xlane.f32.xlu0 %v1110
        %v1112 = vpop.xlane.xlu0 %1111
        %v1113 = vsel %vm1109, %v777, -inf
        %1114 = vmax.xlane.f32.xlu0 %v1113
        %v1115 = vpop.xlane.xlu0 %1114
        %v1116 = vsel %vm1109, %v821, -inf
        %1117 = vmax.xlane.f32.xlu0 %v1116
        %v1118 = vpop.xlane.xlu0 %1117
        %v1119 = vsel %vm1109, %v824, -inf
        %1120 = vmax.xlane.f32.xlu0 %v1119
        %v1121 = vpop.xlane.xlu0 %1120
        %v1122 = vsel %vm1109, %v868, -inf
        %1123 = vmax.xlane.f32.xlu0 %v1122
        %v1124 = vpop.xlane.xlu0 %1123
        %v1125 = vsel %vm1109, %v871, -inf
        %1126 = vmax.xlane.f32.xlu0 %v1125
        %v1127 = vpop.xlane.xlu0 %1126
        %v1128 = vsel %vm1109, %v915, -inf
        %1129 = vmax.xlane.f32.xlu0 %v1128
        %v1130 = vpop.xlane.xlu0 %1129
        %v1131 = vsel %vm1109, %v918, -inf
        %1132 = vmax.xlane.f32.xlu0 %v1131
        %v1133 = vpop.xlane.xlu0 %1132
        %v1134 = vsel %vm1109, %v962, -inf
        %1135 = vmax.xlane.f32.xlu0 %v1134
        %v1136 = vpop.xlane.xlu0 %1135
        %v1137 = vsel %vm1109, %v965, -inf
        %1138 = vmax.xlane.f32.xlu0 %v1137
        %v1139 = vpop.xlane.xlu0 %1138
        %v1140 = vsel %vm1109, %v1009, -inf
        %1141 = vmax.xlane.f32.xlu0 %v1140
        %v1142 = vpop.xlane.xlu0 %1141
        %v1143 = vsel %vm1109, %v1012, -inf
        %1144 = vmax.xlane.f32.xlu0 %v1143
        %v1145 = vpop.xlane.xlu0 %1144
        %v1146 = vsel %vm1109, %v1056, -inf
        %1147 = vmax.xlane.f32.xlu0 %v1146
        %v1148 = vpop.xlane.xlu0 %1147
        %v1149 = vsel %vm1109, %v1059, -inf
        %1150 = vmax.xlane.f32.xlu0 %v1149
        %v1151 = vpop.xlane.xlu0 %1150
        %v1152 = vsel %vm1109, %v1103, -inf
        %1153 = vmax.xlane.f32.xlu0 %v1152
        %v1154 = vpop.xlane.xlu0 %1153
        %v1155 = vsel %vm1109, %v1106, -inf
        %1156 = vmax.xlane.f32.xlu0 %v1155
        %v1157 = vpop.xlane.xlu0 %1156
        %v1158 = vsub.f32 %v774, %v1112
        %v1159 = vsub.f32 %v777, %v1115
        %v1160 = vsub.f32 %v821, %v1118
        %v1161 = vsub.f32 %v824, %v1121
        %v1162 = vsub.f32 %v868, %v1124
        %v1163 = vsub.f32 %v871, %v1127
        %v1164 = vsub.f32 %v915, %v1130
        %v1165 = vsub.f32 %v918, %v1133
        %v1166 = vsub.f32 %v962, %v1136
        %v1167 = vsub.f32 %v965, %v1139
        %v1168 = vsub.f32 %v1009, %v1142
        %v1169 = vsub.f32 %v1012, %v1145
        %v1170 = vsub.f32 %v1056, %v1148
        %v1171 = vsub.f32 %v1059, %v1151
        %v1172 = vsub.f32 %v1103, %v1154
        %v1173 = vsub.f32 %v1106, %v1157
        %v1174 = vmul.f32 %v1158, 1.442695
        %v1175 = vpow.pop %v1174
        %v1176 = vmul.f32 %v1159, 1.442695
        %v1177 = vpow.pop %v1176
        %v1178 = vmul.f32 %v1160, 1.442695
        %v1179 = vpow.pop %v1178
        %v1180 = vmul.f32 %v1161, 1.442695
        %v1181 = vpow.pop %v1180
        %v1182 = vmul.f32 %v1162, 1.442695
        %v1183 = vpow.pop %v1182
        %v1184 = vmul.f32 %v1163, 1.442695
        %v1185 = vpow.pop %v1184
        %v1186 = vmul.f32 %v1164, 1.442695
        %v1187 = vpow.pop %v1186
        %v1188 = vmul.f32 %v1165, 1.442695
        %v1189 = vpow.pop %v1188
        %v1190 = vmul.f32 %v1166, 1.442695
        %v1191 = vpow.pop %v1190
        %v1192 = vmul.f32 %v1167, 1.442695
        %v1193 = vpow.pop %v1192
        %v1194 = vmul.f32 %v1168, 1.442695
        %v1195 = vpow.pop %v1194
        %v1196 = vmul.f32 %v1169, 1.442695
        %v1197 = vpow.pop %v1196
        %v1198 = vmul.f32 %v1170, 1.442695
        %v1199 = vpow.pop %v1198
        %v1200 = vmul.f32 %v1171, 1.442695
        %v1201 = vpow.pop %v1200
        %v1202 = vmul.f32 %v1172, 1.442695
        %v1203 = vpow.pop %v1202
        %v1204 = vmul.f32 %v1173, 1.442695
        %v1205 = vpow.pop %v1204
        %v1206 = vsel %vm1109, %v1175, 0.0
        %1207 = vadd.xlane.f32.xlu0 %v1206
        %v1208 = vpop.xlane.xlu0 %1207
        %v1209 = vsel %vm1109, %v1177, 0.0
        %1210 = vadd.xlane.f32.xlu0 %v1209
        %v1211 = vpop.xlane.xlu0 %1210
        %v1212 = vsel %vm1109, %v1179, 0.0
        %1213 = vadd.xlane.f32.xlu0 %v1212
        %v1214 = vpop.xlane.xlu0 %1213
        %v1215 = vsel %vm1109, %v1181, 0.0
        %1216 = vadd.xlane.f32.xlu0 %v1215
        %v1217 = vpop.xlane.xlu0 %1216
        %v1218 = vsel %vm1109, %v1183, 0.0
        %1219 = vadd.xlane.f32.xlu0 %v1218
        %v1220 = vpop.xlane.xlu0 %1219
        %v1221 = vsel %vm1109, %v1185, 0.0
        %1222 = vadd.xlane.f32.xlu0 %v1221
        %v1223 = vpop.xlane.xlu0 %1222
        %v1224 = vsel %vm1109, %v1187, 0.0
        %1225 = vadd.xlane.f32.xlu0 %v1224
        %v1226 = vpop.xlane.xlu0 %1225
        %v1227 = vsel %vm1109, %v1189, 0.0
        %1228 = vadd.xlane.f32.xlu0 %v1227
        %v1229 = vpop.xlane.xlu0 %1228
        %v1230 = vsel %vm1109, %v1191, 0.0
        %1231 = vadd.xlane.f32.xlu0 %v1230
        %v1232 = vpop.xlane.xlu0 %1231
        %v1233 = vsel %vm1109, %v1193, 0.0
        %1234 = vadd.xlane.f32.xlu0 %v1233
        %v1235 = vpop.xlane.xlu0 %1234
        %v1236 = vsel %vm1109, %v1195, 0.0
        %1237 = vadd.xlane.f32.xlu0 %v1236
        %v1238 = vpop.xlane.xlu0 %1237
        %v1239 = vsel %vm1109, %v1197, 0.0
        %1240 = vadd.xlane.f32.xlu0 %v1239
        %v1241 = vpop.xlane.xlu0 %1240
        %v1242 = vsel %vm1109, %v1199, 0.0
        %1243 = vadd.xlane.f32.xlu0 %v1242
        %v1244 = vpop.xlane.xlu0 %1243
        %v1245 = vsel %vm1109, %v1201, 0.0
        %1246 = vadd.xlane.f32.xlu0 %v1245
        %v1247 = vpop.xlane.xlu0 %1246
        %v1248 = vsel %vm1109, %v1203, 0.0
        %1249 = vadd.xlane.f32.xlu0 %v1248
        %v1250 = vpop.xlane.xlu0 %1249
        %v1251 = vsel %vm1109, %v1205, 0.0
        %1252 = vadd.xlane.f32.xlu0 %v1251
        %v1253 = vpop.xlane.xlu0 %1252
        %v1254 = vrcp.pop %v1208
        %v1255 = vrcp.pop %v1211
        %v1256 = vrcp.pop %v1214
        %v1257 = vrcp.pop %v1217
        %v1258 = vrcp.pop %v1220
        %v1259 = vrcp.pop %v1223
        %v1260 = vrcp.pop %v1226
        %v1261 = vrcp.pop %v1229
        %v1262 = vrcp.pop %v1232
        %v1263 = vrcp.pop %v1235
        %v1264 = vrcp.pop %v1238
        %v1265 = vrcp.pop %v1241
        %v1266 = vrcp.pop %v1244
        %v1267 = vrcp.pop %v1247
        %v1268 = vrcp.pop %v1250
        %v1269 = vrcp.pop %v1253
        %v1270 = vmul.f32 %v1175, %v1254
        %v1271 = vmul.f32 %v1177, %v1255
        %v1272 = vmul.f32 %v1179, %v1256
        %v1273 = vmul.f32 %v1181, %v1257
        %v1274 = vmul.f32 %v1183, %v1258
        %v1275 = vmul.f32 %v1185, %v1259
        %v1276 = vmul.f32 %v1187, %v1260
        %v1277 = vmul.f32 %v1189, %v1261
        %v1278 = vmul.f32 %v1191, %v1262
        %v1279 = vmul.f32 %v1193, %v1263
        %v1280 = vmul.f32 %v1195, %v1264
        %v1281 = vmul.f32 %v1197, %v1265
        %v1282 = vmul.f32 %v1199, %v1266
        %v1283 = vmul.f32 %v1201, %v1267
        %v1284 = vmul.f32 %v1203, %v1268
        %v1285 = vmul.f32 %v1205, %v1269
        %v1286 = vpack.c.bf16 %v1271, %v1270
        %v1287 = vpack.c.bf16 %v1273, %v1272
        %v1288 = vpack.c.bf16 %v1275, %v1274
        %v1289 = vpack.c.bf16 %v1277, %v1276
        %v1290 = vpack.c.bf16 %v1279, %v1278
        %v1291 = vpack.c.bf16 %v1281, %v1280
        %v1292 = vpack.c.bf16 %v1283, %v1282
        %v1293 = vpack.c.bf16 %v1285, %v1284
        %v1295 = vsel %vm1109, %v1286, 0
        %1297 = vmatprep.subr.bf16.mxu0 0
        %1298 = vmatpush1.bf16.msra.mxu0 0
        %1299 = vmatprep.subr.bf16.mxu0 0
        %1300 = vmatpush1.bf16.msra.mxu0 0
        %1301 = vmatprep.subr.bf16.mxu0 0
        %1302 = vmatpush1.bf16.msra.mxu0 0
        %1303 = vmatprep.subr.bf16.mxu0 0
        %1304 = vmatpush1.bf16.msra.mxu0 0
        %1305 = vmatprep.subr.bf16.mxu0 0
        %1306 = vmatpush1.bf16.msra.mxu0 0
        %1307 = vmatprep.subr.bf16.mxu0 0
        %1308 = vmatpush1.bf16.msra.mxu0 0
        %1309 = vmatprep.subr.bf16.mxu0 0
        %1310 = vmatpush1.bf16.msra.mxu0 0
        %1311 = vmatprep.subr.bf16.mxu0 0
        %1312 = vmatpush1.bf16.msra.mxu0 %v724
        %1313 = vmatprep.subr.bf16.mxu0 0
        %1314 = vmatpush2.bf16.msra.mxu0 0
        %1315 = vmatprep.subr.bf16.mxu0 0
        %1316 = vmatpush2.bf16.msra.mxu0 0
        %1317 = vmatprep.subr.bf16.mxu0 0
        %1318 = vmatpush2.bf16.msra.mxu0 0
        %1319 = vmatprep.subr.bf16.mxu0 0
        %1320 = vmatpush2.bf16.msra.mxu0 0
        %1321 = vmatprep.subr.bf16.mxu0 0
        %1322 = vmatpush2.bf16.msra.mxu0 0
        %1323 = vmatprep.subr.bf16.mxu0 0
        %1324 = vmatpush2.bf16.msra.mxu0 0
        %1325 = vmatprep.subr.bf16.mxu0 0
        %1326 = vmatpush2.bf16.msra.mxu0 0
        %1327 = vmatprep.subr.bf16.mxu0 0
        %1328 = vmatpush2.bf16.msra.mxu0 0
        %1329 = vmatprep.mubr.bf16.mxu0 0
        %1330 = vmatmul.mubr.bf16.gmra.mxu0 %v1295
        %v1331 = vpop.f32.mrf.mxu0
        %v1332 = vadd.f32 0.0, %v1331
        %v1333 = vpop.f32.mrf.mxu0
        %v1334 = vpop.f32.mrf.mxu0
        %v1335 = vadd.f32 0.0, %v1334
        %v1336 = vpop.f32.mrf.mxu0
        %1337 = vdwg.mxu0
        %v1339 = vsel %vm1109, %v1287, 0
        %1341 = vmatprep.subr.bf16.mxu0 0
        %1342 = vmatpush1.bf16.msra.mxu0 0
        %1343 = vmatprep.subr.bf16.mxu0 0
        %1344 = vmatpush1.bf16.msra.mxu0 0
        %1345 = vmatprep.subr.bf16.mxu0 0
        %1346 = vmatpush1.bf16.msra.mxu0 0
        %1347 = vmatprep.subr.bf16.mxu0 0
        %1348 = vmatpush1.bf16.msra.mxu0 0
        %1349 = vmatprep.subr.bf16.mxu0 0
        %1350 = vmatpush1.bf16.msra.mxu0 0
        %1351 = vmatprep.subr.bf16.mxu0 0
        %1352 = vmatpush1.bf16.msra.mxu0 0
        %1353 = vmatprep.subr.bf16.mxu0 0
        %1354 = vmatpush1.bf16.msra.mxu0 0
        %1355 = vmatprep.subr.bf16.mxu0 0
        %1356 = vmatpush1.bf16.msra.mxu0 %v725
        %1357 = vmatprep.subr.bf16.mxu0 0
        %1358 = vmatpush2.bf16.msra.mxu0 0
        %1359 = vmatprep.subr.bf16.mxu0 0
        %1360 = vmatpush2.bf16.msra.mxu0 0
        %1361 = vmatprep.subr.bf16.mxu0 0
        %1362 = vmatpush2.bf16.msra.mxu0 0
        %1363 = vmatprep.subr.bf16.mxu0 0
        %1364 = vmatpush2.bf16.msra.mxu0 0
        %1365 = vmatprep.subr.bf16.mxu0 0
        %1366 = vmatpush2.bf16.msra.mxu0 0
        %1367 = vmatprep.subr.bf16.mxu0 0
        %1368 = vmatpush2.bf16.msra.mxu0 0
        %1369 = vmatprep.subr.bf16.mxu0 0
        %1370 = vmatpush2.bf16.msra.mxu0 0
        %1371 = vmatprep.subr.bf16.mxu0 0
        %1372 = vmatpush2.bf16.msra.mxu0 0
        %1373 = vmatprep.mubr.bf16.mxu0 0
        %1374 = vmatmul.mubr.bf16.gmra.mxu0 %v1339
        %v1375 = vpop.f32.mrf.mxu0
        %v1376 = vadd.f32 0.0, %v1375
        %v1377 = vpop.f32.mrf.mxu0
        %v1378 = vpop.f32.mrf.mxu0
        %v1379 = vadd.f32 0.0, %v1378
        %v1380 = vpop.f32.mrf.mxu0
        %1381 = vdwg.mxu0
        %v1383 = vsel %vm1109, %v1288, 0
        %1385 = vmatprep.subr.bf16.mxu0 0
        %1386 = vmatpush1.bf16.msra.mxu0 0
        %1387 = vmatprep.subr.bf16.mxu0 0
        %1388 = vmatpush1.bf16.msra.mxu0 0
        %1389 = vmatprep.subr.bf16.mxu0 0
        %1390 = vmatpush1.bf16.msra.mxu0 0
        %1391 = vmatprep.subr.bf16.mxu0 0
        %1392 = vmatpush1.bf16.msra.mxu0 0
        %1393 = vmatprep.subr.bf16.mxu0 0
        %1394 = vmatpush1.bf16.msra.mxu0 0
        %1395 = vmatprep.subr.bf16.mxu0 0
        %1396 = vmatpush1.bf16.msra.mxu0 0
        %1397 = vmatprep.subr.bf16.mxu0 0
        %1398 = vmatpush1.bf16.msra.mxu0 0
        %1399 = vmatprep.subr.bf16.mxu0 0
        %1400 = vmatpush1.bf16.msra.mxu0 %v726
        %1401 = vmatprep.subr.bf16.mxu0 0
        %1402 = vmatpush2.bf16.msra.mxu0 0
        %1403 = vmatprep.subr.bf16.mxu0 0
        %1404 = vmatpush2.bf16.msra.mxu0 0
        %1405 = vmatprep.subr.bf16.mxu0 0
        %1406 = vmatpush2.bf16.msra.mxu0 0
        %1407 = vmatprep.subr.bf16.mxu0 0
        %1408 = vmatpush2.bf16.msra.mxu0 0
        %1409 = vmatprep.subr.bf16.mxu0 0
        %1410 = vmatpush2.bf16.msra.mxu0 0
        %1411 = vmatprep.subr.bf16.mxu0 0
        %1412 = vmatpush2.bf16.msra.mxu0 0
        %1413 = vmatprep.subr.bf16.mxu0 0
        %1414 = vmatpush2.bf16.msra.mxu0 0
        %1415 = vmatprep.subr.bf16.mxu0 0
        %1416 = vmatpush2.bf16.msra.mxu0 0
        %1417 = vmatprep.mubr.bf16.mxu0 0
        %1418 = vmatmul.mubr.bf16.gmra.mxu0 %v1383
        %v1419 = vpop.f32.mrf.mxu0
        %v1420 = vadd.f32 0.0, %v1419
        %v1421 = vpop.f32.mrf.mxu0
        %v1422 = vpop.f32.mrf.mxu0
        %v1423 = vadd.f32 0.0, %v1422
        %v1424 = vpop.f32.mrf.mxu0
        %1425 = vdwg.mxu0
        %v1427 = vsel %vm1109, %v1289, 0
        %1429 = vmatprep.subr.bf16.mxu0 0
        %1430 = vmatpush1.bf16.msra.mxu0 0
        %1431 = vmatprep.subr.bf16.mxu0 0
        %1432 = vmatpush1.bf16.msra.mxu0 0
        %1433 = vmatprep.subr.bf16.mxu0 0
        %1434 = vmatpush1.bf16.msra.mxu0 0
        %1435 = vmatprep.subr.bf16.mxu0 0
        %1436 = vmatpush1.bf16.msra.mxu0 0
        %1437 = vmatprep.subr.bf16.mxu0 0
        %1438 = vmatpush1.bf16.msra.mxu0 0
        %1439 = vmatprep.subr.bf16.mxu0 0
        %1440 = vmatpush1.bf16.msra.mxu0 0
        %1441 = vmatprep.subr.bf16.mxu0 0
        %1442 = vmatpush1.bf16.msra.mxu0 0
        %1443 = vmatprep.subr.bf16.mxu0 0
        %1444 = vmatpush1.bf16.msra.mxu0 %v727
        %1445 = vmatprep.subr.bf16.mxu0 0
        %1446 = vmatpush2.bf16.msra.mxu0 0
        %1447 = vmatprep.subr.bf16.mxu0 0
        %1448 = vmatpush2.bf16.msra.mxu0 0
        %1449 = vmatprep.subr.bf16.mxu0 0
        %1450 = vmatpush2.bf16.msra.mxu0 0
        %1451 = vmatprep.subr.bf16.mxu0 0
        %1452 = vmatpush2.bf16.msra.mxu0 0
        %1453 = vmatprep.subr.bf16.mxu0 0
        %1454 = vmatpush2.bf16.msra.mxu0 0
        %1455 = vmatprep.subr.bf16.mxu0 0
        %1456 = vmatpush2.bf16.msra.mxu0 0
        %1457 = vmatprep.subr.bf16.mxu0 0
        %1458 = vmatpush2.bf16.msra.mxu0 0
        %1459 = vmatprep.subr.bf16.mxu0 0
        %1460 = vmatpush2.bf16.msra.mxu0 0
        %1461 = vmatprep.mubr.bf16.mxu0 0
        %1462 = vmatmul.mubr.bf16.gmra.mxu0 %v1427
        %v1463 = vpop.f32.mrf.mxu0
        %v1464 = vadd.f32 0.0, %v1463
        %v1465 = vpop.f32.mrf.mxu0
        %v1466 = vpop.f32.mrf.mxu0
        %v1467 = vadd.f32 0.0, %v1466
        %v1468 = vpop.f32.mrf.mxu0
        %1469 = vdwg.mxu0
        %v1471 = vsel %vm1109, %v1290, 0
        %1473 = vmatprep.subr.bf16.mxu0 0
        %1474 = vmatpush1.bf16.msra.mxu0 0
        %1475 = vmatprep.subr.bf16.mxu0 0
        %1476 = vmatpush1.bf16.msra.mxu0 0
        %1477 = vmatprep.subr.bf16.mxu0 0
        %1478 = vmatpush1.bf16.msra.mxu0 0
        %1479 = vmatprep.subr.bf16.mxu0 0
        %1480 = vmatpush1.bf16.msra.mxu0 0
        %1481 = vmatprep.subr.bf16.mxu0 0
        %1482 = vmatpush1.bf16.msra.mxu0 0
        %1483 = vmatprep.subr.bf16.mxu0 0
        %1484 = vmatpush1.bf16.msra.mxu0 0
        %1485 = vmatprep.subr.bf16.mxu0 0
        %1486 = vmatpush1.bf16.msra.mxu0 0
        %1487 = vmatprep.subr.bf16.mxu0 0
        %1488 = vmatpush1.bf16.msra.mxu0 %v728
        %1489 = vmatprep.subr.bf16.mxu0 0
        %1490 = vmatpush2.bf16.msra.mxu0 0
        %1491 = vmatprep.subr.bf16.mxu0 0
        %1492 = vmatpush2.bf16.msra.mxu0 0
        %1493 = vmatprep.subr.bf16.mxu0 0
        %1494 = vmatpush2.bf16.msra.mxu0 0
        %1495 = vmatprep.subr.bf16.mxu0 0
        %1496 = vmatpush2.bf16.msra.mxu0 0
        %1497 = vmatprep.subr.bf16.mxu0 0
        %1498 = vmatpush2.bf16.msra.mxu0 0
        %1499 = vmatprep.subr.bf16.mxu0 0
        %1500 = vmatpush2.bf16.msra.mxu0 0
        %1501 = vmatprep.subr.bf16.mxu0 0
        %1502 = vmatpush2.bf16.msra.mxu0 0
        %1503 = vmatprep.subr.bf16.mxu0 0
        %1504 = vmatpush2.bf16.msra.mxu0 0
        %1505 = vmatprep.mubr.bf16.mxu0 0
        %1506 = vmatmul.mubr.bf16.gmra.mxu0 %v1471
        %v1507 = vpop.f32.mrf.mxu0
        %v1508 = vadd.f32 0.0, %v1507
        %v1509 = vpop.f32.mrf.mxu0
        %v1510 = vpop.f32.mrf.mxu0
        %v1511 = vadd.f32 0.0, %v1510
        %v1512 = vpop.f32.mrf.mxu0
        %1513 = vdwg.mxu0
        %v1515 = vsel %vm1109, %v1291, 0
        %1517 = vmatprep.subr.bf16.mxu0 0
        %1518 = vmatpush1.bf16.msra.mxu0 0
        %1519 = vmatprep.subr.bf16.mxu0 0
        %1520 = vmatpush1.bf16.msra.mxu0 0
        %1521 = vmatprep.subr.bf16.mxu0 0
        %1522 = vmatpush1.bf16.msra.mxu0 0
        %1523 = vmatprep.subr.bf16.mxu0 0
        %1524 = vmatpush1.bf16.msra.mxu0 0
        %1525 = vmatprep.subr.bf16.mxu0 0
        %1526 = vmatpush1.bf16.msra.mxu0 0
        %1527 = vmatprep.subr.bf16.mxu0 0
        %1528 = vmatpush1.bf16.msra.mxu0 0
        %1529 = vmatprep.subr.bf16.mxu0 0
        %1530 = vmatpush1.bf16.msra.mxu0 0
        %1531 = vmatprep.subr.bf16.mxu0 0
        %1532 = vmatpush1.bf16.msra.mxu0 %v729
        %1533 = vmatprep.subr.bf16.mxu0 0
        %1534 = vmatpush2.bf16.msra.mxu0 0
        %1535 = vmatprep.subr.bf16.mxu0 0
        %1536 = vmatpush2.bf16.msra.mxu0 0
        %1537 = vmatprep.subr.bf16.mxu0 0
        %1538 = vmatpush2.bf16.msra.mxu0 0
        %1539 = vmatprep.subr.bf16.mxu0 0
        %1540 = vmatpush2.bf16.msra.mxu0 0
        %1541 = vmatprep.subr.bf16.mxu0 0
        %1542 = vmatpush2.bf16.msra.mxu0 0
        %1543 = vmatprep.subr.bf16.mxu0 0
        %1544 = vmatpush2.bf16.msra.mxu0 0
        %1545 = vmatprep.subr.bf16.mxu0 0
        %1546 = vmatpush2.bf16.msra.mxu0 0
        %1547 = vmatprep.subr.bf16.mxu0 0
        %1548 = vmatpush2.bf16.msra.mxu0 0
        %1549 = vmatprep.mubr.bf16.mxu0 0
        %1550 = vmatmul.mubr.bf16.gmra.mxu0 %v1515
        %v1551 = vpop.f32.mrf.mxu0
        %v1552 = vadd.f32 0.0, %v1551
        %v1553 = vpop.f32.mrf.mxu0
        %v1554 = vpop.f32.mrf.mxu0
        %v1555 = vadd.f32 0.0, %v1554
        %v1556 = vpop.f32.mrf.mxu0
        %1557 = vdwg.mxu0
        %v1559 = vsel %vm1109, %v1292, 0
        %1561 = vmatprep.subr.bf16.mxu0 0
        %1562 = vmatpush1.bf16.msra.mxu0 0
        %1563 = vmatprep.subr.bf16.mxu0 0
        %1564 = vmatpush1.bf16.msra.mxu0 0
        %1565 = vmatprep.subr.bf16.mxu0 0
        %1566 = vmatpush1.bf16.msra.mxu0 0
        %1567 = vmatprep.subr.bf16.mxu0 0
        %1568 = vmatpush1.bf16.msra.mxu0 0
        %1569 = vmatprep.subr.bf16.mxu0 0
        %1570 = vmatpush1.bf16.msra.mxu0 0
        %1571 = vmatprep.subr.bf16.mxu0 0
        %1572 = vmatpush1.bf16.msra.mxu0 0
        %1573 = vmatprep.subr.bf16.mxu0 0
        %1574 = vmatpush1.bf16.msra.mxu0 0
        %1575 = vmatprep.subr.bf16.mxu0 0
        %1576 = vmatpush1.bf16.msra.mxu0 %v730
        %1577 = vmatprep.subr.bf16.mxu0 0
        %1578 = vmatpush2.bf16.msra.mxu0 0
        %1579 = vmatprep.subr.bf16.mxu0 0
        %1580 = vmatpush2.bf16.msra.mxu0 0
        %1581 = vmatprep.subr.bf16.mxu0 0
        %1582 = vmatpush2.bf16.msra.mxu0 0
        %1583 = vmatprep.subr.bf16.mxu0 0
        %1584 = vmatpush2.bf16.msra.mxu0 0
        %1585 = vmatprep.subr.bf16.mxu0 0
        %1586 = vmatpush2.bf16.msra.mxu0 0
        %1587 = vmatprep.subr.bf16.mxu0 0
        %1588 = vmatpush2.bf16.msra.mxu0 0
        %1589 = vmatprep.subr.bf16.mxu0 0
        %1590 = vmatpush2.bf16.msra.mxu0 0
        %1591 = vmatprep.subr.bf16.mxu0 0
        %1592 = vmatpush2.bf16.msra.mxu0 0
        %1593 = vmatprep.mubr.bf16.mxu0 0
        %1594 = vmatmul.mubr.bf16.gmra.mxu0 %v1559
        %v1595 = vpop.f32.mrf.mxu0
        %v1596 = vadd.f32 0.0, %v1595
        %v1597 = vpop.f32.mrf.mxu0
        %v1598 = vpop.f32.mrf.mxu0
        %v1599 = vadd.f32 0.0, %v1598
        %v1600 = vpop.f32.mrf.mxu0
        %1601 = vdwg.mxu0
        %v1603 = vsel %vm1109, %v1293, 0
        %1605 = vmatprep.subr.bf16.mxu0 0
        %1606 = vmatpush1.bf16.msra.mxu0 0
        %1607 = vmatprep.subr.bf16.mxu0 0
        %1608 = vmatpush1.bf16.msra.mxu0 0
        %1609 = vmatprep.subr.bf16.mxu0 0
        %1610 = vmatpush1.bf16.msra.mxu0 0
        %1611 = vmatprep.subr.bf16.mxu0 0
        %1612 = vmatpush1.bf16.msra.mxu0 0
        %1613 = vmatprep.subr.bf16.mxu0 0
        %1614 = vmatpush1.bf16.msra.mxu0 0
        %1615 = vmatprep.subr.bf16.mxu0 0
        %1616 = vmatpush1.bf16.msra.mxu0 0
        %1617 = vmatprep.subr.bf16.mxu0 0
        %1618 = vmatpush1.bf16.msra.mxu0 0
        %1619 = vmatprep.subr.bf16.mxu0 0
        %1620 = vmatpush1.bf16.msra.mxu0 %v731
        %1621 = vmatprep.subr.bf16.mxu0 0
        %1622 = vmatpush2.bf16.msra.mxu0 0
        %1623 = vmatprep.subr.bf16.mxu0 0
        %1624 = vmatpush2.bf16.msra.mxu0 0
        %1625 = vmatprep.subr.bf16.mxu0 0
        %1626 = vmatpush2.bf16.msra.mxu0 0
        %1627 = vmatprep.subr.bf16.mxu0 0
        %1628 = vmatpush2.bf16.msra.mxu0 0
        %1629 = vmatprep.subr.bf16.mxu0 0
        %1630 = vmatpush2.bf16.msra.mxu0 0
        %1631 = vmatprep.subr.bf16.mxu0 0
        %1632 = vmatpush2.bf16.msra.mxu0 0
        %1633 = vmatprep.subr.bf16.mxu0 0
        %1634 = vmatpush2.bf16.msra.mxu0 0
        %1635 = vmatprep.subr.bf16.mxu0 0
        %1636 = vmatpush2.bf16.msra.mxu0 0
        %1637 = vmatprep.mubr.bf16.mxu0 0
        %1638 = vmatmul.mubr.bf16.gmra.mxu0 %v1603
        %v1639 = vpop.f32.mrf.mxu0
        %v1640 = vadd.f32 0.0, %v1639
        %v1641 = vpop.f32.mrf.mxu0
        %v1642 = vpop.f32.mrf.mxu0
        %v1643 = vadd.f32 0.0, %v1642
        %v1644 = vpop.f32.mrf.mxu0
        %1645 = vdwg.mxu0
        %v1646 = vpack.c.bf16 %v1335, %v1332
        %v1647 = vpack.c.bf16 %v1379, %v1376
        %v1648 = vpack.c.bf16 %v1423, %v1420
        %v1649 = vpack.c.bf16 %v1467, %v1464
        %v1650 = vpack.c.bf16 %v1511, %v1508
        %v1651 = vpack.c.bf16 %v1555, %v1552
        %v1652 = vpack.c.bf16 %v1599, %v1596
        %v1653 = vpack.c.bf16 %v1643, %v1640
        %v1654 = vld [vmem:[%s3] sm:$0xf]
        %s1655 = scalar_lea.vmem %s1, 16
        %v1656 = vld [vmem:[%s1655] sm:$0xf]
        %v1657 = vld [vmem:[%s1655 + $0x4] sm:$0xf]
        %v1658 = vld [vmem:[%s1655 + $0x8] sm:$0xf]
        %v1659 = vld [vmem:[%s1655 + $0xc] sm:$0xf]
        %s1660 = scalar_lea.vmem %s1, 80
        %v1661 = vld [vmem:[%s1660] sm:$0xf]
        %v1662 = vld [vmem:[%s1660 + $0x4] sm:$0xf]
        %v1663 = vld [vmem:[%s1660 + $0x8] sm:$0xf]
        %v1664 = vld [vmem:[%s1660 + $0xc] sm:$0xf]
        %s1665 = scalar_lea.vmem %s1, 144
        %v1666 = vld [vmem:[%s1665] sm:$0xf]
        %v1667 = vld [vmem:[%s1665 + $0x4] sm:$0xf]
        %v1668 = vld [vmem:[%s1665 + $0x8] sm:$0xf]
        %v1669 = vld [vmem:[%s1665 + $0xc] sm:$0xf]
        %s1670 = scalar_lea.vmem %s2, 1
        %v1671 = vld [vmem:[%s1670] sm:$0x1]
        %v1673 = vlaneseq
        %v1674 = vshrl.u32 %v1673, 7
        %v1675 = vsub.s32 0, %v1674
        %v1676 = vrot.slane %v1671, %v1675
        %v1682 = vunpack.c.l.b16 %v1656
        %v1683 = vunpack.c.l.b16 %v1657
        %v1684 = vunpack.c.l.b16 %v1658
        %v1685 = vunpack.c.l.b16 %v1659
        %v1686 = vpack.c.b16 %v1683, %v1682
        %v1687 = vpack.c.b16 %v1685, %v1684
        %1690 = vmatprep.subr.bf16.mxu0 0
        %1691 = vmatpush1.bf16.msra.mxu0 0
        %1692 = vmatprep.subr.bf16.mxu0 0
        %1693 = vmatpush1.bf16.msra.mxu0 0
        %1694 = vmatprep.subr.bf16.mxu0 0
        %1695 = vmatpush1.bf16.msra.mxu0 0
        %1696 = vmatprep.subr.bf16.mxu0 0
        %1697 = vmatpush1.bf16.msra.mxu0 0
        %1698 = vmatprep.subr.bf16.mxu0 0
        %1699 = vmatpush1.bf16.msra.mxu0 0
        %1700 = vmatprep.subr.bf16.mxu0 0
        %1701 = vmatpush1.bf16.msra.mxu0 0
        %1702 = vmatprep.subr.bf16.mxu0 0
        %1703 = vmatpush1.bf16.msra.mxu0 %v1687
        %1704 = vmatprep.subr.bf16.mxu0 0
        %1705 = vmatpush1.bf16.msra.mxu0 %v1686
        %1706 = vmatprep.subr.bf16.mxu0 0
        %1707 = vmatpush2.bf16.msra.mxu0 0
        %1708 = vmatprep.subr.bf16.mxu0 0
        %1709 = vmatpush2.bf16.msra.mxu0 0
        %1710 = vmatprep.subr.bf16.mxu0 0
        %1711 = vmatpush2.bf16.msra.mxu0 0
        %1712 = vmatprep.subr.bf16.mxu0 0
        %1713 = vmatpush2.bf16.msra.mxu0 0
        %1714 = vmatprep.subr.bf16.mxu0 0
        %1715 = vmatpush2.bf16.msra.mxu0 0
        %1716 = vmatprep.subr.bf16.mxu0 0
        %1717 = vmatpush2.bf16.msra.mxu0 0
        %1718 = vmatprep.subr.bf16.mxu0 0
        %1719 = vmatpush2.bf16.msra.mxu0 0
        %1720 = vmatprep.subr.bf16.mxu0 0
        %1721 = vmatpush2.bf16.msra.mxu0 0
        %1722 = vmatprep.mubr.bf16.mxu0 0
        %1723 = vmatmul.mubr.bf16.gmra.mxu0 %v338
        %v1724 = vpop.f32.mrf.mxu0
        %v1725 = vadd.f32 %v1676, %v1724
        %v1726 = vpop.f32.mrf.mxu0
        %v1727 = vpop.f32.mrf.mxu0
        %v1728 = vadd.f32 %v1676, %v1727
        %v1729 = vpop.f32.mrf.mxu0
        %1730 = vmatprep.mubr.bf16.mxu0 0
        %1731 = vmatmul.mubr.bf16.gmra.mxu0 %v341
        %v1732 = vpop.f32.mrf.mxu0
        %v1733 = vadd.f32 %v1676, %v1732
        %v1734 = vpop.f32.mrf.mxu0
        %v1735 = vpop.f32.mrf.mxu0
        %v1736 = vadd.f32 %v1676, %v1735
        %v1737 = vpop.f32.mrf.mxu0
        %1738 = vmatprep.mubr.bf16.mxu0 0
        %1739 = vmatmul.mubr.bf16.gmra.mxu0 %v344
        %v1740 = vpop.f32.mrf.mxu0
        %v1741 = vadd.f32 %v1676, %v1740
        %v1742 = vpop.f32.mrf.mxu0
        %v1743 = vpop.f32.mrf.mxu0
        %v1744 = vadd.f32 %v1676, %v1743
        %v1745 = vpop.f32.mrf.mxu0
        %1746 = vmatprep.mubr.bf16.mxu0 0
        %1747 = vmatmul.mubr.bf16.gmra.mxu0 %v347
        %v1748 = vpop.f32.mrf.mxu0
        %v1749 = vadd.f32 %v1676, %v1748
        %v1750 = vpop.f32.mrf.mxu0
        %v1751 = vpop.f32.mrf.mxu0
        %v1752 = vadd.f32 %v1676, %v1751
        %v1753 = vpop.f32.mrf.mxu0
        %1754 = vmatprep.mubr.bf16.mxu0 0
        %1755 = vmatmul.mubr.bf16.gmra.mxu0 %v350
        %v1756 = vpop.f32.mrf.mxu0
        %v1757 = vadd.f32 %v1676, %v1756
        %v1758 = vpop.f32.mrf.mxu0
        %v1759 = vpop.f32.mrf.mxu0
        %v1760 = vadd.f32 %v1676, %v1759
        %v1761 = vpop.f32.mrf.mxu0
        %1762 = vmatprep.mubr.bf16.mxu0 0
        %1763 = vmatmul.mubr.bf16.gmra.mxu0 %v353
        %v1764 = vpop.f32.mrf.mxu0
        %v1765 = vadd.f32 %v1676, %v1764
        %v1766 = vpop.f32.mrf.mxu0
        %v1767 = vpop.f32.mrf.mxu0
        %v1768 = vadd.f32 %v1676, %v1767
        %v1769 = vpop.f32.mrf.mxu0
        %1770 = vmatprep.mubr.bf16.mxu0 0
        %1771 = vmatmul.mubr.bf16.gmra.mxu0 %v356
        %v1772 = vpop.f32.mrf.mxu0
        %v1773 = vadd.f32 %v1676, %v1772
        %v1774 = vpop.f32.mrf.mxu0
        %v1775 = vpop.f32.mrf.mxu0
        %v1776 = vadd.f32 %v1676, %v1775
        %v1777 = vpop.f32.mrf.mxu0
        %1778 = vmatprep.mubr.bf16.mxu0 0
        %1779 = vmatmul.mubr.bf16.gmra.mxu0 %v359
        %v1780 = vpop.f32.mrf.mxu0
        %v1781 = vadd.f32 %v1676, %v1780
        %v1782 = vpop.f32.mrf.mxu0
        %v1783 = vpop.f32.mrf.mxu0
        %v1784 = vadd.f32 %v1676, %v1783
        %v1785 = vpop.f32.mrf.mxu0
        %1786 = vdwg.mxu0
        %v1787 = vmul.f32 %v1725, 0.35355338
        %v1788 = vmul.f32 %v1728, 0.35355338
        %v1789 = vmul.f32 %v1733, 0.35355338
        %v1790 = vmul.f32 %v1736, 0.35355338
        %v1791 = vmul.f32 %v1741, 0.35355338
        %v1792 = vmul.f32 %v1744, 0.35355338
        %v1793 = vmul.f32 %v1749, 0.35355338
        %v1794 = vmul.f32 %v1752, 0.35355338
        %v1795 = vmul.f32 %v1757, 0.35355338
        %v1796 = vmul.f32 %v1760, 0.35355338
        %v1797 = vmul.f32 %v1765, 0.35355338
        %v1798 = vmul.f32 %v1768, 0.35355338
        %v1799 = vmul.f32 %v1773, 0.35355338
        %v1800 = vmul.f32 %v1776, 0.35355338
        %v1801 = vmul.f32 %v1781, 0.35355338
        %v1802 = vmul.f32 %v1784, 0.35355338
        %s1803 = scalar_lea.vmem %s2, 5
        %v1804 = vld [vmem:[%s1803] sm:$0x1]
        %v1806 = vlaneseq
        %v1807 = vshrl.u32 %v1806, 7
        %v1808 = vsub.s32 0, %v1807
        %v1809 = vrot.slane %v1804, %v1808
        %v1815 = vunpack.c.l.b16 %v1661
        %v1816 = vunpack.c.l.b16 %v1662
        %v1817 = vunpack.c.l.b16 %v1663
        %v1818 = vunpack.c.l.b16 %v1664
        %v1819 = vpack.c.b16 %v1816, %v1815
        %v1820 = vpack.c.b16 %v1818, %v1817
        %1823 = vmatprep.subr.bf16.mxu0 0
        %1824 = vmatpush1.bf16.msra.mxu0 0
        %1825 = vmatprep.subr.bf16.mxu0 0
        %1826 = vmatpush1.bf16.msra.mxu0 0
        %1827 = vmatprep.subr.bf16.mxu0 0
        %1828 = vmatpush1.bf16.msra.mxu0 0
        %1829 = vmatprep.subr.bf16.mxu0 0
        %1830 = vmatpush1.bf16.msra.mxu0 0
        %1831 = vmatprep.subr.bf16.mxu0 0
        %1832 = vmatpush1.bf16.msra.mxu0 0
        %1833 = vmatprep.subr.bf16.mxu0 0
        %1834 = vmatpush1.bf16.msra.mxu0 0
        %1835 = vmatprep.subr.bf16.mxu0 0
        %1836 = vmatpush1.bf16.msra.mxu0 %v1820
        %1837 = vmatprep.subr.bf16.mxu0 0
        %1838 = vmatpush1.bf16.msra.mxu0 %v1819
        %1839 = vmatprep.subr.bf16.mxu0 0
        %1840 = vmatpush2.bf16.msra.mxu0 0
        %1841 = vmatprep.subr.bf16.mxu0 0
        %1842 = vmatpush2.bf16.msra.mxu0 0
        %1843 = vmatprep.subr.bf16.mxu0 0
        %1844 = vmatpush2.bf16.msra.mxu0 0
        %1845 = vmatprep.subr.bf16.mxu0 0
        %1846 = vmatpush2.bf16.msra.mxu0 0
        %1847 = vmatprep.subr.bf16.mxu0 0
        %1848 = vmatpush2.bf16.msra.mxu0 0
        %1849 = vmatprep.subr.bf16.mxu0 0
        %1850 = vmatpush2.bf16.msra.mxu0 0
        %1851 = vmatprep.subr.bf16.mxu0 0
        %1852 = vmatpush2.bf16.msra.mxu0 0
        %1853 = vmatprep.subr.bf16.mxu0 0
        %1854 = vmatpush2.bf16.msra.mxu0 0
        %1855 = vmatprep.mubr.bf16.mxu0 0
        %1856 = vmatmul.mubr.bf16.gmra.mxu0 %v338
        %v1857 = vpop.f32.mrf.mxu0
        %v1858 = vadd.f32 %v1809, %v1857
        %v1859 = vpop.f32.mrf.mxu0
        %v1860 = vpop.f32.mrf.mxu0
        %v1861 = vadd.f32 %v1809, %v1860
        %v1862 = vpop.f32.mrf.mxu0
        %1863 = vmatprep.mubr.bf16.mxu0 0
        %1864 = vmatmul.mubr.bf16.gmra.mxu0 %v341
        %v1865 = vpop.f32.mrf.mxu0
        %v1866 = vadd.f32 %v1809, %v1865
        %v1867 = vpop.f32.mrf.mxu0
        %v1868 = vpop.f32.mrf.mxu0
        %v1869 = vadd.f32 %v1809, %v1868
        %v1870 = vpop.f32.mrf.mxu0
        %1871 = vmatprep.mubr.bf16.mxu0 0
        %1872 = vmatmul.mubr.bf16.gmra.mxu0 %v344
        %v1873 = vpop.f32.mrf.mxu0
        %v1874 = vadd.f32 %v1809, %v1873
        %v1875 = vpop.f32.mrf.mxu0
        %v1876 = vpop.f32.mrf.mxu0
        %v1877 = vadd.f32 %v1809, %v1876
        %v1878 = vpop.f32.mrf.mxu0
        %1879 = vmatprep.mubr.bf16.mxu0 0
        %1880 = vmatmul.mubr.bf16.gmra.mxu0 %v347
        %v1881 = vpop.f32.mrf.mxu0
        %v1882 = vadd.f32 %v1809, %v1881
        %v1883 = vpop.f32.mrf.mxu0
        %v1884 = vpop.f32.mrf.mxu0
        %v1885 = vadd.f32 %v1809, %v1884
        %v1886 = vpop.f32.mrf.mxu0
        %1887 = vmatprep.mubr.bf16.mxu0 0
        %1888 = vmatmul.mubr.bf16.gmra.mxu0 %v350
        %v1889 = vpop.f32.mrf.mxu0
        %v1890 = vadd.f32 %v1809, %v1889
        %v1891 = vpop.f32.mrf.mxu0
        %v1892 = vpop.f32.mrf.mxu0
        %v1893 = vadd.f32 %v1809, %v1892
        %v1894 = vpop.f32.mrf.mxu0
        %1895 = vmatprep.mubr.bf16.mxu0 0
        %1896 = vmatmul.mubr.bf16.gmra.mxu0 %v353
        %v1897 = vpop.f32.mrf.mxu0
        %v1898 = vadd.f32 %v1809, %v1897
        %v1899 = vpop.f32.mrf.mxu0
        %v1900 = vpop.f32.mrf.mxu0
        %v1901 = vadd.f32 %v1809, %v1900
        %v1902 = vpop.f32.mrf.mxu0
        %1903 = vmatprep.mubr.bf16.mxu0 0
        %1904 = vmatmul.mubr.bf16.gmra.mxu0 %v356
        %v1905 = vpop.f32.mrf.mxu0
        %v1906 = vadd.f32 %v1809, %v1905
        %v1907 = vpop.f32.mrf.mxu0
        %v1908 = vpop.f32.mrf.mxu0
        %v1909 = vadd.f32 %v1809, %v1908
        %v1910 = vpop.f32.mrf.mxu0
        %1911 = vmatprep.mubr.bf16.mxu0 0
        %1912 = vmatmul.mubr.bf16.gmra.mxu0 %v359
        %v1913 = vpop.f32.mrf.mxu0
        %v1914 = vadd.f32 %v1809, %v1913
        %v1915 = vpop.f32.mrf.mxu0
        %v1916 = vpop.f32.mrf.mxu0
        %v1917 = vadd.f32 %v1809, %v1916
        %v1918 = vpop.f32.mrf.mxu0
        %1919 = vdwg.mxu0
        %s1920 = scalar_lea.vmem %s2, 9
        %v1921 = vld [vmem:[%s1920] sm:$0x1]
        %v1923 = vlaneseq
        %v1924 = vshrl.u32 %v1923, 7
        %v1925 = vsub.s32 0, %v1924
        %v1926 = vrot.slane %v1921, %v1925
        %v1932 = vunpack.c.l.b16 %v1666
        %v1933 = vunpack.c.l.b16 %v1667
        %v1934 = vunpack.c.l.b16 %v1668
        %v1935 = vunpack.c.l.b16 %v1669
        %v1936 = vpack.c.b16 %v1933, %v1932
        %v1937 = vpack.c.b16 %v1935, %v1934
        %1940 = vmatprep.subr.bf16.mxu0 0
        %1941 = vmatpush1.bf16.msra.mxu0 0
        %1942 = vmatprep.subr.bf16.mxu0 0
        %1943 = vmatpush1.bf16.msra.mxu0 0
        %1944 = vmatprep.subr.bf16.mxu0 0
        %1945 = vmatpush1.bf16.msra.mxu0 0
        %1946 = vmatprep.subr.bf16.mxu0 0
        %1947 = vmatpush1.bf16.msra.mxu0 0
        %1948 = vmatprep.subr.bf16.mxu0 0
        %1949 = vmatpush1.bf16.msra.mxu0 0
        %1950 = vmatprep.subr.bf16.mxu0 0
        %1951 = vmatpush1.bf16.msra.mxu0 0
        %1952 = vmatprep.subr.bf16.mxu0 0
        %1953 = vmatpush1.bf16.msra.mxu0 %v1937
        %1954 = vmatprep.subr.bf16.mxu0 0
        %1955 = vmatpush1.bf16.msra.mxu0 %v1936
        %1956 = vmatprep.subr.bf16.mxu0 0
        %1957 = vmatpush2.bf16.msra.mxu0 0
        %1958 = vmatprep.subr.bf16.mxu0 0
        %1959 = vmatpush2.bf16.msra.mxu0 0
        %1960 = vmatprep.subr.bf16.mxu0 0
        %1961 = vmatpush2.bf16.msra.mxu0 0
        %1962 = vmatprep.subr.bf16.mxu0 0
        %1963 = vmatpush2.bf16.msra.mxu0 0
        %1964 = vmatprep.subr.bf16.mxu0 0
        %1965 = vmatpush2.bf16.msra.mxu0 0
        %1966 = vmatprep.subr.bf16.mxu0 0
        %1967 = vmatpush2.bf16.msra.mxu0 0
        %1968 = vmatprep.subr.bf16.mxu0 0
        %1969 = vmatpush2.bf16.msra.mxu0 0
        %1970 = vmatprep.subr.bf16.mxu0 0
        %1971 = vmatpush2.bf16.msra.mxu0 0
        %1972 = vmatprep.mubr.bf16.mxu0 0
        %1973 = vmatmul.mubr.bf16.gmra.mxu0 %v338
        %v1974 = vpop.f32.mrf.mxu0
        %v1975 = vadd.f32 %v1926, %v1974
        %v1976 = vpop.f32.mrf.mxu0
        %v1977 = vpop.f32.mrf.mxu0
        %v1978 = vadd.f32 %v1926, %v1977
        %v1979 = vpop.f32.mrf.mxu0
        %1980 = vmatprep.mubr.bf16.mxu0 0
        %1981 = vmatmul.mubr.bf16.gmra.mxu0 %v341
        %v1982 = vpop.f32.mrf.mxu0
        %v1983 = vadd.f32 %v1926, %v1982
        %v1984 = vpop.f32.mrf.mxu0
        %v1985 = vpop.f32.mrf.mxu0
        %v1986 = vadd.f32 %v1926, %v1985
        %v1987 = vpop.f32.mrf.mxu0
        %1988 = vmatprep.mubr.bf16.mxu0 0
        %1989 = vmatmul.mubr.bf16.gmra.mxu0 %v344
        %v1990 = vpop.f32.mrf.mxu0
        %v1991 = vadd.f32 %v1926, %v1990
        %v1992 = vpop.f32.mrf.mxu0
        %v1993 = vpop.f32.mrf.mxu0
        %v1994 = vadd.f32 %v1926, %v1993
        %v1995 = vpop.f32.mrf.mxu0
        %1996 = vmatprep.mubr.bf16.mxu0 0
        %1997 = vmatmul.mubr.bf16.gmra.mxu0 %v347
        %v1998 = vpop.f32.mrf.mxu0
        %v1999 = vadd.f32 %v1926, %v1998
        %v2000 = vpop.f32.mrf.mxu0
        %v2001 = vpop.f32.mrf.mxu0
        %v2002 = vadd.f32 %v1926, %v2001
        %v2003 = vpop.f32.mrf.mxu0
        %2004 = vmatprep.mubr.bf16.mxu0 0
        %2005 = vmatmul.mubr.bf16.gmra.mxu0 %v350
        %v2006 = vpop.f32.mrf.mxu0
        %v2007 = vadd.f32 %v1926, %v2006
        %v2008 = vpop.f32.mrf.mxu0
        %v2009 = vpop.f32.mrf.mxu0
        %v2010 = vadd.f32 %v1926, %v2009
        %v2011 = vpop.f32.mrf.mxu0
        %2012 = vmatprep.mubr.bf16.mxu0 0
        %2013 = vmatmul.mubr.bf16.gmra.mxu0 %v353
        %v2014 = vpop.f32.mrf.mxu0
        %v2015 = vadd.f32 %v1926, %v2014
        %v2016 = vpop.f32.mrf.mxu0
        %v2017 = vpop.f32.mrf.mxu0
        %v2018 = vadd.f32 %v1926, %v2017
        %v2019 = vpop.f32.mrf.mxu0
        %2020 = vmatprep.mubr.bf16.mxu0 0
        %2021 = vmatmul.mubr.bf16.gmra.mxu0 %v356
        %v2022 = vpop.f32.mrf.mxu0
        %v2023 = vadd.f32 %v1926, %v2022
        %v2024 = vpop.f32.mrf.mxu0
        %v2025 = vpop.f32.mrf.mxu0
        %v2026 = vadd.f32 %v1926, %v2025
        %v2027 = vpop.f32.mrf.mxu0
        %2028 = vmatprep.mubr.bf16.mxu0 0
        %2029 = vmatmul.mubr.bf16.gmra.mxu0 %v359
        %v2030 = vpop.f32.mrf.mxu0
        %v2031 = vadd.f32 %v1926, %v2030
        %v2032 = vpop.f32.mrf.mxu0
        %v2033 = vpop.f32.mrf.mxu0
        %v2034 = vadd.f32 %v1926, %v2033
        %v2035 = vpop.f32.mrf.mxu0
        %2036 = vdwg.mxu0
        %v2037 = vpack.c.bf16 %v1788, %v1787
        %v2038 = vpack.c.bf16 %v1790, %v1789
        %v2039 = vpack.c.bf16 %v1792, %v1791
        %v2040 = vpack.c.bf16 %v1794, %v1793
        %v2041 = vpack.c.bf16 %v1796, %v1795
        %v2042 = vpack.c.bf16 %v1798, %v1797
        %v2043 = vpack.c.bf16 %v1800, %v1799
        %v2044 = vpack.c.bf16 %v1802, %v1801
        %v2045 = vpack.c.bf16 %v1861, %v1858
        %v2046 = vpack.c.bf16 %v1869, %v1866
        %v2047 = vpack.c.bf16 %v1877, %v1874
        %v2048 = vpack.c.bf16 %v1885, %v1882
        %v2049 = vpack.c.bf16 %v1893, %v1890
        %v2050 = vpack.c.bf16 %v1901, %v1898
        %v2051 = vpack.c.bf16 %v1909, %v1906
        %v2052 = vpack.c.bf16 %v1917, %v1914
        %v2053 = vpack.c.bf16 %v1978, %v1975
        %v2054 = vpack.c.bf16 %v1986, %v1983
        %v2055 = vpack.c.bf16 %v1994, %v1991
        %v2056 = vpack.c.bf16 %v2002, %v1999
        %v2057 = vpack.c.bf16 %v2010, %v2007
        %v2058 = vpack.c.bf16 %v2018, %v2015
        %v2059 = vpack.c.bf16 %v2026, %v2023
        %v2060 = vpack.c.bf16 %v2034, %v2031
        %v2062 = vsel %vm732, %v2037, 0
        %v2065 = vsel %vm732, %v2045, 0
        %2067 = vmatprep.subr.bf16.mxu0 0
        %2068 = vmatpush1.bf16.xpose.msra.mxu0 0
        %2069 = vmatprep.subr.bf16.mxu0 0
        %2070 = vmatpush1.bf16.xpose.msra.mxu0 0
        %2071 = vmatprep.subr.bf16.mxu0 0
        %2072 = vmatpush1.bf16.xpose.msra.mxu0 0
        %2073 = vmatprep.subr.bf16.mxu0 0
        %2074 = vmatpush1.bf16.xpose.msra.mxu0 0
        %2075 = vmatprep.subr.bf16.mxu0 0
        %2076 = vmatpush1.bf16.xpose.msra.mxu0 0
        %2077 = vmatprep.subr.bf16.mxu0 0
        %2078 = vmatpush1.bf16.xpose.msra.mxu0 0
        %2079 = vmatprep.subr.bf16.mxu0 0
        %2080 = vmatpush1.bf16.xpose.msra.mxu0 0
        %2081 = vmatprep.subr.bf16.mxu0 0
        %2082 = vmatpush1.bf16.xpose.msra.mxu0 %v2065
        %2083 = vmatprep.subr.bf16.mxu0 0
        %2084 = vmatpush2.bf16.xpose.msra.mxu0 0
        %2085 = vmatprep.subr.bf16.mxu0 0
        %2086 = vmatpush2.bf16.xpose.msra.mxu0 0
        %2087 = vmatprep.subr.bf16.mxu0 0
        %2088 = vmatpush2.bf16.xpose.msra.mxu0 0
        %2089 = vmatprep.subr.bf16.mxu0 0
        %2090 = vmatpush2.bf16.xpose.msra.mxu0 0
        %2091 = vmatprep.subr.bf16.mxu0 0
        %2092 = vmatpush2.bf16.xpose.msra.mxu0 0
        %2093 = vmatprep.subr.bf16.mxu0 0
        %2094 = vmatpush2.bf16.xpose.msra.mxu0 0
        %2095 = vmatprep.subr.bf16.mxu0 0
        %2096 = vmatpush2.bf16.xpose.msra.mxu0 0
        %2097 = vmatprep.subr.bf16.mxu0 0
        %2098 = vmatpush2.bf16.xpose.msra.mxu0 0
        %2099 = vmatprep.mubr.bf16.mxu0 0
        %2100 = vmatmul.mubr.bf16.gmra.mxu0 %v2062
        %v2101 = vpop.f32.mrf.mxu0
        %v2102 = vadd.f32 0.0, %v2101
        %v2103 = vpop.f32.mrf.mxu0
        %v2104 = vpop.f32.mrf.mxu0
        %v2105 = vadd.f32 0.0, %v2104
        %v2106 = vpop.f32.mrf.mxu0
        %2107 = vdwg.mxu0
        %v2109 = vsel %vm732, %v2038, 0
        %v2112 = vsel %vm732, %v2046, 0
        %2114 = vmatprep.subr.bf16.mxu0 0
        %2115 = vmatpush1.bf16.xpose.msra.mxu0 0
        %2116 = vmatprep.subr.bf16.mxu0 0
        %2117 = vmatpush1.bf16.xpose.msra.mxu0 0
        %2118 = vmatprep.subr.bf16.mxu0 0
        %2119 = vmatpush1.bf16.xpose.msra.mxu0 0
        %2120 = vmatprep.subr.bf16.mxu0 0
        %2121 = vmatpush1.bf16.xpose.msra.mxu0 0
        %2122 = vmatprep.subr.bf16.mxu0 0
        %2123 = vmatpush1.bf16.xpose.msra.mxu0 0
        %2124 = vmatprep.subr.bf16.mxu0 0
        %2125 = vmatpush1.bf16.xpose.msra.mxu0 0
        %2126 = vmatprep.subr.bf16.mxu0 0
        %2127 = vmatpush1.bf16.xpose.msra.mxu0 0
        %2128 = vmatprep.subr.bf16.mxu0 0
        %2129 = vmatpush1.bf16.xpose.msra.mxu0 %v2112
        %2130 = vmatprep.subr.bf16.mxu0 0
        %2131 = vmatpush2.bf16.xpose.msra.mxu0 0
        %2132 = vmatprep.subr.bf16.mxu0 0
        %2133 = vmatpush2.bf16.xpose.msra.mxu0 0
        %2134 = vmatprep.subr.bf16.mxu0 0
        %2135 = vmatpush2.bf16.xpose.msra.mxu0 0
        %2136 = vmatprep.subr.bf16.mxu0 0
        %2137 = vmatpush2.bf16.xpose.msra.mxu0 0
        %2138 = vmatprep.subr.bf16.mxu0 0
        %2139 = vmatpush2.bf16.xpose.msra.mxu0 0
        %2140 = vmatprep.subr.bf16.mxu0 0
        %2141 = vmatpush2.bf16.xpose.msra.mxu0 0
        %2142 = vmatprep.subr.bf16.mxu0 0
        %2143 = vmatpush2.bf16.xpose.msra.mxu0 0
        %2144 = vmatprep.subr.bf16.mxu0 0
        %2145 = vmatpush2.bf16.xpose.msra.mxu0 0
        %2146 = vmatprep.mubr.bf16.mxu0 0
        %2147 = vmatmul.mubr.bf16.gmra.mxu0 %v2109
        %v2148 = vpop.f32.mrf.mxu0
        %v2149 = vadd.f32 0.0, %v2148
        %v2150 = vpop.f32.mrf.mxu0
        %v2151 = vpop.f32.mrf.mxu0
        %v2152 = vadd.f32 0.0, %v2151
        %v2153 = vpop.f32.mrf.mxu0
        %2154 = vdwg.mxu0
        %v2156 = vsel %vm732, %v2039, 0
        %v2159 = vsel %vm732, %v2047, 0
        %2161 = vmatprep.subr.bf16.mxu0 0
        %2162 = vmatpush1.bf16.xpose.msra.mxu0 0
        %2163 = vmatprep.subr.bf16.mxu0 0
        %2164 = vmatpush1.bf16.xpose.msra.mxu0 0
        %2165 = vmatprep.subr.bf16.mxu0 0
        %2166 = vmatpush1.bf16.xpose.msra.mxu0 0
        %2167 = vmatprep.subr.bf16.mxu0 0
        %2168 = vmatpush1.bf16.xpose.msra.mxu0 0
        %2169 = vmatprep.subr.bf16.mxu0 0
        %2170 = vmatpush1.bf16.xpose.msra.mxu0 0
        %2171 = vmatprep.subr.bf16.mxu0 0
        %2172 = vmatpush1.bf16.xpose.msra.mxu0 0
        %2173 = vmatprep.subr.bf16.mxu0 0
        %2174 = vmatpush1.bf16.xpose.msra.mxu0 0
        %2175 = vmatprep.subr.bf16.mxu0 0
        %2176 = vmatpush1.bf16.xpose.msra.mxu0 %v2159
        %2177 = vmatprep.subr.bf16.mxu0 0
        %2178 = vmatpush2.bf16.xpose.msra.mxu0 0
        %2179 = vmatprep.subr.bf16.mxu0 0
        %2180 = vmatpush2.bf16.xpose.msra.mxu0 0
        %2181 = vmatprep.subr.bf16.mxu0 0
        %2182 = vmatpush2.bf16.xpose.msra.mxu0 0
        %2183 = vmatprep.subr.bf16.mxu0 0
        %2184 = vmatpush2.bf16.xpose.msra.mxu0 0
        %2185 = vmatprep.subr.bf16.mxu0 0
        %2186 = vmatpush2.bf16.xpose.msra.mxu0 0
        %2187 = vmatprep.subr.bf16.mxu0 0
        %2188 = vmatpush2.bf16.xpose.msra.mxu0 0
        %2189 = vmatprep.subr.bf16.mxu0 0
        %2190 = vmatpush2.bf16.xpose.msra.mxu0 0
        %2191 = vmatprep.subr.bf16.mxu0 0
        %2192 = vmatpush2.bf16.xpose.msra.mxu0 0
        %2193 = vmatprep.mubr.bf16.mxu0 0
        %2194 = vmatmul.mubr.bf16.gmra.mxu0 %v2156
        %v2195 = vpop.f32.mrf.mxu0
        %v2196 = vadd.f32 0.0, %v2195
        %v2197 = vpop.f32.mrf.mxu0
        %v2198 = vpop.f32.mrf.mxu0
        %v2199 = vadd.f32 0.0, %v2198
        %v2200 = vpop.f32.mrf.mxu0
        %2201 = vdwg.mxu0
        %v2203 = vsel %vm732, %v2040, 0
        %v2206 = vsel %vm732, %v2048, 0
        %2208 = vmatprep.subr.bf16.mxu0 0
        %2209 = vmatpush1.bf16.xpose.msra.mxu0 0
        %2210 = vmatprep.subr.bf16.mxu0 0
        %2211 = vmatpush1.bf16.xpose.msra.mxu0 0
        %2212 = vmatprep.subr.bf16.mxu0 0
        %2213 = vmatpush1.bf16.xpose.msra.mxu0 0
        %2214 = vmatprep.subr.bf16.mxu0 0
        %2215 = vmatpush1.bf16.xpose.msra.mxu0 0
        %2216 = vmatprep.subr.bf16.mxu0 0
        %2217 = vmatpush1.bf16.xpose.msra.mxu0 0
        %2218 = vmatprep.subr.bf16.mxu0 0
        %2219 = vmatpush1.bf16.xpose.msra.mxu0 0
        %2220 = vmatprep.subr.bf16.mxu0 0
        %2221 = vmatpush1.bf16.xpose.msra.mxu0 0
        %2222 = vmatprep.subr.bf16.mxu0 0
        %2223 = vmatpush1.bf16.xpose.msra.mxu0 %v2206
        %2224 = vmatprep.subr.bf16.mxu0 0
        %2225 = vmatpush2.bf16.xpose.msra.mxu0 0
        %2226 = vmatprep.subr.bf16.mxu0 0
        %2227 = vmatpush2.bf16.xpose.msra.mxu0 0
        %2228 = vmatprep.subr.bf16.mxu0 0
        %2229 = vmatpush2.bf16.xpose.msra.mxu0 0
        %2230 = vmatprep.subr.bf16.mxu0 0
        %2231 = vmatpush2.bf16.xpose.msra.mxu0 0
        %2232 = vmatprep.subr.bf16.mxu0 0
        %2233 = vmatpush2.bf16.xpose.msra.mxu0 0
        %2234 = vmatprep.subr.bf16.mxu0 0
        %2235 = vmatpush2.bf16.xpose.msra.mxu0 0
        %2236 = vmatprep.subr.bf16.mxu0 0
        %2237 = vmatpush2.bf16.xpose.msra.mxu0 0
        %2238 = vmatprep.subr.bf16.mxu0 0
        %2239 = vmatpush2.bf16.xpose.msra.mxu0 0
        %2240 = vmatprep.mubr.bf16.mxu0 0
        %2241 = vmatmul.mubr.bf16.gmra.mxu0 %v2203
        %v2242 = vpop.f32.mrf.mxu0
        %v2243 = vadd.f32 0.0, %v2242
        %v2244 = vpop.f32.mrf.mxu0
        %v2245 = vpop.f32.mrf.mxu0
        %v2246 = vadd.f32 0.0, %v2245
        %v2247 = vpop.f32.mrf.mxu0
        %2248 = vdwg.mxu0
        %v2250 = vsel %vm732, %v2041, 0
        %v2253 = vsel %vm732, %v2049, 0
        %2255 = vmatprep.subr.bf16.mxu0 0
        %2256 = vmatpush1.bf16.xpose.msra.mxu0 0
        %2257 = vmatprep.subr.bf16.mxu0 0
        %2258 = vmatpush1.bf16.xpose.msra.mxu0 0
        %2259 = vmatprep.subr.bf16.mxu0 0
        %2260 = vmatpush1.bf16.xpose.msra.mxu0 0
        %2261 = vmatprep.subr.bf16.mxu0 0
        %2262 = vmatpush1.bf16.xpose.msra.mxu0 0
        %2263 = vmatprep.subr.bf16.mxu0 0
        %2264 = vmatpush1.bf16.xpose.msra.mxu0 0
        %2265 = vmatprep.subr.bf16.mxu0 0
        %2266 = vmatpush1.bf16.xpose.msra.mxu0 0
        %2267 = vmatprep.subr.bf16.mxu0 0
        %2268 = vmatpush1.bf16.xpose.msra.mxu0 0
        %2269 = vmatprep.subr.bf16.mxu0 0
        %2270 = vmatpush1.bf16.xpose.msra.mxu0 %v2253
        %2271 = vmatprep.subr.bf16.mxu0 0
        %2272 = vmatpush2.bf16.xpose.msra.mxu0 0
        %2273 = vmatprep.subr.bf16.mxu0 0
        %2274 = vmatpush2.bf16.xpose.msra.mxu0 0
        %2275 = vmatprep.subr.bf16.mxu0 0
        %2276 = vmatpush2.bf16.xpose.msra.mxu0 0
        %2277 = vmatprep.subr.bf16.mxu0 0
        %2278 = vmatpush2.bf16.xpose.msra.mxu0 0
        %2279 = vmatprep.subr.bf16.mxu0 0
        %2280 = vmatpush2.bf16.xpose.msra.mxu0 0
        %2281 = vmatprep.subr.bf16.mxu0 0
        %2282 = vmatpush2.bf16.xpose.msra.mxu0 0
        %2283 = vmatprep.subr.bf16.mxu0 0
        %2284 = vmatpush2.bf16.xpose.msra.mxu0 0
        %2285 = vmatprep.subr.bf16.mxu0 0
        %2286 = vmatpush2.bf16.xpose.msra.mxu0 0
        %2287 = vmatprep.mubr.bf16.mxu0 0
        %2288 = vmatmul.mubr.bf16.gmra.mxu0 %v2250
        %v2289 = vpop.f32.mrf.mxu0
        %v2290 = vadd.f32 0.0, %v2289
        %v2291 = vpop.f32.mrf.mxu0
        %v2292 = vpop.f32.mrf.mxu0
        %v2293 = vadd.f32 0.0, %v2292
        %v2294 = vpop.f32.mrf.mxu0
        %2295 = vdwg.mxu0
        %v2297 = vsel %vm732, %v2042, 0
        %v2300 = vsel %vm732, %v2050, 0
        %2302 = vmatprep.subr.bf16.mxu0 0
        %2303 = vmatpush1.bf16.xpose.msra.mxu0 0
        %2304 = vmatprep.subr.bf16.mxu0 0
        %2305 = vmatpush1.bf16.xpose.msra.mxu0 0
        %2306 = vmatprep.subr.bf16.mxu0 0
        %2307 = vmatpush1.bf16.xpose.msra.mxu0 0
        %2308 = vmatprep.subr.bf16.mxu0 0
        %2309 = vmatpush1.bf16.xpose.msra.mxu0 0
        %2310 = vmatprep.subr.bf16.mxu0 0
        %2311 = vmatpush1.bf16.xpose.msra.mxu0 0
        %2312 = vmatprep.subr.bf16.mxu0 0
        %2313 = vmatpush1.bf16.xpose.msra.mxu0 0
        %2314 = vmatprep.subr.bf16.mxu0 0
        %2315 = vmatpush1.bf16.xpose.msra.mxu0 0
        %2316 = vmatprep.subr.bf16.mxu0 0
        %2317 = vmatpush1.bf16.xpose.msra.mxu0 %v2300
        %2318 = vmatprep.subr.bf16.mxu0 0
        %2319 = vmatpush2.bf16.xpose.msra.mxu0 0
        %2320 = vmatprep.subr.bf16.mxu0 0
        %2321 = vmatpush2.bf16.xpose.msra.mxu0 0
        %2322 = vmatprep.subr.bf16.mxu0 0
        %2323 = vmatpush2.bf16.xpose.msra.mxu0 0
        %2324 = vmatprep.subr.bf16.mxu0 0
        %2325 = vmatpush2.bf16.xpose.msra.mxu0 0
        %2326 = vmatprep.subr.bf16.mxu0 0
        %2327 = vmatpush2.bf16.xpose.msra.mxu0 0
        %2328 = vmatprep.subr.bf16.mxu0 0
        %2329 = vmatpush2.bf16.xpose.msra.mxu0 0
        %2330 = vmatprep.subr.bf16.mxu0 0
        %2331 = vmatpush2.bf16.xpose.msra.mxu0 0
        %2332 = vmatprep.subr.bf16.mxu0 0
        %2333 = vmatpush2.bf16.xpose.msra.mxu0 0
        %2334 = vmatprep.mubr.bf16.mxu0 0
        %2335 = vmatmul.mubr.bf16.gmra.mxu0 %v2297
        %v2336 = vpop.f32.mrf.mxu0
        %v2337 = vadd.f32 0.0, %v2336
        %v2338 = vpop.f32.mrf.mxu0
        %v2339 = vpop.f32.mrf.mxu0
        %v2340 = vadd.f32 0.0, %v2339
        %v2341 = vpop.f32.mrf.mxu0
        %2342 = vdwg.mxu0
        %v2344 = vsel %vm732, %v2043, 0
        %v2347 = vsel %vm732, %v2051, 0
        %2349 = vmatprep.subr.bf16.mxu0 0
        %2350 = vmatpush1.bf16.xpose.msra.mxu0 0
        %2351 = vmatprep.subr.bf16.mxu0 0
        %2352 = vmatpush1.bf16.xpose.msra.mxu0 0
        %2353 = vmatprep.subr.bf16.mxu0 0
        %2354 = vmatpush1.bf16.xpose.msra.mxu0 0
        %2355 = vmatprep.subr.bf16.mxu0 0
        %2356 = vmatpush1.bf16.xpose.msra.mxu0 0
        %2357 = vmatprep.subr.bf16.mxu0 0
        %2358 = vmatpush1.bf16.xpose.msra.mxu0 0
        %2359 = vmatprep.subr.bf16.mxu0 0
        %2360 = vmatpush1.bf16.xpose.msra.mxu0 0
        %2361 = vmatprep.subr.bf16.mxu0 0
        %2362 = vmatpush1.bf16.xpose.msra.mxu0 0
        %2363 = vmatprep.subr.bf16.mxu0 0
        %2364 = vmatpush1.bf16.xpose.msra.mxu0 %v2347
        %2365 = vmatprep.subr.bf16.mxu0 0
        %2366 = vmatpush2.bf16.xpose.msra.mxu0 0
        %2367 = vmatprep.subr.bf16.mxu0 0
        %2368 = vmatpush2.bf16.xpose.msra.mxu0 0
        %2369 = vmatprep.subr.bf16.mxu0 0
        %2370 = vmatpush2.bf16.xpose.msra.mxu0 0
        %2371 = vmatprep.subr.bf16.mxu0 0
        %2372 = vmatpush2.bf16.xpose.msra.mxu0 0
        %2373 = vmatprep.subr.bf16.mxu0 0
        %2374 = vmatpush2.bf16.xpose.msra.mxu0 0
        %2375 = vmatprep.subr.bf16.mxu0 0
        %2376 = vmatpush2.bf16.xpose.msra.mxu0 0
        %2377 = vmatprep.subr.bf16.mxu0 0
        %2378 = vmatpush2.bf16.xpose.msra.mxu0 0
        %2379 = vmatprep.subr.bf16.mxu0 0
        %2380 = vmatpush2.bf16.xpose.msra.mxu0 0
        %2381 = vmatprep.mubr.bf16.mxu0 0
        %2382 = vmatmul.mubr.bf16.gmra.mxu0 %v2344
        %v2383 = vpop.f32.mrf.mxu0
        %v2384 = vadd.f32 0.0, %v2383
        %v2385 = vpop.f32.mrf.mxu0
        %v2386 = vpop.f32.mrf.mxu0
        %v2387 = vadd.f32 0.0, %v2386
        %v2388 = vpop.f32.mrf.mxu0
        %2389 = vdwg.mxu0
        %v2391 = vsel %vm732, %v2044, 0
        %v2394 = vsel %vm732, %v2052, 0
        %2396 = vmatprep.subr.bf16.mxu0 0
        %2397 = vmatpush1.bf16.xpose.msra.mxu0 0
        %2398 = vmatprep.subr.bf16.mxu0 0
        %2399 = vmatpush1.bf16.xpose.msra.mxu0 0
        %2400 = vmatprep.subr.bf16.mxu0 0
        %2401 = vmatpush1.bf16.xpose.msra.mxu0 0
        %2402 = vmatprep.subr.bf16.mxu0 0
        %2403 = vmatpush1.bf16.xpose.msra.mxu0 0
        %2404 = vmatprep.subr.bf16.mxu0 0
        %2405 = vmatpush1.bf16.xpose.msra.mxu0 0
        %2406 = vmatprep.subr.bf16.mxu0 0
        %2407 = vmatpush1.bf16.xpose.msra.mxu0 0
        %2408 = vmatprep.subr.bf16.mxu0 0
        %2409 = vmatpush1.bf16.xpose.msra.mxu0 0
        %2410 = vmatprep.subr.bf16.mxu0 0
        %2411 = vmatpush1.bf16.xpose.msra.mxu0 %v2394
        %2412 = vmatprep.subr.bf16.mxu0 0
        %2413 = vmatpush2.bf16.xpose.msra.mxu0 0
        %2414 = vmatprep.subr.bf16.mxu0 0
        %2415 = vmatpush2.bf16.xpose.msra.mxu0 0
        %2416 = vmatprep.subr.bf16.mxu0 0
        %2417 = vmatpush2.bf16.xpose.msra.mxu0 0
        %2418 = vmatprep.subr.bf16.mxu0 0
        %2419 = vmatpush2.bf16.xpose.msra.mxu0 0
        %2420 = vmatprep.subr.bf16.mxu0 0
        %2421 = vmatpush2.bf16.xpose.msra.mxu0 0
        %2422 = vmatprep.subr.bf16.mxu0 0
        %2423 = vmatpush2.bf16.xpose.msra.mxu0 0
        %2424 = vmatprep.subr.bf16.mxu0 0
        %2425 = vmatpush2.bf16.xpose.msra.mxu0 0
        %2426 = vmatprep.subr.bf16.mxu0 0
        %2427 = vmatpush2.bf16.xpose.msra.mxu0 0
        %2428 = vmatprep.mubr.bf16.mxu0 0
        %2429 = vmatmul.mubr.bf16.gmra.mxu0 %v2391
        %v2430 = vpop.f32.mrf.mxu0
        %v2431 = vadd.f32 0.0, %v2430
        %v2432 = vpop.f32.mrf.mxu0
        %v2433 = vpop.f32.mrf.mxu0
        %v2434 = vadd.f32 0.0, %v2433
        %v2435 = vpop.f32.mrf.mxu0
        %2436 = vdwg.mxu0
        %v2437 = vsel %vm1109, %v2102, -inf
        %2438 = vmax.xlane.f32.xlu0 %v2437
        %v2439 = vpop.xlane.xlu0 %2438
        %v2440 = vsel %vm1109, %v2105, -inf
        %2441 = vmax.xlane.f32.xlu0 %v2440
        %v2442 = vpop.xlane.xlu0 %2441
        %v2443 = vsel %vm1109, %v2149, -inf
        %2444 = vmax.xlane.f32.xlu0 %v2443
        %v2445 = vpop.xlane.xlu0 %2444
        %v2446 = vsel %vm1109, %v2152, -inf
        %2447 = vmax.xlane.f32.xlu0 %v2446
        %v2448 = vpop.xlane.xlu0 %2447
        %v2449 = vsel %vm1109, %v2196, -inf
        %2450 = vmax.xlane.f32.xlu0 %v2449
        %v2451 = vpop.xlane.xlu0 %2450
        %v2452 = vsel %vm1109, %v2199, -inf
        %2453 = vmax.xlane.f32.xlu0 %v2452
        %v2454 = vpop.xlane.xlu0 %2453
        %v2455 = vsel %vm1109, %v2243, -inf
        %2456 = vmax.xlane.f32.xlu0 %v2455
        %v2457 = vpop.xlane.xlu0 %2456
        %v2458 = vsel %vm1109, %v2246, -inf
        %2459 = vmax.xlane.f32.xlu0 %v2458
        %v2460 = vpop.xlane.xlu0 %2459
        %v2461 = vsel %vm1109, %v2290, -inf
        %2462 = vmax.xlane.f32.xlu0 %v2461
        %v2463 = vpop.xlane.xlu0 %2462
        %v2464 = vsel %vm1109, %v2293, -inf
        %2465 = vmax.xlane.f32.xlu0 %v2464
        %v2466 = vpop.xlane.xlu0 %2465
        %v2467 = vsel %vm1109, %v2337, -inf
        %2468 = vmax.xlane.f32.xlu0 %v2467
        %v2469 = vpop.xlane.xlu0 %2468
        %v2470 = vsel %vm1109, %v2340, -inf
        %2471 = vmax.xlane.f32.xlu0 %v2470
        %v2472 = vpop.xlane.xlu0 %2471
        %v2473 = vsel %vm1109, %v2384, -inf
        %2474 = vmax.xlane.f32.xlu0 %v2473
        %v2475 = vpop.xlane.xlu0 %2474
        %v2476 = vsel %vm1109, %v2387, -inf
        %2477 = vmax.xlane.f32.xlu0 %v2476
        %v2478 = vpop.xlane.xlu0 %2477
        %v2479 = vsel %vm1109, %v2431, -inf
        %2480 = vmax.xlane.f32.xlu0 %v2479
        %v2481 = vpop.xlane.xlu0 %2480
        %v2482 = vsel %vm1109, %v2434, -inf
        %2483 = vmax.xlane.f32.xlu0 %v2482
        %v2484 = vpop.xlane.xlu0 %2483
        %v2485 = vsub.f32 %v2102, %v2439
        %v2486 = vsub.f32 %v2105, %v2442
        %v2487 = vsub.f32 %v2149, %v2445
        %v2488 = vsub.f32 %v2152, %v2448
        %v2489 = vsub.f32 %v2196, %v2451
        %v2490 = vsub.f32 %v2199, %v2454
        %v2491 = vsub.f32 %v2243, %v2457
        %v2492 = vsub.f32 %v2246, %v2460
        %v2493 = vsub.f32 %v2290, %v2463
        %v2494 = vsub.f32 %v2293, %v2466
        %v2495 = vsub.f32 %v2337, %v2469
        %v2496 = vsub.f32 %v2340, %v2472
        %v2497 = vsub.f32 %v2384, %v2475
        %v2498 = vsub.f32 %v2387, %v2478
        %v2499 = vsub.f32 %v2431, %v2481
        %v2500 = vsub.f32 %v2434, %v2484
        %v2501 = vmul.f32 %v2485, 1.442695
        %v2502 = vpow.pop %v2501
        %v2503 = vmul.f32 %v2486, 1.442695
        %v2504 = vpow.pop %v2503
        %v2505 = vmul.f32 %v2487, 1.442695
        %v2506 = vpow.pop %v2505
        %v2507 = vmul.f32 %v2488, 1.442695
        %v2508 = vpow.pop %v2507
        %v2509 = vmul.f32 %v2489, 1.442695
        %v2510 = vpow.pop %v2509
        %v2511 = vmul.f32 %v2490, 1.442695
        %v2512 = vpow.pop %v2511
        %v2513 = vmul.f32 %v2491, 1.442695
        %v2514 = vpow.pop %v2513
        %v2515 = vmul.f32 %v2492, 1.442695
        %v2516 = vpow.pop %v2515
        %v2517 = vmul.f32 %v2493, 1.442695
        %v2518 = vpow.pop %v2517
        %v2519 = vmul.f32 %v2494, 1.442695
        %v2520 = vpow.pop %v2519
        %v2521 = vmul.f32 %v2495, 1.442695
        %v2522 = vpow.pop %v2521
        %v2523 = vmul.f32 %v2496, 1.442695
        %v2524 = vpow.pop %v2523
        %v2525 = vmul.f32 %v2497, 1.442695
        %v2526 = vpow.pop %v2525
        %v2527 = vmul.f32 %v2498, 1.442695
        %v2528 = vpow.pop %v2527
        %v2529 = vmul.f32 %v2499, 1.442695
        %v2530 = vpow.pop %v2529
        %v2531 = vmul.f32 %v2500, 1.442695
        %v2532 = vpow.pop %v2531
        %v2533 = vsel %vm1109, %v2502, 0.0
        %2534 = vadd.xlane.f32.xlu0 %v2533
        %v2535 = vpop.xlane.xlu0 %2534
        %v2536 = vsel %vm1109, %v2504, 0.0
        %2537 = vadd.xlane.f32.xlu0 %v2536
        %v2538 = vpop.xlane.xlu0 %2537
        %v2539 = vsel %vm1109, %v2506, 0.0
        %2540 = vadd.xlane.f32.xlu0 %v2539
        %v2541 = vpop.xlane.xlu0 %2540
        %v2542 = vsel %vm1109, %v2508, 0.0
        %2543 = vadd.xlane.f32.xlu0 %v2542
        %v2544 = vpop.xlane.xlu0 %2543
        %v2545 = vsel %vm1109, %v2510, 0.0
        %2546 = vadd.xlane.f32.xlu0 %v2545
        %v2547 = vpop.xlane.xlu0 %2546
        %v2548 = vsel %vm1109, %v2512, 0.0
        %2549 = vadd.xlane.f32.xlu0 %v2548
        %v2550 = vpop.xlane.xlu0 %2549
        %v2551 = vsel %vm1109, %v2514, 0.0
        %2552 = vadd.xlane.f32.xlu0 %v2551
        %v2553 = vpop.xlane.xlu0 %2552
        %v2554 = vsel %vm1109, %v2516, 0.0
        %2555 = vadd.xlane.f32.xlu0 %v2554
        %v2556 = vpop.xlane.xlu0 %2555
        %v2557 = vsel %vm1109, %v2518, 0.0
        %2558 = vadd.xlane.f32.xlu0 %v2557
        %v2559 = vpop.xlane.xlu0 %2558
        %v2560 = vsel %vm1109, %v2520, 0.0
        %2561 = vadd.xlane.f32.xlu0 %v2560
        %v2562 = vpop.xlane.xlu0 %2561
        %v2563 = vsel %vm1109, %v2522, 0.0
        %2564 = vadd.xlane.f32.xlu0 %v2563
        %v2565 = vpop.xlane.xlu0 %2564
        %v2566 = vsel %vm1109, %v2524, 0.0
        %2567 = vadd.xlane.f32.xlu0 %v2566
        %v2568 = vpop.xlane.xlu0 %2567
        %v2569 = vsel %vm1109, %v2526, 0.0
        %2570 = vadd.xlane.f32.xlu0 %v2569
        %v2571 = vpop.xlane.xlu0 %2570
        %v2572 = vsel %vm1109, %v2528, 0.0
        %2573 = vadd.xlane.f32.xlu0 %v2572
        %v2574 = vpop.xlane.xlu0 %2573
        %v2575 = vsel %vm1109, %v2530, 0.0
        %2576 = vadd.xlane.f32.xlu0 %v2575
        %v2577 = vpop.xlane.xlu0 %2576
        %v2578 = vsel %vm1109, %v2532, 0.0
        %2579 = vadd.xlane.f32.xlu0 %v2578
        %v2580 = vpop.xlane.xlu0 %2579
        %v2581 = vrcp.pop %v2535
        %v2582 = vrcp.pop %v2538
        %v2583 = vrcp.pop %v2541
        %v2584 = vrcp.pop %v2544
        %v2585 = vrcp.pop %v2547
        %v2586 = vrcp.pop %v2550
        %v2587 = vrcp.pop %v2553
        %v2588 = vrcp.pop %v2556
        %v2589 = vrcp.pop %v2559
        %v2590 = vrcp.pop %v2562
        %v2591 = vrcp.pop %v2565
        %v2592 = vrcp.pop %v2568
        %v2593 = vrcp.pop %v2571
        %v2594 = vrcp.pop %v2574
        %v2595 = vrcp.pop %v2577
        %v2596 = vrcp.pop %v2580
        %v2597 = vmul.f32 %v2502, %v2581
        %v2598 = vmul.f32 %v2504, %v2582
        %v2599 = vmul.f32 %v2506, %v2583
        %v2600 = vmul.f32 %v2508, %v2584
        %v2601 = vmul.f32 %v2510, %v2585
        %v2602 = vmul.f32 %v2512, %v2586
        %v2603 = vmul.f32 %v2514, %v2587
        %v2604 = vmul.f32 %v2516, %v2588
        %v2605 = vmul.f32 %v2518, %v2589
        %v2606 = vmul.f32 %v2520, %v2590
        %v2607 = vmul.f32 %v2522, %v2591
        %v2608 = vmul.f32 %v2524, %v2592
        %v2609 = vmul.f32 %v2526, %v2593
        %v2610 = vmul.f32 %v2528, %v2594
        %v2611 = vmul.f32 %v2530, %v2595
        %v2612 = vmul.f32 %v2532, %v2596
        %v2613 = vpack.c.bf16 %v2598, %v2597
        %v2614 = vpack.c.bf16 %v2600, %v2599
        %v2615 = vpack.c.bf16 %v2602, %v2601
        %v2616 = vpack.c.bf16 %v2604, %v2603
        %v2617 = vpack.c.bf16 %v2606, %v2605
        %v2618 = vpack.c.bf16 %v2608, %v2607
        %v2619 = vpack.c.bf16 %v2610, %v2609
        %v2620 = vpack.c.bf16 %v2612, %v2611
        %v2622 = vsel %vm1109, %v2613, 0
        %2624 = vmatprep.subr.bf16.mxu0 0
        %2625 = vmatpush1.bf16.msra.mxu0 0
        %2626 = vmatprep.subr.bf16.mxu0 0
        %2627 = vmatpush1.bf16.msra.mxu0 0
        %2628 = vmatprep.subr.bf16.mxu0 0
        %2629 = vmatpush1.bf16.msra.mxu0 0
        %2630 = vmatprep.subr.bf16.mxu0 0
        %2631 = vmatpush1.bf16.msra.mxu0 0
        %2632 = vmatprep.subr.bf16.mxu0 0
        %2633 = vmatpush1.bf16.msra.mxu0 0
        %2634 = vmatprep.subr.bf16.mxu0 0
        %2635 = vmatpush1.bf16.msra.mxu0 0
        %2636 = vmatprep.subr.bf16.mxu0 0
        %2637 = vmatpush1.bf16.msra.mxu0 0
        %2638 = vmatprep.subr.bf16.mxu0 0
        %2639 = vmatpush1.bf16.msra.mxu0 %v2053
        %2640 = vmatprep.subr.bf16.mxu0 0
        %2641 = vmatpush2.bf16.msra.mxu0 0
        %2642 = vmatprep.subr.bf16.mxu0 0
        %2643 = vmatpush2.bf16.msra.mxu0 0
        %2644 = vmatprep.subr.bf16.mxu0 0
        %2645 = vmatpush2.bf16.msra.mxu0 0
        %2646 = vmatprep.subr.bf16.mxu0 0
        %2647 = vmatpush2.bf16.msra.mxu0 0
        %2648 = vmatprep.subr.bf16.mxu0 0
        %2649 = vmatpush2.bf16.msra.mxu0 0
        %2650 = vmatprep.subr.bf16.mxu0 0
        %2651 = vmatpush2.bf16.msra.mxu0 0
        %2652 = vmatprep.subr.bf16.mxu0 0
        %2653 = vmatpush2.bf16.msra.mxu0 0
        %2654 = vmatprep.subr.bf16.mxu0 0
        %2655 = vmatpush2.bf16.msra.mxu0 0
        %2656 = vmatprep.mubr.bf16.mxu0 0
        %2657 = vmatmul.mubr.bf16.gmra.mxu0 %v2622
        %v2658 = vpop.f32.mrf.mxu0
        %v2659 = vadd.f32 0.0, %v2658
        %v2660 = vpop.f32.mrf.mxu0
        %v2661 = vpop.f32.mrf.mxu0
        %v2662 = vadd.f32 0.0, %v2661
        %v2663 = vpop.f32.mrf.mxu0
        %2664 = vdwg.mxu0
        %v2666 = vsel %vm1109, %v2614, 0
        %2668 = vmatprep.subr.bf16.mxu0 0
        %2669 = vmatpush1.bf16.msra.mxu0 0
        %2670 = vmatprep.subr.bf16.mxu0 0
        %2671 = vmatpush1.bf16.msra.mxu0 0
        %2672 = vmatprep.subr.bf16.mxu0 0
        %2673 = vmatpush1.bf16.msra.mxu0 0
        %2674 = vmatprep.subr.bf16.mxu0 0
        %2675 = vmatpush1.bf16.msra.mxu0 0
        %2676 = vmatprep.subr.bf16.mxu0 0
        %2677 = vmatpush1.bf16.msra.mxu0 0
        %2678 = vmatprep.subr.bf16.mxu0 0
        %2679 = vmatpush1.bf16.msra.mxu0 0
        %2680 = vmatprep.subr.bf16.mxu0 0
        %2681 = vmatpush1.bf16.msra.mxu0 0
        %2682 = vmatprep.subr.bf16.mxu0 0
        %2683 = vmatpush1.bf16.msra.mxu0 %v2054
        %2684 = vmatprep.subr.bf16.mxu0 0
        %2685 = vmatpush2.bf16.msra.mxu0 0
        %2686 = vmatprep.subr.bf16.mxu0 0
        %2687 = vmatpush2.bf16.msra.mxu0 0
        %2688 = vmatprep.subr.bf16.mxu0 0
        %2689 = vmatpush2.bf16.msra.mxu0 0
        %2690 = vmatprep.subr.bf16.mxu0 0
        %2691 = vmatpush2.bf16.msra.mxu0 0
        %2692 = vmatprep.subr.bf16.mxu0 0
        %2693 = vmatpush2.bf16.msra.mxu0 0
        %2694 = vmatprep.subr.bf16.mxu0 0
        %2695 = vmatpush2.bf16.msra.mxu0 0
        %2696 = vmatprep.subr.bf16.mxu0 0
        %2697 = vmatpush2.bf16.msra.mxu0 0
        %2698 = vmatprep.subr.bf16.mxu0 0
        %2699 = vmatpush2.bf16.msra.mxu0 0
        %2700 = vmatprep.mubr.bf16.mxu0 0
        %2701 = vmatmul.mubr.bf16.gmra.mxu0 %v2666
        %v2702 = vpop.f32.mrf.mxu0
        %v2703 = vadd.f32 0.0, %v2702
        %v2704 = vpop.f32.mrf.mxu0
        %v2705 = vpop.f32.mrf.mxu0
        %v2706 = vadd.f32 0.0, %v2705
        %v2707 = vpop.f32.mrf.mxu0
        %2708 = vdwg.mxu0
        %v2710 = vsel %vm1109, %v2615, 0
        %2712 = vmatprep.subr.bf16.mxu0 0
        %2713 = vmatpush1.bf16.msra.mxu0 0
        %2714 = vmatprep.subr.bf16.mxu0 0
        %2715 = vmatpush1.bf16.msra.mxu0 0
        %2716 = vmatprep.subr.bf16.mxu0 0
        %2717 = vmatpush1.bf16.msra.mxu0 0
        %2718 = vmatprep.subr.bf16.mxu0 0
        %2719 = vmatpush1.bf16.msra.mxu0 0
        %2720 = vmatprep.subr.bf16.mxu0 0
        %2721 = vmatpush1.bf16.msra.mxu0 0
        %2722 = vmatprep.subr.bf16.mxu0 0
        %2723 = vmatpush1.bf16.msra.mxu0 0
        %2724 = vmatprep.subr.bf16.mxu0 0
        %2725 = vmatpush1.bf16.msra.mxu0 0
        %2726 = vmatprep.subr.bf16.mxu0 0
        %2727 = vmatpush1.bf16.msra.mxu0 %v2055
        %2728 = vmatprep.subr.bf16.mxu0 0
        %2729 = vmatpush2.bf16.msra.mxu0 0
        %2730 = vmatprep.subr.bf16.mxu0 0
        %2731 = vmatpush2.bf16.msra.mxu0 0
        %2732 = vmatprep.subr.bf16.mxu0 0
        %2733 = vmatpush2.bf16.msra.mxu0 0
        %2734 = vmatprep.subr.bf16.mxu0 0
        %2735 = vmatpush2.bf16.msra.mxu0 0
        %2736 = vmatprep.subr.bf16.mxu0 0
        %2737 = vmatpush2.bf16.msra.mxu0 0
        %2738 = vmatprep.subr.bf16.mxu0 0
        %2739 = vmatpush2.bf16.msra.mxu0 0
        %2740 = vmatprep.subr.bf16.mxu0 0
        %2741 = vmatpush2.bf16.msra.mxu0 0
        %2742 = vmatprep.subr.bf16.mxu0 0
        %2743 = vmatpush2.bf16.msra.mxu0 0
        %2744 = vmatprep.mubr.bf16.mxu0 0
        %2745 = vmatmul.mubr.bf16.gmra.mxu0 %v2710
        %v2746 = vpop.f32.mrf.mxu0
        %v2747 = vadd.f32 0.0, %v2746
        %v2748 = vpop.f32.mrf.mxu0
        %v2749 = vpop.f32.mrf.mxu0
        %v2750 = vadd.f32 0.0, %v2749
        %v2751 = vpop.f32.mrf.mxu0
        %2752 = vdwg.mxu0
        %v2754 = vsel %vm1109, %v2616, 0
        %2756 = vmatprep.subr.bf16.mxu0 0
        %2757 = vmatpush1.bf16.msra.mxu0 0
        %2758 = vmatprep.subr.bf16.mxu0 0
        %2759 = vmatpush1.bf16.msra.mxu0 0
        %2760 = vmatprep.subr.bf16.mxu0 0
        %2761 = vmatpush1.bf16.msra.mxu0 0
        %2762 = vmatprep.subr.bf16.mxu0 0
        %2763 = vmatpush1.bf16.msra.mxu0 0
        %2764 = vmatprep.subr.bf16.mxu0 0
        %2765 = vmatpush1.bf16.msra.mxu0 0
        %2766 = vmatprep.subr.bf16.mxu0 0
        %2767 = vmatpush1.bf16.msra.mxu0 0
        %2768 = vmatprep.subr.bf16.mxu0 0
        %2769 = vmatpush1.bf16.msra.mxu0 0
        %2770 = vmatprep.subr.bf16.mxu0 0
        %2771 = vmatpush1.bf16.msra.mxu0 %v2056
        %2772 = vmatprep.subr.bf16.mxu0 0
        %2773 = vmatpush2.bf16.msra.mxu0 0
        %2774 = vmatprep.subr.bf16.mxu0 0
        %2775 = vmatpush2.bf16.msra.mxu0 0
        %2776 = vmatprep.subr.bf16.mxu0 0
        %2777 = vmatpush2.bf16.msra.mxu0 0
        %2778 = vmatprep.subr.bf16.mxu0 0
        %2779 = vmatpush2.bf16.msra.mxu0 0
        %2780 = vmatprep.subr.bf16.mxu0 0
        %2781 = vmatpush2.bf16.msra.mxu0 0
        %2782 = vmatprep.subr.bf16.mxu0 0
        %2783 = vmatpush2.bf16.msra.mxu0 0
        %2784 = vmatprep.subr.bf16.mxu0 0
        %2785 = vmatpush2.bf16.msra.mxu0 0
        %2786 = vmatprep.subr.bf16.mxu0 0
        %2787 = vmatpush2.bf16.msra.mxu0 0
        %2788 = vmatprep.mubr.bf16.mxu0 0
        %2789 = vmatmul.mubr.bf16.gmra.mxu0 %v2754
        %v2790 = vpop.f32.mrf.mxu0
        %v2791 = vadd.f32 0.0, %v2790
        %v2792 = vpop.f32.mrf.mxu0
        %v2793 = vpop.f32.mrf.mxu0
        %v2794 = vadd.f32 0.0, %v2793
        %v2795 = vpop.f32.mrf.mxu0
        %2796 = vdwg.mxu0
        %v2798 = vsel %vm1109, %v2617, 0
        %2800 = vmatprep.subr.bf16.mxu0 0
        %2801 = vmatpush1.bf16.msra.mxu0 0
        %2802 = vmatprep.subr.bf16.mxu0 0
        %2803 = vmatpush1.bf16.msra.mxu0 0
        %2804 = vmatprep.subr.bf16.mxu0 0
        %2805 = vmatpush1.bf16.msra.mxu0 0
        %2806 = vmatprep.subr.bf16.mxu0 0
        %2807 = vmatpush1.bf16.msra.mxu0 0
        %2808 = vmatprep.subr.bf16.mxu0 0
        %2809 = vmatpush1.bf16.msra.mxu0 0
        %2810 = vmatprep.subr.bf16.mxu0 0
        %2811 = vmatpush1.bf16.msra.mxu0 0
        %2812 = vmatprep.subr.bf16.mxu0 0
        %2813 = vmatpush1.bf16.msra.mxu0 0
        %2814 = vmatprep.subr.bf16.mxu0 0
        %2815 = vmatpush1.bf16.msra.mxu0 %v2057
        %2816 = vmatprep.subr.bf16.mxu0 0
        %2817 = vmatpush2.bf16.msra.mxu0 0
        %2818 = vmatprep.subr.bf16.mxu0 0
        %2819 = vmatpush2.bf16.msra.mxu0 0
        %2820 = vmatprep.subr.bf16.mxu0 0
        %2821 = vmatpush2.bf16.msra.mxu0 0
        %2822 = vmatprep.subr.bf16.mxu0 0
        %2823 = vmatpush2.bf16.msra.mxu0 0
        %2824 = vmatprep.subr.bf16.mxu0 0
        %2825 = vmatpush2.bf16.msra.mxu0 0
        %2826 = vmatprep.subr.bf16.mxu0 0
        %2827 = vmatpush2.bf16.msra.mxu0 0
        %2828 = vmatprep.subr.bf16.mxu0 0
        %2829 = vmatpush2.bf16.msra.mxu0 0
        %2830 = vmatprep.subr.bf16.mxu0 0
        %2831 = vmatpush2.bf16.msra.mxu0 0
        %2832 = vmatprep.mubr.bf16.mxu0 0
        %2833 = vmatmul.mubr.bf16.gmra.mxu0 %v2798
        %v2834 = vpop.f32.mrf.mxu0
        %v2835 = vadd.f32 0.0, %v2834
        %v2836 = vpop.f32.mrf.mxu0
        %v2837 = vpop.f32.mrf.mxu0
        %v2838 = vadd.f32 0.0, %v2837
        %v2839 = vpop.f32.mrf.mxu0
        %2840 = vdwg.mxu0
        %v2842 = vsel %vm1109, %v2618, 0
        %2844 = vmatprep.subr.bf16.mxu0 0
        %2845 = vmatpush1.bf16.msra.mxu0 0
        %2846 = vmatprep.subr.bf16.mxu0 0
        %2847 = vmatpush1.bf16.msra.mxu0 0
        %2848 = vmatprep.subr.bf16.mxu0 0
        %2849 = vmatpush1.bf16.msra.mxu0 0
        %2850 = vmatprep.subr.bf16.mxu0 0
        %2851 = vmatpush1.bf16.msra.mxu0 0
        %2852 = vmatprep.subr.bf16.mxu0 0
        %2853 = vmatpush1.bf16.msra.mxu0 0
        %2854 = vmatprep.subr.bf16.mxu0 0
        %2855 = vmatpush1.bf16.msra.mxu0 0
        %2856 = vmatprep.subr.bf16.mxu0 0
        %2857 = vmatpush1.bf16.msra.mxu0 0
        %2858 = vmatprep.subr.bf16.mxu0 0
        %2859 = vmatpush1.bf16.msra.mxu0 %v2058
        %2860 = vmatprep.subr.bf16.mxu0 0
        %2861 = vmatpush2.bf16.msra.mxu0 0
        %2862 = vmatprep.subr.bf16.mxu0 0
        %2863 = vmatpush2.bf16.msra.mxu0 0
        %2864 = vmatprep.subr.bf16.mxu0 0
        %2865 = vmatpush2.bf16.msra.mxu0 0
        %2866 = vmatprep.subr.bf16.mxu0 0
        %2867 = vmatpush2.bf16.msra.mxu0 0
        %2868 = vmatprep.subr.bf16.mxu0 0
        %2869 = vmatpush2.bf16.msra.mxu0 0
        %2870 = vmatprep.subr.bf16.mxu0 0
        %2871 = vmatpush2.bf16.msra.mxu0 0
        %2872 = vmatprep.subr.bf16.mxu0 0
        %2873 = vmatpush2.bf16.msra.mxu0 0
        %2874 = vmatprep.subr.bf16.mxu0 0
        %2875 = vmatpush2.bf16.msra.mxu0 0
        %2876 = vmatprep.mubr.bf16.mxu0 0
        %2877 = vmatmul.mubr.bf16.gmra.mxu0 %v2842
        %v2878 = vpop.f32.mrf.mxu0
        %v2879 = vadd.f32 0.0, %v2878
        %v2880 = vpop.f32.mrf.mxu0
        %v2881 = vpop.f32.mrf.mxu0
        %v2882 = vadd.f32 0.0, %v2881
        %v2883 = vpop.f32.mrf.mxu0
        %2884 = vdwg.mxu0
        %v2886 = vsel %vm1109, %v2619, 0
        %2888 = vmatprep.subr.bf16.mxu0 0
        %2889 = vmatpush1.bf16.msra.mxu0 0
        %2890 = vmatprep.subr.bf16.mxu0 0
        %2891 = vmatpush1.bf16.msra.mxu0 0
        %2892 = vmatprep.subr.bf16.mxu0 0
        %2893 = vmatpush1.bf16.msra.mxu0 0
        %2894 = vmatprep.subr.bf16.mxu0 0
        %2895 = vmatpush1.bf16.msra.mxu0 0
        %2896 = vmatprep.subr.bf16.mxu0 0
        %2897 = vmatpush1.bf16.msra.mxu0 0
        %2898 = vmatprep.subr.bf16.mxu0 0
        %2899 = vmatpush1.bf16.msra.mxu0 0
        %2900 = vmatprep.subr.bf16.mxu0 0
        %2901 = vmatpush1.bf16.msra.mxu0 0
        %2902 = vmatprep.subr.bf16.mxu0 0
        %2903 = vmatpush1.bf16.msra.mxu0 %v2059
        %2904 = vmatprep.subr.bf16.mxu0 0
        %2905 = vmatpush2.bf16.msra.mxu0 0
        %2906 = vmatprep.subr.bf16.mxu0 0
        %2907 = vmatpush2.bf16.msra.mxu0 0
        %2908 = vmatprep.subr.bf16.mxu0 0
        %2909 = vmatpush2.bf16.msra.mxu0 0
        %2910 = vmatprep.subr.bf16.mxu0 0
        %2911 = vmatpush2.bf16.msra.mxu0 0
        %2912 = vmatprep.subr.bf16.mxu0 0
        %2913 = vmatpush2.bf16.msra.mxu0 0
        %2914 = vmatprep.subr.bf16.mxu0 0
        %2915 = vmatpush2.bf16.msra.mxu0 0
        %2916 = vmatprep.subr.bf16.mxu0 0
        %2917 = vmatpush2.bf16.msra.mxu0 0
        %2918 = vmatprep.subr.bf16.mxu0 0
        %2919 = vmatpush2.bf16.msra.mxu0 0
        %2920 = vmatprep.mubr.bf16.mxu0 0
        %2921 = vmatmul.mubr.bf16.gmra.mxu0 %v2886
        %v2922 = vpop.f32.mrf.mxu0
        %v2923 = vadd.f32 0.0, %v2922
        %v2924 = vpop.f32.mrf.mxu0
        %v2925 = vpop.f32.mrf.mxu0
        %v2926 = vadd.f32 0.0, %v2925
        %v2927 = vpop.f32.mrf.mxu0
        %2928 = vdwg.mxu0
        %v2930 = vsel %vm1109, %v2620, 0
        %2932 = vmatprep.subr.bf16.mxu0 0
        %2933 = vmatpush1.bf16.msra.mxu0 0
        %2934 = vmatprep.subr.bf16.mxu0 0
        %2935 = vmatpush1.bf16.msra.mxu0 0
        %2936 = vmatprep.subr.bf16.mxu0 0
        %2937 = vmatpush1.bf16.msra.mxu0 0
        %2938 = vmatprep.subr.bf16.mxu0 0
        %2939 = vmatpush1.bf16.msra.mxu0 0
        %2940 = vmatprep.subr.bf16.mxu0 0
        %2941 = vmatpush1.bf16.msra.mxu0 0
        %2942 = vmatprep.subr.bf16.mxu0 0
        %2943 = vmatpush1.bf16.msra.mxu0 0
        %2944 = vmatprep.subr.bf16.mxu0 0
        %2945 = vmatpush1.bf16.msra.mxu0 0
        %2946 = vmatprep.subr.bf16.mxu0 0
        %2947 = vmatpush1.bf16.msra.mxu0 %v2060
        %2948 = vmatprep.subr.bf16.mxu0 0
        %2949 = vmatpush2.bf16.msra.mxu0 0
        %2950 = vmatprep.subr.bf16.mxu0 0
        %2951 = vmatpush2.bf16.msra.mxu0 0
        %2952 = vmatprep.subr.bf16.mxu0 0
        %2953 = vmatpush2.bf16.msra.mxu0 0
        %2954 = vmatprep.subr.bf16.mxu0 0
        %2955 = vmatpush2.bf16.msra.mxu0 0
        %2956 = vmatprep.subr.bf16.mxu0 0
        %2957 = vmatpush2.bf16.msra.mxu0 0
        %2958 = vmatprep.subr.bf16.mxu0 0
        %2959 = vmatpush2.bf16.msra.mxu0 0
        %2960 = vmatprep.subr.bf16.mxu0 0
        %2961 = vmatpush2.bf16.msra.mxu0 0
        %2962 = vmatprep.subr.bf16.mxu0 0
        %2963 = vmatpush2.bf16.msra.mxu0 0
        %2964 = vmatprep.mubr.bf16.mxu0 0
        %2965 = vmatmul.mubr.bf16.gmra.mxu0 %v2930
        %v2966 = vpop.f32.mrf.mxu0
        %v2967 = vadd.f32 0.0, %v2966
        %v2968 = vpop.f32.mrf.mxu0
        %v2969 = vpop.f32.mrf.mxu0
        %v2970 = vadd.f32 0.0, %v2969
        %v2971 = vpop.f32.mrf.mxu0
        %2972 = vdwg.mxu0
        %v2973 = vpack.c.bf16 %v2662, %v2659
        %v2974 = vpack.c.bf16 %v2706, %v2703
        %v2975 = vpack.c.bf16 %v2750, %v2747
        %v2976 = vpack.c.bf16 %v2794, %v2791
        %v2977 = vpack.c.bf16 %v2838, %v2835
        %v2978 = vpack.c.bf16 %v2882, %v2879
        %v2979 = vpack.c.bf16 %v2926, %v2923
        %v2980 = vpack.c.bf16 %v2970, %v2967
        %s2981 = scalar_lea.vmem %s3, 4
        %v2982 = vld [vmem:[%s2981] sm:$0xf]
        %v2984 = vsel %vm732, %v2973, 0
        %v2987 = vsel %vm732, %v2974, 0
        %v2990 = vsel %vm732, %v2975, 0
        %v2993 = vsel %vm732, %v2976, 0
        %v2996 = vsel %vm732, %v2977, 0
        %v2999 = vsel %vm732, %v2978, 0
        %v3002 = vsel %vm732, %v2979, 0
        %v3005 = vsel %vm732, %v2980, 0
        %vm3007 = vcmask 1043456
        %v3009 = vsel %vm3007, %v2982, 0
        %3011 = vmatprep.subr.bf16.mxu0 0
        %3012 = vmatpush1.bf16.msra.mxu0 0
        %3013 = vmatprep.subr.bf16.mxu0 0
        %3014 = vmatpush1.bf16.msra.mxu0 0
        %3015 = vmatprep.subr.bf16.mxu0 0
        %3016 = vmatpush1.bf16.msra.mxu0 0
        %3017 = vmatprep.subr.bf16.mxu0 0
        %3018 = vmatpush1.bf16.msra.mxu0 0
        %3019 = vmatprep.subr.bf16.mxu0 0
        %3020 = vmatpush1.bf16.msra.mxu0 0
        %3021 = vmatprep.subr.bf16.mxu0 0
        %3022 = vmatpush1.bf16.msra.mxu0 0
        %3023 = vmatprep.subr.bf16.mxu0 0
        %3024 = vmatpush1.bf16.msra.mxu0 0
        %3025 = vmatprep.subr.bf16.mxu0 0
        %3026 = vmatpush1.bf16.msra.mxu0 %v3009
        %3027 = vmatprep.subr.bf16.mxu0 0
        %3028 = vmatpush2.bf16.msra.mxu0 0
        %3029 = vmatprep.subr.bf16.mxu0 0
        %3030 = vmatpush2.bf16.msra.mxu0 0
        %3031 = vmatprep.subr.bf16.mxu0 0
        %3032 = vmatpush2.bf16.msra.mxu0 0
        %3033 = vmatprep.subr.bf16.mxu0 0
        %3034 = vmatpush2.bf16.msra.mxu0 0
        %3035 = vmatprep.subr.bf16.mxu0 0
        %3036 = vmatpush2.bf16.msra.mxu0 0
        %3037 = vmatprep.subr.bf16.mxu0 0
        %3038 = vmatpush2.bf16.msra.mxu0 0
        %3039 = vmatprep.subr.bf16.mxu0 0
        %3040 = vmatpush2.bf16.msra.mxu0 0
        %3041 = vmatprep.subr.bf16.mxu0 0
        %3042 = vmatpush2.bf16.msra.mxu0 0
        %3043 = vmatprep.mubr.bf16.mxu0 0
        %3044 = vmatmul.mubr.bf16.gmra.mxu0 %v2984
        %v3045 = vpop.f32.mrf.mxu0
        %v3046 = vadd.f32 0.0, %v3045
        %v3047 = vpop.f32.mrf.mxu0
        %v3048 = vpop.f32.mrf.mxu0
        %v3049 = vadd.f32 0.0, %v3048
        %v3050 = vpop.f32.mrf.mxu0
        %3051 = vmatprep.mubr.bf16.mxu0 0
        %3052 = vmatmul.mubr.bf16.gmra.mxu0 %v2987
        %v3053 = vpop.f32.mrf.mxu0
        %v3054 = vadd.f32 0.0, %v3053
        %v3055 = vpop.f32.mrf.mxu0
        %v3056 = vpop.f32.mrf.mxu0
        %v3057 = vadd.f32 0.0, %v3056
        %v3058 = vpop.f32.mrf.mxu0
        %3059 = vmatprep.mubr.bf16.mxu0 0
        %3060 = vmatmul.mubr.bf16.gmra.mxu0 %v2990
        %v3061 = vpop.f32.mrf.mxu0
        %v3062 = vadd.f32 0.0, %v3061
        %v3063 = vpop.f32.mrf.mxu0
        %v3064 = vpop.f32.mrf.mxu0
        %v3065 = vadd.f32 0.0, %v3064
        %v3066 = vpop.f32.mrf.mxu0
        %3067 = vmatprep.mubr.bf16.mxu0 0
        %3068 = vmatmul.mubr.bf16.gmra.mxu0 %v2993
        %v3069 = vpop.f32.mrf.mxu0
        %v3070 = vadd.f32 0.0, %v3069
        %v3071 = vpop.f32.mrf.mxu0
        %v3072 = vpop.f32.mrf.mxu0
        %v3073 = vadd.f32 0.0, %v3072
        %v3074 = vpop.f32.mrf.mxu0
        %3075 = vmatprep.mubr.bf16.mxu0 0
        %3076 = vmatmul.mubr.bf16.gmra.mxu0 %v2996
        %v3077 = vpop.f32.mrf.mxu0
        %v3078 = vadd.f32 0.0, %v3077
        %v3079 = vpop.f32.mrf.mxu0
        %v3080 = vpop.f32.mrf.mxu0
        %v3081 = vadd.f32 0.0, %v3080
        %v3082 = vpop.f32.mrf.mxu0
        %3083 = vmatprep.mubr.bf16.mxu0 0
        %3084 = vmatmul.mubr.bf16.gmra.mxu0 %v2999
        %v3085 = vpop.f32.mrf.mxu0
        %v3086 = vadd.f32 0.0, %v3085
        %v3087 = vpop.f32.mrf.mxu0
        %v3088 = vpop.f32.mrf.mxu0
        %v3089 = vadd.f32 0.0, %v3088
        %v3090 = vpop.f32.mrf.mxu0
        %3091 = vmatprep.mubr.bf16.mxu0 0
        %3092 = vmatmul.mubr.bf16.gmra.mxu0 %v3002
        %v3093 = vpop.f32.mrf.mxu0
        %v3094 = vadd.f32 0.0, %v3093
        %v3095 = vpop.f32.mrf.mxu0
        %v3096 = vpop.f32.mrf.mxu0
        %v3097 = vadd.f32 0.0, %v3096
        %v3098 = vpop.f32.mrf.mxu0
        %3099 = vmatprep.mubr.bf16.mxu0 0
        %3100 = vmatmul.mubr.bf16.gmra.mxu0 %v3005
        %v3101 = vpop.f32.mrf.mxu0
        %v3102 = vadd.f32 0.0, %v3101
        %v3103 = vpop.f32.mrf.mxu0
        %v3104 = vpop.f32.mrf.mxu0
        %v3105 = vadd.f32 0.0, %v3104
        %v3106 = vpop.f32.mrf.mxu0
        %3107 = vdwg.mxu0
        %v3109 = vsel %vm732, %v1646, 0
        %v3112 = vsel %vm732, %v1647, 0
        %v3115 = vsel %vm732, %v1648, 0
        %v3118 = vsel %vm732, %v1649, 0
        %v3121 = vsel %vm732, %v1650, 0
        %v3124 = vsel %vm732, %v1651, 0
        %v3127 = vsel %vm732, %v1652, 0
        %v3130 = vsel %vm732, %v1653, 0
        %v3133 = vsel %vm3007, %v1654, 0
        %3135 = vmatprep.subr.bf16.mxu0 0
        %3136 = vmatpush1.bf16.msra.mxu0 0
        %3137 = vmatprep.subr.bf16.mxu0 0
        %3138 = vmatpush1.bf16.msra.mxu0 0
        %3139 = vmatprep.subr.bf16.mxu0 0
        %3140 = vmatpush1.bf16.msra.mxu0 0
        %3141 = vmatprep.subr.bf16.mxu0 0
        %3142 = vmatpush1.bf16.msra.mxu0 0
        %3143 = vmatprep.subr.bf16.mxu0 0
        %3144 = vmatpush1.bf16.msra.mxu0 0
        %3145 = vmatprep.subr.bf16.mxu0 0
        %3146 = vmatpush1.bf16.msra.mxu0 0
        %3147 = vmatprep.subr.bf16.mxu0 0
        %3148 = vmatpush1.bf16.msra.mxu0 0
        %3149 = vmatprep.subr.bf16.mxu0 0
        %3150 = vmatpush1.bf16.msra.mxu0 %v3133
        %3151 = vmatprep.subr.bf16.mxu0 0
        %3152 = vmatpush2.bf16.msra.mxu0 0
        %3153 = vmatprep.subr.bf16.mxu0 0
        %3154 = vmatpush2.bf16.msra.mxu0 0
        %3155 = vmatprep.subr.bf16.mxu0 0
        %3156 = vmatpush2.bf16.msra.mxu0 0
        %3157 = vmatprep.subr.bf16.mxu0 0
        %3158 = vmatpush2.bf16.msra.mxu0 0
        %3159 = vmatprep.subr.bf16.mxu0 0
        %3160 = vmatpush2.bf16.msra.mxu0 0
        %3161 = vmatprep.subr.bf16.mxu0 0
        %3162 = vmatpush2.bf16.msra.mxu0 0
        %3163 = vmatprep.subr.bf16.mxu0 0
        %3164 = vmatpush2.bf16.msra.mxu0 0
        %3165 = vmatprep.subr.bf16.mxu0 0
        %3166 = vmatpush2.bf16.msra.mxu0 0
        %3167 = vmatprep.mubr.bf16.mxu0 0
        %3168 = vmatmul.mubr.bf16.gmra.mxu0 %v3109
        %v3169 = vpop.f32.mrf.mxu0
        %v3170 = vadd.f32 %v3046, %v3169
        %v3171 = vpop.f32.mrf.mxu0
        %v3172 = vpop.f32.mrf.mxu0
        %v3173 = vadd.f32 %v3049, %v3172
        %v3174 = vpop.f32.mrf.mxu0
        %3175 = vmatprep.mubr.bf16.mxu0 0
        %3176 = vmatmul.mubr.bf16.gmra.mxu0 %v3112
        %v3177 = vpop.f32.mrf.mxu0
        %v3178 = vadd.f32 %v3054, %v3177
        %v3179 = vpop.f32.mrf.mxu0
        %v3180 = vpop.f32.mrf.mxu0
        %v3181 = vadd.f32 %v3057, %v3180
        %v3182 = vpop.f32.mrf.mxu0
        %3183 = vmatprep.mubr.bf16.mxu0 0
        %3184 = vmatmul.mubr.bf16.gmra.mxu0 %v3115
        %v3185 = vpop.f32.mrf.mxu0
        %v3186 = vadd.f32 %v3062, %v3185
        %v3187 = vpop.f32.mrf.mxu0
        %v3188 = vpop.f32.mrf.mxu0
        %v3189 = vadd.f32 %v3065, %v3188
        %v3190 = vpop.f32.mrf.mxu0
        %3191 = vmatprep.mubr.bf16.mxu0 0
        %3192 = vmatmul.mubr.bf16.gmra.mxu0 %v3118
        %v3193 = vpop.f32.mrf.mxu0
        %v3194 = vadd.f32 %v3070, %v3193
        %v3195 = vpop.f32.mrf.mxu0
        %v3196 = vpop.f32.mrf.mxu0
        %v3197 = vadd.f32 %v3073, %v3196
        %v3198 = vpop.f32.mrf.mxu0
        %3199 = vmatprep.mubr.bf16.mxu0 0
        %3200 = vmatmul.mubr.bf16.gmra.mxu0 %v3121
        %v3201 = vpop.f32.mrf.mxu0
        %v3202 = vadd.f32 %v3078, %v3201
        %v3203 = vpop.f32.mrf.mxu0
        %v3204 = vpop.f32.mrf.mxu0
        %v3205 = vadd.f32 %v3081, %v3204
        %v3206 = vpop.f32.mrf.mxu0
        %3207 = vmatprep.mubr.bf16.mxu0 0
        %3208 = vmatmul.mubr.bf16.gmra.mxu0 %v3124
        %v3209 = vpop.f32.mrf.mxu0
        %v3210 = vadd.f32 %v3086, %v3209
        %v3211 = vpop.f32.mrf.mxu0
        %v3212 = vpop.f32.mrf.mxu0
        %v3213 = vadd.f32 %v3089, %v3212
        %v3214 = vpop.f32.mrf.mxu0
        %3215 = vmatprep.mubr.bf16.mxu0 0
        %3216 = vmatmul.mubr.bf16.gmra.mxu0 %v3127
        %v3217 = vpop.f32.mrf.mxu0
        %v3218 = vadd.f32 %v3094, %v3217
        %v3219 = vpop.f32.mrf.mxu0
        %v3220 = vpop.f32.mrf.mxu0
        %v3221 = vadd.f32 %v3097, %v3220
        %v3222 = vpop.f32.mrf.mxu0
        %3223 = vmatprep.mubr.bf16.mxu0 0
        %3224 = vmatmul.mubr.bf16.gmra.mxu0 %v3130
        %v3225 = vpop.f32.mrf.mxu0
        %v3226 = vadd.f32 %v3102, %v3225
        %v3227 = vpop.f32.mrf.mxu0
        %v3228 = vpop.f32.mrf.mxu0
        %v3229 = vadd.f32 %v3105, %v3228
        %v3230 = vpop.f32.mrf.mxu0
        %3231 = vdwg.mxu0
        %s3232 = scalar_lea.vmem %s1, 32
        %v3233 = vld [vmem:[%s3232] sm:$0xf]
        %v3234 = vld [vmem:[%s3232 + $0x4] sm:$0xf]
        %v3235 = vld [vmem:[%s3232 + $0x8] sm:$0xf]
        %v3236 = vld [vmem:[%s3232 + $0xc] sm:$0xf]
        %s3237 = scalar_lea.vmem %s1, 96
        %v3238 = vld [vmem:[%s3237] sm:$0xf]
        %v3239 = vld [vmem:[%s3237 + $0x4] sm:$0xf]
        %v3240 = vld [vmem:[%s3237 + $0x8] sm:$0xf]
        %v3241 = vld [vmem:[%s3237 + $0xc] sm:$0xf]
        %s3242 = scalar_lea.vmem %s1, 160
        %v3243 = vld [vmem:[%s3242] sm:$0xf]
        %v3244 = vld [vmem:[%s3242 + $0x4] sm:$0xf]
        %v3245 = vld [vmem:[%s3242 + $0x8] sm:$0xf]
        %v3246 = vld [vmem:[%s3242 + $0xc] sm:$0xf]
        %s3247 = scalar_lea.vmem %s2, 2
        %v3248 = vld [vmem:[%s3247] sm:$0x1]
        %v3250 = vlaneseq
        %v3251 = vshrl.u32 %v3250, 7
        %v3252 = vsub.s32 0, %v3251
        %v3253 = vrot.slane %v3248, %v3252
        %v3259 = vunpack.c.l.b16 %v3233
        %v3260 = vunpack.c.l.b16 %v3234
        %v3261 = vunpack.c.l.b16 %v3235
        %v3262 = vunpack.c.l.b16 %v3236
        %v3263 = vpack.c.b16 %v3260, %v3259
        %v3264 = vpack.c.b16 %v3262, %v3261
        %3267 = vmatprep.subr.bf16.mxu0 0
        %3268 = vmatpush1.bf16.msra.mxu0 0
        %3269 = vmatprep.subr.bf16.mxu0 0
        %3270 = vmatpush1.bf16.msra.mxu0 0
        %3271 = vmatprep.subr.bf16.mxu0 0
        %3272 = vmatpush1.bf16.msra.mxu0 0
        %3273 = vmatprep.subr.bf16.mxu0 0
        %3274 = vmatpush1.bf16.msra.mxu0 0
        %3275 = vmatprep.subr.bf16.mxu0 0
        %3276 = vmatpush1.bf16.msra.mxu0 0
        %3277 = vmatprep.subr.bf16.mxu0 0
        %3278 = vmatpush1.bf16.msra.mxu0 0
        %3279 = vmatprep.subr.bf16.mxu0 0
        %3280 = vmatpush1.bf16.msra.mxu0 %v3264
        %3281 = vmatprep.subr.bf16.mxu0 0
        %3282 = vmatpush1.bf16.msra.mxu0 %v3263
        %3283 = vmatprep.subr.bf16.mxu0 0
        %3284 = vmatpush2.bf16.msra.mxu0 0
        %3285 = vmatprep.subr.bf16.mxu0 0
        %3286 = vmatpush2.bf16.msra.mxu0 0
        %3287 = vmatprep.subr.bf16.mxu0 0
        %3288 = vmatpush2.bf16.msra.mxu0 0
        %3289 = vmatprep.subr.bf16.mxu0 0
        %3290 = vmatpush2.bf16.msra.mxu0 0
        %3291 = vmatprep.subr.bf16.mxu0 0
        %3292 = vmatpush2.bf16.msra.mxu0 0
        %3293 = vmatprep.subr.bf16.mxu0 0
        %3294 = vmatpush2.bf16.msra.mxu0 0
        %3295 = vmatprep.subr.bf16.mxu0 0
        %3296 = vmatpush2.bf16.msra.mxu0 0
        %3297 = vmatprep.subr.bf16.mxu0 0
        %3298 = vmatpush2.bf16.msra.mxu0 0
        %3299 = vmatprep.mubr.bf16.mxu0 0
        %3300 = vmatmul.mubr.bf16.gmra.mxu0 %v338
        %v3301 = vpop.f32.mrf.mxu0
        %v3302 = vadd.f32 %v3253, %v3301
        %v3303 = vpop.f32.mrf.mxu0
        %v3304 = vpop.f32.mrf.mxu0
        %v3305 = vadd.f32 %v3253, %v3304
        %v3306 = vpop.f32.mrf.mxu0
        %3307 = vmatprep.mubr.bf16.mxu0 0
        %3308 = vmatmul.mubr.bf16.gmra.mxu0 %v341
        %v3309 = vpop.f32.mrf.mxu0
        %v3310 = vadd.f32 %v3253, %v3309
        %v3311 = vpop.f32.mrf.mxu0
        %v3312 = vpop.f32.mrf.mxu0
        %v3313 = vadd.f32 %v3253, %v3312
        %v3314 = vpop.f32.mrf.mxu0
        %3315 = vmatprep.mubr.bf16.mxu0 0
        %3316 = vmatmul.mubr.bf16.gmra.mxu0 %v344
        %v3317 = vpop.f32.mrf.mxu0
        %v3318 = vadd.f32 %v3253, %v3317
        %v3319 = vpop.f32.mrf.mxu0
        %v3320 = vpop.f32.mrf.mxu0
        %v3321 = vadd.f32 %v3253, %v3320
        %v3322 = vpop.f32.mrf.mxu0
        %3323 = vmatprep.mubr.bf16.mxu0 0
        %3324 = vmatmul.mubr.bf16.gmra.mxu0 %v347
        %v3325 = vpop.f32.mrf.mxu0
        %v3326 = vadd.f32 %v3253, %v3325
        %v3327 = vpop.f32.mrf.mxu0
        %v3328 = vpop.f32.mrf.mxu0
        %v3329 = vadd.f32 %v3253, %v3328
        %v3330 = vpop.f32.mrf.mxu0
        %3331 = vmatprep.mubr.bf16.mxu0 0
        %3332 = vmatmul.mubr.bf16.gmra.mxu0 %v350
        %v3333 = vpop.f32.mrf.mxu0
        %v3334 = vadd.f32 %v3253, %v3333
        %v3335 = vpop.f32.mrf.mxu0
        %v3336 = vpop.f32.mrf.mxu0
        %v3337 = vadd.f32 %v3253, %v3336
        %v3338 = vpop.f32.mrf.mxu0
        %3339 = vmatprep.mubr.bf16.mxu0 0
        %3340 = vmatmul.mubr.bf16.gmra.mxu0 %v353
        %v3341 = vpop.f32.mrf.mxu0
        %v3342 = vadd.f32 %v3253, %v3341
        %v3343 = vpop.f32.mrf.mxu0
        %v3344 = vpop.f32.mrf.mxu0
        %v3345 = vadd.f32 %v3253, %v3344
        %v3346 = vpop.f32.mrf.mxu0
        %3347 = vmatprep.mubr.bf16.mxu0 0
        %3348 = vmatmul.mubr.bf16.gmra.mxu0 %v356
        %v3349 = vpop.f32.mrf.mxu0
        %v3350 = vadd.f32 %v3253, %v3349
        %v3351 = vpop.f32.mrf.mxu0
        %v3352 = vpop.f32.mrf.mxu0
        %v3353 = vadd.f32 %v3253, %v3352
        %v3354 = vpop.f32.mrf.mxu0
        %3355 = vmatprep.mubr.bf16.mxu0 0
        %3356 = vmatmul.mubr.bf16.gmra.mxu0 %v359
        %v3357 = vpop.f32.mrf.mxu0
        %v3358 = vadd.f32 %v3253, %v3357
        %v3359 = vpop.f32.mrf.mxu0
        %v3360 = vpop.f32.mrf.mxu0
        %v3361 = vadd.f32 %v3253, %v3360
        %v3362 = vpop.f32.mrf.mxu0
        %3363 = vdwg.mxu0
        %v3364 = vmul.f32 %v3302, 0.35355338
        %v3365 = vmul.f32 %v3305, 0.35355338
        %v3366 = vmul.f32 %v3310, 0.35355338
        %v3367 = vmul.f32 %v3313, 0.35355338
        %v3368 = vmul.f32 %v3318, 0.35355338
        %v3369 = vmul.f32 %v3321, 0.35355338
        %v3370 = vmul.f32 %v3326, 0.35355338
        %v3371 = vmul.f32 %v3329, 0.35355338
        %v3372 = vmul.f32 %v3334, 0.35355338
        %v3373 = vmul.f32 %v3337, 0.35355338
        %v3374 = vmul.f32 %v3342, 0.35355338
        %v3375 = vmul.f32 %v3345, 0.35355338
        %v3376 = vmul.f32 %v3350, 0.35355338
        %v3377 = vmul.f32 %v3353, 0.35355338
        %v3378 = vmul.f32 %v3358, 0.35355338
        %v3379 = vmul.f32 %v3361, 0.35355338
        %s3380 = scalar_lea.vmem %s2, 6
        %v3381 = vld [vmem:[%s3380] sm:$0x1]
        %v3383 = vlaneseq
        %v3384 = vshrl.u32 %v3383, 7
        %v3385 = vsub.s32 0, %v3384
        %v3386 = vrot.slane %v3381, %v3385
        %v3392 = vunpack.c.l.b16 %v3238
        %v3393 = vunpack.c.l.b16 %v3239
        %v3394 = vunpack.c.l.b16 %v3240
        %v3395 = vunpack.c.l.b16 %v3241
        %v3396 = vpack.c.b16 %v3393, %v3392
        %v3397 = vpack.c.b16 %v3395, %v3394
        %3400 = vmatprep.subr.bf16.mxu0 0
        %3401 = vmatpush1.bf16.msra.mxu0 0
        %3402 = vmatprep.subr.bf16.mxu0 0
        %3403 = vmatpush1.bf16.msra.mxu0 0
        %3404 = vmatprep.subr.bf16.mxu0 0
        %3405 = vmatpush1.bf16.msra.mxu0 0
        %3406 = vmatprep.subr.bf16.mxu0 0
        %3407 = vmatpush1.bf16.msra.mxu0 0
        %3408 = vmatprep.subr.bf16.mxu0 0
        %3409 = vmatpush1.bf16.msra.mxu0 0
        %3410 = vmatprep.subr.bf16.mxu0 0
        %3411 = vmatpush1.bf16.msra.mxu0 0
        %3412 = vmatprep.subr.bf16.mxu0 0
        %3413 = vmatpush1.bf16.msra.mxu0 %v3397
        %3414 = vmatprep.subr.bf16.mxu0 0
        %3415 = vmatpush1.bf16.msra.mxu0 %v3396
        %3416 = vmatprep.subr.bf16.mxu0 0
        %3417 = vmatpush2.bf16.msra.mxu0 0
        %3418 = vmatprep.subr.bf16.mxu0 0
        %3419 = vmatpush2.bf16.msra.mxu0 0
        %3420 = vmatprep.subr.bf16.mxu0 0
        %3421 = vmatpush2.bf16.msra.mxu0 0
        %3422 = vmatprep.subr.bf16.mxu0 0
        %3423 = vmatpush2.bf16.msra.mxu0 0
        %3424 = vmatprep.subr.bf16.mxu0 0
        %3425 = vmatpush2.bf16.msra.mxu0 0
        %3426 = vmatprep.subr.bf16.mxu0 0
        %3427 = vmatpush2.bf16.msra.mxu0 0
        %3428 = vmatprep.subr.bf16.mxu0 0
        %3429 = vmatpush2.bf16.msra.mxu0 0
        %3430 = vmatprep.subr.bf16.mxu0 0
        %3431 = vmatpush2.bf16.msra.mxu0 0
        %3432 = vmatprep.mubr.bf16.mxu0 0
        %3433 = vmatmul.mubr.bf16.gmra.mxu0 %v338
        %v3434 = vpop.f32.mrf.mxu0
        %v3435 = vadd.f32 %v3386, %v3434
        %v3436 = vpop.f32.mrf.mxu0
        %v3437 = vpop.f32.mrf.mxu0
        %v3438 = vadd.f32 %v3386, %v3437
        %v3439 = vpop.f32.mrf.mxu0
        %3440 = vmatprep.mubr.bf16.mxu0 0
        %3441 = vmatmul.mubr.bf16.gmra.mxu0 %v341
        %v3442 = vpop.f32.mrf.mxu0
        %v3443 = vadd.f32 %v3386, %v3442
        %v3444 = vpop.f32.mrf.mxu0
        %v3445 = vpop.f32.mrf.mxu0
        %v3446 = vadd.f32 %v3386, %v3445
        %v3447 = vpop.f32.mrf.mxu0
        %3448 = vmatprep.mubr.bf16.mxu0 0
        %3449 = vmatmul.mubr.bf16.gmra.mxu0 %v344
        %v3450 = vpop.f32.mrf.mxu0
        %v3451 = vadd.f32 %v3386, %v3450
        %v3452 = vpop.f32.mrf.mxu0
        %v3453 = vpop.f32.mrf.mxu0
        %v3454 = vadd.f32 %v3386, %v3453
        %v3455 = vpop.f32.mrf.mxu0
        %3456 = vmatprep.mubr.bf16.mxu0 0
        %3457 = vmatmul.mubr.bf16.gmra.mxu0 %v347
        %v3458 = vpop.f32.mrf.mxu0
        %v3459 = vadd.f32 %v3386, %v3458
        %v3460 = vpop.f32.mrf.mxu0
        %v3461 = vpop.f32.mrf.mxu0
        %v3462 = vadd.f32 %v3386, %v3461
        %v3463 = vpop.f32.mrf.mxu0
        %3464 = vmatprep.mubr.bf16.mxu0 0
        %3465 = vmatmul.mubr.bf16.gmra.mxu0 %v350
        %v3466 = vpop.f32.mrf.mxu0
        %v3467 = vadd.f32 %v3386, %v3466
        %v3468 = vpop.f32.mrf.mxu0
        %v3469 = vpop.f32.mrf.mxu0
        %v3470 = vadd.f32 %v3386, %v3469
        %v3471 = vpop.f32.mrf.mxu0
        %3472 = vmatprep.mubr.bf16.mxu0 0
        %3473 = vmatmul.mubr.bf16.gmra.mxu0 %v353
        %v3474 = vpop.f32.mrf.mxu0
        %v3475 = vadd.f32 %v3386, %v3474
        %v3476 = vpop.f32.mrf.mxu0
        %v3477 = vpop.f32.mrf.mxu0
        %v3478 = vadd.f32 %v3386, %v3477
        %v3479 = vpop.f32.mrf.mxu0
        %3480 = vmatprep.mubr.bf16.mxu0 0
        %3481 = vmatmul.mubr.bf16.gmra.mxu0 %v356
        %v3482 = vpop.f32.mrf.mxu0
        %v3483 = vadd.f32 %v3386, %v3482
        %v3484 = vpop.f32.mrf.mxu0
        %v3485 = vpop.f32.mrf.mxu0
        %v3486 = vadd.f32 %v3386, %v3485
        %v3487 = vpop.f32.mrf.mxu0
        %3488 = vmatprep.mubr.bf16.mxu0 0
        %3489 = vmatmul.mubr.bf16.gmra.mxu0 %v359
        %v3490 = vpop.f32.mrf.mxu0
        %v3491 = vadd.f32 %v3386, %v3490
        %v3492 = vpop.f32.mrf.mxu0
        %v3493 = vpop.f32.mrf.mxu0
        %v3494 = vadd.f32 %v3386, %v3493
        %v3495 = vpop.f32.mrf.mxu0
        %3496 = vdwg.mxu0
        %s3497 = scalar_lea.vmem %s2, 10
        %v3498 = vld [vmem:[%s3497] sm:$0x1]
        %v3500 = vlaneseq
        %v3501 = vshrl.u32 %v3500, 7
        %v3502 = vsub.s32 0, %v3501
        %v3503 = vrot.slane %v3498, %v3502
        %v3509 = vunpack.c.l.b16 %v3243
        %v3510 = vunpack.c.l.b16 %v3244
        %v3511 = vunpack.c.l.b16 %v3245
        %v3512 = vunpack.c.l.b16 %v3246
        %v3513 = vpack.c.b16 %v3510, %v3509
        %v3514 = vpack.c.b16 %v3512, %v3511
        %3517 = vmatprep.subr.bf16.mxu0 0
        %3518 = vmatpush1.bf16.msra.mxu0 0
        %3519 = vmatprep.subr.bf16.mxu0 0
        %3520 = vmatpush1.bf16.msra.mxu0 0
        %3521 = vmatprep.subr.bf16.mxu0 0
        %3522 = vmatpush1.bf16.msra.mxu0 0
        %3523 = vmatprep.subr.bf16.mxu0 0
        %3524 = vmatpush1.bf16.msra.mxu0 0
        %3525 = vmatprep.subr.bf16.mxu0 0
        %3526 = vmatpush1.bf16.msra.mxu0 0
        %3527 = vmatprep.subr.bf16.mxu0 0
        %3528 = vmatpush1.bf16.msra.mxu0 0
        %3529 = vmatprep.subr.bf16.mxu0 0
        %3530 = vmatpush1.bf16.msra.mxu0 %v3514
        %3531 = vmatprep.subr.bf16.mxu0 0
        %3532 = vmatpush1.bf16.msra.mxu0 %v3513
        %3533 = vmatprep.subr.bf16.mxu0 0
        %3534 = vmatpush2.bf16.msra.mxu0 0
        %3535 = vmatprep.subr.bf16.mxu0 0
        %3536 = vmatpush2.bf16.msra.mxu0 0
        %3537 = vmatprep.subr.bf16.mxu0 0
        %3538 = vmatpush2.bf16.msra.mxu0 0
        %3539 = vmatprep.subr.bf16.mxu0 0
        %3540 = vmatpush2.bf16.msra.mxu0 0
        %3541 = vmatprep.subr.bf16.mxu0 0
        %3542 = vmatpush2.bf16.msra.mxu0 0
        %3543 = vmatprep.subr.bf16.mxu0 0
        %3544 = vmatpush2.bf16.msra.mxu0 0
        %3545 = vmatprep.subr.bf16.mxu0 0
        %3546 = vmatpush2.bf16.msra.mxu0 0
        %3547 = vmatprep.subr.bf16.mxu0 0
        %3548 = vmatpush2.bf16.msra.mxu0 0
        %3549 = vmatprep.mubr.bf16.mxu0 0
        %3550 = vmatmul.mubr.bf16.gmra.mxu0 %v338
        %v3551 = vpop.f32.mrf.mxu0
        %v3552 = vadd.f32 %v3503, %v3551
        %v3553 = vpop.f32.mrf.mxu0
        %v3554 = vpop.f32.mrf.mxu0
        %v3555 = vadd.f32 %v3503, %v3554
        %v3556 = vpop.f32.mrf.mxu0
        %3557 = vmatprep.mubr.bf16.mxu0 0
        %3558 = vmatmul.mubr.bf16.gmra.mxu0 %v341
        %v3559 = vpop.f32.mrf.mxu0
        %v3560 = vadd.f32 %v3503, %v3559
        %v3561 = vpop.f32.mrf.mxu0
        %v3562 = vpop.f32.mrf.mxu0
        %v3563 = vadd.f32 %v3503, %v3562
        %v3564 = vpop.f32.mrf.mxu0
        %3565 = vmatprep.mubr.bf16.mxu0 0
        %3566 = vmatmul.mubr.bf16.gmra.mxu0 %v344
        %v3567 = vpop.f32.mrf.mxu0
        %v3568 = vadd.f32 %v3503, %v3567
        %v3569 = vpop.f32.mrf.mxu0
        %v3570 = vpop.f32.mrf.mxu0
        %v3571 = vadd.f32 %v3503, %v3570
        %v3572 = vpop.f32.mrf.mxu0
        %3573 = vmatprep.mubr.bf16.mxu0 0
        %3574 = vmatmul.mubr.bf16.gmra.mxu0 %v347
        %v3575 = vpop.f32.mrf.mxu0
        %v3576 = vadd.f32 %v3503, %v3575
        %v3577 = vpop.f32.mrf.mxu0
        %v3578 = vpop.f32.mrf.mxu0
        %v3579 = vadd.f32 %v3503, %v3578
        %v3580 = vpop.f32.mrf.mxu0
        %3581 = vmatprep.mubr.bf16.mxu0 0
        %3582 = vmatmul.mubr.bf16.gmra.mxu0 %v350
        %v3583 = vpop.f32.mrf.mxu0
        %v3584 = vadd.f32 %v3503, %v3583
        %v3585 = vpop.f32.mrf.mxu0
        %v3586 = vpop.f32.mrf.mxu0
        %v3587 = vadd.f32 %v3503, %v3586
        %v3588 = vpop.f32.mrf.mxu0
        %3589 = vmatprep.mubr.bf16.mxu0 0
        %3590 = vmatmul.mubr.bf16.gmra.mxu0 %v353
        %v3591 = vpop.f32.mrf.mxu0
        %v3592 = vadd.f32 %v3503, %v3591
        %v3593 = vpop.f32.mrf.mxu0
        %v3594 = vpop.f32.mrf.mxu0
        %v3595 = vadd.f32 %v3503, %v3594
        %v3596 = vpop.f32.mrf.mxu0
        %3597 = vmatprep.mubr.bf16.mxu0 0
        %3598 = vmatmul.mubr.bf16.gmra.mxu0 %v356
        %v3599 = vpop.f32.mrf.mxu0
        %v3600 = vadd.f32 %v3503, %v3599
        %v3601 = vpop.f32.mrf.mxu0
        %v3602 = vpop.f32.mrf.mxu0
        %v3603 = vadd.f32 %v3503, %v3602
        %v3604 = vpop.f32.mrf.mxu0
        %3605 = vmatprep.mubr.bf16.mxu0 0
        %3606 = vmatmul.mubr.bf16.gmra.mxu0 %v359
        %v3607 = vpop.f32.mrf.mxu0
        %v3608 = vadd.f32 %v3503, %v3607
        %v3609 = vpop.f32.mrf.mxu0
        %v3610 = vpop.f32.mrf.mxu0
        %v3611 = vadd.f32 %v3503, %v3610
        %v3612 = vpop.f32.mrf.mxu0
        %3613 = vdwg.mxu0
        %v3614 = vpack.c.bf16 %v3365, %v3364
        %v3615 = vpack.c.bf16 %v3367, %v3366
        %v3616 = vpack.c.bf16 %v3369, %v3368
        %v3617 = vpack.c.bf16 %v3371, %v3370
        %v3618 = vpack.c.bf16 %v3373, %v3372
        %v3619 = vpack.c.bf16 %v3375, %v3374
        %v3620 = vpack.c.bf16 %v3377, %v3376
        %v3621 = vpack.c.bf16 %v3379, %v3378
        %v3622 = vpack.c.bf16 %v3438, %v3435
        %v3623 = vpack.c.bf16 %v3446, %v3443
        %v3624 = vpack.c.bf16 %v3454, %v3451
        %v3625 = vpack.c.bf16 %v3462, %v3459
        %v3626 = vpack.c.bf16 %v3470, %v3467
        %v3627 = vpack.c.bf16 %v3478, %v3475
        %v3628 = vpack.c.bf16 %v3486, %v3483
        %v3629 = vpack.c.bf16 %v3494, %v3491
        %v3630 = vpack.c.bf16 %v3555, %v3552
        %v3631 = vpack.c.bf16 %v3563, %v3560
        %v3632 = vpack.c.bf16 %v3571, %v3568
        %v3633 = vpack.c.bf16 %v3579, %v3576
        %v3634 = vpack.c.bf16 %v3587, %v3584
        %v3635 = vpack.c.bf16 %v3595, %v3592
        %v3636 = vpack.c.bf16 %v3603, %v3600
        %v3637 = vpack.c.bf16 %v3611, %v3608
        %v3639 = vsel %vm732, %v3614, 0
        %v3642 = vsel %vm732, %v3622, 0
        %3644 = vmatprep.subr.bf16.mxu0 0
        %3645 = vmatpush1.bf16.xpose.msra.mxu0 0
        %3646 = vmatprep.subr.bf16.mxu0 0
        %3647 = vmatpush1.bf16.xpose.msra.mxu0 0
        %3648 = vmatprep.subr.bf16.mxu0 0
        %3649 = vmatpush1.bf16.xpose.msra.mxu0 0
        %3650 = vmatprep.subr.bf16.mxu0 0
        %3651 = vmatpush1.bf16.xpose.msra.mxu0 0
        %3652 = vmatprep.subr.bf16.mxu0 0
        %3653 = vmatpush1.bf16.xpose.msra.mxu0 0
        %3654 = vmatprep.subr.bf16.mxu0 0
        %3655 = vmatpush1.bf16.xpose.msra.mxu0 0
        %3656 = vmatprep.subr.bf16.mxu0 0
        %3657 = vmatpush1.bf16.xpose.msra.mxu0 0
        %3658 = vmatprep.subr.bf16.mxu0 0
        %3659 = vmatpush1.bf16.xpose.msra.mxu0 %v3642
        %3660 = vmatprep.subr.bf16.mxu0 0
        %3661 = vmatpush2.bf16.xpose.msra.mxu0 0
        %3662 = vmatprep.subr.bf16.mxu0 0
        %3663 = vmatpush2.bf16.xpose.msra.mxu0 0
        %3664 = vmatprep.subr.bf16.mxu0 0
        %3665 = vmatpush2.bf16.xpose.msra.mxu0 0
        %3666 = vmatprep.subr.bf16.mxu0 0
        %3667 = vmatpush2.bf16.xpose.msra.mxu0 0
        %3668 = vmatprep.subr.bf16.mxu0 0
        %3669 = vmatpush2.bf16.xpose.msra.mxu0 0
        %3670 = vmatprep.subr.bf16.mxu0 0
        %3671 = vmatpush2.bf16.xpose.msra.mxu0 0
        %3672 = vmatprep.subr.bf16.mxu0 0
        %3673 = vmatpush2.bf16.xpose.msra.mxu0 0
        %3674 = vmatprep.subr.bf16.mxu0 0
        %3675 = vmatpush2.bf16.xpose.msra.mxu0 0
        %3676 = vmatprep.mubr.bf16.mxu0 0
        %3677 = vmatmul.mubr.bf16.gmra.mxu0 %v3639
        %v3678 = vpop.f32.mrf.mxu0
        %v3679 = vadd.f32 0.0, %v3678
        %v3680 = vpop.f32.mrf.mxu0
        %v3681 = vpop.f32.mrf.mxu0
        %v3682 = vadd.f32 0.0, %v3681
        %v3683 = vpop.f32.mrf.mxu0
        %3684 = vdwg.mxu0
        %v3686 = vsel %vm732, %v3615, 0
        %v3689 = vsel %vm732, %v3623, 0
        %3691 = vmatprep.subr.bf16.mxu0 0
        %3692 = vmatpush1.bf16.xpose.msra.mxu0 0
        %3693 = vmatprep.subr.bf16.mxu0 0
        %3694 = vmatpush1.bf16.xpose.msra.mxu0 0
        %3695 = vmatprep.subr.bf16.mxu0 0
        %3696 = vmatpush1.bf16.xpose.msra.mxu0 0
        %3697 = vmatprep.subr.bf16.mxu0 0
        %3698 = vmatpush1.bf16.xpose.msra.mxu0 0
        %3699 = vmatprep.subr.bf16.mxu0 0
        %3700 = vmatpush1.bf16.xpose.msra.mxu0 0
        %3701 = vmatprep.subr.bf16.mxu0 0
        %3702 = vmatpush1.bf16.xpose.msra.mxu0 0
        %3703 = vmatprep.subr.bf16.mxu0 0
        %3704 = vmatpush1.bf16.xpose.msra.mxu0 0
        %3705 = vmatprep.subr.bf16.mxu0 0
        %3706 = vmatpush1.bf16.xpose.msra.mxu0 %v3689
        %3707 = vmatprep.subr.bf16.mxu0 0
        %3708 = vmatpush2.bf16.xpose.msra.mxu0 0
        %3709 = vmatprep.subr.bf16.mxu0 0
        %3710 = vmatpush2.bf16.xpose.msra.mxu0 0
        %3711 = vmatprep.subr.bf16.mxu0 0
        %3712 = vmatpush2.bf16.xpose.msra.mxu0 0
        %3713 = vmatprep.subr.bf16.mxu0 0
        %3714 = vmatpush2.bf16.xpose.msra.mxu0 0
        %3715 = vmatprep.subr.bf16.mxu0 0
        %3716 = vmatpush2.bf16.xpose.msra.mxu0 0
        %3717 = vmatprep.subr.bf16.mxu0 0
        %3718 = vmatpush2.bf16.xpose.msra.mxu0 0
        %3719 = vmatprep.subr.bf16.mxu0 0
        %3720 = vmatpush2.bf16.xpose.msra.mxu0 0
        %3721 = vmatprep.subr.bf16.mxu0 0
        %3722 = vmatpush2.bf16.xpose.msra.mxu0 0
        %3723 = vmatprep.mubr.bf16.mxu0 0
        %3724 = vmatmul.mubr.bf16.gmra.mxu0 %v3686
        %v3725 = vpop.f32.mrf.mxu0
        %v3726 = vadd.f32 0.0, %v3725
        %v3727 = vpop.f32.mrf.mxu0
        %v3728 = vpop.f32.mrf.mxu0
        %v3729 = vadd.f32 0.0, %v3728
        %v3730 = vpop.f32.mrf.mxu0
        %3731 = vdwg.mxu0
        %v3733 = vsel %vm732, %v3616, 0
        %v3736 = vsel %vm732, %v3624, 0
        %3738 = vmatprep.subr.bf16.mxu0 0
        %3739 = vmatpush1.bf16.xpose.msra.mxu0 0
        %3740 = vmatprep.subr.bf16.mxu0 0
        %3741 = vmatpush1.bf16.xpose.msra.mxu0 0
        %3742 = vmatprep.subr.bf16.mxu0 0
        %3743 = vmatpush1.bf16.xpose.msra.mxu0 0
        %3744 = vmatprep.subr.bf16.mxu0 0
        %3745 = vmatpush1.bf16.xpose.msra.mxu0 0
        %3746 = vmatprep.subr.bf16.mxu0 0
        %3747 = vmatpush1.bf16.xpose.msra.mxu0 0
        %3748 = vmatprep.subr.bf16.mxu0 0
        %3749 = vmatpush1.bf16.xpose.msra.mxu0 0
        %3750 = vmatprep.subr.bf16.mxu0 0
        %3751 = vmatpush1.bf16.xpose.msra.mxu0 0
        %3752 = vmatprep.subr.bf16.mxu0 0
        %3753 = vmatpush1.bf16.xpose.msra.mxu0 %v3736
        %3754 = vmatprep.subr.bf16.mxu0 0
        %3755 = vmatpush2.bf16.xpose.msra.mxu0 0
        %3756 = vmatprep.subr.bf16.mxu0 0
        %3757 = vmatpush2.bf16.xpose.msra.mxu0 0
        %3758 = vmatprep.subr.bf16.mxu0 0
        %3759 = vmatpush2.bf16.xpose.msra.mxu0 0
        %3760 = vmatprep.subr.bf16.mxu0 0
        %3761 = vmatpush2.bf16.xpose.msra.mxu0 0
        %3762 = vmatprep.subr.bf16.mxu0 0
        %3763 = vmatpush2.bf16.xpose.msra.mxu0 0
        %3764 = vmatprep.subr.bf16.mxu0 0
        %3765 = vmatpush2.bf16.xpose.msra.mxu0 0
        %3766 = vmatprep.subr.bf16.mxu0 0
        %3767 = vmatpush2.bf16.xpose.msra.mxu0 0
        %3768 = vmatprep.subr.bf16.mxu0 0
        %3769 = vmatpush2.bf16.xpose.msra.mxu0 0
        %3770 = vmatprep.mubr.bf16.mxu0 0
        %3771 = vmatmul.mubr.bf16.gmra.mxu0 %v3733
        %v3772 = vpop.f32.mrf.mxu0
        %v3773 = vadd.f32 0.0, %v3772
        %v3774 = vpop.f32.mrf.mxu0
        %v3775 = vpop.f32.mrf.mxu0
        %v3776 = vadd.f32 0.0, %v3775
        %v3777 = vpop.f32.mrf.mxu0
        %3778 = vdwg.mxu0
        %v3780 = vsel %vm732, %v3617, 0
        %v3783 = vsel %vm732, %v3625, 0
        %3785 = vmatprep.subr.bf16.mxu0 0
        %3786 = vmatpush1.bf16.xpose.msra.mxu0 0
        %3787 = vmatprep.subr.bf16.mxu0 0
        %3788 = vmatpush1.bf16.xpose.msra.mxu0 0
        %3789 = vmatprep.subr.bf16.mxu0 0
        %3790 = vmatpush1.bf16.xpose.msra.mxu0 0
        %3791 = vmatprep.subr.bf16.mxu0 0
        %3792 = vmatpush1.bf16.xpose.msra.mxu0 0
        %3793 = vmatprep.subr.bf16.mxu0 0
        %3794 = vmatpush1.bf16.xpose.msra.mxu0 0
        %3795 = vmatprep.subr.bf16.mxu0 0
        %3796 = vmatpush1.bf16.xpose.msra.mxu0 0
        %3797 = vmatprep.subr.bf16.mxu0 0
        %3798 = vmatpush1.bf16.xpose.msra.mxu0 0
        %3799 = vmatprep.subr.bf16.mxu0 0
        %3800 = vmatpush1.bf16.xpose.msra.mxu0 %v3783
        %3801 = vmatprep.subr.bf16.mxu0 0
        %3802 = vmatpush2.bf16.xpose.msra.mxu0 0
        %3803 = vmatprep.subr.bf16.mxu0 0
        %3804 = vmatpush2.bf16.xpose.msra.mxu0 0
        %3805 = vmatprep.subr.bf16.mxu0 0
        %3806 = vmatpush2.bf16.xpose.msra.mxu0 0
        %3807 = vmatprep.subr.bf16.mxu0 0
        %3808 = vmatpush2.bf16.xpose.msra.mxu0 0
        %3809 = vmatprep.subr.bf16.mxu0 0
        %3810 = vmatpush2.bf16.xpose.msra.mxu0 0
        %3811 = vmatprep.subr.bf16.mxu0 0
        %3812 = vmatpush2.bf16.xpose.msra.mxu0 0
        %3813 = vmatprep.subr.bf16.mxu0 0
        %3814 = vmatpush2.bf16.xpose.msra.mxu0 0
        %3815 = vmatprep.subr.bf16.mxu0 0
        %3816 = vmatpush2.bf16.xpose.msra.mxu0 0
        %3817 = vmatprep.mubr.bf16.mxu0 0
        %3818 = vmatmul.mubr.bf16.gmra.mxu0 %v3780
        %v3819 = vpop.f32.mrf.mxu0
        %v3820 = vadd.f32 0.0, %v3819
        %v3821 = vpop.f32.mrf.mxu0
        %v3822 = vpop.f32.mrf.mxu0
        %v3823 = vadd.f32 0.0, %v3822
        %v3824 = vpop.f32.mrf.mxu0
        %3825 = vdwg.mxu0
        %v3827 = vsel %vm732, %v3618, 0
        %v3830 = vsel %vm732, %v3626, 0
        %3832 = vmatprep.subr.bf16.mxu0 0
        %3833 = vmatpush1.bf16.xpose.msra.mxu0 0
        %3834 = vmatprep.subr.bf16.mxu0 0
        %3835 = vmatpush1.bf16.xpose.msra.mxu0 0
        %3836 = vmatprep.subr.bf16.mxu0 0
        %3837 = vmatpush1.bf16.xpose.msra.mxu0 0
        %3838 = vmatprep.subr.bf16.mxu0 0
        %3839 = vmatpush1.bf16.xpose.msra.mxu0 0
        %3840 = vmatprep.subr.bf16.mxu0 0
        %3841 = vmatpush1.bf16.xpose.msra.mxu0 0
        %3842 = vmatprep.subr.bf16.mxu0 0
        %3843 = vmatpush1.bf16.xpose.msra.mxu0 0
        %3844 = vmatprep.subr.bf16.mxu0 0
        %3845 = vmatpush1.bf16.xpose.msra.mxu0 0
        %3846 = vmatprep.subr.bf16.mxu0 0
        %3847 = vmatpush1.bf16.xpose.msra.mxu0 %v3830
        %3848 = vmatprep.subr.bf16.mxu0 0
        %3849 = vmatpush2.bf16.xpose.msra.mxu0 0
        %3850 = vmatprep.subr.bf16.mxu0 0
        %3851 = vmatpush2.bf16.xpose.msra.mxu0 0
        %3852 = vmatprep.subr.bf16.mxu0 0
        %3853 = vmatpush2.bf16.xpose.msra.mxu0 0
        %3854 = vmatprep.subr.bf16.mxu0 0
        %3855 = vmatpush2.bf16.xpose.msra.mxu0 0
        %3856 = vmatprep.subr.bf16.mxu0 0
        %3857 = vmatpush2.bf16.xpose.msra.mxu0 0
        %3858 = vmatprep.subr.bf16.mxu0 0
        %3859 = vmatpush2.bf16.xpose.msra.mxu0 0
        %3860 = vmatprep.subr.bf16.mxu0 0
        %3861 = vmatpush2.bf16.xpose.msra.mxu0 0
        %3862 = vmatprep.subr.bf16.mxu0 0
        %3863 = vmatpush2.bf16.xpose.msra.mxu0 0
        %3864 = vmatprep.mubr.bf16.mxu0 0
        %3865 = vmatmul.mubr.bf16.gmra.mxu0 %v3827
        %v3866 = vpop.f32.mrf.mxu0
        %v3867 = vadd.f32 0.0, %v3866
        %v3868 = vpop.f32.mrf.mxu0
        %v3869 = vpop.f32.mrf.mxu0
        %v3870 = vadd.f32 0.0, %v3869
        %v3871 = vpop.f32.mrf.mxu0
        %3872 = vdwg.mxu0
        %v3874 = vsel %vm732, %v3619, 0
        %v3877 = vsel %vm732, %v3627, 0
        %3879 = vmatprep.subr.bf16.mxu0 0
        %3880 = vmatpush1.bf16.xpose.msra.mxu0 0
        %3881 = vmatprep.subr.bf16.mxu0 0
        %3882 = vmatpush1.bf16.xpose.msra.mxu0 0
        %3883 = vmatprep.subr.bf16.mxu0 0
        %3884 = vmatpush1.bf16.xpose.msra.mxu0 0
        %3885 = vmatprep.subr.bf16.mxu0 0
        %3886 = vmatpush1.bf16.xpose.msra.mxu0 0
        %3887 = vmatprep.subr.bf16.mxu0 0
        %3888 = vmatpush1.bf16.xpose.msra.mxu0 0
        %3889 = vmatprep.subr.bf16.mxu0 0
        %3890 = vmatpush1.bf16.xpose.msra.mxu0 0
        %3891 = vmatprep.subr.bf16.mxu0 0
        %3892 = vmatpush1.bf16.xpose.msra.mxu0 0
        %3893 = vmatprep.subr.bf16.mxu0 0
        %3894 = vmatpush1.bf16.xpose.msra.mxu0 %v3877
        %3895 = vmatprep.subr.bf16.mxu0 0
        %3896 = vmatpush2.bf16.xpose.msra.mxu0 0
        %3897 = vmatprep.subr.bf16.mxu0 0
        %3898 = vmatpush2.bf16.xpose.msra.mxu0 0
        %3899 = vmatprep.subr.bf16.mxu0 0
        %3900 = vmatpush2.bf16.xpose.msra.mxu0 0
        %3901 = vmatprep.subr.bf16.mxu0 0
        %3902 = vmatpush2.bf16.xpose.msra.mxu0 0
        %3903 = vmatprep.subr.bf16.mxu0 0
        %3904 = vmatpush2.bf16.xpose.msra.mxu0 0
        %3905 = vmatprep.subr.bf16.mxu0 0
        %3906 = vmatpush2.bf16.xpose.msra.mxu0 0
        %3907 = vmatprep.subr.bf16.mxu0 0
        %3908 = vmatpush2.bf16.xpose.msra.mxu0 0
        %3909 = vmatprep.subr.bf16.mxu0 0
        %3910 = vmatpush2.bf16.xpose.msra.mxu0 0
        %3911 = vmatprep.mubr.bf16.mxu0 0
        %3912 = vmatmul.mubr.bf16.gmra.mxu0 %v3874
        %v3913 = vpop.f32.mrf.mxu0
        %v3914 = vadd.f32 0.0, %v3913
        %v3915 = vpop.f32.mrf.mxu0
        %v3916 = vpop.f32.mrf.mxu0
        %v3917 = vadd.f32 0.0, %v3916
        %v3918 = vpop.f32.mrf.mxu0
        %3919 = vdwg.mxu0
        %v3921 = vsel %vm732, %v3620, 0
        %v3924 = vsel %vm732, %v3628, 0
        %3926 = vmatprep.subr.bf16.mxu0 0
        %3927 = vmatpush1.bf16.xpose.msra.mxu0 0
        %3928 = vmatprep.subr.bf16.mxu0 0
        %3929 = vmatpush1.bf16.xpose.msra.mxu0 0
        %3930 = vmatprep.subr.bf16.mxu0 0
        %3931 = vmatpush1.bf16.xpose.msra.mxu0 0
        %3932 = vmatprep.subr.bf16.mxu0 0
        %3933 = vmatpush1.bf16.xpose.msra.mxu0 0
        %3934 = vmatprep.subr.bf16.mxu0 0
        %3935 = vmatpush1.bf16.xpose.msra.mxu0 0
        %3936 = vmatprep.subr.bf16.mxu0 0
        %3937 = vmatpush1.bf16.xpose.msra.mxu0 0
        %3938 = vmatprep.subr.bf16.mxu0 0
        %3939 = vmatpush1.bf16.xpose.msra.mxu0 0
        %3940 = vmatprep.subr.bf16.mxu0 0
        %3941 = vmatpush1.bf16.xpose.msra.mxu0 %v3924
        %3942 = vmatprep.subr.bf16.mxu0 0
        %3943 = vmatpush2.bf16.xpose.msra.mxu0 0
        %3944 = vmatprep.subr.bf16.mxu0 0
        %3945 = vmatpush2.bf16.xpose.msra.mxu0 0
        %3946 = vmatprep.subr.bf16.mxu0 0
        %3947 = vmatpush2.bf16.xpose.msra.mxu0 0
        %3948 = vmatprep.subr.bf16.mxu0 0
        %3949 = vmatpush2.bf16.xpose.msra.mxu0 0
        %3950 = vmatprep.subr.bf16.mxu0 0
        %3951 = vmatpush2.bf16.xpose.msra.mxu0 0
        %3952 = vmatprep.subr.bf16.mxu0 0
        %3953 = vmatpush2.bf16.xpose.msra.mxu0 0
        %3954 = vmatprep.subr.bf16.mxu0 0
        %3955 = vmatpush2.bf16.xpose.msra.mxu0 0
        %3956 = vmatprep.subr.bf16.mxu0 0
        %3957 = vmatpush2.bf16.xpose.msra.mxu0 0
        %3958 = vmatprep.mubr.bf16.mxu0 0
        %3959 = vmatmul.mubr.bf16.gmra.mxu0 %v3921
        %v3960 = vpop.f32.mrf.mxu0
        %v3961 = vadd.f32 0.0, %v3960
        %v3962 = vpop.f32.mrf.mxu0
        %v3963 = vpop.f32.mrf.mxu0
        %v3964 = vadd.f32 0.0, %v3963
        %v3965 = vpop.f32.mrf.mxu0
        %3966 = vdwg.mxu0
        %v3968 = vsel %vm732, %v3621, 0
        %v3971 = vsel %vm732, %v3629, 0
        %3973 = vmatprep.subr.bf16.mxu0 0
        %3974 = vmatpush1.bf16.xpose.msra.mxu0 0
        %3975 = vmatprep.subr.bf16.mxu0 0
        %3976 = vmatpush1.bf16.xpose.msra.mxu0 0
        %3977 = vmatprep.subr.bf16.mxu0 0
        %3978 = vmatpush1.bf16.xpose.msra.mxu0 0
        %3979 = vmatprep.subr.bf16.mxu0 0
        %3980 = vmatpush1.bf16.xpose.msra.mxu0 0
        %3981 = vmatprep.subr.bf16.mxu0 0
        %3982 = vmatpush1.bf16.xpose.msra.mxu0 0
        %3983 = vmatprep.subr.bf16.mxu0 0
        %3984 = vmatpush1.bf16.xpose.msra.mxu0 0
        %3985 = vmatprep.subr.bf16.mxu0 0
        %3986 = vmatpush1.bf16.xpose.msra.mxu0 0
        %3987 = vmatprep.subr.bf16.mxu0 0
        %3988 = vmatpush1.bf16.xpose.msra.mxu0 %v3971
        %3989 = vmatprep.subr.bf16.mxu0 0
        %3990 = vmatpush2.bf16.xpose.msra.mxu0 0
        %3991 = vmatprep.subr.bf16.mxu0 0
        %3992 = vmatpush2.bf16.xpose.msra.mxu0 0
        %3993 = vmatprep.subr.bf16.mxu0 0
        %3994 = vmatpush2.bf16.xpose.msra.mxu0 0
        %3995 = vmatprep.subr.bf16.mxu0 0
        %3996 = vmatpush2.bf16.xpose.msra.mxu0 0
        %3997 = vmatprep.subr.bf16.mxu0 0
        %3998 = vmatpush2.bf16.xpose.msra.mxu0 0
        %3999 = vmatprep.subr.bf16.mxu0 0
        %4000 = vmatpush2.bf16.xpose.msra.mxu0 0
        %4001 = vmatprep.subr.bf16.mxu0 0
        %4002 = vmatpush2.bf16.xpose.msra.mxu0 0
        %4003 = vmatprep.subr.bf16.mxu0 0
        %4004 = vmatpush2.bf16.xpose.msra.mxu0 0
        %4005 = vmatprep.mubr.bf16.mxu0 0
        %4006 = vmatmul.mubr.bf16.gmra.mxu0 %v3968
        %v4007 = vpop.f32.mrf.mxu0
        %v4008 = vadd.f32 0.0, %v4007
        %v4009 = vpop.f32.mrf.mxu0
        %v4010 = vpop.f32.mrf.mxu0
        %v4011 = vadd.f32 0.0, %v4010
        %v4012 = vpop.f32.mrf.mxu0
        %4013 = vdwg.mxu0
        %v4014 = vsel %vm1109, %v3679, -inf
        %4015 = vmax.xlane.f32.xlu0 %v4014
        %v4016 = vpop.xlane.xlu0 %4015
        %v4017 = vsel %vm1109, %v3682, -inf
        %4018 = vmax.xlane.f32.xlu0 %v4017
        %v4019 = vpop.xlane.xlu0 %4018
        %v4020 = vsel %vm1109, %v3726, -inf
        %4021 = vmax.xlane.f32.xlu0 %v4020
        %v4022 = vpop.xlane.xlu0 %4021
        %v4023 = vsel %vm1109, %v3729, -inf
        %4024 = vmax.xlane.f32.xlu0 %v4023
        %v4025 = vpop.xlane.xlu0 %4024
        %v4026 = vsel %vm1109, %v3773, -inf
        %4027 = vmax.xlane.f32.xlu0 %v4026
        %v4028 = vpop.xlane.xlu0 %4027
        %v4029 = vsel %vm1109, %v3776, -inf
        %4030 = vmax.xlane.f32.xlu0 %v4029
        %v4031 = vpop.xlane.xlu0 %4030
        %v4032 = vsel %vm1109, %v3820, -inf
        %4033 = vmax.xlane.f32.xlu0 %v4032
        %v4034 = vpop.xlane.xlu0 %4033
        %v4035 = vsel %vm1109, %v3823, -inf
        %4036 = vmax.xlane.f32.xlu0 %v4035
        %v4037 = vpop.xlane.xlu0 %4036
        %v4038 = vsel %vm1109, %v3867, -inf
        %4039 = vmax.xlane.f32.xlu0 %v4038
        %v4040 = vpop.xlane.xlu0 %4039
        %v4041 = vsel %vm1109, %v3870, -inf
        %4042 = vmax.xlane.f32.xlu0 %v4041
        %v4043 = vpop.xlane.xlu0 %4042
        %v4044 = vsel %vm1109, %v3914, -inf
        %4045 = vmax.xlane.f32.xlu0 %v4044
        %v4046 = vpop.xlane.xlu0 %4045
        %v4047 = vsel %vm1109, %v3917, -inf
        %4048 = vmax.xlane.f32.xlu0 %v4047
        %v4049 = vpop.xlane.xlu0 %4048
        %v4050 = vsel %vm1109, %v3961, -inf
        %4051 = vmax.xlane.f32.xlu0 %v4050
        %v4052 = vpop.xlane.xlu0 %4051
        %v4053 = vsel %vm1109, %v3964, -inf
        %4054 = vmax.xlane.f32.xlu0 %v4053
        %v4055 = vpop.xlane.xlu0 %4054
        %v4056 = vsel %vm1109, %v4008, -inf
        %4057 = vmax.xlane.f32.xlu0 %v4056
        %v4058 = vpop.xlane.xlu0 %4057
        %v4059 = vsel %vm1109, %v4011, -inf
        %4060 = vmax.xlane.f32.xlu0 %v4059
        %v4061 = vpop.xlane.xlu0 %4060
        %v4062 = vsub.f32 %v3679, %v4016
        %v4063 = vsub.f32 %v3682, %v4019
        %v4064 = vsub.f32 %v3726, %v4022
        %v4065 = vsub.f32 %v3729, %v4025
        %v4066 = vsub.f32 %v3773, %v4028
        %v4067 = vsub.f32 %v3776, %v4031
        %v4068 = vsub.f32 %v3820, %v4034
        %v4069 = vsub.f32 %v3823, %v4037
        %v4070 = vsub.f32 %v3867, %v4040
        %v4071 = vsub.f32 %v3870, %v4043
        %v4072 = vsub.f32 %v3914, %v4046
        %v4073 = vsub.f32 %v3917, %v4049
        %v4074 = vsub.f32 %v3961, %v4052
        %v4075 = vsub.f32 %v3964, %v4055
        %v4076 = vsub.f32 %v4008, %v4058
        %v4077 = vsub.f32 %v4011, %v4061
        %v4078 = vmul.f32 %v4062, 1.442695
        %v4079 = vpow.pop %v4078
        %v4080 = vmul.f32 %v4063, 1.442695
        %v4081 = vpow.pop %v4080
        %v4082 = vmul.f32 %v4064, 1.442695
        %v4083 = vpow.pop %v4082
        %v4084 = vmul.f32 %v4065, 1.442695
        %v4085 = vpow.pop %v4084
        %v4086 = vmul.f32 %v4066, 1.442695
        %v4087 = vpow.pop %v4086
        %v4088 = vmul.f32 %v4067, 1.442695
        %v4089 = vpow.pop %v4088
        %v4090 = vmul.f32 %v4068, 1.442695
        %v4091 = vpow.pop %v4090
        %v4092 = vmul.f32 %v4069, 1.442695
        %v4093 = vpow.pop %v4092
        %v4094 = vmul.f32 %v4070, 1.442695
        %v4095 = vpow.pop %v4094
        %v4096 = vmul.f32 %v4071, 1.442695
        %v4097 = vpow.pop %v4096
        %v4098 = vmul.f32 %v4072, 1.442695
        %v4099 = vpow.pop %v4098
        %v4100 = vmul.f32 %v4073, 1.442695
        %v4101 = vpow.pop %v4100
        %v4102 = vmul.f32 %v4074, 1.442695
        %v4103 = vpow.pop %v4102
        %v4104 = vmul.f32 %v4075, 1.442695
        %v4105 = vpow.pop %v4104
        %v4106 = vmul.f32 %v4076, 1.442695
        %v4107 = vpow.pop %v4106
        %v4108 = vmul.f32 %v4077, 1.442695
        %v4109 = vpow.pop %v4108
        %v4110 = vsel %vm1109, %v4079, 0.0
        %4111 = vadd.xlane.f32.xlu0 %v4110
        %v4112 = vpop.xlane.xlu0 %4111
        %v4113 = vsel %vm1109, %v4081, 0.0
        %4114 = vadd.xlane.f32.xlu0 %v4113
        %v4115 = vpop.xlane.xlu0 %4114
        %v4116 = vsel %vm1109, %v4083, 0.0
        %4117 = vadd.xlane.f32.xlu0 %v4116
        %v4118 = vpop.xlane.xlu0 %4117
        %v4119 = vsel %vm1109, %v4085, 0.0
        %4120 = vadd.xlane.f32.xlu0 %v4119
        %v4121 = vpop.xlane.xlu0 %4120
        %v4122 = vsel %vm1109, %v4087, 0.0
        %4123 = vadd.xlane.f32.xlu0 %v4122
        %v4124 = vpop.xlane.xlu0 %4123
        %v4125 = vsel %vm1109, %v4089, 0.0
        %4126 = vadd.xlane.f32.xlu0 %v4125
        %v4127 = vpop.xlane.xlu0 %4126
        %v4128 = vsel %vm1109, %v4091, 0.0
        %4129 = vadd.xlane.f32.xlu0 %v4128
        %v4130 = vpop.xlane.xlu0 %4129
        %v4131 = vsel %vm1109, %v4093, 0.0
        %4132 = vadd.xlane.f32.xlu0 %v4131
        %v4133 = vpop.xlane.xlu0 %4132
        %v4134 = vsel %vm1109, %v4095, 0.0
        %4135 = vadd.xlane.f32.xlu0 %v4134
        %v4136 = vpop.xlane.xlu0 %4135
        %v4137 = vsel %vm1109, %v4097, 0.0
        %4138 = vadd.xlane.f32.xlu0 %v4137
        %v4139 = vpop.xlane.xlu0 %4138
        %v4140 = vsel %vm1109, %v4099, 0.0
        %4141 = vadd.xlane.f32.xlu0 %v4140
        %v4142 = vpop.xlane.xlu0 %4141
        %v4143 = vsel %vm1109, %v4101, 0.0
        %4144 = vadd.xlane.f32.xlu0 %v4143
        %v4145 = vpop.xlane.xlu0 %4144
        %v4146 = vsel %vm1109, %v4103, 0.0
        %4147 = vadd.xlane.f32.xlu0 %v4146
        %v4148 = vpop.xlane.xlu0 %4147
        %v4149 = vsel %vm1109, %v4105, 0.0
        %4150 = vadd.xlane.f32.xlu0 %v4149
        %v4151 = vpop.xlane.xlu0 %4150
        %v4152 = vsel %vm1109, %v4107, 0.0
        %4153 = vadd.xlane.f32.xlu0 %v4152
        %v4154 = vpop.xlane.xlu0 %4153
        %v4155 = vsel %vm1109, %v4109, 0.0
        %4156 = vadd.xlane.f32.xlu0 %v4155
        %v4157 = vpop.xlane.xlu0 %4156
        %v4158 = vrcp.pop %v4112
        %v4159 = vrcp.pop %v4115
        %v4160 = vrcp.pop %v4118
        %v4161 = vrcp.pop %v4121
        %v4162 = vrcp.pop %v4124
        %v4163 = vrcp.pop %v4127
        %v4164 = vrcp.pop %v4130
        %v4165 = vrcp.pop %v4133
        %v4166 = vrcp.pop %v4136
        %v4167 = vrcp.pop %v4139
        %v4168 = vrcp.pop %v4142
        %v4169 = vrcp.pop %v4145
        %v4170 = vrcp.pop %v4148
        %v4171 = vrcp.pop %v4151
        %v4172 = vrcp.pop %v4154
        %v4173 = vrcp.pop %v4157
        %v4174 = vmul.f32 %v4079, %v4158
        %v4175 = vmul.f32 %v4081, %v4159
        %v4176 = vmul.f32 %v4083, %v4160
        %v4177 = vmul.f32 %v4085, %v4161
        %v4178 = vmul.f32 %v4087, %v4162
        %v4179 = vmul.f32 %v4089, %v4163
        %v4180 = vmul.f32 %v4091, %v4164
        %v4181 = vmul.f32 %v4093, %v4165
        %v4182 = vmul.f32 %v4095, %v4166
        %v4183 = vmul.f32 %v4097, %v4167
        %v4184 = vmul.f32 %v4099, %v4168
        %v4185 = vmul.f32 %v4101, %v4169
        %v4186 = vmul.f32 %v4103, %v4170
        %v4187 = vmul.f32 %v4105, %v4171
        %v4188 = vmul.f32 %v4107, %v4172
        %v4189 = vmul.f32 %v4109, %v4173
        %v4190 = vpack.c.bf16 %v4175, %v4174
        %v4191 = vpack.c.bf16 %v4177, %v4176
        %v4192 = vpack.c.bf16 %v4179, %v4178
        %v4193 = vpack.c.bf16 %v4181, %v4180
        %v4194 = vpack.c.bf16 %v4183, %v4182
        %v4195 = vpack.c.bf16 %v4185, %v4184
        %v4196 = vpack.c.bf16 %v4187, %v4186
        %v4197 = vpack.c.bf16 %v4189, %v4188
        %v4199 = vsel %vm1109, %v4190, 0
        %4201 = vmatprep.subr.bf16.mxu0 0
        %4202 = vmatpush1.bf16.msra.mxu0 0
        %4203 = vmatprep.subr.bf16.mxu0 0
        %4204 = vmatpush1.bf16.msra.mxu0 0
        %4205 = vmatprep.subr.bf16.mxu0 0
        %4206 = vmatpush1.bf16.msra.mxu0 0
        %4207 = vmatprep.subr.bf16.mxu0 0
        %4208 = vmatpush1.bf16.msra.mxu0 0
        %4209 = vmatprep.subr.bf16.mxu0 0
        %4210 = vmatpush1.bf16.msra.mxu0 0
        %4211 = vmatprep.subr.bf16.mxu0 0
        %4212 = vmatpush1.bf16.msra.mxu0 0
        %4213 = vmatprep.subr.bf16.mxu0 0
        %4214 = vmatpush1.bf16.msra.mxu0 0
        %4215 = vmatprep.subr.bf16.mxu0 0
        %4216 = vmatpush1.bf16.msra.mxu0 %v3630
        %4217 = vmatprep.subr.bf16.mxu0 0
        %4218 = vmatpush2.bf16.msra.mxu0 0
        %4219 = vmatprep.subr.bf16.mxu0 0
        %4220 = vmatpush2.bf16.msra.mxu0 0
        %4221 = vmatprep.subr.bf16.mxu0 0
        %4222 = vmatpush2.bf16.msra.mxu0 0
        %4223 = vmatprep.subr.bf16.mxu0 0
        %4224 = vmatpush2.bf16.msra.mxu0 0
        %4225 = vmatprep.subr.bf16.mxu0 0
        %4226 = vmatpush2.bf16.msra.mxu0 0
        %4227 = vmatprep.subr.bf16.mxu0 0
        %4228 = vmatpush2.bf16.msra.mxu0 0
        %4229 = vmatprep.subr.bf16.mxu0 0
        %4230 = vmatpush2.bf16.msra.mxu0 0
        %4231 = vmatprep.subr.bf16.mxu0 0
        %4232 = vmatpush2.bf16.msra.mxu0 0
        %4233 = vmatprep.mubr.bf16.mxu0 0
        %4234 = vmatmul.mubr.bf16.gmra.mxu0 %v4199
        %v4235 = vpop.f32.mrf.mxu0
        %v4236 = vadd.f32 0.0, %v4235
        %v4237 = vpop.f32.mrf.mxu0
        %v4238 = vpop.f32.mrf.mxu0
        %v4239 = vadd.f32 0.0, %v4238
        %v4240 = vpop.f32.mrf.mxu0
        %4241 = vdwg.mxu0
        %v4243 = vsel %vm1109, %v4191, 0
        %4245 = vmatprep.subr.bf16.mxu0 0
        %4246 = vmatpush1.bf16.msra.mxu0 0
        %4247 = vmatprep.subr.bf16.mxu0 0
        %4248 = vmatpush1.bf16.msra.mxu0 0
        %4249 = vmatprep.subr.bf16.mxu0 0
        %4250 = vmatpush1.bf16.msra.mxu0 0
        %4251 = vmatprep.subr.bf16.mxu0 0
        %4252 = vmatpush1.bf16.msra.mxu0 0
        %4253 = vmatprep.subr.bf16.mxu0 0
        %4254 = vmatpush1.bf16.msra.mxu0 0
        %4255 = vmatprep.subr.bf16.mxu0 0
        %4256 = vmatpush1.bf16.msra.mxu0 0
        %4257 = vmatprep.subr.bf16.mxu0 0
        %4258 = vmatpush1.bf16.msra.mxu0 0
        %4259 = vmatprep.subr.bf16.mxu0 0
        %4260 = vmatpush1.bf16.msra.mxu0 %v3631
        %4261 = vmatprep.subr.bf16.mxu0 0
        %4262 = vmatpush2.bf16.msra.mxu0 0
        %4263 = vmatprep.subr.bf16.mxu0 0
        %4264 = vmatpush2.bf16.msra.mxu0 0
        %4265 = vmatprep.subr.bf16.mxu0 0
        %4266 = vmatpush2.bf16.msra.mxu0 0
        %4267 = vmatprep.subr.bf16.mxu0 0
        %4268 = vmatpush2.bf16.msra.mxu0 0
        %4269 = vmatprep.subr.bf16.mxu0 0
        %4270 = vmatpush2.bf16.msra.mxu0 0
        %4271 = vmatprep.subr.bf16.mxu0 0
        %4272 = vmatpush2.bf16.msra.mxu0 0
        %4273 = vmatprep.subr.bf16.mxu0 0
        %4274 = vmatpush2.bf16.msra.mxu0 0
        %4275 = vmatprep.subr.bf16.mxu0 0
        %4276 = vmatpush2.bf16.msra.mxu0 0
        %4277 = vmatprep.mubr.bf16.mxu0 0
        %4278 = vmatmul.mubr.bf16.gmra.mxu0 %v4243
        %v4279 = vpop.f32.mrf.mxu0
        %v4280 = vadd.f32 0.0, %v4279
        %v4281 = vpop.f32.mrf.mxu0
        %v4282 = vpop.f32.mrf.mxu0
        %v4283 = vadd.f32 0.0, %v4282
        %v4284 = vpop.f32.mrf.mxu0
        %4285 = vdwg.mxu0
        %v4287 = vsel %vm1109, %v4192, 0
        %4289 = vmatprep.subr.bf16.mxu0 0
        %4290 = vmatpush1.bf16.msra.mxu0 0
        %4291 = vmatprep.subr.bf16.mxu0 0
        %4292 = vmatpush1.bf16.msra.mxu0 0
        %4293 = vmatprep.subr.bf16.mxu0 0
        %4294 = vmatpush1.bf16.msra.mxu0 0
        %4295 = vmatprep.subr.bf16.mxu0 0
        %4296 = vmatpush1.bf16.msra.mxu0 0
        %4297 = vmatprep.subr.bf16.mxu0 0
        %4298 = vmatpush1.bf16.msra.mxu0 0
        %4299 = vmatprep.subr.bf16.mxu0 0
        %4300 = vmatpush1.bf16.msra.mxu0 0
        %4301 = vmatprep.subr.bf16.mxu0 0
        %4302 = vmatpush1.bf16.msra.mxu0 0
        %4303 = vmatprep.subr.bf16.mxu0 0
        %4304 = vmatpush1.bf16.msra.mxu0 %v3632
        %4305 = vmatprep.subr.bf16.mxu0 0
        %4306 = vmatpush2.bf16.msra.mxu0 0
        %4307 = vmatprep.subr.bf16.mxu0 0
        %4308 = vmatpush2.bf16.msra.mxu0 0
        %4309 = vmatprep.subr.bf16.mxu0 0
        %4310 = vmatpush2.bf16.msra.mxu0 0
        %4311 = vmatprep.subr.bf16.mxu0 0
        %4312 = vmatpush2.bf16.msra.mxu0 0
        %4313 = vmatprep.subr.bf16.mxu0 0
        %4314 = vmatpush2.bf16.msra.mxu0 0
        %4315 = vmatprep.subr.bf16.mxu0 0
        %4316 = vmatpush2.bf16.msra.mxu0 0
        %4317 = vmatprep.subr.bf16.mxu0 0
        %4318 = vmatpush2.bf16.msra.mxu0 0
        %4319 = vmatprep.subr.bf16.mxu0 0
        %4320 = vmatpush2.bf16.msra.mxu0 0
        %4321 = vmatprep.mubr.bf16.mxu0 0
        %4322 = vmatmul.mubr.bf16.gmra.mxu0 %v4287
        %v4323 = vpop.f32.mrf.mxu0
        %v4324 = vadd.f32 0.0, %v4323
        %v4325 = vpop.f32.mrf.mxu0
        %v4326 = vpop.f32.mrf.mxu0
        %v4327 = vadd.f32 0.0, %v4326
        %v4328 = vpop.f32.mrf.mxu0
        %4329 = vdwg.mxu0
        %v4331 = vsel %vm1109, %v4193, 0
        %4333 = vmatprep.subr.bf16.mxu0 0
        %4334 = vmatpush1.bf16.msra.mxu0 0
        %4335 = vmatprep.subr.bf16.mxu0 0
        %4336 = vmatpush1.bf16.msra.mxu0 0
        %4337 = vmatprep.subr.bf16.mxu0 0
        %4338 = vmatpush1.bf16.msra.mxu0 0
        %4339 = vmatprep.subr.bf16.mxu0 0
        %4340 = vmatpush1.bf16.msra.mxu0 0
        %4341 = vmatprep.subr.bf16.mxu0 0
        %4342 = vmatpush1.bf16.msra.mxu0 0
        %4343 = vmatprep.subr.bf16.mxu0 0
        %4344 = vmatpush1.bf16.msra.mxu0 0
        %4345 = vmatprep.subr.bf16.mxu0 0
        %4346 = vmatpush1.bf16.msra.mxu0 0
        %4347 = vmatprep.subr.bf16.mxu0 0
        %4348 = vmatpush1.bf16.msra.mxu0 %v3633
        %4349 = vmatprep.subr.bf16.mxu0 0
        %4350 = vmatpush2.bf16.msra.mxu0 0
        %4351 = vmatprep.subr.bf16.mxu0 0
        %4352 = vmatpush2.bf16.msra.mxu0 0
        %4353 = vmatprep.subr.bf16.mxu0 0
        %4354 = vmatpush2.bf16.msra.mxu0 0
        %4355 = vmatprep.subr.bf16.mxu0 0
        %4356 = vmatpush2.bf16.msra.mxu0 0
        %4357 = vmatprep.subr.bf16.mxu0 0
        %4358 = vmatpush2.bf16.msra.mxu0 0
        %4359 = vmatprep.subr.bf16.mxu0 0
        %4360 = vmatpush2.bf16.msra.mxu0 0
        %4361 = vmatprep.subr.bf16.mxu0 0
        %4362 = vmatpush2.bf16.msra.mxu0 0
        %4363 = vmatprep.subr.bf16.mxu0 0
        %4364 = vmatpush2.bf16.msra.mxu0 0
        %4365 = vmatprep.mubr.bf16.mxu0 0
        %4366 = vmatmul.mubr.bf16.gmra.mxu0 %v4331
        %v4367 = vpop.f32.mrf.mxu0
        %v4368 = vadd.f32 0.0, %v4367
        %v4369 = vpop.f32.mrf.mxu0
        %v4370 = vpop.f32.mrf.mxu0
        %v4371 = vadd.f32 0.0, %v4370
        %v4372 = vpop.f32.mrf.mxu0
        %4373 = vdwg.mxu0
        %v4375 = vsel %vm1109, %v4194, 0
        %4377 = vmatprep.subr.bf16.mxu0 0
        %4378 = vmatpush1.bf16.msra.mxu0 0
        %4379 = vmatprep.subr.bf16.mxu0 0
        %4380 = vmatpush1.bf16.msra.mxu0 0
        %4381 = vmatprep.subr.bf16.mxu0 0
        %4382 = vmatpush1.bf16.msra.mxu0 0
        %4383 = vmatprep.subr.bf16.mxu0 0
        %4384 = vmatpush1.bf16.msra.mxu0 0
        %4385 = vmatprep.subr.bf16.mxu0 0
        %4386 = vmatpush1.bf16.msra.mxu0 0
        %4387 = vmatprep.subr.bf16.mxu0 0
        %4388 = vmatpush1.bf16.msra.mxu0 0
        %4389 = vmatprep.subr.bf16.mxu0 0
        %4390 = vmatpush1.bf16.msra.mxu0 0
        %4391 = vmatprep.subr.bf16.mxu0 0
        %4392 = vmatpush1.bf16.msra.mxu0 %v3634
        %4393 = vmatprep.subr.bf16.mxu0 0
        %4394 = vmatpush2.bf16.msra.mxu0 0
        %4395 = vmatprep.subr.bf16.mxu0 0
        %4396 = vmatpush2.bf16.msra.mxu0 0
        %4397 = vmatprep.subr.bf16.mxu0 0
        %4398 = vmatpush2.bf16.msra.mxu0 0
        %4399 = vmatprep.subr.bf16.mxu0 0
        %4400 = vmatpush2.bf16.msra.mxu0 0
        %4401 = vmatprep.subr.bf16.mxu0 0
        %4402 = vmatpush2.bf16.msra.mxu0 0
        %4403 = vmatprep.subr.bf16.mxu0 0
        %4404 = vmatpush2.bf16.msra.mxu0 0
        %4405 = vmatprep.subr.bf16.mxu0 0
        %4406 = vmatpush2.bf16.msra.mxu0 0
        %4407 = vmatprep.subr.bf16.mxu0 0
        %4408 = vmatpush2.bf16.msra.mxu0 0
        %4409 = vmatprep.mubr.bf16.mxu0 0
        %4410 = vmatmul.mubr.bf16.gmra.mxu0 %v4375
        %v4411 = vpop.f32.mrf.mxu0
        %v4412 = vadd.f32 0.0, %v4411
        %v4413 = vpop.f32.mrf.mxu0
        %v4414 = vpop.f32.mrf.mxu0
        %v4415 = vadd.f32 0.0, %v4414
        %v4416 = vpop.f32.mrf.mxu0
        %4417 = vdwg.mxu0
        %v4419 = vsel %vm1109, %v4195, 0
        %4421 = vmatprep.subr.bf16.mxu0 0
        %4422 = vmatpush1.bf16.msra.mxu0 0
        %4423 = vmatprep.subr.bf16.mxu0 0
        %4424 = vmatpush1.bf16.msra.mxu0 0
        %4425 = vmatprep.subr.bf16.mxu0 0
        %4426 = vmatpush1.bf16.msra.mxu0 0
        %4427 = vmatprep.subr.bf16.mxu0 0
        %4428 = vmatpush1.bf16.msra.mxu0 0
        %4429 = vmatprep.subr.bf16.mxu0 0
        %4430 = vmatpush1.bf16.msra.mxu0 0
        %4431 = vmatprep.subr.bf16.mxu0 0
        %4432 = vmatpush1.bf16.msra.mxu0 0
        %4433 = vmatprep.subr.bf16.mxu0 0
        %4434 = vmatpush1.bf16.msra.mxu0 0
        %4435 = vmatprep.subr.bf16.mxu0 0
        %4436 = vmatpush1.bf16.msra.mxu0 %v3635
        %4437 = vmatprep.subr.bf16.mxu0 0
        %4438 = vmatpush2.bf16.msra.mxu0 0
        %4439 = vmatprep.subr.bf16.mxu0 0
        %4440 = vmatpush2.bf16.msra.mxu0 0
        %4441 = vmatprep.subr.bf16.mxu0 0
        %4442 = vmatpush2.bf16.msra.mxu0 0
        %4443 = vmatprep.subr.bf16.mxu0 0
        %4444 = vmatpush2.bf16.msra.mxu0 0
        %4445 = vmatprep.subr.bf16.mxu0 0
        %4446 = vmatpush2.bf16.msra.mxu0 0
        %4447 = vmatprep.subr.bf16.mxu0 0
        %4448 = vmatpush2.bf16.msra.mxu0 0
        %4449 = vmatprep.subr.bf16.mxu0 0
        %4450 = vmatpush2.bf16.msra.mxu0 0
        %4451 = vmatprep.subr.bf16.mxu0 0
        %4452 = vmatpush2.bf16.msra.mxu0 0
        %4453 = vmatprep.mubr.bf16.mxu0 0
        %4454 = vmatmul.mubr.bf16.gmra.mxu0 %v4419
        %v4455 = vpop.f32.mrf.mxu0
        %v4456 = vadd.f32 0.0, %v4455
        %v4457 = vpop.f32.mrf.mxu0
        %v4458 = vpop.f32.mrf.mxu0
        %v4459 = vadd.f32 0.0, %v4458
        %v4460 = vpop.f32.mrf.mxu0
        %4461 = vdwg.mxu0
        %v4463 = vsel %vm1109, %v4196, 0
        %4465 = vmatprep.subr.bf16.mxu0 0
        %4466 = vmatpush1.bf16.msra.mxu0 0
        %4467 = vmatprep.subr.bf16.mxu0 0
        %4468 = vmatpush1.bf16.msra.mxu0 0
        %4469 = vmatprep.subr.bf16.mxu0 0
        %4470 = vmatpush1.bf16.msra.mxu0 0
        %4471 = vmatprep.subr.bf16.mxu0 0
        %4472 = vmatpush1.bf16.msra.mxu0 0
        %4473 = vmatprep.subr.bf16.mxu0 0
        %4474 = vmatpush1.bf16.msra.mxu0 0
        %4475 = vmatprep.subr.bf16.mxu0 0
        %4476 = vmatpush1.bf16.msra.mxu0 0
        %4477 = vmatprep.subr.bf16.mxu0 0
        %4478 = vmatpush1.bf16.msra.mxu0 0
        %4479 = vmatprep.subr.bf16.mxu0 0
        %4480 = vmatpush1.bf16.msra.mxu0 %v3636
        %4481 = vmatprep.subr.bf16.mxu0 0
        %4482 = vmatpush2.bf16.msra.mxu0 0
        %4483 = vmatprep.subr.bf16.mxu0 0
        %4484 = vmatpush2.bf16.msra.mxu0 0
        %4485 = vmatprep.subr.bf16.mxu0 0
        %4486 = vmatpush2.bf16.msra.mxu0 0
        %4487 = vmatprep.subr.bf16.mxu0 0
        %4488 = vmatpush2.bf16.msra.mxu0 0
        %4489 = vmatprep.subr.bf16.mxu0 0
        %4490 = vmatpush2.bf16.msra.mxu0 0
        %4491 = vmatprep.subr.bf16.mxu0 0
        %4492 = vmatpush2.bf16.msra.mxu0 0
        %4493 = vmatprep.subr.bf16.mxu0 0
        %4494 = vmatpush2.bf16.msra.mxu0 0
        %4495 = vmatprep.subr.bf16.mxu0 0
        %4496 = vmatpush2.bf16.msra.mxu0 0
        %4497 = vmatprep.mubr.bf16.mxu0 0
        %4498 = vmatmul.mubr.bf16.gmra.mxu0 %v4463
        %v4499 = vpop.f32.mrf.mxu0
        %v4500 = vadd.f32 0.0, %v4499
        %v4501 = vpop.f32.mrf.mxu0
        %v4502 = vpop.f32.mrf.mxu0
        %v4503 = vadd.f32 0.0, %v4502
        %v4504 = vpop.f32.mrf.mxu0
        %4505 = vdwg.mxu0
        %v4507 = vsel %vm1109, %v4197, 0
        %4509 = vmatprep.subr.bf16.mxu0 0
        %4510 = vmatpush1.bf16.msra.mxu0 0
        %4511 = vmatprep.subr.bf16.mxu0 0
        %4512 = vmatpush1.bf16.msra.mxu0 0
        %4513 = vmatprep.subr.bf16.mxu0 0
        %4514 = vmatpush1.bf16.msra.mxu0 0
        %4515 = vmatprep.subr.bf16.mxu0 0
        %4516 = vmatpush1.bf16.msra.mxu0 0
        %4517 = vmatprep.subr.bf16.mxu0 0
        %4518 = vmatpush1.bf16.msra.mxu0 0
        %4519 = vmatprep.subr.bf16.mxu0 0
        %4520 = vmatpush1.bf16.msra.mxu0 0
        %4521 = vmatprep.subr.bf16.mxu0 0
        %4522 = vmatpush1.bf16.msra.mxu0 0
        %4523 = vmatprep.subr.bf16.mxu0 0
        %4524 = vmatpush1.bf16.msra.mxu0 %v3637
        %4525 = vmatprep.subr.bf16.mxu0 0
        %4526 = vmatpush2.bf16.msra.mxu0 0
        %4527 = vmatprep.subr.bf16.mxu0 0
        %4528 = vmatpush2.bf16.msra.mxu0 0
        %4529 = vmatprep.subr.bf16.mxu0 0
        %4530 = vmatpush2.bf16.msra.mxu0 0
        %4531 = vmatprep.subr.bf16.mxu0 0
        %4532 = vmatpush2.bf16.msra.mxu0 0
        %4533 = vmatprep.subr.bf16.mxu0 0
        %4534 = vmatpush2.bf16.msra.mxu0 0
        %4535 = vmatprep.subr.bf16.mxu0 0
        %4536 = vmatpush2.bf16.msra.mxu0 0
        %4537 = vmatprep.subr.bf16.mxu0 0
        %4538 = vmatpush2.bf16.msra.mxu0 0
        %4539 = vmatprep.subr.bf16.mxu0 0
        %4540 = vmatpush2.bf16.msra.mxu0 0
        %4541 = vmatprep.mubr.bf16.mxu0 0
        %4542 = vmatmul.mubr.bf16.gmra.mxu0 %v4507
        %v4543 = vpop.f32.mrf.mxu0
        %v4544 = vadd.f32 0.0, %v4543
        %v4545 = vpop.f32.mrf.mxu0
        %v4546 = vpop.f32.mrf.mxu0
        %v4547 = vadd.f32 0.0, %v4546
        %v4548 = vpop.f32.mrf.mxu0
        %4549 = vdwg.mxu0
        %v4550 = vpack.c.bf16 %v4239, %v4236
        %v4551 = vpack.c.bf16 %v4283, %v4280
        %v4552 = vpack.c.bf16 %v4327, %v4324
        %v4553 = vpack.c.bf16 %v4371, %v4368
        %v4554 = vpack.c.bf16 %v4415, %v4412
        %v4555 = vpack.c.bf16 %v4459, %v4456
        %v4556 = vpack.c.bf16 %v4503, %v4500
        %v4557 = vpack.c.bf16 %v4547, %v4544
        %s4558 = scalar_lea.vmem %s3, 8
        %v4559 = vld [vmem:[%s4558] sm:$0xf]
        %v4561 = vsel %vm732, %v4550, 0
        %v4564 = vsel %vm732, %v4551, 0
        %v4567 = vsel %vm732, %v4552, 0
        %v4570 = vsel %vm732, %v4553, 0
        %v4573 = vsel %vm732, %v4554, 0
        %v4576 = vsel %vm732, %v4555, 0
        %v4579 = vsel %vm732, %v4556, 0
        %v4582 = vsel %vm732, %v4557, 0
        %v4585 = vsel %vm3007, %v4559, 0
        %4587 = vmatprep.subr.bf16.mxu0 0
        %4588 = vmatpush1.bf16.msra.mxu0 0
        %4589 = vmatprep.subr.bf16.mxu0 0
        %4590 = vmatpush1.bf16.msra.mxu0 0
        %4591 = vmatprep.subr.bf16.mxu0 0
        %4592 = vmatpush1.bf16.msra.mxu0 0
        %4593 = vmatprep.subr.bf16.mxu0 0
        %4594 = vmatpush1.bf16.msra.mxu0 0
        %4595 = vmatprep.subr.bf16.mxu0 0
        %4596 = vmatpush1.bf16.msra.mxu0 0
        %4597 = vmatprep.subr.bf16.mxu0 0
        %4598 = vmatpush1.bf16.msra.mxu0 0
        %4599 = vmatprep.subr.bf16.mxu0 0
        %4600 = vmatpush1.bf16.msra.mxu0 0
        %4601 = vmatprep.subr.bf16.mxu0 0
        %4602 = vmatpush1.bf16.msra.mxu0 %v4585
        %4603 = vmatprep.subr.bf16.mxu0 0
        %4604 = vmatpush2.bf16.msra.mxu0 0
        %4605 = vmatprep.subr.bf16.mxu0 0
        %4606 = vmatpush2.bf16.msra.mxu0 0
        %4607 = vmatprep.subr.bf16.mxu0 0
        %4608 = vmatpush2.bf16.msra.mxu0 0
        %4609 = vmatprep.subr.bf16.mxu0 0
        %4610 = vmatpush2.bf16.msra.mxu0 0
        %4611 = vmatprep.subr.bf16.mxu0 0
        %4612 = vmatpush2.bf16.msra.mxu0 0
        %4613 = vmatprep.subr.bf16.mxu0 0
        %4614 = vmatpush2.bf16.msra.mxu0 0
        %4615 = vmatprep.subr.bf16.mxu0 0
        %4616 = vmatpush2.bf16.msra.mxu0 0
        %4617 = vmatprep.subr.bf16.mxu0 0
        %4618 = vmatpush2.bf16.msra.mxu0 0
        %4619 = vmatprep.mubr.bf16.mxu0 0
        %4620 = vmatmul.mubr.bf16.gmra.mxu0 %v4561
        %v4621 = vpop.f32.mrf.mxu0
        %v4622 = vadd.f32 0.0, %v4621
        %v4623 = vpop.f32.mrf.mxu0
        %v4624 = vpop.f32.mrf.mxu0
        %v4625 = vadd.f32 0.0, %v4624
        %v4626 = vpop.f32.mrf.mxu0
        %4627 = vmatprep.mubr.bf16.mxu0 0
        %4628 = vmatmul.mubr.bf16.gmra.mxu0 %v4564
        %v4629 = vpop.f32.mrf.mxu0
        %v4630 = vadd.f32 0.0, %v4629
        %v4631 = vpop.f32.mrf.mxu0
        %v4632 = vpop.f32.mrf.mxu0
        %v4633 = vadd.f32 0.0, %v4632
        %v4634 = vpop.f32.mrf.mxu0
        %4635 = vmatprep.mubr.bf16.mxu0 0
        %4636 = vmatmul.mubr.bf16.gmra.mxu0 %v4567
        %v4637 = vpop.f32.mrf.mxu0
        %v4638 = vadd.f32 0.0, %v4637
        %v4639 = vpop.f32.mrf.mxu0
        %v4640 = vpop.f32.mrf.mxu0
        %v4641 = vadd.f32 0.0, %v4640
        %v4642 = vpop.f32.mrf.mxu0
        %4643 = vmatprep.mubr.bf16.mxu0 0
        %4644 = vmatmul.mubr.bf16.gmra.mxu0 %v4570
        %v4645 = vpop.f32.mrf.mxu0
        %v4646 = vadd.f32 0.0, %v4645
        %v4647 = vpop.f32.mrf.mxu0
        %v4648 = vpop.f32.mrf.mxu0
        %v4649 = vadd.f32 0.0, %v4648
        %v4650 = vpop.f32.mrf.mxu0
        %4651 = vmatprep.mubr.bf16.mxu0 0
        %4652 = vmatmul.mubr.bf16.gmra.mxu0 %v4573
        %v4653 = vpop.f32.mrf.mxu0
        %v4654 = vadd.f32 0.0, %v4653
        %v4655 = vpop.f32.mrf.mxu0
        %v4656 = vpop.f32.mrf.mxu0
        %v4657 = vadd.f32 0.0, %v4656
        %v4658 = vpop.f32.mrf.mxu0
        %4659 = vmatprep.mubr.bf16.mxu0 0
        %4660 = vmatmul.mubr.bf16.gmra.mxu0 %v4576
        %v4661 = vpop.f32.mrf.mxu0
        %v4662 = vadd.f32 0.0, %v4661
        %v4663 = vpop.f32.mrf.mxu0
        %v4664 = vpop.f32.mrf.mxu0
        %v4665 = vadd.f32 0.0, %v4664
        %v4666 = vpop.f32.mrf.mxu0
        %4667 = vmatprep.mubr.bf16.mxu0 0
        %4668 = vmatmul.mubr.bf16.gmra.mxu0 %v4579
        %v4669 = vpop.f32.mrf.mxu0
        %v4670 = vadd.f32 0.0, %v4669
        %v4671 = vpop.f32.mrf.mxu0
        %v4672 = vpop.f32.mrf.mxu0
        %v4673 = vadd.f32 0.0, %v4672
        %v4674 = vpop.f32.mrf.mxu0
        %4675 = vmatprep.mubr.bf16.mxu0 0
        %4676 = vmatmul.mubr.bf16.gmra.mxu0 %v4582
        %v4677 = vpop.f32.mrf.mxu0
        %v4678 = vadd.f32 0.0, %v4677
        %v4679 = vpop.f32.mrf.mxu0
        %v4680 = vpop.f32.mrf.mxu0
        %v4681 = vadd.f32 0.0, %v4680
        %v4682 = vpop.f32.mrf.mxu0
        %4683 = vdwg.mxu0
        %v4684 = vadd.f32 %v3170, %v4622
        %v4685 = vadd.f32 %v3173, %v4625
        %v4686 = vadd.f32 %v3178, %v4630
        %v4687 = vadd.f32 %v3181, %v4633
        %v4688 = vadd.f32 %v3186, %v4638
        %v4689 = vadd.f32 %v3189, %v4641
        %v4690 = vadd.f32 %v3194, %v4646
        %v4691 = vadd.f32 %v3197, %v4649
        %v4692 = vadd.f32 %v3202, %v4654
        %v4693 = vadd.f32 %v3205, %v4657
        %v4694 = vadd.f32 %v3210, %v4662
        %v4695 = vadd.f32 %v3213, %v4665
        %v4696 = vadd.f32 %v3218, %v4670
        %v4697 = vadd.f32 %v3221, %v4673
        %v4698 = vadd.f32 %v3226, %v4678
        %v4699 = vadd.f32 %v3229, %v4681
        %s4700 = scalar_lea.vmem %s1, 48
        %v4701 = vld [vmem:[%s4700] sm:$0xf]
        %v4702 = vld [vmem:[%s4700 + $0x4] sm:$0xf]
        %v4703 = vld [vmem:[%s4700 + $0x8] sm:$0xf]
        %v4704 = vld [vmem:[%s4700 + $0xc] sm:$0xf]
        %s4705 = scalar_lea.vmem %s1, 112
        %v4706 = vld [vmem:[%s4705] sm:$0xf]
        %v4707 = vld [vmem:[%s4705 + $0x4] sm:$0xf]
        %v4708 = vld [vmem:[%s4705 + $0x8] sm:$0xf]
        %v4709 = vld [vmem:[%s4705 + $0xc] sm:$0xf]
        %s4710 = scalar_lea.vmem %s1, 176
        %v4711 = vld [vmem:[%s4710] sm:$0xf]
        %v4712 = vld [vmem:[%s4710 + $0x4] sm:$0xf]
        %v4713 = vld [vmem:[%s4710 + $0x8] sm:$0xf]
        %v4714 = vld [vmem:[%s4710 + $0xc] sm:$0xf]
        %s4715 = scalar_lea.vmem %s2, 3
        %v4716 = vld [vmem:[%s4715] sm:$0x1]
        %v4718 = vlaneseq
        %v4719 = vshrl.u32 %v4718, 7
        %v4720 = vsub.s32 0, %v4719
        %v4721 = vrot.slane %v4716, %v4720
        %v4727 = vunpack.c.l.b16 %v4701
        %v4728 = vunpack.c.l.b16 %v4702
        %v4729 = vunpack.c.l.b16 %v4703
        %v4730 = vunpack.c.l.b16 %v4704
        %v4731 = vpack.c.b16 %v4728, %v4727
        %v4732 = vpack.c.b16 %v4730, %v4729
        %4735 = vmatprep.subr.bf16.mxu0 0
        %4736 = vmatpush1.bf16.msra.mxu0 0
        %4737 = vmatprep.subr.bf16.mxu0 0
        %4738 = vmatpush1.bf16.msra.mxu0 0
        %4739 = vmatprep.subr.bf16.mxu0 0
        %4740 = vmatpush1.bf16.msra.mxu0 0
        %4741 = vmatprep.subr.bf16.mxu0 0
        %4742 = vmatpush1.bf16.msra.mxu0 0
        %4743 = vmatprep.subr.bf16.mxu0 0
        %4744 = vmatpush1.bf16.msra.mxu0 0
        %4745 = vmatprep.subr.bf16.mxu0 0
        %4746 = vmatpush1.bf16.msra.mxu0 0
        %4747 = vmatprep.subr.bf16.mxu0 0
        %4748 = vmatpush1.bf16.msra.mxu0 %v4732
        %4749 = vmatprep.subr.bf16.mxu0 0
        %4750 = vmatpush1.bf16.msra.mxu0 %v4731
        %4751 = vmatprep.subr.bf16.mxu0 0
        %4752 = vmatpush2.bf16.msra.mxu0 0
        %4753 = vmatprep.subr.bf16.mxu0 0
        %4754 = vmatpush2.bf16.msra.mxu0 0
        %4755 = vmatprep.subr.bf16.mxu0 0
        %4756 = vmatpush2.bf16.msra.mxu0 0
        %4757 = vmatprep.subr.bf16.mxu0 0
        %4758 = vmatpush2.bf16.msra.mxu0 0
        %4759 = vmatprep.subr.bf16.mxu0 0
        %4760 = vmatpush2.bf16.msra.mxu0 0
        %4761 = vmatprep.subr.bf16.mxu0 0
        %4762 = vmatpush2.bf16.msra.mxu0 0
        %4763 = vmatprep.subr.bf16.mxu0 0
        %4764 = vmatpush2.bf16.msra.mxu0 0
        %4765 = vmatprep.subr.bf16.mxu0 0
        %4766 = vmatpush2.bf16.msra.mxu0 0
        %4767 = vmatprep.mubr.bf16.mxu0 0
        %4768 = vmatmul.mubr.bf16.gmra.mxu0 %v338
        %v4769 = vpop.f32.mrf.mxu0
        %v4770 = vadd.f32 %v4721, %v4769
        %v4771 = vpop.f32.mrf.mxu0
        %v4772 = vpop.f32.mrf.mxu0
        %v4773 = vadd.f32 %v4721, %v4772
        %v4774 = vpop.f32.mrf.mxu0
        %4775 = vmatprep.mubr.bf16.mxu0 0
        %4776 = vmatmul.mubr.bf16.gmra.mxu0 %v341
        %v4777 = vpop.f32.mrf.mxu0
        %v4778 = vadd.f32 %v4721, %v4777
        %v4779 = vpop.f32.mrf.mxu0
        %v4780 = vpop.f32.mrf.mxu0
        %v4781 = vadd.f32 %v4721, %v4780
        %v4782 = vpop.f32.mrf.mxu0
        %4783 = vmatprep.mubr.bf16.mxu0 0
        %4784 = vmatmul.mubr.bf16.gmra.mxu0 %v344
        %v4785 = vpop.f32.mrf.mxu0
        %v4786 = vadd.f32 %v4721, %v4785
        %v4787 = vpop.f32.mrf.mxu0
        %v4788 = vpop.f32.mrf.mxu0
        %v4789 = vadd.f32 %v4721, %v4788
        %v4790 = vpop.f32.mrf.mxu0
        %4791 = vmatprep.mubr.bf16.mxu0 0
        %4792 = vmatmul.mubr.bf16.gmra.mxu0 %v347
        %v4793 = vpop.f32.mrf.mxu0
        %v4794 = vadd.f32 %v4721, %v4793
        %v4795 = vpop.f32.mrf.mxu0
        %v4796 = vpop.f32.mrf.mxu0
        %v4797 = vadd.f32 %v4721, %v4796
        %v4798 = vpop.f32.mrf.mxu0
        %4799 = vmatprep.mubr.bf16.mxu0 0
        %4800 = vmatmul.mubr.bf16.gmra.mxu0 %v350
        %v4801 = vpop.f32.mrf.mxu0
        %v4802 = vadd.f32 %v4721, %v4801
        %v4803 = vpop.f32.mrf.mxu0
        %v4804 = vpop.f32.mrf.mxu0
        %v4805 = vadd.f32 %v4721, %v4804
        %v4806 = vpop.f32.mrf.mxu0
        %4807 = vmatprep.mubr.bf16.mxu0 0
        %4808 = vmatmul.mubr.bf16.gmra.mxu0 %v353
        %v4809 = vpop.f32.mrf.mxu0
        %v4810 = vadd.f32 %v4721, %v4809
        %v4811 = vpop.f32.mrf.mxu0
        %v4812 = vpop.f32.mrf.mxu0
        %v4813 = vadd.f32 %v4721, %v4812
        %v4814 = vpop.f32.mrf.mxu0
        %4815 = vmatprep.mubr.bf16.mxu0 0
        %4816 = vmatmul.mubr.bf16.gmra.mxu0 %v356
        %v4817 = vpop.f32.mrf.mxu0
        %v4818 = vadd.f32 %v4721, %v4817
        %v4819 = vpop.f32.mrf.mxu0
        %v4820 = vpop.f32.mrf.mxu0
        %v4821 = vadd.f32 %v4721, %v4820
        %v4822 = vpop.f32.mrf.mxu0
        %4823 = vmatprep.mubr.bf16.mxu0 0
        %4824 = vmatmul.mubr.bf16.gmra.mxu0 %v359
        %v4825 = vpop.f32.mrf.mxu0
        %v4826 = vadd.f32 %v4721, %v4825
        %v4827 = vpop.f32.mrf.mxu0
        %v4828 = vpop.f32.mrf.mxu0
        %v4829 = vadd.f32 %v4721, %v4828
        %v4830 = vpop.f32.mrf.mxu0
        %4831 = vdwg.mxu0
        %v4832 = vmul.f32 %v4770, 0.35355338
        %v4833 = vmul.f32 %v4773, 0.35355338
        %v4834 = vmul.f32 %v4778, 0.35355338
        %v4835 = vmul.f32 %v4781, 0.35355338
        %v4836 = vmul.f32 %v4786, 0.35355338
        %v4837 = vmul.f32 %v4789, 0.35355338
        %v4838 = vmul.f32 %v4794, 0.35355338
        %v4839 = vmul.f32 %v4797, 0.35355338
        %v4840 = vmul.f32 %v4802, 0.35355338
        %v4841 = vmul.f32 %v4805, 0.35355338
        %v4842 = vmul.f32 %v4810, 0.35355338
        %v4843 = vmul.f32 %v4813, 0.35355338
        %v4844 = vmul.f32 %v4818, 0.35355338
        %v4845 = vmul.f32 %v4821, 0.35355338
        %v4846 = vmul.f32 %v4826, 0.35355338
        %v4847 = vmul.f32 %v4829, 0.35355338
        %s4848 = scalar_lea.vmem %s2, 7
        %v4849 = vld [vmem:[%s4848] sm:$0x1]
        %v4851 = vlaneseq
        %v4852 = vshrl.u32 %v4851, 7
        %v4853 = vsub.s32 0, %v4852
        %v4854 = vrot.slane %v4849, %v4853
        %v4860 = vunpack.c.l.b16 %v4706
        %v4861 = vunpack.c.l.b16 %v4707
        %v4862 = vunpack.c.l.b16 %v4708
        %v4863 = vunpack.c.l.b16 %v4709
        %v4864 = vpack.c.b16 %v4861, %v4860
        %v4865 = vpack.c.b16 %v4863, %v4862
        %4868 = vmatprep.subr.bf16.mxu0 0
        %4869 = vmatpush1.bf16.msra.mxu0 0
        %4870 = vmatprep.subr.bf16.mxu0 0
        %4871 = vmatpush1.bf16.msra.mxu0 0
        %4872 = vmatprep.subr.bf16.mxu0 0
        %4873 = vmatpush1.bf16.msra.mxu0 0
        %4874 = vmatprep.subr.bf16.mxu0 0
        %4875 = vmatpush1.bf16.msra.mxu0 0
        %4876 = vmatprep.subr.bf16.mxu0 0
        %4877 = vmatpush1.bf16.msra.mxu0 0
        %4878 = vmatprep.subr.bf16.mxu0 0
        %4879 = vmatpush1.bf16.msra.mxu0 0
        %4880 = vmatprep.subr.bf16.mxu0 0
        %4881 = vmatpush1.bf16.msra.mxu0 %v4865
        %4882 = vmatprep.subr.bf16.mxu0 0
        %4883 = vmatpush1.bf16.msra.mxu0 %v4864
        %4884 = vmatprep.subr.bf16.mxu0 0
        %4885 = vmatpush2.bf16.msra.mxu0 0
        %4886 = vmatprep.subr.bf16.mxu0 0
        %4887 = vmatpush2.bf16.msra.mxu0 0
        %4888 = vmatprep.subr.bf16.mxu0 0
        %4889 = vmatpush2.bf16.msra.mxu0 0
        %4890 = vmatprep.subr.bf16.mxu0 0
        %4891 = vmatpush2.bf16.msra.mxu0 0
        %4892 = vmatprep.subr.bf16.mxu0 0
        %4893 = vmatpush2.bf16.msra.mxu0 0
        %4894 = vmatprep.subr.bf16.mxu0 0
        %4895 = vmatpush2.bf16.msra.mxu0 0
        %4896 = vmatprep.subr.bf16.mxu0 0
        %4897 = vmatpush2.bf16.msra.mxu0 0
        %4898 = vmatprep.subr.bf16.mxu0 0
        %4899 = vmatpush2.bf16.msra.mxu0 0
        %4900 = vmatprep.mubr.bf16.mxu0 0
        %4901 = vmatmul.mubr.bf16.gmra.mxu0 %v338
        %v4902 = vpop.f32.mrf.mxu0
        %v4903 = vadd.f32 %v4854, %v4902
        %v4904 = vpop.f32.mrf.mxu0
        %v4905 = vpop.f32.mrf.mxu0
        %v4906 = vadd.f32 %v4854, %v4905
        %v4907 = vpop.f32.mrf.mxu0
        %4908 = vmatprep.mubr.bf16.mxu0 0
        %4909 = vmatmul.mubr.bf16.gmra.mxu0 %v341
        %v4910 = vpop.f32.mrf.mxu0
        %v4911 = vadd.f32 %v4854, %v4910
        %v4912 = vpop.f32.mrf.mxu0
        %v4913 = vpop.f32.mrf.mxu0
        %v4914 = vadd.f32 %v4854, %v4913
        %v4915 = vpop.f32.mrf.mxu0
        %4916 = vmatprep.mubr.bf16.mxu0 0
        %4917 = vmatmul.mubr.bf16.gmra.mxu0 %v344
        %v4918 = vpop.f32.mrf.mxu0
        %v4919 = vadd.f32 %v4854, %v4918
        %v4920 = vpop.f32.mrf.mxu0
        %v4921 = vpop.f32.mrf.mxu0
        %v4922 = vadd.f32 %v4854, %v4921
        %v4923 = vpop.f32.mrf.mxu0
        %4924 = vmatprep.mubr.bf16.mxu0 0
        %4925 = vmatmul.mubr.bf16.gmra.mxu0 %v347
        %v4926 = vpop.f32.mrf.mxu0
        %v4927 = vadd.f32 %v4854, %v4926
        %v4928 = vpop.f32.mrf.mxu0
        %v4929 = vpop.f32.mrf.mxu0
        %v4930 = vadd.f32 %v4854, %v4929
        %v4931 = vpop.f32.mrf.mxu0
        %4932 = vmatprep.mubr.bf16.mxu0 0
        %4933 = vmatmul.mubr.bf16.gmra.mxu0 %v350
        %v4934 = vpop.f32.mrf.mxu0
        %v4935 = vadd.f32 %v4854, %v4934
        %v4936 = vpop.f32.mrf.mxu0
        %v4937 = vpop.f32.mrf.mxu0
        %v4938 = vadd.f32 %v4854, %v4937
        %v4939 = vpop.f32.mrf.mxu0
        %4940 = vmatprep.mubr.bf16.mxu0 0
        %4941 = vmatmul.mubr.bf16.gmra.mxu0 %v353
        %v4942 = vpop.f32.mrf.mxu0
        %v4943 = vadd.f32 %v4854, %v4942
        %v4944 = vpop.f32.mrf.mxu0
        %v4945 = vpop.f32.mrf.mxu0
        %v4946 = vadd.f32 %v4854, %v4945
        %v4947 = vpop.f32.mrf.mxu0
        %4948 = vmatprep.mubr.bf16.mxu0 0
        %4949 = vmatmul.mubr.bf16.gmra.mxu0 %v356
        %v4950 = vpop.f32.mrf.mxu0
        %v4951 = vadd.f32 %v4854, %v4950
        %v4952 = vpop.f32.mrf.mxu0
        %v4953 = vpop.f32.mrf.mxu0
        %v4954 = vadd.f32 %v4854, %v4953
        %v4955 = vpop.f32.mrf.mxu0
        %4956 = vmatprep.mubr.bf16.mxu0 0
        %4957 = vmatmul.mubr.bf16.gmra.mxu0 %v359
        %v4958 = vpop.f32.mrf.mxu0
        %v4959 = vadd.f32 %v4854, %v4958
        %v4960 = vpop.f32.mrf.mxu0
        %v4961 = vpop.f32.mrf.mxu0
        %v4962 = vadd.f32 %v4854, %v4961
        %v4963 = vpop.f32.mrf.mxu0
        %4964 = vdwg.mxu0
        %s4965 = scalar_lea.vmem %s2, 11
        %v4966 = vld [vmem:[%s4965] sm:$0x1]
        %v4968 = vlaneseq
        %v4969 = vshrl.u32 %v4968, 7
        %v4970 = vsub.s32 0, %v4969
        %v4971 = vrot.slane %v4966, %v4970
        %v4977 = vunpack.c.l.b16 %v4711
        %v4978 = vunpack.c.l.b16 %v4712
        %v4979 = vunpack.c.l.b16 %v4713
        %v4980 = vunpack.c.l.b16 %v4714
        %v4981 = vpack.c.b16 %v4978, %v4977
        %v4982 = vpack.c.b16 %v4980, %v4979
        %4985 = vmatprep.subr.bf16.mxu0 0
        %4986 = vmatpush1.bf16.msra.mxu0 0
        %4987 = vmatprep.subr.bf16.mxu0 0
        %4988 = vmatpush1.bf16.msra.mxu0 0
        %4989 = vmatprep.subr.bf16.mxu0 0
        %4990 = vmatpush1.bf16.msra.mxu0 0
        %4991 = vmatprep.subr.bf16.mxu0 0
        %4992 = vmatpush1.bf16.msra.mxu0 0
        %4993 = vmatprep.subr.bf16.mxu0 0
        %4994 = vmatpush1.bf16.msra.mxu0 0
        %4995 = vmatprep.subr.bf16.mxu0 0
        %4996 = vmatpush1.bf16.msra.mxu0 0
        %4997 = vmatprep.subr.bf16.mxu0 0
        %4998 = vmatpush1.bf16.msra.mxu0 %v4982
        %4999 = vmatprep.subr.bf16.mxu0 0
        %5000 = vmatpush1.bf16.msra.mxu0 %v4981
        %5001 = vmatprep.subr.bf16.mxu0 0
        %5002 = vmatpush2.bf16.msra.mxu0 0
        %5003 = vmatprep.subr.bf16.mxu0 0
        %5004 = vmatpush2.bf16.msra.mxu0 0
        %5005 = vmatprep.subr.bf16.mxu0 0
        %5006 = vmatpush2.bf16.msra.mxu0 0
        %5007 = vmatprep.subr.bf16.mxu0 0
        %5008 = vmatpush2.bf16.msra.mxu0 0
        %5009 = vmatprep.subr.bf16.mxu0 0
        %5010 = vmatpush2.bf16.msra.mxu0 0
        %5011 = vmatprep.subr.bf16.mxu0 0
        %5012 = vmatpush2.bf16.msra.mxu0 0
        %5013 = vmatprep.subr.bf16.mxu0 0
        %5014 = vmatpush2.bf16.msra.mxu0 0
        %5015 = vmatprep.subr.bf16.mxu0 0
        %5016 = vmatpush2.bf16.msra.mxu0 0
        %5017 = vmatprep.mubr.bf16.mxu0 0
        %5018 = vmatmul.mubr.bf16.gmra.mxu0 %v338
        %v5019 = vpop.f32.mrf.mxu0
        %v5020 = vadd.f32 %v4971, %v5019
        %v5021 = vpop.f32.mrf.mxu0
        %v5022 = vpop.f32.mrf.mxu0
        %v5023 = vadd.f32 %v4971, %v5022
        %v5024 = vpop.f32.mrf.mxu0
        %5025 = vmatprep.mubr.bf16.mxu0 0
        %5026 = vmatmul.mubr.bf16.gmra.mxu0 %v341
        %v5027 = vpop.f32.mrf.mxu0
        %v5028 = vadd.f32 %v4971, %v5027
        %v5029 = vpop.f32.mrf.mxu0
        %v5030 = vpop.f32.mrf.mxu0
        %v5031 = vadd.f32 %v4971, %v5030
        %v5032 = vpop.f32.mrf.mxu0
        %5033 = vmatprep.mubr.bf16.mxu0 0
        %5034 = vmatmul.mubr.bf16.gmra.mxu0 %v344
        %v5035 = vpop.f32.mrf.mxu0
        %v5036 = vadd.f32 %v4971, %v5035
        %v5037 = vpop.f32.mrf.mxu0
        %v5038 = vpop.f32.mrf.mxu0
        %v5039 = vadd.f32 %v4971, %v5038
        %v5040 = vpop.f32.mrf.mxu0
        %5041 = vmatprep.mubr.bf16.mxu0 0
        %5042 = vmatmul.mubr.bf16.gmra.mxu0 %v347
        %v5043 = vpop.f32.mrf.mxu0
        %v5044 = vadd.f32 %v4971, %v5043
        %v5045 = vpop.f32.mrf.mxu0
        %v5046 = vpop.f32.mrf.mxu0
        %v5047 = vadd.f32 %v4971, %v5046
        %v5048 = vpop.f32.mrf.mxu0
        %5049 = vmatprep.mubr.bf16.mxu0 0
        %5050 = vmatmul.mubr.bf16.gmra.mxu0 %v350
        %v5051 = vpop.f32.mrf.mxu0
        %v5052 = vadd.f32 %v4971, %v5051
        %v5053 = vpop.f32.mrf.mxu0
        %v5054 = vpop.f32.mrf.mxu0
        %v5055 = vadd.f32 %v4971, %v5054
        %v5056 = vpop.f32.mrf.mxu0
        %5057 = vmatprep.mubr.bf16.mxu0 0
        %5058 = vmatmul.mubr.bf16.gmra.mxu0 %v353
        %v5059 = vpop.f32.mrf.mxu0
        %v5060 = vadd.f32 %v4971, %v5059
        %v5061 = vpop.f32.mrf.mxu0
        %v5062 = vpop.f32.mrf.mxu0
        %v5063 = vadd.f32 %v4971, %v5062
        %v5064 = vpop.f32.mrf.mxu0
        %5065 = vmatprep.mubr.bf16.mxu0 0
        %5066 = vmatmul.mubr.bf16.gmra.mxu0 %v356
        %v5067 = vpop.f32.mrf.mxu0
        %v5068 = vadd.f32 %v4971, %v5067
        %v5069 = vpop.f32.mrf.mxu0
        %v5070 = vpop.f32.mrf.mxu0
        %v5071 = vadd.f32 %v4971, %v5070
        %v5072 = vpop.f32.mrf.mxu0
        %5073 = vmatprep.mubr.bf16.mxu0 0
        %5074 = vmatmul.mubr.bf16.gmra.mxu0 %v359
        %v5075 = vpop.f32.mrf.mxu0
        %v5076 = vadd.f32 %v4971, %v5075
        %v5077 = vpop.f32.mrf.mxu0
        %v5078 = vpop.f32.mrf.mxu0
        %v5079 = vadd.f32 %v4971, %v5078
        %v5080 = vpop.f32.mrf.mxu0
        %5081 = vdwg.mxu0
        %v5082 = vpack.c.bf16 %v4833, %v4832
        %v5083 = vpack.c.bf16 %v4835, %v4834
        %v5084 = vpack.c.bf16 %v4837, %v4836
        %v5085 = vpack.c.bf16 %v4839, %v4838
        %v5086 = vpack.c.bf16 %v4841, %v4840
        %v5087 = vpack.c.bf16 %v4843, %v4842
        %v5088 = vpack.c.bf16 %v4845, %v4844
        %v5089 = vpack.c.bf16 %v4847, %v4846
        %v5090 = vpack.c.bf16 %v4906, %v4903
        %v5091 = vpack.c.bf16 %v4914, %v4911
        %v5092 = vpack.c.bf16 %v4922, %v4919
        %v5093 = vpack.c.bf16 %v4930, %v4927
        %v5094 = vpack.c.bf16 %v4938, %v4935
        %v5095 = vpack.c.bf16 %v4946, %v4943
        %v5096 = vpack.c.bf16 %v4954, %v4951
        %v5097 = vpack.c.bf16 %v4962, %v4959
        %v5098 = vpack.c.bf16 %v5023, %v5020
        %v5099 = vpack.c.bf16 %v5031, %v5028
        %v5100 = vpack.c.bf16 %v5039, %v5036
        %v5101 = vpack.c.bf16 %v5047, %v5044
        %v5102 = vpack.c.bf16 %v5055, %v5052
        %v5103 = vpack.c.bf16 %v5063, %v5060
        %v5104 = vpack.c.bf16 %v5071, %v5068
        %v5105 = vpack.c.bf16 %v5079, %v5076
        %v5107 = vsel %vm732, %v5082, 0
        %v5110 = vsel %vm732, %v5090, 0
        %5112 = vmatprep.subr.bf16.mxu0 0
        %5113 = vmatpush1.bf16.xpose.msra.mxu0 0
        %5114 = vmatprep.subr.bf16.mxu0 0
        %5115 = vmatpush1.bf16.xpose.msra.mxu0 0
        %5116 = vmatprep.subr.bf16.mxu0 0
        %5117 = vmatpush1.bf16.xpose.msra.mxu0 0
        %5118 = vmatprep.subr.bf16.mxu0 0
        %5119 = vmatpush1.bf16.xpose.msra.mxu0 0
        %5120 = vmatprep.subr.bf16.mxu0 0
        %5121 = vmatpush1.bf16.xpose.msra.mxu0 0
        %5122 = vmatprep.subr.bf16.mxu0 0
        %5123 = vmatpush1.bf16.xpose.msra.mxu0 0
        %5124 = vmatprep.subr.bf16.mxu0 0
        %5125 = vmatpush1.bf16.xpose.msra.mxu0 0
        %5126 = vmatprep.subr.bf16.mxu0 0
        %5127 = vmatpush1.bf16.xpose.msra.mxu0 %v5110
        %5128 = vmatprep.subr.bf16.mxu0 0
        %5129 = vmatpush2.bf16.xpose.msra.mxu0 0
        %5130 = vmatprep.subr.bf16.mxu0 0
        %5131 = vmatpush2.bf16.xpose.msra.mxu0 0
        %5132 = vmatprep.subr.bf16.mxu0 0
        %5133 = vmatpush2.bf16.xpose.msra.mxu0 0
        %5134 = vmatprep.subr.bf16.mxu0 0
        %5135 = vmatpush2.bf16.xpose.msra.mxu0 0
        %5136 = vmatprep.subr.bf16.mxu0 0
        %5137 = vmatpush2.bf16.xpose.msra.mxu0 0
        %5138 = vmatprep.subr.bf16.mxu0 0
        %5139 = vmatpush2.bf16.xpose.msra.mxu0 0
        %5140 = vmatprep.subr.bf16.mxu0 0
        %5141 = vmatpush2.bf16.xpose.msra.mxu0 0
        %5142 = vmatprep.subr.bf16.mxu0 0
        %5143 = vmatpush2.bf16.xpose.msra.mxu0 0
        %5144 = vmatprep.mubr.bf16.mxu0 0
        %5145 = vmatmul.mubr.bf16.gmra.mxu0 %v5107
        %v5146 = vpop.f32.mrf.mxu0
        %v5147 = vadd.f32 0.0, %v5146
        %v5148 = vpop.f32.mrf.mxu0
        %v5149 = vpop.f32.mrf.mxu0
        %v5150 = vadd.f32 0.0, %v5149
        %v5151 = vpop.f32.mrf.mxu0
        %5152 = vdwg.mxu0
        %v5154 = vsel %vm732, %v5083, 0
        %v5157 = vsel %vm732, %v5091, 0
        %5159 = vmatprep.subr.bf16.mxu0 0
        %5160 = vmatpush1.bf16.xpose.msra.mxu0 0
        %5161 = vmatprep.subr.bf16.mxu0 0
        %5162 = vmatpush1.bf16.xpose.msra.mxu0 0
        %5163 = vmatprep.subr.bf16.mxu0 0
        %5164 = vmatpush1.bf16.xpose.msra.mxu0 0
        %5165 = vmatprep.subr.bf16.mxu0 0
        %5166 = vmatpush1.bf16.xpose.msra.mxu0 0
        %5167 = vmatprep.subr.bf16.mxu0 0
        %5168 = vmatpush1.bf16.xpose.msra.mxu0 0
        %5169 = vmatprep.subr.bf16.mxu0 0
        %5170 = vmatpush1.bf16.xpose.msra.mxu0 0
        %5171 = vmatprep.subr.bf16.mxu0 0
        %5172 = vmatpush1.bf16.xpose.msra.mxu0 0
        %5173 = vmatprep.subr.bf16.mxu0 0
        %5174 = vmatpush1.bf16.xpose.msra.mxu0 %v5157
        %5175 = vmatprep.subr.bf16.mxu0 0
        %5176 = vmatpush2.bf16.xpose.msra.mxu0 0
        %5177 = vmatprep.subr.bf16.mxu0 0
        %5178 = vmatpush2.bf16.xpose.msra.mxu0 0
        %5179 = vmatprep.subr.bf16.mxu0 0
        %5180 = vmatpush2.bf16.xpose.msra.mxu0 0
        %5181 = vmatprep.subr.bf16.mxu0 0
        %5182 = vmatpush2.bf16.xpose.msra.mxu0 0
        %5183 = vmatprep.subr.bf16.mxu0 0
        %5184 = vmatpush2.bf16.xpose.msra.mxu0 0
        %5185 = vmatprep.subr.bf16.mxu0 0
        %5186 = vmatpush2.bf16.xpose.msra.mxu0 0
        %5187 = vmatprep.subr.bf16.mxu0 0
        %5188 = vmatpush2.bf16.xpose.msra.mxu0 0
        %5189 = vmatprep.subr.bf16.mxu0 0
        %5190 = vmatpush2.bf16.xpose.msra.mxu0 0
        %5191 = vmatprep.mubr.bf16.mxu0 0
        %5192 = vmatmul.mubr.bf16.gmra.mxu0 %v5154
        %v5193 = vpop.f32.mrf.mxu0
        %v5194 = vadd.f32 0.0, %v5193
        %v5195 = vpop.f32.mrf.mxu0
        %v5196 = vpop.f32.mrf.mxu0
        %v5197 = vadd.f32 0.0, %v5196
        %v5198 = vpop.f32.mrf.mxu0
        %5199 = vdwg.mxu0
        %v5201 = vsel %vm732, %v5084, 0
        %v5204 = vsel %vm732, %v5092, 0
        %5206 = vmatprep.subr.bf16.mxu0 0
        %5207 = vmatpush1.bf16.xpose.msra.mxu0 0
        %5208 = vmatprep.subr.bf16.mxu0 0
        %5209 = vmatpush1.bf16.xpose.msra.mxu0 0
        %5210 = vmatprep.subr.bf16.mxu0 0
        %5211 = vmatpush1.bf16.xpose.msra.mxu0 0
        %5212 = vmatprep.subr.bf16.mxu0 0
        %5213 = vmatpush1.bf16.xpose.msra.mxu0 0
        %5214 = vmatprep.subr.bf16.mxu0 0
        %5215 = vmatpush1.bf16.xpose.msra.mxu0 0
        %5216 = vmatprep.subr.bf16.mxu0 0
        %5217 = vmatpush1.bf16.xpose.msra.mxu0 0
        %5218 = vmatprep.subr.bf16.mxu0 0
        %5219 = vmatpush1.bf16.xpose.msra.mxu0 0
        %5220 = vmatprep.subr.bf16.mxu0 0
        %5221 = vmatpush1.bf16.xpose.msra.mxu0 %v5204
        %5222 = vmatprep.subr.bf16.mxu0 0
        %5223 = vmatpush2.bf16.xpose.msra.mxu0 0
        %5224 = vmatprep.subr.bf16.mxu0 0
        %5225 = vmatpush2.bf16.xpose.msra.mxu0 0
        %5226 = vmatprep.subr.bf16.mxu0 0
        %5227 = vmatpush2.bf16.xpose.msra.mxu0 0
        %5228 = vmatprep.subr.bf16.mxu0 0
        %5229 = vmatpush2.bf16.xpose.msra.mxu0 0
        %5230 = vmatprep.subr.bf16.mxu0 0
        %5231 = vmatpush2.bf16.xpose.msra.mxu0 0
        %5232 = vmatprep.subr.bf16.mxu0 0
        %5233 = vmatpush2.bf16.xpose.msra.mxu0 0
        %5234 = vmatprep.subr.bf16.mxu0 0
        %5235 = vmatpush2.bf16.xpose.msra.mxu0 0
        %5236 = vmatprep.subr.bf16.mxu0 0
        %5237 = vmatpush2.bf16.xpose.msra.mxu0 0
        %5238 = vmatprep.mubr.bf16.mxu0 0
        %5239 = vmatmul.mubr.bf16.gmra.mxu0 %v5201
        %v5240 = vpop.f32.mrf.mxu0
        %v5241 = vadd.f32 0.0, %v5240
        %v5242 = vpop.f32.mrf.mxu0
        %v5243 = vpop.f32.mrf.mxu0
        %v5244 = vadd.f32 0.0, %v5243
        %v5245 = vpop.f32.mrf.mxu0
        %5246 = vdwg.mxu0
        %v5248 = vsel %vm732, %v5085, 0
        %v5251 = vsel %vm732, %v5093, 0
        %5253 = vmatprep.subr.bf16.mxu0 0
        %5254 = vmatpush1.bf16.xpose.msra.mxu0 0
        %5255 = vmatprep.subr.bf16.mxu0 0
        %5256 = vmatpush1.bf16.xpose.msra.mxu0 0
        %5257 = vmatprep.subr.bf16.mxu0 0
        %5258 = vmatpush1.bf16.xpose.msra.mxu0 0
        %5259 = vmatprep.subr.bf16.mxu0 0
        %5260 = vmatpush1.bf16.xpose.msra.mxu0 0
        %5261 = vmatprep.subr.bf16.mxu0 0
        %5262 = vmatpush1.bf16.xpose.msra.mxu0 0
        %5263 = vmatprep.subr.bf16.mxu0 0
        %5264 = vmatpush1.bf16.xpose.msra.mxu0 0
        %5265 = vmatprep.subr.bf16.mxu0 0
        %5266 = vmatpush1.bf16.xpose.msra.mxu0 0
        %5267 = vmatprep.subr.bf16.mxu0 0
        %5268 = vmatpush1.bf16.xpose.msra.mxu0 %v5251
        %5269 = vmatprep.subr.bf16.mxu0 0
        %5270 = vmatpush2.bf16.xpose.msra.mxu0 0
        %5271 = vmatprep.subr.bf16.mxu0 0
        %5272 = vmatpush2.bf16.xpose.msra.mxu0 0
        %5273 = vmatprep.subr.bf16.mxu0 0
        %5274 = vmatpush2.bf16.xpose.msra.mxu0 0
        %5275 = vmatprep.subr.bf16.mxu0 0
        %5276 = vmatpush2.bf16.xpose.msra.mxu0 0
        %5277 = vmatprep.subr.bf16.mxu0 0
        %5278 = vmatpush2.bf16.xpose.msra.mxu0 0
        %5279 = vmatprep.subr.bf16.mxu0 0
        %5280 = vmatpush2.bf16.xpose.msra.mxu0 0
        %5281 = vmatprep.subr.bf16.mxu0 0
        %5282 = vmatpush2.bf16.xpose.msra.mxu0 0
        %5283 = vmatprep.subr.bf16.mxu0 0
        %5284 = vmatpush2.bf16.xpose.msra.mxu0 0
        %5285 = vmatprep.mubr.bf16.mxu0 0
        %5286 = vmatmul.mubr.bf16.gmra.mxu0 %v5248
        %v5287 = vpop.f32.mrf.mxu0
        %v5288 = vadd.f32 0.0, %v5287
        %v5289 = vpop.f32.mrf.mxu0
        %v5290 = vpop.f32.mrf.mxu0
        %v5291 = vadd.f32 0.0, %v5290
        %v5292 = vpop.f32.mrf.mxu0
        %5293 = vdwg.mxu0
        %v5295 = vsel %vm732, %v5086, 0
        %v5298 = vsel %vm732, %v5094, 0
        %5300 = vmatprep.subr.bf16.mxu0 0
        %5301 = vmatpush1.bf16.xpose.msra.mxu0 0
        %5302 = vmatprep.subr.bf16.mxu0 0
        %5303 = vmatpush1.bf16.xpose.msra.mxu0 0
        %5304 = vmatprep.subr.bf16.mxu0 0
        %5305 = vmatpush1.bf16.xpose.msra.mxu0 0
        %5306 = vmatprep.subr.bf16.mxu0 0
        %5307 = vmatpush1.bf16.xpose.msra.mxu0 0
        %5308 = vmatprep.subr.bf16.mxu0 0
        %5309 = vmatpush1.bf16.xpose.msra.mxu0 0
        %5310 = vmatprep.subr.bf16.mxu0 0
        %5311 = vmatpush1.bf16.xpose.msra.mxu0 0
        %5312 = vmatprep.subr.bf16.mxu0 0
        %5313 = vmatpush1.bf16.xpose.msra.mxu0 0
        %5314 = vmatprep.subr.bf16.mxu0 0
        %5315 = vmatpush1.bf16.xpose.msra.mxu0 %v5298
        %5316 = vmatprep.subr.bf16.mxu0 0
        %5317 = vmatpush2.bf16.xpose.msra.mxu0 0
        %5318 = vmatprep.subr.bf16.mxu0 0
        %5319 = vmatpush2.bf16.xpose.msra.mxu0 0
        %5320 = vmatprep.subr.bf16.mxu0 0
        %5321 = vmatpush2.bf16.xpose.msra.mxu0 0
        %5322 = vmatprep.subr.bf16.mxu0 0
        %5323 = vmatpush2.bf16.xpose.msra.mxu0 0
        %5324 = vmatprep.subr.bf16.mxu0 0
        %5325 = vmatpush2.bf16.xpose.msra.mxu0 0
        %5326 = vmatprep.subr.bf16.mxu0 0
        %5327 = vmatpush2.bf16.xpose.msra.mxu0 0
        %5328 = vmatprep.subr.bf16.mxu0 0
        %5329 = vmatpush2.bf16.xpose.msra.mxu0 0
        %5330 = vmatprep.subr.bf16.mxu0 0
        %5331 = vmatpush2.bf16.xpose.msra.mxu0 0
        %5332 = vmatprep.mubr.bf16.mxu0 0
        %5333 = vmatmul.mubr.bf16.gmra.mxu0 %v5295
        %v5334 = vpop.f32.mrf.mxu0
        %v5335 = vadd.f32 0.0, %v5334
        %v5336 = vpop.f32.mrf.mxu0
        %v5337 = vpop.f32.mrf.mxu0
        %v5338 = vadd.f32 0.0, %v5337
        %v5339 = vpop.f32.mrf.mxu0
        %5340 = vdwg.mxu0
        %v5342 = vsel %vm732, %v5087, 0
        %v5345 = vsel %vm732, %v5095, 0
        %5347 = vmatprep.subr.bf16.mxu0 0
        %5348 = vmatpush1.bf16.xpose.msra.mxu0 0
        %5349 = vmatprep.subr.bf16.mxu0 0
        %5350 = vmatpush1.bf16.xpose.msra.mxu0 0
        %5351 = vmatprep.subr.bf16.mxu0 0
        %5352 = vmatpush1.bf16.xpose.msra.mxu0 0
        %5353 = vmatprep.subr.bf16.mxu0 0
        %5354 = vmatpush1.bf16.xpose.msra.mxu0 0
        %5355 = vmatprep.subr.bf16.mxu0 0
        %5356 = vmatpush1.bf16.xpose.msra.mxu0 0
        %5357 = vmatprep.subr.bf16.mxu0 0
        %5358 = vmatpush1.bf16.xpose.msra.mxu0 0
        %5359 = vmatprep.subr.bf16.mxu0 0
        %5360 = vmatpush1.bf16.xpose.msra.mxu0 0
        %5361 = vmatprep.subr.bf16.mxu0 0
        %5362 = vmatpush1.bf16.xpose.msra.mxu0 %v5345
        %5363 = vmatprep.subr.bf16.mxu0 0
        %5364 = vmatpush2.bf16.xpose.msra.mxu0 0
        %5365 = vmatprep.subr.bf16.mxu0 0
        %5366 = vmatpush2.bf16.xpose.msra.mxu0 0
        %5367 = vmatprep.subr.bf16.mxu0 0
        %5368 = vmatpush2.bf16.xpose.msra.mxu0 0
        %5369 = vmatprep.subr.bf16.mxu0 0
        %5370 = vmatpush2.bf16.xpose.msra.mxu0 0
        %5371 = vmatprep.subr.bf16.mxu0 0
        %5372 = vmatpush2.bf16.xpose.msra.mxu0 0
        %5373 = vmatprep.subr.bf16.mxu0 0
        %5374 = vmatpush2.bf16.xpose.msra.mxu0 0
        %5375 = vmatprep.subr.bf16.mxu0 0
        %5376 = vmatpush2.bf16.xpose.msra.mxu0 0
        %5377 = vmatprep.subr.bf16.mxu0 0
        %5378 = vmatpush2.bf16.xpose.msra.mxu0 0
        %5379 = vmatprep.mubr.bf16.mxu0 0
        %5380 = vmatmul.mubr.bf16.gmra.mxu0 %v5342
        %v5381 = vpop.f32.mrf.mxu0
        %v5382 = vadd.f32 0.0, %v5381
        %v5383 = vpop.f32.mrf.mxu0
        %v5384 = vpop.f32.mrf.mxu0
        %v5385 = vadd.f32 0.0, %v5384
        %v5386 = vpop.f32.mrf.mxu0
        %5387 = vdwg.mxu0
        %v5389 = vsel %vm732, %v5088, 0
        %v5392 = vsel %vm732, %v5096, 0
        %5394 = vmatprep.subr.bf16.mxu0 0
        %5395 = vmatpush1.bf16.xpose.msra.mxu0 0
        %5396 = vmatprep.subr.bf16.mxu0 0
        %5397 = vmatpush1.bf16.xpose.msra.mxu0 0
        %5398 = vmatprep.subr.bf16.mxu0 0
        %5399 = vmatpush1.bf16.xpose.msra.mxu0 0
        %5400 = vmatprep.subr.bf16.mxu0 0
        %5401 = vmatpush1.bf16.xpose.msra.mxu0 0
        %5402 = vmatprep.subr.bf16.mxu0 0
        %5403 = vmatpush1.bf16.xpose.msra.mxu0 0
        %5404 = vmatprep.subr.bf16.mxu0 0
        %5405 = vmatpush1.bf16.xpose.msra.mxu0 0
        %5406 = vmatprep.subr.bf16.mxu0 0
        %5407 = vmatpush1.bf16.xpose.msra.mxu0 0
        %5408 = vmatprep.subr.bf16.mxu0 0
        %5409 = vmatpush1.bf16.xpose.msra.mxu0 %v5392
        %5410 = vmatprep.subr.bf16.mxu0 0
        %5411 = vmatpush2.bf16.xpose.msra.mxu0 0
        %5412 = vmatprep.subr.bf16.mxu0 0
        %5413 = vmatpush2.bf16.xpose.msra.mxu0 0
        %5414 = vmatprep.subr.bf16.mxu0 0
        %5415 = vmatpush2.bf16.xpose.msra.mxu0 0
        %5416 = vmatprep.subr.bf16.mxu0 0
        %5417 = vmatpush2.bf16.xpose.msra.mxu0 0
        %5418 = vmatprep.subr.bf16.mxu0 0
        %5419 = vmatpush2.bf16.xpose.msra.mxu0 0
        %5420 = vmatprep.subr.bf16.mxu0 0
        %5421 = vmatpush2.bf16.xpose.msra.mxu0 0
        %5422 = vmatprep.subr.bf16.mxu0 0
        %5423 = vmatpush2.bf16.xpose.msra.mxu0 0
        %5424 = vmatprep.subr.bf16.mxu0 0
        %5425 = vmatpush2.bf16.xpose.msra.mxu0 0
        %5426 = vmatprep.mubr.bf16.mxu0 0
        %5427 = vmatmul.mubr.bf16.gmra.mxu0 %v5389
        %v5428 = vpop.f32.mrf.mxu0
        %v5429 = vadd.f32 0.0, %v5428
        %v5430 = vpop.f32.mrf.mxu0
        %v5431 = vpop.f32.mrf.mxu0
        %v5432 = vadd.f32 0.0, %v5431
        %v5433 = vpop.f32.mrf.mxu0
        %5434 = vdwg.mxu0
        %v5436 = vsel %vm732, %v5089, 0
        %v5439 = vsel %vm732, %v5097, 0
        %5441 = vmatprep.subr.bf16.mxu0 0
        %5442 = vmatpush1.bf16.xpose.msra.mxu0 0
        %5443 = vmatprep.subr.bf16.mxu0 0
        %5444 = vmatpush1.bf16.xpose.msra.mxu0 0
        %5445 = vmatprep.subr.bf16.mxu0 0
        %5446 = vmatpush1.bf16.xpose.msra.mxu0 0
        %5447 = vmatprep.subr.bf16.mxu0 0
        %5448 = vmatpush1.bf16.xpose.msra.mxu0 0
        %5449 = vmatprep.subr.bf16.mxu0 0
        %5450 = vmatpush1.bf16.xpose.msra.mxu0 0
        %5451 = vmatprep.subr.bf16.mxu0 0
        %5452 = vmatpush1.bf16.xpose.msra.mxu0 0
        %5453 = vmatprep.subr.bf16.mxu0 0
        %5454 = vmatpush1.bf16.xpose.msra.mxu0 0
        %5455 = vmatprep.subr.bf16.mxu0 0
        %5456 = vmatpush1.bf16.xpose.msra.mxu0 %v5439
        %5457 = vmatprep.subr.bf16.mxu0 0
        %5458 = vmatpush2.bf16.xpose.msra.mxu0 0
        %5459 = vmatprep.subr.bf16.mxu0 0
        %5460 = vmatpush2.bf16.xpose.msra.mxu0 0
        %5461 = vmatprep.subr.bf16.mxu0 0
        %5462 = vmatpush2.bf16.xpose.msra.mxu0 0
        %5463 = vmatprep.subr.bf16.mxu0 0
        %5464 = vmatpush2.bf16.xpose.msra.mxu0 0
        %5465 = vmatprep.subr.bf16.mxu0 0
        %5466 = vmatpush2.bf16.xpose.msra.mxu0 0
        %5467 = vmatprep.subr.bf16.mxu0 0
        %5468 = vmatpush2.bf16.xpose.msra.mxu0 0
        %5469 = vmatprep.subr.bf16.mxu0 0
        %5470 = vmatpush2.bf16.xpose.msra.mxu0 0
        %5471 = vmatprep.subr.bf16.mxu0 0
        %5472 = vmatpush2.bf16.xpose.msra.mxu0 0
        %5473 = vmatprep.mubr.bf16.mxu0 0
        %5474 = vmatmul.mubr.bf16.gmra.mxu0 %v5436
        %v5475 = vpop.f32.mrf.mxu0
        %v5476 = vadd.f32 0.0, %v5475
        %v5477 = vpop.f32.mrf.mxu0
        %v5478 = vpop.f32.mrf.mxu0
        %v5479 = vadd.f32 0.0, %v5478
        %v5480 = vpop.f32.mrf.mxu0
        %5481 = vdwg.mxu0
        %v5482 = vsel %vm1109, %v5147, -inf
        %5483 = vmax.xlane.f32.xlu0 %v5482
        %v5484 = vpop.xlane.xlu0 %5483
        %v5485 = vsel %vm1109, %v5150, -inf
        %5486 = vmax.xlane.f32.xlu0 %v5485
        %v5487 = vpop.xlane.xlu0 %5486
        %v5488 = vsel %vm1109, %v5194, -inf
        %5489 = vmax.xlane.f32.xlu0 %v5488
        %v5490 = vpop.xlane.xlu0 %5489
        %v5491 = vsel %vm1109, %v5197, -inf
        %5492 = vmax.xlane.f32.xlu0 %v5491
        %v5493 = vpop.xlane.xlu0 %5492
        %v5494 = vsel %vm1109, %v5241, -inf
        %5495 = vmax.xlane.f32.xlu0 %v5494
        %v5496 = vpop.xlane.xlu0 %5495
        %v5497 = vsel %vm1109, %v5244, -inf
        %5498 = vmax.xlane.f32.xlu0 %v5497
        %v5499 = vpop.xlane.xlu0 %5498
        %v5500 = vsel %vm1109, %v5288, -inf
        %5501 = vmax.xlane.f32.xlu0 %v5500
        %v5502 = vpop.xlane.xlu0 %5501
        %v5503 = vsel %vm1109, %v5291, -inf
        %5504 = vmax.xlane.f32.xlu0 %v5503
        %v5505 = vpop.xlane.xlu0 %5504
        %v5506 = vsel %vm1109, %v5335, -inf
        %5507 = vmax.xlane.f32.xlu0 %v5506
        %v5508 = vpop.xlane.xlu0 %5507
        %v5509 = vsel %vm1109, %v5338, -inf
        %5510 = vmax.xlane.f32.xlu0 %v5509
        %v5511 = vpop.xlane.xlu0 %5510
        %v5512 = vsel %vm1109, %v5382, -inf
        %5513 = vmax.xlane.f32.xlu0 %v5512
        %v5514 = vpop.xlane.xlu0 %5513
        %v5515 = vsel %vm1109, %v5385, -inf
        %5516 = vmax.xlane.f32.xlu0 %v5515
        %v5517 = vpop.xlane.xlu0 %5516
        %v5518 = vsel %vm1109, %v5429, -inf
        %5519 = vmax.xlane.f32.xlu0 %v5518
        %v5520 = vpop.xlane.xlu0 %5519
        %v5521 = vsel %vm1109, %v5432, -inf
        %5522 = vmax.xlane.f32.xlu0 %v5521
        %v5523 = vpop.xlane.xlu0 %5522
        %v5524 = vsel %vm1109, %v5476, -inf
        %5525 = vmax.xlane.f32.xlu0 %v5524
        %v5526 = vpop.xlane.xlu0 %5525
        %v5527 = vsel %vm1109, %v5479, -inf
        %5528 = vmax.xlane.f32.xlu0 %v5527
        %v5529 = vpop.xlane.xlu0 %5528
        %v5530 = vsub.f32 %v5147, %v5484
        %v5531 = vsub.f32 %v5150, %v5487
        %v5532 = vsub.f32 %v5194, %v5490
        %v5533 = vsub.f32 %v5197, %v5493
        %v5534 = vsub.f32 %v5241, %v5496
        %v5535 = vsub.f32 %v5244, %v5499
        %v5536 = vsub.f32 %v5288, %v5502
        %v5537 = vsub.f32 %v5291, %v5505
        %v5538 = vsub.f32 %v5335, %v5508
        %v5539 = vsub.f32 %v5338, %v5511
        %v5540 = vsub.f32 %v5382, %v5514
        %v5541 = vsub.f32 %v5385, %v5517
        %v5542 = vsub.f32 %v5429, %v5520
        %v5543 = vsub.f32 %v5432, %v5523
        %v5544 = vsub.f32 %v5476, %v5526
        %v5545 = vsub.f32 %v5479, %v5529
        %v5546 = vmul.f32 %v5530, 1.442695
        %v5547 = vpow.pop %v5546
        %v5548 = vmul.f32 %v5531, 1.442695
        %v5549 = vpow.pop %v5548
        %v5550 = vmul.f32 %v5532, 1.442695
        %v5551 = vpow.pop %v5550
        %v5552 = vmul.f32 %v5533, 1.442695
        %v5553 = vpow.pop %v5552
        %v5554 = vmul.f32 %v5534, 1.442695
        %v5555 = vpow.pop %v5554
        %v5556 = vmul.f32 %v5535, 1.442695
        %v5557 = vpow.pop %v5556
        %v5558 = vmul.f32 %v5536, 1.442695
        %v5559 = vpow.pop %v5558
        %v5560 = vmul.f32 %v5537, 1.442695
        %v5561 = vpow.pop %v5560
        %v5562 = vmul.f32 %v5538, 1.442695
        %v5563 = vpow.pop %v5562
        %v5564 = vmul.f32 %v5539, 1.442695
        %v5565 = vpow.pop %v5564
        %v5566 = vmul.f32 %v5540, 1.442695
        %v5567 = vpow.pop %v5566
        %v5568 = vmul.f32 %v5541, 1.442695
        %v5569 = vpow.pop %v5568
        %v5570 = vmul.f32 %v5542, 1.442695
        %v5571 = vpow.pop %v5570
        %v5572 = vmul.f32 %v5543, 1.442695
        %v5573 = vpow.pop %v5572
        %v5574 = vmul.f32 %v5544, 1.442695
        %v5575 = vpow.pop %v5574
        %v5576 = vmul.f32 %v5545, 1.442695
        %v5577 = vpow.pop %v5576
        %v5578 = vsel %vm1109, %v5547, 0.0
        %5579 = vadd.xlane.f32.xlu0 %v5578
        %v5580 = vpop.xlane.xlu0 %5579
        %v5581 = vsel %vm1109, %v5549, 0.0
        %5582 = vadd.xlane.f32.xlu0 %v5581
        %v5583 = vpop.xlane.xlu0 %5582
        %v5584 = vsel %vm1109, %v5551, 0.0
        %5585 = vadd.xlane.f32.xlu0 %v5584
        %v5586 = vpop.xlane.xlu0 %5585
        %v5587 = vsel %vm1109, %v5553, 0.0
        %5588 = vadd.xlane.f32.xlu0 %v5587
        %v5589 = vpop.xlane.xlu0 %5588
        %v5590 = vsel %vm1109, %v5555, 0.0
        %5591 = vadd.xlane.f32.xlu0 %v5590
        %v5592 = vpop.xlane.xlu0 %5591
        %v5593 = vsel %vm1109, %v5557, 0.0
        %5594 = vadd.xlane.f32.xlu0 %v5593
        %v5595 = vpop.xlane.xlu0 %5594
        %v5596 = vsel %vm1109, %v5559, 0.0
        %5597 = vadd.xlane.f32.xlu0 %v5596
        %v5598 = vpop.xlane.xlu0 %5597
        %v5599 = vsel %vm1109, %v5561, 0.0
        %5600 = vadd.xlane.f32.xlu0 %v5599
        %v5601 = vpop.xlane.xlu0 %5600
        %v5602 = vsel %vm1109, %v5563, 0.0
        %5603 = vadd.xlane.f32.xlu0 %v5602
        %v5604 = vpop.xlane.xlu0 %5603
        %v5605 = vsel %vm1109, %v5565, 0.0
        %5606 = vadd.xlane.f32.xlu0 %v5605
        %v5607 = vpop.xlane.xlu0 %5606
        %v5608 = vsel %vm1109, %v5567, 0.0
        %5609 = vadd.xlane.f32.xlu0 %v5608
        %v5610 = vpop.xlane.xlu0 %5609
        %v5611 = vsel %vm1109, %v5569, 0.0
        %5612 = vadd.xlane.f32.xlu0 %v5611
        %v5613 = vpop.xlane.xlu0 %5612
        %v5614 = vsel %vm1109, %v5571, 0.0
        %5615 = vadd.xlane.f32.xlu0 %v5614
        %v5616 = vpop.xlane.xlu0 %5615
        %v5617 = vsel %vm1109, %v5573, 0.0
        %5618 = vadd.xlane.f32.xlu0 %v5617
        %v5619 = vpop.xlane.xlu0 %5618
        %v5620 = vsel %vm1109, %v5575, 0.0
        %5621 = vadd.xlane.f32.xlu0 %v5620
        %v5622 = vpop.xlane.xlu0 %5621
        %v5623 = vsel %vm1109, %v5577, 0.0
        %5624 = vadd.xlane.f32.xlu0 %v5623
        %v5625 = vpop.xlane.xlu0 %5624
        %v5626 = vrcp.pop %v5580
        %v5627 = vrcp.pop %v5583
        %v5628 = vrcp.pop %v5586
        %v5629 = vrcp.pop %v5589
        %v5630 = vrcp.pop %v5592
        %v5631 = vrcp.pop %v5595
        %v5632 = vrcp.pop %v5598
        %v5633 = vrcp.pop %v5601
        %v5634 = vrcp.pop %v5604
        %v5635 = vrcp.pop %v5607
        %v5636 = vrcp.pop %v5610
        %v5637 = vrcp.pop %v5613
        %v5638 = vrcp.pop %v5616
        %v5639 = vrcp.pop %v5619
        %v5640 = vrcp.pop %v5622
        %v5641 = vrcp.pop %v5625
        %v5642 = vmul.f32 %v5547, %v5626
        %v5643 = vmul.f32 %v5549, %v5627
        %v5644 = vmul.f32 %v5551, %v5628
        %v5645 = vmul.f32 %v5553, %v5629
        %v5646 = vmul.f32 %v5555, %v5630
        %v5647 = vmul.f32 %v5557, %v5631
        %v5648 = vmul.f32 %v5559, %v5632
        %v5649 = vmul.f32 %v5561, %v5633
        %v5650 = vmul.f32 %v5563, %v5634
        %v5651 = vmul.f32 %v5565, %v5635
        %v5652 = vmul.f32 %v5567, %v5636
        %v5653 = vmul.f32 %v5569, %v5637
        %v5654 = vmul.f32 %v5571, %v5638
        %v5655 = vmul.f32 %v5573, %v5639
        %v5656 = vmul.f32 %v5575, %v5640
        %v5657 = vmul.f32 %v5577, %v5641
        %v5658 = vpack.c.bf16 %v5643, %v5642
        %v5659 = vpack.c.bf16 %v5645, %v5644
        %v5660 = vpack.c.bf16 %v5647, %v5646
        %v5661 = vpack.c.bf16 %v5649, %v5648
        %v5662 = vpack.c.bf16 %v5651, %v5650
        %v5663 = vpack.c.bf16 %v5653, %v5652
        %v5664 = vpack.c.bf16 %v5655, %v5654
        %v5665 = vpack.c.bf16 %v5657, %v5656
        %v5667 = vsel %vm1109, %v5658, 0
        %5669 = vmatprep.subr.bf16.mxu0 0
        %5670 = vmatpush1.bf16.msra.mxu0 0
        %5671 = vmatprep.subr.bf16.mxu0 0
        %5672 = vmatpush1.bf16.msra.mxu0 0
        %5673 = vmatprep.subr.bf16.mxu0 0
        %5674 = vmatpush1.bf16.msra.mxu0 0
        %5675 = vmatprep.subr.bf16.mxu0 0
        %5676 = vmatpush1.bf16.msra.mxu0 0
        %5677 = vmatprep.subr.bf16.mxu0 0
        %5678 = vmatpush1.bf16.msra.mxu0 0
        %5679 = vmatprep.subr.bf16.mxu0 0
        %5680 = vmatpush1.bf16.msra.mxu0 0
        %5681 = vmatprep.subr.bf16.mxu0 0
        %5682 = vmatpush1.bf16.msra.mxu0 0
        %5683 = vmatprep.subr.bf16.mxu0 0
        %5684 = vmatpush1.bf16.msra.mxu0 %v5098
        %5685 = vmatprep.subr.bf16.mxu0 0
        %5686 = vmatpush2.bf16.msra.mxu0 0
        %5687 = vmatprep.subr.bf16.mxu0 0
        %5688 = vmatpush2.bf16.msra.mxu0 0
        %5689 = vmatprep.subr.bf16.mxu0 0
        %5690 = vmatpush2.bf16.msra.mxu0 0
        %5691 = vmatprep.subr.bf16.mxu0 0
        %5692 = vmatpush2.bf16.msra.mxu0 0
        %5693 = vmatprep.subr.bf16.mxu0 0
        %5694 = vmatpush2.bf16.msra.mxu0 0
        %5695 = vmatprep.subr.bf16.mxu0 0
        %5696 = vmatpush2.bf16.msra.mxu0 0
        %5697 = vmatprep.subr.bf16.mxu0 0
        %5698 = vmatpush2.bf16.msra.mxu0 0
        %5699 = vmatprep.subr.bf16.mxu0 0
        %5700 = vmatpush2.bf16.msra.mxu0 0
        %5701 = vmatprep.mubr.bf16.mxu0 0
        %5702 = vmatmul.mubr.bf16.gmra.mxu0 %v5667
        %v5703 = vpop.f32.mrf.mxu0
        %v5704 = vadd.f32 0.0, %v5703
        %v5705 = vpop.f32.mrf.mxu0
        %v5706 = vpop.f32.mrf.mxu0
        %v5707 = vadd.f32 0.0, %v5706
        %v5708 = vpop.f32.mrf.mxu0
        %5709 = vdwg.mxu0
        %v5711 = vsel %vm1109, %v5659, 0
        %5713 = vmatprep.subr.bf16.mxu0 0
        %5714 = vmatpush1.bf16.msra.mxu0 0
        %5715 = vmatprep.subr.bf16.mxu0 0
        %5716 = vmatpush1.bf16.msra.mxu0 0
        %5717 = vmatprep.subr.bf16.mxu0 0
        %5718 = vmatpush1.bf16.msra.mxu0 0
        %5719 = vmatprep.subr.bf16.mxu0 0
        %5720 = vmatpush1.bf16.msra.mxu0 0
        %5721 = vmatprep.subr.bf16.mxu0 0
        %5722 = vmatpush1.bf16.msra.mxu0 0
        %5723 = vmatprep.subr.bf16.mxu0 0
        %5724 = vmatpush1.bf16.msra.mxu0 0
        %5725 = vmatprep.subr.bf16.mxu0 0
        %5726 = vmatpush1.bf16.msra.mxu0 0
        %5727 = vmatprep.subr.bf16.mxu0 0
        %5728 = vmatpush1.bf16.msra.mxu0 %v5099
        %5729 = vmatprep.subr.bf16.mxu0 0
        %5730 = vmatpush2.bf16.msra.mxu0 0
        %5731 = vmatprep.subr.bf16.mxu0 0
        %5732 = vmatpush2.bf16.msra.mxu0 0
        %5733 = vmatprep.subr.bf16.mxu0 0
        %5734 = vmatpush2.bf16.msra.mxu0 0
        %5735 = vmatprep.subr.bf16.mxu0 0
        %5736 = vmatpush2.bf16.msra.mxu0 0
        %5737 = vmatprep.subr.bf16.mxu0 0
        %5738 = vmatpush2.bf16.msra.mxu0 0
        %5739 = vmatprep.subr.bf16.mxu0 0
        %5740 = vmatpush2.bf16.msra.mxu0 0
        %5741 = vmatprep.subr.bf16.mxu0 0
        %5742 = vmatpush2.bf16.msra.mxu0 0
        %5743 = vmatprep.subr.bf16.mxu0 0
        %5744 = vmatpush2.bf16.msra.mxu0 0
        %5745 = vmatprep.mubr.bf16.mxu0 0
        %5746 = vmatmul.mubr.bf16.gmra.mxu0 %v5711
        %v5747 = vpop.f32.mrf.mxu0
        %v5748 = vadd.f32 0.0, %v5747
        %v5749 = vpop.f32.mrf.mxu0
        %v5750 = vpop.f32.mrf.mxu0
        %v5751 = vadd.f32 0.0, %v5750
        %v5752 = vpop.f32.mrf.mxu0
        %5753 = vdwg.mxu0
        %v5755 = vsel %vm1109, %v5660, 0
        %5757 = vmatprep.subr.bf16.mxu0 0
        %5758 = vmatpush1.bf16.msra.mxu0 0
        %5759 = vmatprep.subr.bf16.mxu0 0
        %5760 = vmatpush1.bf16.msra.mxu0 0
        %5761 = vmatprep.subr.bf16.mxu0 0
        %5762 = vmatpush1.bf16.msra.mxu0 0
        %5763 = vmatprep.subr.bf16.mxu0 0
        %5764 = vmatpush1.bf16.msra.mxu0 0
        %5765 = vmatprep.subr.bf16.mxu0 0
        %5766 = vmatpush1.bf16.msra.mxu0 0
        %5767 = vmatprep.subr.bf16.mxu0 0
        %5768 = vmatpush1.bf16.msra.mxu0 0
        %5769 = vmatprep.subr.bf16.mxu0 0
        %5770 = vmatpush1.bf16.msra.mxu0 0
        %5771 = vmatprep.subr.bf16.mxu0 0
        %5772 = vmatpush1.bf16.msra.mxu0 %v5100
        %5773 = vmatprep.subr.bf16.mxu0 0
        %5774 = vmatpush2.bf16.msra.mxu0 0
        %5775 = vmatprep.subr.bf16.mxu0 0
        %5776 = vmatpush2.bf16.msra.mxu0 0
        %5777 = vmatprep.subr.bf16.mxu0 0
        %5778 = vmatpush2.bf16.msra.mxu0 0
        %5779 = vmatprep.subr.bf16.mxu0 0
        %5780 = vmatpush2.bf16.msra.mxu0 0
        %5781 = vmatprep.subr.bf16.mxu0 0
        %5782 = vmatpush2.bf16.msra.mxu0 0
        %5783 = vmatprep.subr.bf16.mxu0 0
        %5784 = vmatpush2.bf16.msra.mxu0 0
        %5785 = vmatprep.subr.bf16.mxu0 0
        %5786 = vmatpush2.bf16.msra.mxu0 0
        %5787 = vmatprep.subr.bf16.mxu0 0
        %5788 = vmatpush2.bf16.msra.mxu0 0
        %5789 = vmatprep.mubr.bf16.mxu0 0
        %5790 = vmatmul.mubr.bf16.gmra.mxu0 %v5755
        %v5791 = vpop.f32.mrf.mxu0
        %v5792 = vadd.f32 0.0, %v5791
        %v5793 = vpop.f32.mrf.mxu0
        %v5794 = vpop.f32.mrf.mxu0
        %v5795 = vadd.f32 0.0, %v5794
        %v5796 = vpop.f32.mrf.mxu0
        %5797 = vdwg.mxu0
        %v5799 = vsel %vm1109, %v5661, 0
        %5801 = vmatprep.subr.bf16.mxu0 0
        %5802 = vmatpush1.bf16.msra.mxu0 0
        %5803 = vmatprep.subr.bf16.mxu0 0
        %5804 = vmatpush1.bf16.msra.mxu0 0
        %5805 = vmatprep.subr.bf16.mxu0 0
        %5806 = vmatpush1.bf16.msra.mxu0 0
        %5807 = vmatprep.subr.bf16.mxu0 0
        %5808 = vmatpush1.bf16.msra.mxu0 0
        %5809 = vmatprep.subr.bf16.mxu0 0
        %5810 = vmatpush1.bf16.msra.mxu0 0
        %5811 = vmatprep.subr.bf16.mxu0 0
        %5812 = vmatpush1.bf16.msra.mxu0 0
        %5813 = vmatprep.subr.bf16.mxu0 0
        %5814 = vmatpush1.bf16.msra.mxu0 0
        %5815 = vmatprep.subr.bf16.mxu0 0
        %5816 = vmatpush1.bf16.msra.mxu0 %v5101
        %5817 = vmatprep.subr.bf16.mxu0 0
        %5818 = vmatpush2.bf16.msra.mxu0 0
        %5819 = vmatprep.subr.bf16.mxu0 0
        %5820 = vmatpush2.bf16.msra.mxu0 0
        %5821 = vmatprep.subr.bf16.mxu0 0
        %5822 = vmatpush2.bf16.msra.mxu0 0
        %5823 = vmatprep.subr.bf16.mxu0 0
        %5824 = vmatpush2.bf16.msra.mxu0 0
        %5825 = vmatprep.subr.bf16.mxu0 0
        %5826 = vmatpush2.bf16.msra.mxu0 0
        %5827 = vmatprep.subr.bf16.mxu0 0
        %5828 = vmatpush2.bf16.msra.mxu0 0
        %5829 = vmatprep.subr.bf16.mxu0 0
        %5830 = vmatpush2.bf16.msra.mxu0 0
        %5831 = vmatprep.subr.bf16.mxu0 0
        %5832 = vmatpush2.bf16.msra.mxu0 0
        %5833 = vmatprep.mubr.bf16.mxu0 0
        %5834 = vmatmul.mubr.bf16.gmra.mxu0 %v5799
        %v5835 = vpop.f32.mrf.mxu0
        %v5836 = vadd.f32 0.0, %v5835
        %v5837 = vpop.f32.mrf.mxu0
        %v5838 = vpop.f32.mrf.mxu0
        %v5839 = vadd.f32 0.0, %v5838
        %v5840 = vpop.f32.mrf.mxu0
        %5841 = vdwg.mxu0
        %v5843 = vsel %vm1109, %v5662, 0
        %5845 = vmatprep.subr.bf16.mxu0 0
        %5846 = vmatpush1.bf16.msra.mxu0 0
        %5847 = vmatprep.subr.bf16.mxu0 0
        %5848 = vmatpush1.bf16.msra.mxu0 0
        %5849 = vmatprep.subr.bf16.mxu0 0
        %5850 = vmatpush1.bf16.msra.mxu0 0
        %5851 = vmatprep.subr.bf16.mxu0 0
        %5852 = vmatpush1.bf16.msra.mxu0 0
        %5853 = vmatprep.subr.bf16.mxu0 0
        %5854 = vmatpush1.bf16.msra.mxu0 0
        %5855 = vmatprep.subr.bf16.mxu0 0
        %5856 = vmatpush1.bf16.msra.mxu0 0
        %5857 = vmatprep.subr.bf16.mxu0 0
        %5858 = vmatpush1.bf16.msra.mxu0 0
        %5859 = vmatprep.subr.bf16.mxu0 0
        %5860 = vmatpush1.bf16.msra.mxu0 %v5102
        %5861 = vmatprep.subr.bf16.mxu0 0
        %5862 = vmatpush2.bf16.msra.mxu0 0
        %5863 = vmatprep.subr.bf16.mxu0 0
        %5864 = vmatpush2.bf16.msra.mxu0 0
        %5865 = vmatprep.subr.bf16.mxu0 0
        %5866 = vmatpush2.bf16.msra.mxu0 0
        %5867 = vmatprep.subr.bf16.mxu0 0
        %5868 = vmatpush2.bf16.msra.mxu0 0
        %5869 = vmatprep.subr.bf16.mxu0 0
        %5870 = vmatpush2.bf16.msra.mxu0 0
        %5871 = vmatprep.subr.bf16.mxu0 0
        %5872 = vmatpush2.bf16.msra.mxu0 0
        %5873 = vmatprep.subr.bf16.mxu0 0
        %5874 = vmatpush2.bf16.msra.mxu0 0
        %5875 = vmatprep.subr.bf16.mxu0 0
        %5876 = vmatpush2.bf16.msra.mxu0 0
        %5877 = vmatprep.mubr.bf16.mxu0 0
        %5878 = vmatmul.mubr.bf16.gmra.mxu0 %v5843
        %v5879 = vpop.f32.mrf.mxu0
        %v5880 = vadd.f32 0.0, %v5879
        %v5881 = vpop.f32.mrf.mxu0
        %v5882 = vpop.f32.mrf.mxu0
        %v5883 = vadd.f32 0.0, %v5882
        %v5884 = vpop.f32.mrf.mxu0
        %5885 = vdwg.mxu0
        %v5887 = vsel %vm1109, %v5663, 0
        %5889 = vmatprep.subr.bf16.mxu0 0
        %5890 = vmatpush1.bf16.msra.mxu0 0
        %5891 = vmatprep.subr.bf16.mxu0 0
        %5892 = vmatpush1.bf16.msra.mxu0 0
        %5893 = vmatprep.subr.bf16.mxu0 0
        %5894 = vmatpush1.bf16.msra.mxu0 0
        %5895 = vmatprep.subr.bf16.mxu0 0
        %5896 = vmatpush1.bf16.msra.mxu0 0
        %5897 = vmatprep.subr.bf16.mxu0 0
        %5898 = vmatpush1.bf16.msra.mxu0 0
        %5899 = vmatprep.subr.bf16.mxu0 0
        %5900 = vmatpush1.bf16.msra.mxu0 0
        %5901 = vmatprep.subr.bf16.mxu0 0
        %5902 = vmatpush1.bf16.msra.mxu0 0
        %5903 = vmatprep.subr.bf16.mxu0 0
        %5904 = vmatpush1.bf16.msra.mxu0 %v5103
        %5905 = vmatprep.subr.bf16.mxu0 0
        %5906 = vmatpush2.bf16.msra.mxu0 0
        %5907 = vmatprep.subr.bf16.mxu0 0
        %5908 = vmatpush2.bf16.msra.mxu0 0
        %5909 = vmatprep.subr.bf16.mxu0 0
        %5910 = vmatpush2.bf16.msra.mxu0 0
        %5911 = vmatprep.subr.bf16.mxu0 0
        %5912 = vmatpush2.bf16.msra.mxu0 0
        %5913 = vmatprep.subr.bf16.mxu0 0
        %5914 = vmatpush2.bf16.msra.mxu0 0
        %5915 = vmatprep.subr.bf16.mxu0 0
        %5916 = vmatpush2.bf16.msra.mxu0 0
        %5917 = vmatprep.subr.bf16.mxu0 0
        %5918 = vmatpush2.bf16.msra.mxu0 0
        %5919 = vmatprep.subr.bf16.mxu0 0
        %5920 = vmatpush2.bf16.msra.mxu0 0
        %5921 = vmatprep.mubr.bf16.mxu0 0
        %5922 = vmatmul.mubr.bf16.gmra.mxu0 %v5887
        %v5923 = vpop.f32.mrf.mxu0
        %v5924 = vadd.f32 0.0, %v5923
        %v5925 = vpop.f32.mrf.mxu0
        %v5926 = vpop.f32.mrf.mxu0
        %v5927 = vadd.f32 0.0, %v5926
        %v5928 = vpop.f32.mrf.mxu0
        %5929 = vdwg.mxu0
        %v5931 = vsel %vm1109, %v5664, 0
        %5933 = vmatprep.subr.bf16.mxu0 0
        %5934 = vmatpush1.bf16.msra.mxu0 0
        %5935 = vmatprep.subr.bf16.mxu0 0
        %5936 = vmatpush1.bf16.msra.mxu0 0
        %5937 = vmatprep.subr.bf16.mxu0 0
        %5938 = vmatpush1.bf16.msra.mxu0 0
        %5939 = vmatprep.subr.bf16.mxu0 0
        %5940 = vmatpush1.bf16.msra.mxu0 0
        %5941 = vmatprep.subr.bf16.mxu0 0
        %5942 = vmatpush1.bf16.msra.mxu0 0
        %5943 = vmatprep.subr.bf16.mxu0 0
        %5944 = vmatpush1.bf16.msra.mxu0 0
        %5945 = vmatprep.subr.bf16.mxu0 0
        %5946 = vmatpush1.bf16.msra.mxu0 0
        %5947 = vmatprep.subr.bf16.mxu0 0
        %5948 = vmatpush1.bf16.msra.mxu0 %v5104
        %5949 = vmatprep.subr.bf16.mxu0 0
        %5950 = vmatpush2.bf16.msra.mxu0 0
        %5951 = vmatprep.subr.bf16.mxu0 0
        %5952 = vmatpush2.bf16.msra.mxu0 0
        %5953 = vmatprep.subr.bf16.mxu0 0
        %5954 = vmatpush2.bf16.msra.mxu0 0
        %5955 = vmatprep.subr.bf16.mxu0 0
        %5956 = vmatpush2.bf16.msra.mxu0 0
        %5957 = vmatprep.subr.bf16.mxu0 0
        %5958 = vmatpush2.bf16.msra.mxu0 0
        %5959 = vmatprep.subr.bf16.mxu0 0
        %5960 = vmatpush2.bf16.msra.mxu0 0
        %5961 = vmatprep.subr.bf16.mxu0 0
        %5962 = vmatpush2.bf16.msra.mxu0 0
        %5963 = vmatprep.subr.bf16.mxu0 0
        %5964 = vmatpush2.bf16.msra.mxu0 0
        %5965 = vmatprep.mubr.bf16.mxu0 0
        %5966 = vmatmul.mubr.bf16.gmra.mxu0 %v5931
        %v5967 = vpop.f32.mrf.mxu0
        %v5968 = vadd.f32 0.0, %v5967
        %v5969 = vpop.f32.mrf.mxu0
        %v5970 = vpop.f32.mrf.mxu0
        %v5971 = vadd.f32 0.0, %v5970
        %v5972 = vpop.f32.mrf.mxu0
        %5973 = vdwg.mxu0
        %v5975 = vsel %vm1109, %v5665, 0
        %5977 = vmatprep.subr.bf16.mxu0 0
        %5978 = vmatpush1.bf16.msra.mxu0 0
        %5979 = vmatprep.subr.bf16.mxu0 0
        %5980 = vmatpush1.bf16.msra.mxu0 0
        %5981 = vmatprep.subr.bf16.mxu0 0
        %5982 = vmatpush1.bf16.msra.mxu0 0
        %5983 = vmatprep.subr.bf16.mxu0 0
        %5984 = vmatpush1.bf16.msra.mxu0 0
        %5985 = vmatprep.subr.bf16.mxu0 0
        %5986 = vmatpush1.bf16.msra.mxu0 0
        %5987 = vmatprep.subr.bf16.mxu0 0
        %5988 = vmatpush1.bf16.msra.mxu0 0
        %5989 = vmatprep.subr.bf16.mxu0 0
        %5990 = vmatpush1.bf16.msra.mxu0 0
        %5991 = vmatprep.subr.bf16.mxu0 0
        %5992 = vmatpush1.bf16.msra.mxu0 %v5105
        %5993 = vmatprep.subr.bf16.mxu0 0
        %5994 = vmatpush2.bf16.msra.mxu0 0
        %5995 = vmatprep.subr.bf16.mxu0 0
        %5996 = vmatpush2.bf16.msra.mxu0 0
        %5997 = vmatprep.subr.bf16.mxu0 0
        %5998 = vmatpush2.bf16.msra.mxu0 0
        %5999 = vmatprep.subr.bf16.mxu0 0
        %6000 = vmatpush2.bf16.msra.mxu0 0
        %6001 = vmatprep.subr.bf16.mxu0 0
        %6002 = vmatpush2.bf16.msra.mxu0 0
        %6003 = vmatprep.subr.bf16.mxu0 0
        %6004 = vmatpush2.bf16.msra.mxu0 0
        %6005 = vmatprep.subr.bf16.mxu0 0
        %6006 = vmatpush2.bf16.msra.mxu0 0
        %6007 = vmatprep.subr.bf16.mxu0 0
        %6008 = vmatpush2.bf16.msra.mxu0 0
        %6009 = vmatprep.mubr.bf16.mxu0 0
        %6010 = vmatmul.mubr.bf16.gmra.mxu0 %v5975
        %v6011 = vpop.f32.mrf.mxu0
        %v6012 = vadd.f32 0.0, %v6011
        %v6013 = vpop.f32.mrf.mxu0
        %v6014 = vpop.f32.mrf.mxu0
        %v6015 = vadd.f32 0.0, %v6014
        %v6016 = vpop.f32.mrf.mxu0
        %6017 = vdwg.mxu0
        %v6018 = vpack.c.bf16 %v5707, %v5704
        %v6019 = vpack.c.bf16 %v5751, %v5748
        %v6020 = vpack.c.bf16 %v5795, %v5792
        %v6021 = vpack.c.bf16 %v5839, %v5836
        %v6022 = vpack.c.bf16 %v5883, %v5880
        %v6023 = vpack.c.bf16 %v5927, %v5924
        %v6024 = vpack.c.bf16 %v5971, %v5968
        %v6025 = vpack.c.bf16 %v6015, %v6012
        %s6026 = scalar_lea.vmem %s3, 12
        %v6027 = vld [vmem:[%s6026] sm:$0xf]
        %v6029 = vsel %vm732, %v6018, 0
        %v6032 = vsel %vm732, %v6019, 0
        %v6035 = vsel %vm732, %v6020, 0
        %v6038 = vsel %vm732, %v6021, 0
        %v6041 = vsel %vm732, %v6022, 0
        %v6044 = vsel %vm732, %v6023, 0
        %v6047 = vsel %vm732, %v6024, 0
        %v6050 = vsel %vm732, %v6025, 0
        %v6053 = vsel %vm3007, %v6027, 0
        %6055 = vmatprep.subr.bf16.mxu0 0
        %6056 = vmatpush1.bf16.msra.mxu0 0
        %6057 = vmatprep.subr.bf16.mxu0 0
        %6058 = vmatpush1.bf16.msra.mxu0 0
        %6059 = vmatprep.subr.bf16.mxu0 0
        %6060 = vmatpush1.bf16.msra.mxu0 0
        %6061 = vmatprep.subr.bf16.mxu0 0
        %6062 = vmatpush1.bf16.msra.mxu0 0
        %6063 = vmatprep.subr.bf16.mxu0 0
        %6064 = vmatpush1.bf16.msra.mxu0 0
        %6065 = vmatprep.subr.bf16.mxu0 0
        %6066 = vmatpush1.bf16.msra.mxu0 0
        %6067 = vmatprep.subr.bf16.mxu0 0
        %6068 = vmatpush1.bf16.msra.mxu0 0
        %6069 = vmatprep.subr.bf16.mxu0 0
        %6070 = vmatpush1.bf16.msra.mxu0 %v6053
        %6071 = vmatprep.subr.bf16.mxu0 0
        %6072 = vmatpush2.bf16.msra.mxu0 0
        %6073 = vmatprep.subr.bf16.mxu0 0
        %6074 = vmatpush2.bf16.msra.mxu0 0
        %6075 = vmatprep.subr.bf16.mxu0 0
        %6076 = vmatpush2.bf16.msra.mxu0 0
        %6077 = vmatprep.subr.bf16.mxu0 0
        %6078 = vmatpush2.bf16.msra.mxu0 0
        %6079 = vmatprep.subr.bf16.mxu0 0
        %6080 = vmatpush2.bf16.msra.mxu0 0
        %6081 = vmatprep.subr.bf16.mxu0 0
        %6082 = vmatpush2.bf16.msra.mxu0 0
        %6083 = vmatprep.subr.bf16.mxu0 0
        %6084 = vmatpush2.bf16.msra.mxu0 0
        %6085 = vmatprep.subr.bf16.mxu0 0
        %6086 = vmatpush2.bf16.msra.mxu0 0
        %6087 = vmatprep.mubr.bf16.mxu0 0
        %6088 = vmatmul.mubr.bf16.gmra.mxu0 %v6029
        %v6089 = vpop.f32.mrf.mxu0
        %v6090 = vadd.f32 0.0, %v6089
        %v6091 = vpop.f32.mrf.mxu0
        %v6092 = vpop.f32.mrf.mxu0
        %v6093 = vadd.f32 0.0, %v6092
        %v6094 = vpop.f32.mrf.mxu0
        %6095 = vmatprep.mubr.bf16.mxu0 0
        %6096 = vmatmul.mubr.bf16.gmra.mxu0 %v6032
        %v6097 = vpop.f32.mrf.mxu0
        %v6098 = vadd.f32 0.0, %v6097
        %v6099 = vpop.f32.mrf.mxu0
        %v6100 = vpop.f32.mrf.mxu0
        %v6101 = vadd.f32 0.0, %v6100
        %v6102 = vpop.f32.mrf.mxu0
        %6103 = vmatprep.mubr.bf16.mxu0 0
        %6104 = vmatmul.mubr.bf16.gmra.mxu0 %v6035
        %v6105 = vpop.f32.mrf.mxu0
        %v6106 = vadd.f32 0.0, %v6105
        %v6107 = vpop.f32.mrf.mxu0
        %v6108 = vpop.f32.mrf.mxu0
        %v6109 = vadd.f32 0.0, %v6108
        %v6110 = vpop.f32.mrf.mxu0
        %6111 = vmatprep.mubr.bf16.mxu0 0
        %6112 = vmatmul.mubr.bf16.gmra.mxu0 %v6038
        %v6113 = vpop.f32.mrf.mxu0
        %v6114 = vadd.f32 0.0, %v6113
        %v6115 = vpop.f32.mrf.mxu0
        %v6116 = vpop.f32.mrf.mxu0
        %v6117 = vadd.f32 0.0, %v6116
        %v6118 = vpop.f32.mrf.mxu0
        %6119 = vmatprep.mubr.bf16.mxu0 0
        %6120 = vmatmul.mubr.bf16.gmra.mxu0 %v6041
        %v6121 = vpop.f32.mrf.mxu0
        %v6122 = vadd.f32 0.0, %v6121
        %v6123 = vpop.f32.mrf.mxu0
        %v6124 = vpop.f32.mrf.mxu0
        %v6125 = vadd.f32 0.0, %v6124
        %v6126 = vpop.f32.mrf.mxu0
        %6127 = vmatprep.mubr.bf16.mxu0 0
        %6128 = vmatmul.mubr.bf16.gmra.mxu0 %v6044
        %v6129 = vpop.f32.mrf.mxu0
        %v6130 = vadd.f32 0.0, %v6129
        %v6131 = vpop.f32.mrf.mxu0
        %v6132 = vpop.f32.mrf.mxu0
        %v6133 = vadd.f32 0.0, %v6132
        %v6134 = vpop.f32.mrf.mxu0
        %6135 = vmatprep.mubr.bf16.mxu0 0
        %6136 = vmatmul.mubr.bf16.gmra.mxu0 %v6047
        %v6137 = vpop.f32.mrf.mxu0
        %v6138 = vadd.f32 0.0, %v6137
        %v6139 = vpop.f32.mrf.mxu0
        %v6140 = vpop.f32.mrf.mxu0
        %v6141 = vadd.f32 0.0, %v6140
        %v6142 = vpop.f32.mrf.mxu0
        %6143 = vmatprep.mubr.bf16.mxu0 0
        %6144 = vmatmul.mubr.bf16.gmra.mxu0 %v6050
        %v6145 = vpop.f32.mrf.mxu0
        %v6146 = vadd.f32 0.0, %v6145
        %v6147 = vpop.f32.mrf.mxu0
        %v6148 = vpop.f32.mrf.mxu0
        %v6149 = vadd.f32 0.0, %v6148
        %v6150 = vpop.f32.mrf.mxu0
        %6151 = vdwg.mxu0
        %v6152 = vadd.f32 %v4684, %v6090
        %v6153 = vadd.f32 %v4685, %v6093
        %v6154 = vadd.f32 %v4686, %v6098
        %v6155 = vadd.f32 %v4687, %v6101
        %v6156 = vadd.f32 %v4688, %v6106
        %v6157 = vadd.f32 %v4689, %v6109
        %v6158 = vadd.f32 %v4690, %v6114
        %v6159 = vadd.f32 %v4691, %v6117
        %v6160 = vadd.f32 %v4692, %v6122
        %v6161 = vadd.f32 %v4693, %v6125
        %v6162 = vadd.f32 %v4694, %v6130
        %v6163 = vadd.f32 %v4695, %v6133
        %v6164 = vadd.f32 %v4696, %v6138
        %v6165 = vadd.f32 %v4697, %v6141
        %v6166 = vadd.f32 %v4698, %v6146
        %v6167 = vadd.f32 %v4699, %v6149
        %v6168 = vld [vmem:[%s4] sm:$0x1]
        %v6170 = vlaneseq
        %v6171 = vshrl.u32 %v6170, 7
        %v6172 = vsub.s32 0, %v6171
        %v6173 = vrot.slane %v6168, %v6172
        %v6175 = vadd.f32 %v6152, %v6173
        %v6176 = vadd.f32 %v6153, %v6173
        %v6177 = vadd.f32 %v6154, %v6173
        %v6178 = vadd.f32 %v6155, %v6173
        %v6179 = vadd.f32 %v6156, %v6173
        %v6180 = vadd.f32 %v6157, %v6173
        %v6181 = vadd.f32 %v6158, %v6173
        %v6182 = vadd.f32 %v6159, %v6173
        %v6183 = vadd.f32 %v6160, %v6173
        %v6184 = vadd.f32 %v6161, %v6173
        %v6185 = vadd.f32 %v6162, %v6173
        %v6186 = vadd.f32 %v6163, %v6173
        %v6187 = vadd.f32 %v6164, %v6173
        %v6188 = vadd.f32 %v6165, %v6173
        %v6189 = vadd.f32 %v6166, %v6173
        %v6190 = vadd.f32 %v6167, %v6173
        %6191 = vst.msk [vmem:[%s243] sm:$0xff] %vm336, %v6175
        %6192 = vst.msk [vmem:[%s243 + $0x8] sm:$0xff] %vm336, %v6176
        %6193 = vst.msk [vmem:[%s243 + $0x10] sm:$0xff] %vm336, %v6177
        %6194 = vst.msk [vmem:[%s243 + $0x18] sm:$0xff] %vm336, %v6178
        %6195 = vst.msk [vmem:[%s243 + $0x20] sm:$0xff] %vm336, %v6179
        %6196 = vst.msk [vmem:[%s243 + $0x28] sm:$0xff] %vm336, %v6180
        %6197 = vst.msk [vmem:[%s243 + $0x30] sm:$0xff] %vm336, %v6181
        %6198 = vst.msk [vmem:[%s243 + $0x38] sm:$0xff] %vm336, %v6182
        %6199 = vst.msk [vmem:[%s243 + $0x40] sm:$0xff] %vm336, %v6183
        %6200 = vst.msk [vmem:[%s243 + $0x48] sm:$0xff] %vm336, %v6184
        %6201 = vst.msk [vmem:[%s243 + $0x50] sm:$0xff] %vm336, %v6185
        %6202 = vst.msk [vmem:[%s243 + $0x58] sm:$0xff] %vm336, %v6186
        %6203 = vst.msk [vmem:[%s243 + $0x60] sm:$0xff] %vm336, %v6187
        %6204 = vst.msk [vmem:[%s243 + $0x68] sm:$0xff] %vm336, %v6188
        %6205 = vst.msk [vmem:[%s243 + $0x70] sm:$0xff] %vm336, %v6189
        %6206 = vst.msk [vmem:[%s243 + $0x78] sm:$0xff] %vm336, %v6190
        %s6207 = sand.u32 %s140, 1
        %s6208 = scalar_lea.sflag [#allocation4], %s6207
        %s6209 = sand.u32 %s140, 1
        %s6210 = smul.addr %s6209, 128
        %s6211 = scalar_lea.vmem [#allocation5], %s6210
        // Predicated region
        $region45: #{tpu_custom_call.1} parent=39 // pred_check
          %p6212 = pneg %p150
        $region46: #{tpu_custom_call.1} parent=39 // pred_check_branch
          %6214 = sbr.rel (%p6212) target = $region48
        $region47: #{tpu_custom_call.1} parent=39 // pred_region
          %s6215 = smul.u32 8, %s22
          %s6217 = ssub.s32 2048, 2048
          %6218 = vsyncadd %s6208, %s6217
          %s6219 = smul.addr %s6215, 2
          %s6220 = smul.addr %s6219, 128
          %s6221 = scalar_lea.hbm %s5, %s6220
          %s6222 = sshll.u32 %s6211, 4
          %s6223 = int_to_ptr.vmem [resolvable:$true] %s6222
          %6228 = dma.vmem_to_hbm [thread:$0]  %s6223, 2048, %s6221, %s6208, 128, 128, 8
        $region48: #{tpu_custom_call.1} parent=39 // pred_fallthru
          _
      $region40: #{tpu_custom_call.1} parent=5 // pred_fallthru
        _
      %p6229 = scmp.le.s32.totalorder 2, %s17
      // Predicated region
      $region49: #{tpu_custom_call.1} parent=5 // pred_check
        %p6230 = pneg %p6229
      $region50: #{tpu_custom_call.1} parent=5 // pred_check_branch
        %6232 = sbr.rel (%p6230) target = $region52
      $region51: #{tpu_custom_call.1} parent=5 // pred_region
        %s6233 = ssub.s32 %s17, 2
        // Predicated region
        $region53: #{tpu_custom_call.1} parent=51 // pred_check
          %p6234 = pneg %p156
        $region54: #{tpu_custom_call.1} parent=51 // pred_check_branch
          %6236 = sbr.rel (%p6234) target = $region56
        $region55: #{tpu_custom_call.1} parent=51 // pred_region
          %s6237 = sand.u32 %s141, 1
          %s6238 = scalar_lea.sflag [#allocation4], %s6237
          %s6239 = sand.u32 %s141, 1
          %s6240 = smul.addr %s6239, 128
          %s6241 = scalar_lea.vmem [#allocation5], %s6240
          %6242 = dma.done %s6238, 2048
        $region56: #{tpu_custom_call.1} parent=51 // pred_fallthru
          _
      $region52: #{tpu_custom_call.1} parent=5 // pred_fallthru
        _
    $region6: #{tpu_custom_call.1} parent=1 // loop_footer
      %s21 = sadd.s32 1, %s17
    $region7: #{tpu_custom_call.1} parent=1 // loop_footer_branch
      %16 = sbr.rel target = $region3
    $region8: #{tpu_custom_call.1} parent=1 // loop_exit
      _
    %6243 = vsyncpa [#allocation3], 1
    %s6244 = scalar_lea.sflag [#allocation3], 1
    %6245 = vsyncpa %s6244, 1
    %6246 = vsyncpa [#allocation4], 1
    %s6247 = scalar_lea.sflag [#allocation4], 1
    %6248 = vsyncpa %s6247, 1

</llo_original>
